<compile_context>
chip_gen: v6e
topology: v6e:2x2x1
jax: 0.10.0
libtpu: 0.0.40
codegen_flags: <defaults>
</compile_context>

<pallas_src>
import jax
import jax.numpy as jnp
from jax import lax
from jax.experimental import pallas as pl
from jax.experimental.pallas import tpu as pltpu


BATCH_TILE = 16          # samples per grid step; 16*144 = 2304 lanes (multiple of 256)
NUM_CLASSES = 10
PADDED_CLASSES = 128     # lane-dense logits store; padding sliced off in glue
CONV_CH = 28
POOL_SP = 144            # 12*12 pooled spatial positions per sample


# ----------------------------------------------------------------------------
# Kernel 1: conv (4 wide matmuls over pool offsets) + bias + ReLU + MaxPool2d(2)
# ----------------------------------------------------------------------------
def conv_relu_pool_kernel(p_ref, wc_ref, bc_ref, o_ref):
    # p_ref : (4, 25, B*144)  im2col patches, one slab per 2x2 pool offset;
    #                         lane index = sample*144 + pooled_spatial
    # wc_ref: (28, 25)        conv weights (flattened 5x5 taps)
    # bc_ref: (28, 1)         conv bias
    # o_ref : (28, B*144)     pooled features (lane-dense, 2304 = 9*256)
    w = wc_ref[...]
    c0 = jnp.dot(w, p_ref[0], preferred_element_type=jnp.float32)
    c1 = jnp.dot(w, p_ref[1], preferred_element_type=jnp.float32)
    c2 = jnp.dot(w, p_ref[2], preferred_element_type=jnp.float32)
    c3 = jnp.dot(w, p_ref[3], preferred_element_type=jnp.float32)
    # bias is shared by the 4 pooling candidates and ReLU is monotone, so
    # max -> +bias -> relu  ==  relu(maxpool(conv + bias))
    pooled = jnp.maximum(jnp.maximum(c0, c1), jnp.maximum(c2, c3))
    o_ref[...] = jnp.maximum(pooled + bc_ref[...], 0.0)


# ----------------------------------------------------------------------------
# Kernel 2: Linear(4032 -> 10) as a channel-batched matmul + log_softmax
# ----------------------------------------------------------------------------
def linear_logsoftmax_kernel(f_ref, wl_ref, bl_ref, o_ref):
    # f_ref : (28, B, 144)    pooled features (channel, sample, spatial)
    # wl_ref: (28, 144, 128)  Linear weight, permuted+padded: wl[c,s,o] = W[o, c*144+s]
    # bl_ref: (1, 128)        Linear bias, padded with -1e30 beyond class 10
    # o_ref : (B, 128)        log-softmax logits; classes >= 10 are padding
    part = lax.dot_general(
        f_ref[...], wl_ref[...],
        dimension_numbers=(((2,), (1,)), ((0,), (0,))),   # contract spatial, batch channel
        preferred_element_type=jnp.float32)               # (28, B, 128)
    logits = jnp.sum(part, axis=0) + bl_ref[...]          # (B, 128)
    m = jnp.max(logits, axis=-1, keepdims=True)
    s = logits - m
    lse = jnp.log(jnp.sum(jnp.exp(s), axis=-1, keepdims=True))
    o_ref[...] = s - lse


# ----------------------------------------------------------------------------
# Glue: im2col patch extraction (data rearrangement only; compute stays in kernels)
# ----------------------------------------------------------------------------
def im2col_pool_patches(x):
    # x: (Np, 1, 28, 28) -> (4, 25, Np*144)
    # patches[2a+b, 5kh+kw, n*144 + 12*oh+ow] = x[n, 0, 2*oh+a+kh, 2*ow+b+kw]
    # TODO(synk): extract these patches in-kernel from a VMEM-resident (28,28)
    # image tile to cut the ~18x im2col HBM blow-up (needs strided in-kernel slicing).
    n = x.shape[0]
    xs = x[:, 0]
    offs = []
    for a in range(2):
        for b in range(2):
            taps = []
            for kh in range(5):
                for kw in range(5):
                    win = xs[:, a + kh: a + kh + 24: 2, b + kw: b + kw + 24: 2]  # (Np,12,12)
                    taps.append(win.reshape(n, POOL_SP))
            offs.append(jnp.stack(taps, axis=0))            # (25, Np, 144)
    return jnp.stack(offs, axis=0).reshape(4, 25, n * POOL_SP)


@jax.jit
def cnn_model_forward(x, conv_w, conv_b, lin_w, lin_b):
    n = x.shape[0]
    bt = BATCH_TILE
    n_pad = ((n + bt - 1) // bt) * bt
    x = x.astype(jnp.float32)
    if n_pad != n:
        x = jnp.pad(x, ((0, n_pad - n), (0, 0), (0, 0), (0, 0)))

    patches = im2col_pool_patches(x)                               # (4, 25, Np*144)
    wc_mat = conv_w.reshape(CONV_CH, 25).astype(jnp.float32)       # (28, 25)
    bc_col = conv_b.reshape(CONV_CH, 1).astype(jnp.float32)        # (28, 1)

    grid = (n_pad // bt,)
    cparams = pltpu.CompilerParams(
        dimension_semantics=("parallel",),
        vmem_limit_bytes=32 * 1024 * 1024)

    feats = pl.pallas_call(
        conv_relu_pool_kernel,
        grid=grid,
        in_specs=[
            pl.BlockSpec((4, 25, bt * POOL_SP), lambda i: (0, 0, i)),
            pl.BlockSpec((CONV_CH, 25), lambda i: (0, 0)),
            pl.BlockSpec((CONV_CH, 1), lambda i: (0, 0)),
        ],
        out_specs=pl.BlockSpec((CONV_CH, bt * POOL_SP), lambda i: (0, i)),
        out_shape=jax.ShapeDtypeStruct((CONV_CH, n_pad * POOL_SP), jnp.float32),
        compiler_params=cparams,
    )(patches, wc_mat, bc_col)

    # Metadata-only reshape (no HBM transpose): (28, Np*144) -> (28, Np, 144)
    feats3 = feats.reshape(CONV_CH, n_pad, POOL_SP)

    # Linear weight permuted to (channel, spatial, class) so the kernel contracts
    # the channel-major feature layout directly; classes padded to 128 so the
    # output store is lane-dense.  wl3[c, s, o] = lin_w[o, c*144 + s].
    wl3 = lin_w.astype(jnp.float32).reshape(NUM_CLASSES, CONV_CH, POOL_SP)
    wl3 = jnp.transpose(wl3, (1, 2, 0))                                      # (28,144,10)
    wl3 = jnp.pad(wl3, ((0, 0), (0, 0), (0, PADDED_CLASSES - NUM_CLASSES)))  # (28,144,128)
    bl = jnp.pad(lin_b.astype(jnp.float32), (0, PADDED_CLASSES - NUM_CLASSES),
                 constant_values=-1e30).reshape(1, PADDED_CLASSES)

    out = pl.pallas_call(
        linear_logsoftmax_kernel,
        grid=grid,
        in_specs=[
            pl.BlockSpec((CONV_CH, bt, POOL_SP), lambda i: (0, i, 0)),
            pl.BlockSpec((CONV_CH, POOL_SP, PADDED_CLASSES), lambda i: (0, 0, 0)),
            pl.BlockSpec((1, PADDED_CLASSES), lambda i: (0, 0)),
        ],
        out_specs=pl.BlockSpec((bt, PADDED_CLASSES), lambda i: (i, 0)),
        out_shape=jax.ShapeDtypeStruct((n_pad, PADDED_CLASSES), jnp.float32),
        compiler_params=cparams,
    )(feats3, wl3, bl)

    return out[:n, :NUM_CLASSES]


# ----------------------------------------------------------------------------
# Pure-JAX reference (correctness check only)
# ----------------------------------------------------------------------------
def reference_forward(x, conv_w, conv_b, lin_w, lin_b):
    conv = lax.conv_general_dilated(
        x, conv_w, window_strides=(1, 1), padding="VALID",
        dimension_numbers=("NCHW", "OIHW", "NCHW"),
        precision=lax.Precision.HIGHEST)
    conv = conv + conv_b.reshape(1, 28, 1, 1)
    relu = jnp.maximum(conv, 0.0)
    pooled = lax.reduce_window(relu, -jnp.inf, lax.max,
                               (1, 1, 2, 2), (1, 1, 2, 2), "VALID")
    flat = pooled.reshape(x.shape[0], -1)
    logits = jnp.dot(flat, lin_w.T, precision=lax.Precision.HIGHEST) + lin_b
    return jax.nn.log_softmax(logits, axis=1)


if __name__ == "__main__":
    key = jax.random.PRNGKey(0)
    k1, k2, k3, k4, k5 = jax.random.split(key, 5)

    # Deterministic synthetic parameters (shapes from CNNModel.__init__)
    conv_w = jax.random.normal(k1, (28, 1, 5, 5), jnp.float32) * 0.1       # Conv2d(1, 28, 5)
    conv_b = jax.random.normal(k2, (28,), jnp.float32) * 0.1
    lin_w = jax.random.normal(k3, (10, 28 * 12 * 12), jnp.float32) * 0.02  # Linear(4032, 10)
    lin_b = jax.random.normal(k4, (10,), jnp.float32) * 0.1

    # MNIST-shaped input; batch 32 = 2 grid steps of 16 (exercises megacore sharding).
    x = jax.random.normal(k5, (32, 1, 28, 28), jnp.float32)

    out = jax.block_until_ready(cnn_model_forward(x, conv_w, conv_b, lin_w, lin_b))
    ref = jax.block_until_ready(reference_forward(x, conv_w, conv_b, lin_w, lin_b))
    assert out.shape == (32, 10)
    assert jnp.allclose(out, ref, atol=2e-3, rtol=2e-3), (
        f"max abs diff {float(jnp.max(jnp.abs(out - ref)))}")

    print("KERNEL_OK")
</pallas_src>

<mosaic_0001>
module attributes {stable_mosaic.version = 11 : i64} {
  func.func @conv_relu_pool_kernel(%arg0: i32, %arg1: memref<4x25x2304xf32, #tpu.memory_space<vmem>>, %arg2: memref<28x25xf32, #tpu.memory_space<vmem>>, %arg3: memref<28x1xf32, #tpu.memory_space<vmem>>, %arg4: memref<28x2304xf32, #tpu.memory_space<vmem>>) attributes {dimension_semantics = [#tpu.dimension_semantics<parallel>], iteration_bounds = array<i64: 2>, scalar_prefetch = 0 : i64, scratch_operands = 0 : i64, tpu.core_type = #tpu.core_type<tc>, window_params = [{transform_indices = @transform_0, window_bounds = array<i64: 4, 25, 2304>}, {pipeline_mode = #tpu.pipeline_mode<synchronous>, transform_indices = @transform_1, window_bounds = array<i64: 28, 25>}, {pipeline_mode = #tpu.pipeline_mode<synchronous>, transform_indices = @transform_2, window_bounds = array<i64: 28, 1>}, {transform_indices = @transform_3, window_bounds = array<i64: 28, 2304>}]} {
    %c0 = arith.constant 0 : index
    %c0_0 = arith.constant 0 : index
    %0 = vector.load %arg2[%c0, %c0_0] : memref<28x25xf32, #tpu.memory_space<vmem>>, vector<28x25xf32>
    %c0_1 = arith.constant 0 : index
    %c0_2 = arith.constant 0 : index
    %c0_3 = arith.constant 0 : index
    %1 = vector.load %arg1[%c0_1, %c0_2, %c0_3] : memref<4x25x2304xf32, #tpu.memory_space<vmem>>, vector<1x25x2304xf32>
    %2 = vector.shape_cast %1 : vector<1x25x2304xf32> to vector<25x2304xf32>
    %cst = arith.constant dense<0.000000e+00> : vector<28x2304xf32>
    %3 = tpu.matmul %0, %2, %cst {dimension_numbers = #tpu.dot_dimension_numbers<[1], [0], [0], [1], [0, 0, 1, 1], [], []>} : vector<28x25xf32>, vector<25x2304xf32>, vector<28x2304xf32> -> vector<28x2304xf32>
    %c1 = arith.constant 1 : index
    %c0_4 = arith.constant 0 : index
    %c0_5 = arith.constant 0 : index
    %4 = vector.load %arg1[%c1, %c0_4, %c0_5] : memref<4x25x2304xf32, #tpu.memory_space<vmem>>, vector<1x25x2304xf32>
    %5 = vector.shape_cast %4 : vector<1x25x2304xf32> to vector<25x2304xf32>
    %cst_6 = arith.constant dense<0.000000e+00> : vector<28x2304xf32>
    %6 = tpu.matmul %0, %5, %cst_6 {dimension_numbers = #tpu.dot_dimension_numbers<[1], [0], [0], [1], [0, 0, 1, 1], [], []>} : vector<28x25xf32>, vector<25x2304xf32>, vector<28x2304xf32> -> vector<28x2304xf32>
    %c2 = arith.constant 2 : index
    %c0_7 = arith.constant 0 : index
    %c0_8 = arith.constant 0 : index
    %7 = vector.load %arg1[%c2, %c0_7, %c0_8] : memref<4x25x2304xf32, #tpu.memory_space<vmem>>, vector<1x25x2304xf32>
    %8 = vector.shape_cast %7 : vector<1x25x2304xf32> to vector<25x2304xf32>
    %cst_9 = arith.constant dense<0.000000e+00> : vector<28x2304xf32>
    %9 = tpu.matmul %0, %8, %cst_9 {dimension_numbers = #tpu.dot_dimension_numbers<[1], [0], [0], [1], [0, 0, 1, 1], [], []>} : vector<28x25xf32>, vector<25x2304xf32>, vector<28x2304xf32> -> vector<28x2304xf32>
    %c3 = arith.constant 3 : index
    %c0_10 = arith.constant 0 : index
    %c0_11 = arith.constant 0 : index
    %10 = vector.load %arg1[%c3, %c0_10, %c0_11] : memref<4x25x2304xf32, #tpu.memory_space<vmem>>, vector<1x25x2304xf32>
    %11 = vector.shape_cast %10 : vector<1x25x2304xf32> to vector<25x2304xf32>
    %cst_12 = arith.constant dense<0.000000e+00> : vector<28x2304xf32>
    %12 = tpu.matmul %0, %11, %cst_12 {dimension_numbers = #tpu.dot_dimension_numbers<[1], [0], [0], [1], [0, 0, 1, 1], [], []>} : vector<28x25xf32>, vector<25x2304xf32>, vector<28x2304xf32> -> vector<28x2304xf32>
    %13 = arith.maximumf %3, %6 : vector<28x2304xf32>
    %14 = arith.maximumf %9, %12 : vector<28x2304xf32>
    %15 = arith.maximumf %13, %14 : vector<28x2304xf32>
    %c0_13 = arith.constant 0 : index
    %c0_14 = arith.constant 0 : index
    %16 = vector.load %arg3[%c0_13, %c0_14] : memref<28x1xf32, #tpu.memory_space<vmem>>, vector<28x1xf32>
    %17 = vector.broadcast %16 : vector<28x1xf32> to vector<28x2304xf32>
    %18 = arith.addf %15, %17 : vector<28x2304xf32>
    %cst_15 = arith.constant 0.000000e+00 : f32
    %19 = vector.broadcast %cst_15 : f32 to vector<28x2304xf32>
    %20 = arith.maximumf %18, %19 : vector<28x2304xf32>
    %c0_16 = arith.constant 0 : index
    %c0_17 = arith.constant 0 : index
    %21 = vector.load %arg4[%c0_16, %c0_17] : memref<28x2304xf32, #tpu.memory_space<vmem>>, vector<28x2304xf32>
    tpu.vector_store %arg4[%c0_16, %c0_17], %20 {strides = array<i32>} : memref<28x2304xf32, #tpu.memory_space<vmem>>, vector<28x2304xf32>,
    return
  }
  func.func @transform_0(%arg0: i32) -> (i32, i32, i32) {
    %c0_i32 = arith.constant 0 : i32
    %c0_i32_0 = arith.constant 0 : i32
    %c0_i32_1 = arith.constant 0 : i32
    return %c0_i32, %c0_i32_0, %arg0 : i32, i32, i32
  }
  func.func @transform_1(%arg0: i32) -> (i32, i32) {
    %c0_i32 = arith.constant 0 : i32
    %c0_i32_0 = arith.constant 0 : i32
    %c0_i32_1 = arith.constant 0 : i32
    return %c0_i32, %c0_i32_0 : i32, i32
  }
  func.func @transform_2(%arg0: i32) -> (i32, i32) {
    %c0_i32 = arith.constant 0 : i32
    %c0_i32_0 = arith.constant 0 : i32
    %c0_i32_1 = arith.constant 0 : i32
    return %c0_i32, %c0_i32_0 : i32, i32
  }
  func.func @transform_3(%arg0: i32) -> (i32, i32) {
    %c0_i32 = arith.constant 0 : i32
    %c0_i32_0 = arith.constant 0 : i32
    return %c0_i32, %arg0 : i32, i32
  }
}

module attributes {stable_mosaic.version = 11 : i64} {
  func.func @linear_logsoftmax_kernel(%arg0: i32, %arg1: memref<28x16x144xf32, #tpu.memory_space<vmem>>, %arg2: memref<28x144x128xf32, #tpu.memory_space<vmem>>, %arg3: memref<1x128xf32, #tpu.memory_space<vmem>>, %arg4: memref<16x128xf32, #tpu.memory_space<vmem>>) attributes {dimension_semantics = [#tpu.dimension_semantics<parallel>], iteration_bounds = array<i64: 2>, scalar_prefetch = 0 : i64, scratch_operands = 0 : i64, tpu.core_type = #tpu.core_type<tc>, window_params = [{transform_indices = @transform_0, window_bounds = array<i64: 28, 16, 144>}, {pipeline_mode = #tpu.pipeline_mode<synchronous>, transform_indices = @transform_1, window_bounds = array<i64: 28, 144, 128>}, {pipeline_mode = #tpu.pipeline_mode<synchronous>, transform_indices = @transform_2, window_bounds = array<i64: 1, 128>}, {transform_indices = @transform_3, window_bounds = array<i64: 16, 128>}]} {
    %c0 = arith.constant 0 : index
    %c0_0 = arith.constant 0 : index
    %c0_1 = arith.constant 0 : index
    %0 = vector.load %arg1[%c0, %c0_0, %c0_1] : memref<28x16x144xf32, #tpu.memory_space<vmem>>, vector<28x16x144xf32>
    %c0_2 = arith.constant 0 : index
    %c0_3 = arith.constant 0 : index
    %c0_4 = arith.constant 0 : index
    %1 = vector.load %arg2[%c0_2, %c0_3, %c0_4] : memref<28x144x128xf32, #tpu.memory_space<vmem>>, vector<28x144x128xf32>
    %cst = arith.constant dense<0.000000e+00> : vector<28x16x128xf32>
    %2 = tpu.matmul %0, %1, %cst {dimension_numbers = #tpu.dot_dimension_numbers<[2], [1], [1], [2], [0, 0, 0, 1, 1, 2], [0], [0]>} : vector<28x16x144xf32>, vector<28x144x128xf32>, vector<28x16x128xf32> -> vector<28x16x128xf32>
    %cst_5 = arith.constant dense<0.000000e+00> : vector<16x128xf32>
    %3 = vector.multi_reduction <add>, %2, %cst_5 [0] : vector<28x16x128xf32> to vector<16x128xf32>
    %c0_6 = arith.constant 0 : index
    %c0_7 = arith.constant 0 : index
    %4 = vector.load %arg3[%c0_6, %c0_7] : memref<1x128xf32, #tpu.memory_space<vmem>>, vector<1x128xf32>
    %5 = vector.broadcast %4 : vector<1x128xf32> to vector<16x128xf32>
    %6 = arith.addf %3, %5 : vector<16x128xf32>
    %cst_8 = arith.constant dense<0xFF800000> : vector<16xf32>
    %7 = vector.multi_reduction <maximumf>, %6, %cst_8 [1] : vector<16x128xf32> to vector<16xf32>
    %8 = vector.shape_cast %7 : vector<16xf32> to vector<16x1xf32>
    %9 = vector.broadcast %8 : vector<16x1xf32> to vector<16x128xf32>
    %10 = arith.subf %6, %9 : vector<16x128xf32>
    %11 = math.exp %10 : vector<16x128xf32>
    %cst_9 = arith.constant dense<0.000000e+00> : vector<16xf32>
    %12 = vector.multi_reduction <add>, %11, %cst_9 [1] : vector<16x128xf32> to vector<16xf32>
    %13 = vector.shape_cast %12 : vector<16xf32> to vector<16x1xf32>
    %14 = math.log %13 : vector<16x1xf32>
    %15 = vector.broadcast %14 : vector<16x1xf32> to vector<16x128xf32>
    %16 = arith.subf %10, %15 : vector<16x128xf32>
    %c0_10 = arith.constant 0 : index
    %c0_11 = arith.constant 0 : index
    %17 = vector.load %arg4[%c0_10, %c0_11] : memref<16x128xf32, #tpu.memory_space<vmem>>, vector<16x128xf32>
    tpu.vector_store %arg4[%c0_10, %c0_11], %16 {strides = array<i32>} : memref<16x128xf32, #tpu.memory_space<vmem>>, vector<16x128xf32>,
    return
  }
  func.func @transform_0(%arg0: i32) -> (i32, i32, i32) {
    %c0_i32 = arith.constant 0 : i32
    %c0_i32_0 = arith.constant 0 : i32
    %c0_i32_1 = arith.constant 0 : i32
    return %c0_i32, %arg0, %c0_i32_0 : i32, i32, i32
  }
  func.func @transform_1(%arg0: i32) -> (i32, i32, i32) {
    %c0_i32 = arith.constant 0 : i32
    %c0_i32_0 = arith.constant 0 : i32
    %c0_i32_1 = arith.constant 0 : i32
    %c0_i32_2 = arith.constant 0 : i32
    return %c0_i32, %c0_i32_0, %c0_i32_1 : i32, i32, i32
  }
  func.func @transform_2(%arg0: i32) -> (i32, i32) {
    %c0_i32 = arith.constant 0 : i32
    %c0_i32_0 = arith.constant 0 : i32
    %c0_i32_1 = arith.constant 0 : i32
    return %c0_i32, %c0_i32_0 : i32, i32
  }
  func.func @transform_3(%arg0: i32) -> (i32, i32) {
    %c0_i32 = arith.constant 0 : i32
    %c0_i32_0 = arith.constant 0 : i32
    return %arg0, %c0_i32 : i32, i32
  }
}

</mosaic_0001>

<llo_original>
// kernel: cnn_model_forward.2
$region0: #{cnn_model_forward.2}
  #allocation0 [shape = 'u32[]', space=smem, size = 0x4, offset = 0x4, fixed_abs, tag = 'smem constant byte address 0x4 - core index']
  #allocation1 [shape = 'u32[144,128]{1,0:T(1,128)}', space=vmem, size = 0x12000, scoped, tag = 'internal scratch']
  %s0 = inlined_call_operand.vmem [shape: f32[4,25,4608], index: 0, kind: input, shape index: {}]
  %s1 = inlined_call_operand.vmem [shape: f32[28,25], index: 1, kind: input, shape index: {}]
  %s2 = inlined_call_operand.vmem [shape: f32[28,1], index: 2, kind: input, shape index: {}]
  %s3 = inlined_call_operand.vmem [shape: f32[28,4608], index: 3, kind: output, shape index: {}]
  %s4 = sld [smem:[#allocation0]]
  $region87: #{cnn_model_forward.2} parent=0
    _
  %s6 = ssub.s32 1, %s4
  %s7 = scalar_select 0, %s6, %s4
  $region1: #{cnn_model_forward.2} parent=0
    #allocation2 [shape = 'u8[2359296]{0}', space=vmem, size = 0x240000, scoped, tag = 'input window, operand 0']
    #allocation3 [shape = 'u8[589824]{0}', space=vmem, size = 0x90000, scoped, tag = 'output window, operand 0']
    loop: start=0, step=1, limit=4
    $region2: #{cnn_model_forward.2} parent=1 // loop_pre_header
      _
    $region3: #{cnn_model_forward.2} parent=1 // loop_header
      %s9 = sphi 0, %s13
      %p10 = scmp.ge.s32.totalorder %s9, 4
      %s19 = sphi 0, %s21
      %s22 = sphi 0, %s19
      %s23 = sphi 0, %s22
      %s39 = sphi 0, %s23
      %s43 = sphi 0, %s43
      %s45 = sphi 0, %s43
      %s46 = sphi 0, %s45
      %s60 = sphi 0, %s46
      %s64 = sphi 0, %s64
      %s66 = sphi 0, %s64
      %s67 = sphi 0, %s66
      %s81 = sphi 0, %s67
      %s87 = sphi 0, %s89
      %s90 = sphi 0, %s87
      %s91 = sphi 0, %s90
      %s107 = sphi 0, %s91
    $region4: #{cnn_model_forward.2} parent=1 // loop_header_branch
      %12 = sbr.rel (%p10) target = $region8
    $region5: #{cnn_model_forward.2} parent=1 // loop_body
      %s14 = ssub.s32 %s9, 1
      %s15 = ssub.s32 %s9, 2
      %s16 = sadd.s32 %s9, 1
      %s17 = ssub.s32 %s9, %s16
      %p18 = scmp.eq.s32.totalorder %s17, 0
      %s20 = sadd.s32 %s19, 1
      %s21 = scalar_select %p18, %s19, %s20
      %p24 = pneg %p18
      %p25 = scmp.eq.s32.totalorder %s9, 1
      %p26 = por %p24, %p25
      %p27 = scmp.ne.s32.totalorder %s19, %s22
      %p28 = scmp.eq.s32.totalorder %s9, 0
      %p29 = por %p27, %p28
      %p30 = scmp.ne.s32.totalorder %s19, %s22
      %p31 = scmp.eq.s32.totalorder %s14, 1
      %p32 = por %p30, %p31
      %p33 = scmp.ne.s32.totalorder %s22, %s23
      %p34 = scmp.eq.s32.totalorder %s14, 0
      %p35 = por %p33, %p34
      %p36 = scmp.ne.s32.totalorder %s22, %s23
      %p37 = scmp.eq.s32.totalorder %s15, 1
      %p38 = por %p36, %p37
      %p40 = scmp.ne.s32.totalorder %s23, %s39
      %p41 = scmp.eq.s32.totalorder %s15, 0
      %p42 = por %p40, %p41
      %s44 = sadd.s32 %s43, 1
      %p47 = scmp.eq.s32.totalorder %s9, 1
      %p48 = scmp.ne.s32.totalorder %s43, %s45
      %p49 = scmp.eq.s32.totalorder %s9, 0
      %p50 = por %p48, %p49
      %p51 = scmp.ne.s32.totalorder %s43, %s45
      %p52 = scmp.eq.s32.totalorder %s14, 1
      %p53 = por %p51, %p52
      %p54 = scmp.ne.s32.totalorder %s45, %s46
      %p55 = scmp.eq.s32.totalorder %s14, 0
      %p56 = por %p54, %p55
      %p57 = scmp.ne.s32.totalorder %s45, %s46
      %p58 = scmp.eq.s32.totalorder %s15, 1
      %p59 = por %p57, %p58
      %p61 = scmp.ne.s32.totalorder %s46, %s60
      %p62 = scmp.eq.s32.totalorder %s15, 0
      %p63 = por %p61, %p62
      %s65 = sadd.s32 %s64, 1
      %p68 = scmp.eq.s32.totalorder %s9, 1
      %p69 = scmp.ne.s32.totalorder %s64, %s66
      %p70 = scmp.eq.s32.totalorder %s9, 0
      %p71 = por %p69, %p70
      %p72 = scmp.ne.s32.totalorder %s64, %s66
      %p73 = scmp.eq.s32.totalorder %s14, 1
      %p74 = por %p72, %p73
      %p75 = scmp.ne.s32.totalorder %s66, %s67
      %p76 = scmp.eq.s32.totalorder %s14, 0
      %p77 = por %p75, %p76
      %p78 = scmp.ne.s32.totalorder %s66, %s67
      %p79 = scmp.eq.s32.totalorder %s15, 1
      %p80 = por %p78, %p79
      %p82 = scmp.ne.s32.totalorder %s67, %s81
      %p83 = scmp.eq.s32.totalorder %s15, 0
      %p84 = por %p82, %p83
      %s85 = ssub.s32 %s9, %s16
      %p86 = scmp.eq.s32.totalorder %s85, 0
      %s88 = sadd.s32 %s87, 1
      %s89 = scalar_select %p86, %s87, %s88
      %p92 = pneg %p86
      %p93 = scmp.eq.s32.totalorder %s9, 1
      %p94 = por %p92, %p93
      %p95 = scmp.ne.s32.totalorder %s87, %s90
      %p96 = scmp.eq.s32.totalorder %s9, 0
      %p97 = por %p95, %p96
      %p98 = scmp.ne.s32.totalorder %s87, %s90
      %p99 = scmp.eq.s32.totalorder %s14, 1
      %p100 = por %p98, %p99
      %p101 = scmp.ne.s32.totalorder %s90, %s91
      %p102 = scmp.eq.s32.totalorder %s14, 0
      %p103 = por %p101, %p102
      %p104 = scmp.ne.s32.totalorder %s90, %s91
      %p105 = scmp.eq.s32.totalorder %s15, 1
      %p106 = por %p104, %p105
      %p108 = scmp.ne.s32.totalorder %s91, %s107
      %p109 = scmp.eq.s32.totalorder %s15, 0
      %p110 = por %p108, %p109
      %p111 = scmp.le.s32.totalorder 1, %s9
      %p112 = scmp.lt.s32.totalorder %s9, 3
      %p113 = pnand %p111, %p112
      %p114 = pneg %p113
      // Predicated region
      $region9: #{cnn_model_forward.2} parent=5 // pred_check
        _
      $region10: #{cnn_model_forward.2} parent=5 // pred_check_branch
        %116 = sbr.rel (%p113) target = $region12
      $region11: #{cnn_model_forward.2} parent=5 // pred_region
        %s117 = ssub.s32 %s9, 1
        // Predicated region
        $region13: #{cnn_model_forward.2} parent=11 // pred_check
          %p118 = pneg %p56
        $region14: #{cnn_model_forward.2} parent=11 // pred_check_branch
          %120 = sbr.rel (%p118) target = $region16
        $region15: #{cnn_model_forward.2} parent=11 // pred_region
          _
        $region16: #{cnn_model_forward.2} parent=11 // pred_fallthru
          _
        // Predicated region
        $region17: #{cnn_model_forward.2} parent=11 // pred_check
          %p121 = pneg %p77
        $region18: #{cnn_model_forward.2} parent=11 // pred_check_branch
          %123 = sbr.rel (%p121) target = $region20
        $region19: #{cnn_model_forward.2} parent=11 // pred_region
          _
        $region20: #{cnn_model_forward.2} parent=11 // pred_fallthru
          _
      $region12: #{cnn_model_forward.2} parent=5 // pred_fallthru
        _
      %p124 = scmp.lt.s32.totalorder %s9, 2
      // Predicated region
      $region21: #{cnn_model_forward.2} parent=5 // pred_check
        %p125 = pneg %p124
      $region22: #{cnn_model_forward.2} parent=5 // pred_check_branch
        %127 = sbr.rel (%p125) target = $region24
      $region23: #{cnn_model_forward.2} parent=5 // pred_region
        // Predicated region
        $region25: #{cnn_model_forward.2} parent=23 // pred_check
          %p128 = pneg %p29
        $region26: #{cnn_model_forward.2} parent=23 // pred_check_branch
          %130 = sbr.rel (%p128) target = $region28
        $region27: #{cnn_model_forward.2} parent=23 // pred_region
          %s131 = sand.u32 %s19, 1
          %s132 = sand.u32 %s19, 1
          %s133 = smul.addr %s132, 2304
          %s134 = scalar_lea.vmem [#allocation2], %s133
          %s135 = smul.u32 18, %s9
          %s136 = smul.addr %s135, 8
          %s137 = scalar_lea.vmem %s0, %s136
          // Predicated region
          $region29: #{cnn_model_forward.2} parent=27 // pred_check
            _
          $region30: #{cnn_model_forward.2} parent=27 // pred_check_branch
            %139 = sbr.rel (0) target = $region32
          $region31: #{cnn_model_forward.2} parent=27 // pred_region
            // Predicated region
            $region33: #{cnn_model_forward.2} parent=31 // pred_check
              _
            $region34: #{cnn_model_forward.2} parent=31 // pred_check_branch
              %141 = sbr.rel (0) target = $region36
            $region35: #{cnn_model_forward.2} parent=31 // pred_region
              loop: start=0, step=1, limit=1
              $region37: #{cnn_model_forward.2} parent=35 // loop_pre_header
                _
              $region38: #{cnn_model_forward.2} parent=35 // loop_header
                %s143 = sphi 0, %s147
                %p144 = scmp.ge.s32.totalorder %s143, 1
                %s148 = sphi %s137, %s137
                %s149 = sphi %s134, %s134
              $region39: #{cnn_model_forward.2} parent=35 // loop_header_branch
                %146 = sbr.rel (%p144) target = $region43
              $region40: #{cnn_model_forward.2} parent=35 // loop_body
                %v150 = vld [vmem:[%s148] sm:$0xff]
                %151 = vst [vmem:[%s149] sm:$0xff] %v150
                %v152 = vld [vmem:[%s148 + $0x8] sm:$0xff]
                %153 = vst [vmem:[%s149 + $0x8] sm:$0xff] %v152
                %v154 = vld [vmem:[%s148 + $0x10] sm:$0xff]
                %155 = vst [vmem:[%s149 + $0x10] sm:$0xff] %v154
                %v156 = vld [vmem:[%s148 + $0x18] sm:$0xff]
                %157 = vst [vmem:[%s149 + $0x18] sm:$0xff] %v156
                %v158 = vld [vmem:[%s148 + $0x20] sm:$0xff]
                %159 = vst [vmem:[%s149 + $0x20] sm:$0xff] %v158
                %v160 = vld [vmem:[%s148 + $0x28] sm:$0xff]
                %161 = vst [vmem:[%s149 + $0x28] sm:$0xff] %v160
                %v162 = vld [vmem:[%s148 + $0x30] sm:$0xff]
                %163 = vst [vmem:[%s149 + $0x30] sm:$0xff] %v162
                %v164 = vld [vmem:[%s148 + $0x38] sm:$0xff]
                %165 = vst [vmem:[%s149 + $0x38] sm:$0xff] %v164
                %v166 = vld [vmem:[%s148 + $0x40] sm:$0xff]
                %167 = vst [vmem:[%s149 + $0x40] sm:$0xff] %v166
                %v168 = vld [vmem:[%s148 + $0x48] sm:$0xff]
                %169 = vst [vmem:[%s149 + $0x48] sm:$0xff] %v168
                %v170 = vld [vmem:[%s148 + $0x50] sm:$0xff]
                %171 = vst [vmem:[%s149 + $0x50] sm:$0xff] %v170
                %v172 = vld [vmem:[%s148 + $0x58] sm:$0xff]
                %173 = vst [vmem:[%s149 + $0x58] sm:$0xff] %v172
                %v174 = vld [vmem:[%s148 + $0x60] sm:$0xff]
                %175 = vst [vmem:[%s149 + $0x60] sm:$0xff] %v174
                %v176 = vld [vmem:[%s148 + $0x68] sm:$0xff]
                %177 = vst [vmem:[%s149 + $0x68] sm:$0xff] %v176
                %v178 = vld [vmem:[%s148 + $0x70] sm:$0xff]
                %179 = vst [vmem:[%s149 + $0x70] sm:$0xff] %v178
                %v180 = vld [vmem:[%s148 + $0x78] sm:$0xff]
                %181 = vst [vmem:[%s149 + $0x78] sm:$0xff] %v180
                %v182 = vld [vmem:[%s148 + $0x80] sm:$0xff]
                %183 = vst [vmem:[%s149 + $0x80] sm:$0xff] %v182
                %v184 = vld [vmem:[%s148 + $0x88] sm:$0xff]
                %185 = vst [vmem:[%s149 + $0x88] sm:$0xff] %v184
                %v186 = vld [vmem:[%s148 + $0x120] sm:$0xff]
                %187 = vst [vmem:[%s149 + $0x90] sm:$0xff] %v186
                %v188 = vld [vmem:[%s148 + $0x128] sm:$0xff]
                %189 = vst [vmem:[%s149 + $0x98] sm:$0xff] %v188
                %v190 = vld [vmem:[%s148 + $0x130] sm:$0xff]
                %191 = vst [vmem:[%s149 + $0xa0] sm:$0xff] %v190
                %v192 = vld [vmem:[%s148 + $0x138] sm:$0xff]
                %193 = vst [vmem:[%s149 + $0xa8] sm:$0xff] %v192
                %v194 = vld [vmem:[%s148 + $0x140] sm:$0xff]
                %195 = vst [vmem:[%s149 + $0xb0] sm:$0xff] %v194
                %v196 = vld [vmem:[%s148 + $0x148] sm:$0xff]
                %197 = vst [vmem:[%s149 + $0xb8] sm:$0xff] %v196
                %v198 = vld [vmem:[%s148 + $0x150] sm:$0xff]
                %199 = vst [vmem:[%s149 + $0xc0] sm:$0xff] %v198
                %v200 = vld [vmem:[%s148 + $0x158] sm:$0xff]
                %201 = vst [vmem:[%s149 + $0xc8] sm:$0xff] %v200
                %v202 = vld [vmem:[%s148 + $0x160] sm:$0xff]
                %203 = vst [vmem:[%s149 + $0xd0] sm:$0xff] %v202
                %v204 = vld [vmem:[%s148 + $0x168] sm:$0xff]
                %205 = vst [vmem:[%s149 + $0xd8] sm:$0xff] %v204
                %v206 = vld [vmem:[%s148 + $0x170] sm:$0xff]
                %207 = vst [vmem:[%s149 + $0xe0] sm:$0xff] %v206
                %v208 = vld [vmem:[%s148 + $0x178] sm:$0xff]
                %209 = vst [vmem:[%s149 + $0xe8] sm:$0xff] %v208
                %v210 = vld [vmem:[%s148 + $0x180] sm:$0xff]
                %211 = vst [vmem:[%s149 + $0xf0] sm:$0xff] %v210
                %v212 = vld [vmem:[%s148 + $0x188] sm:$0xff]
                %213 = vst [vmem:[%s149 + $0xf8] sm:$0xff] %v212
                %v214 = vld [vmem:[%s148 + $0x190] sm:$0xff]
                %215 = vst [vmem:[%s149 + $0x100] sm:$0xff] %v214
                %v216 = vld [vmem:[%s148 + $0x198] sm:$0xff]
                %217 = vst [vmem:[%s149 + $0x108] sm:$0xff] %v216
                %v218 = vld [vmem:[%s148 + $0x1a0] sm:$0xff]
                %219 = vst [vmem:[%s149 + $0x110] sm:$0xff] %v218
                %v220 = vld [vmem:[%s148 + $0x1a8] sm:$0xff]
                %221 = vst [vmem:[%s149 + $0x118] sm:$0xff] %v220
                %v222 = vld [vmem:[%s148 + $0x240] sm:$0xff]
                %223 = vst [vmem:[%s149 + $0x120] sm:$0xff] %v222
                %v224 = vld [vmem:[%s148 + $0x248] sm:$0xff]
                %225 = vst [vmem:[%s149 + $0x128] sm:$0xff] %v224
                %v226 = vld [vmem:[%s148 + $0x250] sm:$0xff]
                %227 = vst [vmem:[%s149 + $0x130] sm:$0xff] %v226
                %v228 = vld [vmem:[%s148 + $0x258] sm:$0xff]
                %229 = vst [vmem:[%s149 + $0x138] sm:$0xff] %v228
                %v230 = vld [vmem:[%s148 + $0x260] sm:$0xff]
                %231 = vst [vmem:[%s149 + $0x140] sm:$0xff] %v230
                %v232 = vld [vmem:[%s148 + $0x268] sm:$0xff]
                %233 = vst [vmem:[%s149 + $0x148] sm:$0xff] %v232
                %v234 = vld [vmem:[%s148 + $0x270] sm:$0xff]
                %235 = vst [vmem:[%s149 + $0x150] sm:$0xff] %v234
                %v236 = vld [vmem:[%s148 + $0x278] sm:$0xff]
                %237 = vst [vmem:[%s149 + $0x158] sm:$0xff] %v236
                %v238 = vld [vmem:[%s148 + $0x280] sm:$0xff]
                %239 = vst [vmem:[%s149 + $0x160] sm:$0xff] %v238
                %v240 = vld [vmem:[%s148 + $0x288] sm:$0xff]
                %241 = vst [vmem:[%s149 + $0x168] sm:$0xff] %v240
                %v242 = vld [vmem:[%s148 + $0x290] sm:$0xff]
                %243 = vst [vmem:[%s149 + $0x170] sm:$0xff] %v242
                %v244 = vld [vmem:[%s148 + $0x298] sm:$0xff]
                %245 = vst [vmem:[%s149 + $0x178] sm:$0xff] %v244
                %v246 = vld [vmem:[%s148 + $0x2a0] sm:$0xff]
                %247 = vst [vmem:[%s149 + $0x180] sm:$0xff] %v246
                %v248 = vld [vmem:[%s148 + $0x2a8] sm:$0xff]
                %249 = vst [vmem:[%s149 + $0x188] sm:$0xff] %v248
                %v250 = vld [vmem:[%s148 + $0x2b0] sm:$0xff]
                %251 = vst [vmem:[%s149 + $0x190] sm:$0xff] %v250
                %v252 = vld [vmem:[%s148 + $0x2b8] sm:$0xff]
                %253 = vst [vmem:[%s149 + $0x198] sm:$0xff] %v252
                %v254 = vld [vmem:[%s148 + $0x2c0] sm:$0xff]
                %255 = vst [vmem:[%s149 + $0x1a0] sm:$0xff] %v254
                %v256 = vld [vmem:[%s148 + $0x2c8] sm:$0xff]
                %257 = vst [vmem:[%s149 + $0x1a8] sm:$0xff] %v256
                %v258 = vld [vmem:[%s148 + $0x360] sm:$0xff]
                %259 = vst [vmem:[%s149 + $0x1b0] sm:$0xff] %v258
                %v260 = vld [vmem:[%s148 + $0x368] sm:$0xff]
                %261 = vst [vmem:[%s149 + $0x1b8] sm:$0xff] %v260
                %v262 = vld [vmem:[%s148 + $0x370] sm:$0xff]
                %263 = vst [vmem:[%s149 + $0x1c0] sm:$0xff] %v262
                %v264 = vld [vmem:[%s148 + $0x378] sm:$0xff]
                %265 = vst [vmem:[%s149 + $0x1c8] sm:$0xff] %v264
                %v266 = vld [vmem:[%s148 + $0x380] sm:$0xff]
                %267 = vst [vmem:[%s149 + $0x1d0] sm:$0xff] %v266
                %v268 = vld [vmem:[%s148 + $0x388] sm:$0xff]
                %269 = vst [vmem:[%s149 + $0x1d8] sm:$0xff] %v268
                %v270 = vld [vmem:[%s148 + $0x390] sm:$0xff]
                %271 = vst [vmem:[%s149 + $0x1e0] sm:$0xff] %v270
                %v272 = vld [vmem:[%s148 + $0x398] sm:$0xff]
                %273 = vst [vmem:[%s149 + $0x1e8] sm:$0xff] %v272
                %v274 = vld [vmem:[%s148 + $0x3a0] sm:$0xff]
                %275 = vst [vmem:[%s149 + $0x1f0] sm:$0xff] %v274
                %v276 = vld [vmem:[%s148 + $0x3a8] sm:$0xff]
                %277 = vst [vmem:[%s149 + $0x1f8] sm:$0xff] %v276
                %v278 = vld [vmem:[%s148 + $0x3b0] sm:$0xff]
                %279 = vst [vmem:[%s149 + $0x200] sm:$0xff] %v278
                %v280 = vld [vmem:[%s148 + $0x3b8] sm:$0xff]
                %281 = vst [vmem:[%s149 + $0x208] sm:$0xff] %v280
                %v282 = vld [vmem:[%s148 + $0x3c0] sm:$0xff]
                %283 = vst [vmem:[%s149 + $0x210] sm:$0xff] %v282
                %v284 = vld [vmem:[%s148 + $0x3c8] sm:$0xff]
                %285 = vst [vmem:[%s149 + $0x218] sm:$0xff] %v284
                %v286 = vld [vmem:[%s148 + $0x3d0] sm:$0xff]
                %287 = vst [vmem:[%s149 + $0x220] sm:$0xff] %v286
                %v288 = vld [vmem:[%s148 + $0x3d8] sm:$0xff]
                %289 = vst [vmem:[%s149 + $0x228] sm:$0xff] %v288
                %v290 = vld [vmem:[%s148 + $0x3e0] sm:$0xff]
                %291 = vst [vmem:[%s149 + $0x230] sm:$0xff] %v290
                %v292 = vld [vmem:[%s148 + $0x3e8] sm:$0xff]
                %293 = vst [vmem:[%s149 + $0x238] sm:$0xff] %v292
                %v294 = vld [vmem:[%s148 + $0x480] sm:$0xff]
                %295 = vst [vmem:[%s149 + $0x240] sm:$0xff] %v294
                %v296 = vld [vmem:[%s148 + $0x488] sm:$0xff]
                %297 = vst [vmem:[%s149 + $0x248] sm:$0xff] %v296
                %v298 = vld [vmem:[%s148 + $0x490] sm:$0xff]
                %299 = vst [vmem:[%s149 + $0x250] sm:$0xff] %v298
                %v300 = vld [vmem:[%s148 + $0x498] sm:$0xff]
                %301 = vst [vmem:[%s149 + $0x258] sm:$0xff] %v300
                %v302 = vld [vmem:[%s148 + $0x4a0] sm:$0xff]
                %303 = vst [vmem:[%s149 + $0x260] sm:$0xff] %v302
                %v304 = vld [vmem:[%s148 + $0x4a8] sm:$0xff]
                %305 = vst [vmem:[%s149 + $0x268] sm:$0xff] %v304
                %v306 = vld [vmem:[%s148 + $0x4b0] sm:$0xff]
                %307 = vst [vmem:[%s149 + $0x270] sm:$0xff] %v306
                %v308 = vld [vmem:[%s148 + $0x4b8] sm:$0xff]
                %309 = vst [vmem:[%s149 + $0x278] sm:$0xff] %v308
                %v310 = vld [vmem:[%s148 + $0x4c0] sm:$0xff]
                %311 = vst [vmem:[%s149 + $0x280] sm:$0xff] %v310
                %v312 = vld [vmem:[%s148 + $0x4c8] sm:$0xff]
                %313 = vst [vmem:[%s149 + $0x288] sm:$0xff] %v312
                %v314 = vld [vmem:[%s148 + $0x4d0] sm:$0xff]
                %315 = vst [vmem:[%s149 + $0x290] sm:$0xff] %v314
                %v316 = vld [vmem:[%s148 + $0x4d8] sm:$0xff]
                %317 = vst [vmem:[%s149 + $0x298] sm:$0xff] %v316
                %v318 = vld [vmem:[%s148 + $0x4e0] sm:$0xff]
                %319 = vst [vmem:[%s149 + $0x2a0] sm:$0xff] %v318
                %v320 = vld [vmem:[%s148 + $0x4e8] sm:$0xff]
                %321 = vst [vmem:[%s149 + $0x2a8] sm:$0xff] %v320
                %v322 = vld [vmem:[%s148 + $0x4f0] sm:$0xff]
                %323 = vst [vmem:[%s149 + $0x2b0] sm:$0xff] %v322
                %v324 = vld [vmem:[%s148 + $0x4f8] sm:$0xff]
                %325 = vst [vmem:[%s149 + $0x2b8] sm:$0xff] %v324
                %v326 = vld [vmem:[%s148 + $0x500] sm:$0xff]
                %327 = vst [vmem:[%s149 + $0x2c0] sm:$0xff] %v326
                %v328 = vld [vmem:[%s148 + $0x508] sm:$0xff]
                %329 = vst [vmem:[%s149 + $0x2c8] sm:$0xff] %v328
                %v330 = vld [vmem:[%s148 + $0x5a0] sm:$0xff]
                %331 = vst [vmem:[%s149 + $0x2d0] sm:$0xff] %v330
                %v332 = vld [vmem:[%s148 + $0x5a8] sm:$0xff]
                %333 = vst [vmem:[%s149 + $0x2d8] sm:$0xff] %v332
                %v334 = vld [vmem:[%s148 + $0x5b0] sm:$0xff]
                %335 = vst [vmem:[%s149 + $0x2e0] sm:$0xff] %v334
                %v336 = vld [vmem:[%s148 + $0x5b8] sm:$0xff]
                %337 = vst [vmem:[%s149 + $0x2e8] sm:$0xff] %v336
                %v338 = vld [vmem:[%s148 + $0x5c0] sm:$0xff]
                %339 = vst [vmem:[%s149 + $0x2f0] sm:$0xff] %v338
                %v340 = vld [vmem:[%s148 + $0x5c8] sm:$0xff]
                %341 = vst [vmem:[%s149 + $0x2f8] sm:$0xff] %v340
                %v342 = vld [vmem:[%s148 + $0x5d0] sm:$0xff]
                %343 = vst [vmem:[%s149 + $0x300] sm:$0xff] %v342
                %v344 = vld [vmem:[%s148 + $0x5d8] sm:$0xff]
                %345 = vst [vmem:[%s149 + $0x308] sm:$0xff] %v344
                %v346 = vld [vmem:[%s148 + $0x5e0] sm:$0xff]
                %347 = vst [vmem:[%s149 + $0x310] sm:$0xff] %v346
                %v348 = vld [vmem:[%s148 + $0x5e8] sm:$0xff]
                %349 = vst [vmem:[%s149 + $0x318] sm:$0xff] %v348
                %v350 = vld [vmem:[%s148 + $0x5f0] sm:$0xff]
                %351 = vst [vmem:[%s149 + $0x320] sm:$0xff] %v350
                %v352 = vld [vmem:[%s148 + $0x5f8] sm:$0xff]
                %353 = vst [vmem:[%s149 + $0x328] sm:$0xff] %v352
                %v354 = vld [vmem:[%s148 + $0x600] sm:$0xff]
                %355 = vst [vmem:[%s149 + $0x330] sm:$0xff] %v354
                %v356 = vld [vmem:[%s148 + $0x608] sm:$0xff]
                %357 = vst [vmem:[%s149 + $0x338] sm:$0xff] %v356
                %v358 = vld [vmem:[%s148 + $0x610] sm:$0xff]
                %359 = vst [vmem:[%s149 + $0x340] sm:$0xff] %v358
                %v360 = vld [vmem:[%s148 + $0x618] sm:$0xff]
                %361 = vst [vmem:[%s149 + $0x348] sm:$0xff] %v360
                %v362 = vld [vmem:[%s148 + $0x620] sm:$0xff]
                %363 = vst [vmem:[%s149 + $0x350] sm:$0xff] %v362
                %v364 = vld [vmem:[%s148 + $0x628] sm:$0xff]
                %365 = vst [vmem:[%s149 + $0x358] sm:$0xff] %v364
                %v366 = vld [vmem:[%s148 + $0x6c0] sm:$0xff]
                %367 = vst [vmem:[%s149 + $0x360] sm:$0xff] %v366
                %v368 = vld [vmem:[%s148 + $0x6c8] sm:$0xff]
                %369 = vst [vmem:[%s149 + $0x368] sm:$0xff] %v368
                %v370 = vld [vmem:[%s148 + $0x6d0] sm:$0xff]
                %371 = vst [vmem:[%s149 + $0x370] sm:$0xff] %v370
                %v372 = vld [vmem:[%s148 + $0x6d8] sm:$0xff]
                %373 = vst [vmem:[%s149 + $0x378] sm:$0xff] %v372
                %v374 = vld [vmem:[%s148 + $0x6e0] sm:$0xff]
                %375 = vst [vmem:[%s149 + $0x380] sm:$0xff] %v374
                %v376 = vld [vmem:[%s148 + $0x6e8] sm:$0xff]
                %377 = vst [vmem:[%s149 + $0x388] sm:$0xff] %v376
                %v378 = vld [vmem:[%s148 + $0x6f0] sm:$0xff]
                %379 = vst [vmem:[%s149 + $0x390] sm:$0xff] %v378
                %v380 = vld [vmem:[%s148 + $0x6f8] sm:$0xff]
                %381 = vst [vmem:[%s149 + $0x398] sm:$0xff] %v380
                %v382 = vld [vmem:[%s148 + $0x700] sm:$0xff]
                %383 = vst [vmem:[%s149 + $0x3a0] sm:$0xff] %v382
                %v384 = vld [vmem:[%s148 + $0x708] sm:$0xff]
                %385 = vst [vmem:[%s149 + $0x3a8] sm:$0xff] %v384
                %v386 = vld [vmem:[%s148 + $0x710] sm:$0xff]
                %387 = vst [vmem:[%s149 + $0x3b0] sm:$0xff] %v386
                %v388 = vld [vmem:[%s148 + $0x718] sm:$0xff]
                %389 = vst [vmem:[%s149 + $0x3b8] sm:$0xff] %v388
                %v390 = vld [vmem:[%s148 + $0x720] sm:$0xff]
                %391 = vst [vmem:[%s149 + $0x3c0] sm:$0xff] %v390
                %v392 = vld [vmem:[%s148 + $0x728] sm:$0xff]
                %393 = vst [vmem:[%s149 + $0x3c8] sm:$0xff] %v392
                %v394 = vld [vmem:[%s148 + $0x730] sm:$0xff]
                %395 = vst [vmem:[%s149 + $0x3d0] sm:$0xff] %v394
                %v396 = vld [vmem:[%s148 + $0x738] sm:$0xff]
                %397 = vst [vmem:[%s149 + $0x3d8] sm:$0xff] %v396
                %v398 = vld [vmem:[%s148 + $0x740] sm:$0xff]
                %399 = vst [vmem:[%s149 + $0x3e0] sm:$0xff] %v398
                %v400 = vld [vmem:[%s148 + $0x748] sm:$0xff]
                %401 = vst [vmem:[%s149 + $0x3e8] sm:$0xff] %v400
                %v402 = vld [vmem:[%s148 + $0x7e0] sm:$0xff]
                %403 = vst [vmem:[%s149 + $0x3f0] sm:$0xff] %v402
                %v404 = vld [vmem:[%s148 + $0x7e8] sm:$0xff]
                %405 = vst [vmem:[%s149 + $0x3f8] sm:$0xff] %v404
                %v406 = vld [vmem:[%s148 + $0x7f0] sm:$0xff]
                %407 = vst [vmem:[%s149 + $0x400] sm:$0xff] %v406
                %v408 = vld [vmem:[%s148 + $0x7f8] sm:$0xff]
                %409 = vst [vmem:[%s149 + $0x408] sm:$0xff] %v408
                %v410 = vld [vmem:[%s148 + $0x800] sm:$0xff]
                %411 = vst [vmem:[%s149 + $0x410] sm:$0xff] %v410
                %v412 = vld [vmem:[%s148 + $0x808] sm:$0xff]
                %413 = vst [vmem:[%s149 + $0x418] sm:$0xff] %v412
                %v414 = vld [vmem:[%s148 + $0x810] sm:$0xff]
                %415 = vst [vmem:[%s149 + $0x420] sm:$0xff] %v414
                %v416 = vld [vmem:[%s148 + $0x818] sm:$0xff]
                %417 = vst [vmem:[%s149 + $0x428] sm:$0xff] %v416
                %v418 = vld [vmem:[%s148 + $0x820] sm:$0xff]
                %419 = vst [vmem:[%s149 + $0x430] sm:$0xff] %v418
                %v420 = vld [vmem:[%s148 + $0x828] sm:$0xff]
                %421 = vst [vmem:[%s149 + $0x438] sm:$0xff] %v420
                %v422 = vld [vmem:[%s148 + $0x830] sm:$0xff]
                %423 = vst [vmem:[%s149 + $0x440] sm:$0xff] %v422
                %v424 = vld [vmem:[%s148 + $0x838] sm:$0xff]
                %425 = vst [vmem:[%s149 + $0x448] sm:$0xff] %v424
                %v426 = vld [vmem:[%s148 + $0x840] sm:$0xff]
                %427 = vst [vmem:[%s149 + $0x450] sm:$0xff] %v426
                %v428 = vld [vmem:[%s148 + $0x848] sm:$0xff]
                %429 = vst [vmem:[%s149 + $0x458] sm:$0xff] %v428
                %v430 = vld [vmem:[%s148 + $0x850] sm:$0xff]
                %431 = vst [vmem:[%s149 + $0x460] sm:$0xff] %v430
                %v432 = vld [vmem:[%s148 + $0x858] sm:$0xff]
                %433 = vst [vmem:[%s149 + $0x468] sm:$0xff] %v432
                %v434 = vld [vmem:[%s148 + $0x860] sm:$0xff]
                %435 = vst [vmem:[%s149 + $0x470] sm:$0xff] %v434
                %v436 = vld [vmem:[%s148 + $0x868] sm:$0xff]
                %437 = vst [vmem:[%s149 + $0x478] sm:$0xff] %v436
                %v438 = vld [vmem:[%s148 + $0x900] sm:$0xff]
                %439 = vst [vmem:[%s149 + $0x480] sm:$0xff] %v438
                %v440 = vld [vmem:[%s148 + $0x908] sm:$0xff]
                %441 = vst [vmem:[%s149 + $0x488] sm:$0xff] %v440
                %v442 = vld [vmem:[%s148 + $0x910] sm:$0xff]
                %443 = vst [vmem:[%s149 + $0x490] sm:$0xff] %v442
                %v444 = vld [vmem:[%s148 + $0x918] sm:$0xff]
                %445 = vst [vmem:[%s149 + $0x498] sm:$0xff] %v444
                %v446 = vld [vmem:[%s148 + $0x920] sm:$0xff]
                %447 = vst [vmem:[%s149 + $0x4a0] sm:$0xff] %v446
                %v448 = vld [vmem:[%s148 + $0x928] sm:$0xff]
                %449 = vst [vmem:[%s149 + $0x4a8] sm:$0xff] %v448
                %v450 = vld [vmem:[%s148 + $0x930] sm:$0xff]
                %451 = vst [vmem:[%s149 + $0x4b0] sm:$0xff] %v450
                %v452 = vld [vmem:[%s148 + $0x938] sm:$0xff]
                %453 = vst [vmem:[%s149 + $0x4b8] sm:$0xff] %v452
                %v454 = vld [vmem:[%s148 + $0x940] sm:$0xff]
                %455 = vst [vmem:[%s149 + $0x4c0] sm:$0xff] %v454
                %v456 = vld [vmem:[%s148 + $0x948] sm:$0xff]
                %457 = vst [vmem:[%s149 + $0x4c8] sm:$0xff] %v456
                %v458 = vld [vmem:[%s148 + $0x950] sm:$0xff]
                %459 = vst [vmem:[%s149 + $0x4d0] sm:$0xff] %v458
                %v460 = vld [vmem:[%s148 + $0x958] sm:$0xff]
                %461 = vst [vmem:[%s149 + $0x4d8] sm:$0xff] %v460
                %v462 = vld [vmem:[%s148 + $0x960] sm:$0xff]
                %463 = vst [vmem:[%s149 + $0x4e0] sm:$0xff] %v462
                %v464 = vld [vmem:[%s148 + $0x968] sm:$0xff]
                %465 = vst [vmem:[%s149 + $0x4e8] sm:$0xff] %v464
                %v466 = vld [vmem:[%s148 + $0x970] sm:$0xff]
                %467 = vst [vmem:[%s149 + $0x4f0] sm:$0xff] %v466
                %v468 = vld [vmem:[%s148 + $0x978] sm:$0xff]
                %469 = vst [vmem:[%s149 + $0x4f8] sm:$0xff] %v468
                %v470 = vld [vmem:[%s148 + $0x980] sm:$0xff]
                %471 = vst [vmem:[%s149 + $0x500] sm:$0xff] %v470
                %v472 = vld [vmem:[%s148 + $0x988] sm:$0xff]
                %473 = vst [vmem:[%s149 + $0x508] sm:$0xff] %v472
                %v474 = vld [vmem:[%s148 + $0xa20] sm:$0xff]
                %475 = vst [vmem:[%s149 + $0x510] sm:$0xff] %v474
                %v476 = vld [vmem:[%s148 + $0xa28] sm:$0xff]
                %477 = vst [vmem:[%s149 + $0x518] sm:$0xff] %v476
                %v478 = vld [vmem:[%s148 + $0xa30] sm:$0xff]
                %479 = vst [vmem:[%s149 + $0x520] sm:$0xff] %v478
                %v480 = vld [vmem:[%s148 + $0xa38] sm:$0xff]
                %481 = vst [vmem:[%s149 + $0x528] sm:$0xff] %v480
                %v482 = vld [vmem:[%s148 + $0xa40] sm:$0xff]
                %483 = vst [vmem:[%s149 + $0x530] sm:$0xff] %v482
                %v484 = vld [vmem:[%s148 + $0xa48] sm:$0xff]
                %485 = vst [vmem:[%s149 + $0x538] sm:$0xff] %v484
                %v486 = vld [vmem:[%s148 + $0xa50] sm:$0xff]
                %487 = vst [vmem:[%s149 + $0x540] sm:$0xff] %v486
                %v488 = vld [vmem:[%s148 + $0xa58] sm:$0xff]
                %489 = vst [vmem:[%s149 + $0x548] sm:$0xff] %v488
                %v490 = vld [vmem:[%s148 + $0xa60] sm:$0xff]
                %491 = vst [vmem:[%s149 + $0x550] sm:$0xff] %v490
                %v492 = vld [vmem:[%s148 + $0xa68] sm:$0xff]
                %493 = vst [vmem:[%s149 + $0x558] sm:$0xff] %v492
                %v494 = vld [vmem:[%s148 + $0xa70] sm:$0xff]
                %495 = vst [vmem:[%s149 + $0x560] sm:$0xff] %v494
                %v496 = vld [vmem:[%s148 + $0xa78] sm:$0xff]
                %497 = vst [vmem:[%s149 + $0x568] sm:$0xff] %v496
                %v498 = vld [vmem:[%s148 + $0xa80] sm:$0xff]
                %499 = vst [vmem:[%s149 + $0x570] sm:$0xff] %v498
                %v500 = vld [vmem:[%s148 + $0xa88] sm:$0xff]
                %501 = vst [vmem:[%s149 + $0x578] sm:$0xff] %v500
                %v502 = vld [vmem:[%s148 + $0xa90] sm:$0xff]
                %503 = vst [vmem:[%s149 + $0x580] sm:$0xff] %v502
                %v504 = vld [vmem:[%s148 + $0xa98] sm:$0xff]
                %505 = vst [vmem:[%s149 + $0x588] sm:$0xff] %v504
                %v506 = vld [vmem:[%s148 + $0xaa0] sm:$0xff]
                %507 = vst [vmem:[%s149 + $0x590] sm:$0xff] %v506
                %v508 = vld [vmem:[%s148 + $0xaa8] sm:$0xff]
                %509 = vst [vmem:[%s149 + $0x598] sm:$0xff] %v508
                %v510 = vld [vmem:[%s148 + $0xb40] sm:$0xff]
                %511 = vst [vmem:[%s149 + $0x5a0] sm:$0xff] %v510
                %v512 = vld [vmem:[%s148 + $0xb48] sm:$0xff]
                %513 = vst [vmem:[%s149 + $0x5a8] sm:$0xff] %v512
                %v514 = vld [vmem:[%s148 + $0xb50] sm:$0xff]
                %515 = vst [vmem:[%s149 + $0x5b0] sm:$0xff] %v514
                %v516 = vld [vmem:[%s148 + $0xb58] sm:$0xff]
                %517 = vst [vmem:[%s149 + $0x5b8] sm:$0xff] %v516
                %v518 = vld [vmem:[%s148 + $0xb60] sm:$0xff]
                %519 = vst [vmem:[%s149 + $0x5c0] sm:$0xff] %v518
                %v520 = vld [vmem:[%s148 + $0xb68] sm:$0xff]
                %521 = vst [vmem:[%s149 + $0x5c8] sm:$0xff] %v520
                %v522 = vld [vmem:[%s148 + $0xb70] sm:$0xff]
                %523 = vst [vmem:[%s149 + $0x5d0] sm:$0xff] %v522
                %v524 = vld [vmem:[%s148 + $0xb78] sm:$0xff]
                %525 = vst [vmem:[%s149 + $0x5d8] sm:$0xff] %v524
                %v526 = vld [vmem:[%s148 + $0xb80] sm:$0xff]
                %527 = vst [vmem:[%s149 + $0x5e0] sm:$0xff] %v526
                %v528 = vld [vmem:[%s148 + $0xb88] sm:$0xff]
                %529 = vst [vmem:[%s149 + $0x5e8] sm:$0xff] %v528
                %v530 = vld [vmem:[%s148 + $0xb90] sm:$0xff]
                %531 = vst [vmem:[%s149 + $0x5f0] sm:$0xff] %v530
                %v532 = vld [vmem:[%s148 + $0xb98] sm:$0xff]
                %533 = vst [vmem:[%s149 + $0x5f8] sm:$0xff] %v532
                %v534 = vld [vmem:[%s148 + $0xba0] sm:$0xff]
                %535 = vst [vmem:[%s149 + $0x600] sm:$0xff] %v534
                %v536 = vld [vmem:[%s148 + $0xba8] sm:$0xff]
                %537 = vst [vmem:[%s149 + $0x608] sm:$0xff] %v536
                %v538 = vld [vmem:[%s148 + $0xbb0] sm:$0xff]
                %539 = vst [vmem:[%s149 + $0x610] sm:$0xff] %v538
                %v540 = vld [vmem:[%s148 + $0xbb8] sm:$0xff]
                %541 = vst [vmem:[%s149 + $0x618] sm:$0xff] %v540
                %v542 = vld [vmem:[%s148 + $0xbc0] sm:$0xff]
                %543 = vst [vmem:[%s149 + $0x620] sm:$0xff] %v542
                %v544 = vld [vmem:[%s148 + $0xbc8] sm:$0xff]
                %545 = vst [vmem:[%s149 + $0x628] sm:$0xff] %v544
                %v546 = vld [vmem:[%s148 + $0xc60] sm:$0xff]
                %547 = vst [vmem:[%s149 + $0x630] sm:$0xff] %v546
                %v548 = vld [vmem:[%s148 + $0xc68] sm:$0xff]
                %549 = vst [vmem:[%s149 + $0x638] sm:$0xff] %v548
                %v550 = vld [vmem:[%s148 + $0xc70] sm:$0xff]
                %551 = vst [vmem:[%s149 + $0x640] sm:$0xff] %v550
                %v552 = vld [vmem:[%s148 + $0xc78] sm:$0xff]
                %553 = vst [vmem:[%s149 + $0x648] sm:$0xff] %v552
                %v554 = vld [vmem:[%s148 + $0xc80] sm:$0xff]
                %555 = vst [vmem:[%s149 + $0x650] sm:$0xff] %v554
                %v556 = vld [vmem:[%s148 + $0xc88] sm:$0xff]
                %557 = vst [vmem:[%s149 + $0x658] sm:$0xff] %v556
                %v558 = vld [vmem:[%s148 + $0xc90] sm:$0xff]
                %559 = vst [vmem:[%s149 + $0x660] sm:$0xff] %v558
                %v560 = vld [vmem:[%s148 + $0xc98] sm:$0xff]
                %561 = vst [vmem:[%s149 + $0x668] sm:$0xff] %v560
                %v562 = vld [vmem:[%s148 + $0xca0] sm:$0xff]
                %563 = vst [vmem:[%s149 + $0x670] sm:$0xff] %v562
                %v564 = vld [vmem:[%s148 + $0xca8] sm:$0xff]
                %565 = vst [vmem:[%s149 + $0x678] sm:$0xff] %v564
                %v566 = vld [vmem:[%s148 + $0xcb0] sm:$0xff]
                %567 = vst [vmem:[%s149 + $0x680] sm:$0xff] %v566
                %v568 = vld [vmem:[%s148 + $0xcb8] sm:$0xff]
                %569 = vst [vmem:[%s149 + $0x688] sm:$0xff] %v568
                %v570 = vld [vmem:[%s148 + $0xcc0] sm:$0xff]
                %571 = vst [vmem:[%s149 + $0x690] sm:$0xff] %v570
                %v572 = vld [vmem:[%s148 + $0xcc8] sm:$0xff]
                %573 = vst [vmem:[%s149 + $0x698] sm:$0xff] %v572
                %v574 = vld [vmem:[%s148 + $0xcd0] sm:$0xff]
                %575 = vst [vmem:[%s149 + $0x6a0] sm:$0xff] %v574
                %v576 = vld [vmem:[%s148 + $0xcd8] sm:$0xff]
                %577 = vst [vmem:[%s149 + $0x6a8] sm:$0xff] %v576
                %v578 = vld [vmem:[%s148 + $0xce0] sm:$0xff]
                %579 = vst [vmem:[%s149 + $0x6b0] sm:$0xff] %v578
                %v580 = vld [vmem:[%s148 + $0xce8] sm:$0xff]
                %581 = vst [vmem:[%s149 + $0x6b8] sm:$0xff] %v580
                %v582 = vld [vmem:[%s148 + $0xd80] sm:$0xff]
                %583 = vst [vmem:[%s149 + $0x6c0] sm:$0xff] %v582
                %v584 = vld [vmem:[%s148 + $0xd88] sm:$0xff]
                %585 = vst [vmem:[%s149 + $0x6c8] sm:$0xff] %v584
                %v586 = vld [vmem:[%s148 + $0xd90] sm:$0xff]
                %587 = vst [vmem:[%s149 + $0x6d0] sm:$0xff] %v586
                %v588 = vld [vmem:[%s148 + $0xd98] sm:$0xff]
                %589 = vst [vmem:[%s149 + $0x6d8] sm:$0xff] %v588
                %v590 = vld [vmem:[%s148 + $0xda0] sm:$0xff]
                %591 = vst [vmem:[%s149 + $0x6e0] sm:$0xff] %v590
                %v592 = vld [vmem:[%s148 + $0xda8] sm:$0xff]
                %593 = vst [vmem:[%s149 + $0x6e8] sm:$0xff] %v592
                %v594 = vld [vmem:[%s148 + $0xdb0] sm:$0xff]
                %595 = vst [vmem:[%s149 + $0x6f0] sm:$0xff] %v594
                %v596 = vld [vmem:[%s148 + $0xdb8] sm:$0xff]
                %597 = vst [vmem:[%s149 + $0x6f8] sm:$0xff] %v596
                %v598 = vld [vmem:[%s148 + $0xdc0] sm:$0xff]
                %599 = vst [vmem:[%s149 + $0x700] sm:$0xff] %v598
                %v600 = vld [vmem:[%s148 + $0xdc8] sm:$0xff]
                %601 = vst [vmem:[%s149 + $0x708] sm:$0xff] %v600
                %v602 = vld [vmem:[%s148 + $0xdd0] sm:$0xff]
                %603 = vst [vmem:[%s149 + $0x710] sm:$0xff] %v602
                %v604 = vld [vmem:[%s148 + $0xdd8] sm:$0xff]
                %605 = vst [vmem:[%s149 + $0x718] sm:$0xff] %v604
                %v606 = vld [vmem:[%s148 + $0xde0] sm:$0xff]
                %607 = vst [vmem:[%s149 + $0x720] sm:$0xff] %v606
                %v608 = vld [vmem:[%s148 + $0xde8] sm:$0xff]
                %609 = vst [vmem:[%s149 + $0x728] sm:$0xff] %v608
                %v610 = vld [vmem:[%s148 + $0xdf0] sm:$0xff]
                %611 = vst [vmem:[%s149 + $0x730] sm:$0xff] %v610
                %v612 = vld [vmem:[%s148 + $0xdf8] sm:$0xff]
                %613 = vst [vmem:[%s149 + $0x738] sm:$0xff] %v612
                %v614 = vld [vmem:[%s148 + $0xe00] sm:$0xff]
                %615 = vst [vmem:[%s149 + $0x740] sm:$0xff] %v614
                %v616 = vld [vmem:[%s148 + $0xe08] sm:$0xff]
                %617 = vst [vmem:[%s149 + $0x748] sm:$0xff] %v616
                %v618 = vld [vmem:[%s148 + $0xea0] sm:$0xff]
                %619 = vst [vmem:[%s149 + $0x750] sm:$0xff] %v618
                %v620 = vld [vmem:[%s148 + $0xea8] sm:$0xff]
                %621 = vst [vmem:[%s149 + $0x758] sm:$0xff] %v620
                %v622 = vld [vmem:[%s148 + $0xeb0] sm:$0xff]
                %623 = vst [vmem:[%s149 + $0x760] sm:$0xff] %v622
                %v624 = vld [vmem:[%s148 + $0xeb8] sm:$0xff]
                %625 = vst [vmem:[%s149 + $0x768] sm:$0xff] %v624
                %v626 = vld [vmem:[%s148 + $0xec0] sm:$0xff]
                %627 = vst [vmem:[%s149 + $0x770] sm:$0xff] %v626
                %v628 = vld [vmem:[%s148 + $0xec8] sm:$0xff]
                %629 = vst [vmem:[%s149 + $0x778] sm:$0xff] %v628
                %v630 = vld [vmem:[%s148 + $0xed0] sm:$0xff]
                %631 = vst [vmem:[%s149 + $0x780] sm:$0xff] %v630
                %v632 = vld [vmem:[%s148 + $0xed8] sm:$0xff]
                %633 = vst [vmem:[%s149 + $0x788] sm:$0xff] %v632
                %v634 = vld [vmem:[%s148 + $0xee0] sm:$0xff]
                %635 = vst [vmem:[%s149 + $0x790] sm:$0xff] %v634
                %v636 = vld [vmem:[%s148 + $0xee8] sm:$0xff]
                %637 = vst [vmem:[%s149 + $0x798] sm:$0xff] %v636
                %v638 = vld [vmem:[%s148 + $0xef0] sm:$0xff]
                %639 = vst [vmem:[%s149 + $0x7a0] sm:$0xff] %v638
                %v640 = vld [vmem:[%s148 + $0xef8] sm:$0xff]
                %641 = vst [vmem:[%s149 + $0x7a8] sm:$0xff] %v640
                %v642 = vld [vmem:[%s148 + $0xf00] sm:$0xff]
                %643 = vst [vmem:[%s149 + $0x7b0] sm:$0xff] %v642
                %v644 = vld [vmem:[%s148 + $0xf08] sm:$0xff]
                %645 = vst [vmem:[%s149 + $0x7b8] sm:$0xff] %v644
                %v646 = vld [vmem:[%s148 + $0xf10] sm:$0xff]
                %647 = vst [vmem:[%s149 + $0x7c0] sm:$0xff] %v646
                %v648 = vld [vmem:[%s148 + $0xf18] sm:$0xff]
                %649 = vst [vmem:[%s149 + $0x7c8] sm:$0xff] %v648
                %v650 = vld [vmem:[%s148 + $0xf20] sm:$0xff]
                %651 = vst [vmem:[%s149 + $0x7d0] sm:$0xff] %v650
                %v652 = vld [vmem:[%s148 + $0xf28] sm:$0xff]
                %653 = vst [vmem:[%s149 + $0x7d8] sm:$0xff] %v652
                %v654 = vld [vmem:[%s148 + $0xfc0] sm:$0xff]
                %655 = vst [vmem:[%s149 + $0x7e0] sm:$0xff] %v654
                %v656 = vld [vmem:[%s148 + $0xfc8] sm:$0xff]
                %657 = vst [vmem:[%s149 + $0x7e8] sm:$0xff] %v656
                %v658 = vld [vmem:[%s148 + $0xfd0] sm:$0xff]
                %659 = vst [vmem:[%s149 + $0x7f0] sm:$0xff] %v658
                %v660 = vld [vmem:[%s148 + $0xfd8] sm:$0xff]
                %661 = vst [vmem:[%s149 + $0x7f8] sm:$0xff] %v660
                %v662 = vld [vmem:[%s148 + $0xfe0] sm:$0xff]
                %663 = vst [vmem:[%s149 + $0x800] sm:$0xff] %v662
                %v664 = vld [vmem:[%s148 + $0xfe8] sm:$0xff]
                %665 = vst [vmem:[%s149 + $0x808] sm:$0xff] %v664
                %v666 = vld [vmem:[%s148 + $0xff0] sm:$0xff]
                %667 = vst [vmem:[%s149 + $0x810] sm:$0xff] %v666
                %v668 = vld [vmem:[%s148 + $0xff8] sm:$0xff]
                %669 = vst [vmem:[%s149 + $0x818] sm:$0xff] %v668
                %v670 = vld [vmem:[%s148 + $0x1000] sm:$0xff]
                %671 = vst [vmem:[%s149 + $0x820] sm:$0xff] %v670
                %v672 = vld [vmem:[%s148 + $0x1008] sm:$0xff]
                %673 = vst [vmem:[%s149 + $0x828] sm:$0xff] %v672
                %v674 = vld [vmem:[%s148 + $0x1010] sm:$0xff]
                %675 = vst [vmem:[%s149 + $0x830] sm:$0xff] %v674
                %v676 = vld [vmem:[%s148 + $0x1018] sm:$0xff]
                %677 = vst [vmem:[%s149 + $0x838] sm:$0xff] %v676
                %v678 = vld [vmem:[%s148 + $0x1020] sm:$0xff]
                %679 = vst [vmem:[%s149 + $0x840] sm:$0xff] %v678
                %v680 = vld [vmem:[%s148 + $0x1028] sm:$0xff]
                %681 = vst [vmem:[%s149 + $0x848] sm:$0xff] %v680
                %v682 = vld [vmem:[%s148 + $0x1030] sm:$0xff]
                %683 = vst [vmem:[%s149 + $0x850] sm:$0xff] %v682
                %v684 = vld [vmem:[%s148 + $0x1038] sm:$0xff]
                %685 = vst [vmem:[%s149 + $0x858] sm:$0xff] %v684
                %v686 = vld [vmem:[%s148 + $0x1040] sm:$0xff]
                %687 = vst [vmem:[%s149 + $0x860] sm:$0xff] %v686
                %v688 = vld [vmem:[%s148 + $0x1048] sm:$0xff]
                %689 = vst [vmem:[%s149 + $0x868] sm:$0xff] %v688
                %v690 = vld [vmem:[%s148 + $0x10e0] sm:$0xff]
                %691 = vst [vmem:[%s149 + $0x870] sm:$0xff] %v690
                %v692 = vld [vmem:[%s148 + $0x10e8] sm:$0xff]
                %693 = vst [vmem:[%s149 + $0x878] sm:$0xff] %v692
                %v694 = vld [vmem:[%s148 + $0x10f0] sm:$0xff]
                %695 = vst [vmem:[%s149 + $0x880] sm:$0xff] %v694
                %v696 = vld [vmem:[%s148 + $0x10f8] sm:$0xff]
                %697 = vst [vmem:[%s149 + $0x888] sm:$0xff] %v696
                %v698 = vld [vmem:[%s148 + $0x1100] sm:$0xff]
                %699 = vst [vmem:[%s149 + $0x890] sm:$0xff] %v698
                %v700 = vld [vmem:[%s148 + $0x1108] sm:$0xff]
                %701 = vst [vmem:[%s149 + $0x898] sm:$0xff] %v700
                %v702 = vld [vmem:[%s148 + $0x1110] sm:$0xff]
                %703 = vst [vmem:[%s149 + $0x8a0] sm:$0xff] %v702
                %v704 = vld [vmem:[%s148 + $0x1118] sm:$0xff]
                %705 = vst [vmem:[%s149 + $0x8a8] sm:$0xff] %v704
                %v706 = vld [vmem:[%s148 + $0x1120] sm:$0xff]
                %707 = vst [vmem:[%s149 + $0x8b0] sm:$0xff] %v706
                %v708 = vld [vmem:[%s148 + $0x1128] sm:$0xff]
                %709 = vst [vmem:[%s149 + $0x8b8] sm:$0xff] %v708
                %v710 = vld [vmem:[%s148 + $0x1130] sm:$0xff]
                %711 = vst [vmem:[%s149 + $0x8c0] sm:$0xff] %v710
                %v712 = vld [vmem:[%s148 + $0x1138] sm:$0xff]
                %713 = vst [vmem:[%s149 + $0x8c8] sm:$0xff] %v712
                %v714 = vld [vmem:[%s148 + $0x1140] sm:$0xff]
                %715 = vst [vmem:[%s149 + $0x8d0] sm:$0xff] %v714
                %v716 = vld [vmem:[%s148 + $0x1148] sm:$0xff]
                %717 = vst [vmem:[%s149 + $0x8d8] sm:$0xff] %v716
                %v718 = vld [vmem:[%s148 + $0x1150] sm:$0xff]
                %719 = vst [vmem:[%s149 + $0x8e0] sm:$0xff] %v718
                %v720 = vld [vmem:[%s148 + $0x1158] sm:$0xff]
                %721 = vst [vmem:[%s149 + $0x8e8] sm:$0xff] %v720
                %v722 = vld [vmem:[%s148 + $0x1160] sm:$0xff]
                %723 = vst [vmem:[%s149 + $0x8f0] sm:$0xff] %v722
                %v724 = vld [vmem:[%s148 + $0x1168] sm:$0xff]
                %725 = vst [vmem:[%s149 + $0x8f8] sm:$0xff] %v724
              $region41: #{cnn_model_forward.2} parent=35 // loop_footer
                %s147 = sadd.s32 1, %s143
              $region42: #{cnn_model_forward.2} parent=35 // loop_footer_branch
                %142 = sbr.rel target = $region38
              $region43: #{cnn_model_forward.2} parent=35 // loop_exit
                _
            $region36: #{cnn_model_forward.2} parent=31 // pred_fallthru
              _
            // Predicated region
            $region44: #{cnn_model_forward.2} parent=31 // pred_check
              _
            $region45: #{cnn_model_forward.2} parent=31 // pred_check_branch
              %727 = sbr.rel target = $region47
            $region46: #{cnn_model_forward.2} parent=31 // pred_region
              _
            $region47: #{cnn_model_forward.2} parent=31 // pred_fallthru
              _
          $region32: #{cnn_model_forward.2} parent=27 // pred_fallthru
            _
          %728 = vnop
        $region28: #{cnn_model_forward.2} parent=23 // pred_fallthru
          _
      $region24: #{cnn_model_forward.2} parent=5 // pred_fallthru
        _
      %p729 = scmp.le.s32.totalorder 1, %s9
      %p730 = scmp.lt.s32.totalorder %s9, 3
      %p731 = pnand %p729, %p730
      %p732 = pneg %p731
      // Predicated region
      $region48: #{cnn_model_forward.2} parent=5 // pred_check
        _
      $region49: #{cnn_model_forward.2} parent=5 // pred_check_branch
        %734 = sbr.rel (%p731) target = $region51
      $region50: #{cnn_model_forward.2} parent=5 // pred_region
        %s735 = ssub.s32 %s9, 1
        %s736 = sand.u32 %s22, 1
        %s737 = sand.u32 %s22, 1
        %s738 = smul.addr %s737, 2304
        %s739 = scalar_lea.vmem [#allocation2], %s738
        // Predicated region
        $region52: #{cnn_model_forward.2} parent=50 // pred_check
          %p740 = pneg %p35
        $region53: #{cnn_model_forward.2} parent=50 // pred_check_branch
          %742 = sbr.rel (%p740) target = $region55
        $region54: #{cnn_model_forward.2} parent=50 // pred_region
          _
        $region55: #{cnn_model_forward.2} parent=50 // pred_fallthru
          _
        %s743 = sand.u32 %s22, 1
        %s744 = sand.u32 %s22, 1
        %s745 = smul.addr %s744, 2304
        %s746 = scalar_lea.vmem [#allocation2], %s745
        %p747 = pneg %p35
        %p748 = pneg %p32
        %p749 = pneg %p56
        %p750 = pneg %p53
        %p751 = pneg %p77
        %p752 = pneg %p74
        %p753 = pneg %p103
        %p754 = pneg %p100
        %s755 = sand.u32 %s90, 1
        %s756 = sand.u32 %s90, 1
        %s757 = smul.addr %s756, 576
        %s758 = scalar_lea.vmem [#allocation3], %s757
        %s759 = smul.u32 18, %s14
        %s760 = smul.u32 18, %s14
        %v761 = vld [vmem:[%s1] sm:$0xff]
        %v762 = vld [vmem:[%s1 + $0x8] sm:$0xff]
        %v763 = vld [vmem:[%s1 + $0x10] sm:$0xff]
        %v764 = vld [vmem:[%s1 + $0x18] sm:$0xf]
        %v765 = vld [vmem:[%s739] sm:$0xff]
        %v766 = vld [vmem:[%s739 + $0x8] sm:$0xff]
        %v767 = vld [vmem:[%s739 + $0x10] sm:$0xff]
        %v768 = vld [vmem:[%s739 + $0x18] sm:$0xff]
        %v769 = vld [vmem:[%s739 + $0x20] sm:$0xff]
        %v770 = vld [vmem:[%s739 + $0x28] sm:$0xff]
        %v771 = vld [vmem:[%s739 + $0x30] sm:$0xff]
        %v772 = vld [vmem:[%s739 + $0x38] sm:$0xff]
        %v773 = vld [vmem:[%s739 + $0x40] sm:$0xff]
        %v774 = vld [vmem:[%s739 + $0x48] sm:$0xff]
        %v775 = vld [vmem:[%s739 + $0x50] sm:$0xff]
        %v776 = vld [vmem:[%s739 + $0x58] sm:$0xff]
        %v777 = vld [vmem:[%s739 + $0x60] sm:$0xff]
        %v778 = vld [vmem:[%s739 + $0x68] sm:$0xff]
        %v779 = vld [vmem:[%s739 + $0x70] sm:$0xff]
        %v780 = vld [vmem:[%s739 + $0x78] sm:$0xff]
        %v781 = vld [vmem:[%s739 + $0x80] sm:$0xff]
        %v782 = vld [vmem:[%s739 + $0x88] sm:$0xff]
        %v783 = vld [vmem:[%s739 + $0x90] sm:$0xff]
        %v784 = vld [vmem:[%s739 + $0x98] sm:$0xff]
        %v785 = vld [vmem:[%s739 + $0xa0] sm:$0xff]
        %v786 = vld [vmem:[%s739 + $0xa8] sm:$0xff]
        %v787 = vld [vmem:[%s739 + $0xb0] sm:$0xff]
        %v788 = vld [vmem:[%s739 + $0xb8] sm:$0xff]
        %v789 = vld [vmem:[%s739 + $0xc0] sm:$0xff]
        %v790 = vld [vmem:[%s739 + $0xc8] sm:$0xff]
        %v791 = vld [vmem:[%s739 + $0xd0] sm:$0xff]
        %v792 = vld [vmem:[%s739 + $0xd8] sm:$0xff]
        %v793 = vld [vmem:[%s739 + $0xe0] sm:$0xff]
        %v794 = vld [vmem:[%s739 + $0xe8] sm:$0xff]
        %v795 = vld [vmem:[%s739 + $0xf0] sm:$0xff]
        %v796 = vld [vmem:[%s739 + $0xf8] sm:$0xff]
        %v797 = vld [vmem:[%s739 + $0x100] sm:$0xff]
        %v798 = vld [vmem:[%s739 + $0x108] sm:$0xff]
        %v799 = vld [vmem:[%s739 + $0x110] sm:$0xff]
        %v800 = vld [vmem:[%s739 + $0x118] sm:$0xff]
        %v801 = vld [vmem:[%s739 + $0x120] sm:$0xff]
        %v802 = vld [vmem:[%s739 + $0x128] sm:$0xff]
        %v803 = vld [vmem:[%s739 + $0x130] sm:$0xff]
        %v804 = vld [vmem:[%s739 + $0x138] sm:$0xff]
        %v805 = vld [vmem:[%s739 + $0x140] sm:$0xff]
        %v806 = vld [vmem:[%s739 + $0x148] sm:$0xff]
        %v807 = vld [vmem:[%s739 + $0x150] sm:$0xff]
        %v808 = vld [vmem:[%s739 + $0x158] sm:$0xff]
        %v809 = vld [vmem:[%s739 + $0x160] sm:$0xff]
        %v810 = vld [vmem:[%s739 + $0x168] sm:$0xff]
        %v811 = vld [vmem:[%s739 + $0x170] sm:$0xff]
        %v812 = vld [vmem:[%s739 + $0x178] sm:$0xff]
        %v813 = vld [vmem:[%s739 + $0x180] sm:$0xff]
        %v814 = vld [vmem:[%s739 + $0x188] sm:$0xff]
        %v815 = vld [vmem:[%s739 + $0x190] sm:$0xff]
        %v816 = vld [vmem:[%s739 + $0x198] sm:$0xff]
        %v817 = vld [vmem:[%s739 + $0x1a0] sm:$0xff]
        %v818 = vld [vmem:[%s739 + $0x1a8] sm:$0xff]
        %v819 = vld [vmem:[%s739 + $0x1b0] sm:$0x1]
        %v820 = vld [vmem:[%s739 + $0x1b8] sm:$0x1]
        %v821 = vld [vmem:[%s739 + $0x1c0] sm:$0x1]
        %v822 = vld [vmem:[%s739 + $0x1c8] sm:$0x1]
        %v823 = vld [vmem:[%s739 + $0x1d0] sm:$0x1]
        %v824 = vld [vmem:[%s739 + $0x1d8] sm:$0x1]
        %v825 = vld [vmem:[%s739 + $0x1e0] sm:$0x1]
        %v826 = vld [vmem:[%s739 + $0x1e8] sm:$0x1]
        %v827 = vld [vmem:[%s739 + $0x1f0] sm:$0x1]
        %v828 = vld [vmem:[%s739 + $0x1f8] sm:$0x1]
        %v829 = vld [vmem:[%s739 + $0x200] sm:$0x1]
        %v830 = vld [vmem:[%s739 + $0x208] sm:$0x1]
        %v831 = vld [vmem:[%s739 + $0x210] sm:$0x1]
        %v832 = vld [vmem:[%s739 + $0x218] sm:$0x1]
        %v833 = vld [vmem:[%s739 + $0x220] sm:$0x1]
        %v834 = vld [vmem:[%s739 + $0x228] sm:$0x1]
        %v835 = vld [vmem:[%s739 + $0x230] sm:$0x1]
        %v836 = vld [vmem:[%s739 + $0x238] sm:$0x1]
        %vm837 = vcmask 203776
        %v839 = vsel %vm837, %v761, 0
        %v842 = vsel %vm837, %v762, 0
        %v845 = vsel %vm837, %v763, 0
        %v848 = vsel %vm837, %v764, 0
        %vm850 = vcmask 1040384
        %v852 = vsel %vm850, %v819, 0
        %v855 = vsel %vm850, %v820, 0
        %v858 = vsel %vm850, %v821, 0
        %v861 = vsel %vm850, %v822, 0
        %v864 = vsel %vm850, %v823, 0
        %v867 = vsel %vm850, %v824, 0
        %v870 = vsel %vm850, %v825, 0
        %v873 = vsel %vm850, %v826, 0
        %v876 = vsel %vm850, %v827, 0
        %v879 = vsel %vm850, %v828, 0
        %v882 = vsel %vm850, %v829, 0
        %v885 = vsel %vm850, %v830, 0
        %v888 = vsel %vm850, %v831, 0
        %v891 = vsel %vm850, %v832, 0
        %v894 = vsel %vm850, %v833, 0
        %v897 = vsel %vm850, %v834, 0
        %v900 = vsel %vm850, %v835, 0
        %v903 = vsel %vm850, %v836, 0
        %905 = vmatprep.subr.mxu0 0.0
        %906 = vmatpush1.msra.mxu0 0.0
        %907 = vmatprep.subr.mxu0 0.0
        %908 = vmatpush1.msra.mxu0 0.0
        %909 = vmatprep.subr.mxu0 0.0
        %910 = vmatpush1.msra.mxu0 0.0
        %911 = vmatprep.subr.mxu0 0.0
        %912 = vmatpush1.msra.mxu0 0.0
        %913 = vmatprep.subr.mxu0 0.0
        %914 = vmatpush1.msra.mxu0 0.0
        %915 = vmatprep.subr.mxu0 0.0
        %916 = vmatpush1.msra.mxu0 0.0
        %917 = vmatprep.subr.mxu0 0.0
        %918 = vmatpush1.msra.mxu0 0.0
        %919 = vmatprep.subr.mxu0 0.0
        %920 = vmatpush1.msra.mxu0 0.0
        %921 = vmatprep.subr.mxu0 0.0
        %922 = vmatpush1.msra.mxu0 0.0
        %923 = vmatprep.subr.mxu0 0.0
        %924 = vmatpush1.msra.mxu0 0.0
        %925 = vmatprep.subr.mxu0 0.0
        %926 = vmatpush1.msra.mxu0 0.0
        %927 = vmatprep.subr.mxu0 0.0
        %928 = vmatpush1.msra.mxu0 0.0
        %929 = vmatprep.subr.mxu0 %v855
        %930 = vmatpush1.msra.mxu0 %v852
        %931 = vmatprep.subr.mxu0 %v802
        %932 = vmatpush1.msra.mxu0 %v801
        %933 = vmatprep.subr.mxu0 %v784
        %934 = vmatpush1.msra.mxu0 %v783
        %935 = vmatprep.subr.mxu0 %v766
        %936 = vmatpush1.msra.mxu0 %v765
        %937 = vmatprep.subr.mxu0 0.0
        %938 = vmatpush2.msra.mxu0 0.0
        %939 = vmatprep.subr.mxu0 0.0
        %940 = vmatpush2.msra.mxu0 0.0
        %941 = vmatprep.subr.mxu0 0.0
        %942 = vmatpush2.msra.mxu0 0.0
        %943 = vmatprep.subr.mxu0 0.0
        %944 = vmatpush2.msra.mxu0 0.0
        %945 = vmatprep.subr.mxu0 0.0
        %946 = vmatpush2.msra.mxu0 0.0
        %947 = vmatprep.subr.mxu0 0.0
        %948 = vmatpush2.msra.mxu0 0.0
        %949 = vmatprep.subr.mxu0 0.0
        %950 = vmatpush2.msra.mxu0 0.0
        %951 = vmatprep.subr.mxu0 0.0
        %952 = vmatpush2.msra.mxu0 0.0
        %953 = vmatprep.subr.mxu0 0.0
        %954 = vmatpush2.msra.mxu0 0.0
        %955 = vmatprep.subr.mxu0 0.0
        %956 = vmatpush2.msra.mxu0 0.0
        %957 = vmatprep.subr.mxu0 0.0
        %958 = vmatpush2.msra.mxu0 0.0
        %959 = vmatprep.subr.mxu0 0.0
        %960 = vmatpush2.msra.mxu0 0.0
        %961 = vmatprep.subr.mxu0 0.0
        %962 = vmatpush2.msra.mxu0 0.0
        %963 = vmatprep.subr.mxu0 0.0
        %964 = vmatpush2.msra.mxu0 0.0
        %965 = vmatprep.subr.mxu0 0.0
        %966 = vmatpush2.msra.mxu0 0.0
        %967 = vmatprep.subr.mxu0 0.0
        %968 = vmatpush2.msra.mxu0 0.0
        %969 = vmatprep.mubr.f32.mxu0 0.0
        %970 = vmatmul.mubr.f32.gmra.mxu0 %v839
        %v971 = vpop.f32.mrf.mxu0
        %v972 = vadd.f32 0.0, %v971
        %v973 = vpop.f32.mrf.mxu0
        %v974 = vadd.f32 0.0, %v973
        %975 = vmatprep.mubr.f32.mxu0 0.0
        %976 = vmatmul.mubr.f32.gmra.mxu0 %v842
        %v977 = vpop.f32.mrf.mxu0
        %v978 = vadd.f32 0.0, %v977
        %v979 = vpop.f32.mrf.mxu0
        %v980 = vadd.f32 0.0, %v979
        %981 = vmatprep.mubr.f32.mxu0 0.0
        %982 = vmatmul.mubr.f32.gmra.mxu0 %v845
        %v983 = vpop.f32.mrf.mxu0
        %v984 = vadd.f32 0.0, %v983
        %v985 = vpop.f32.mrf.mxu0
        %v986 = vadd.f32 0.0, %v985
        %987 = vmatprep.mubr.f32.mxu0 0.0
        %988 = vmatmul.mubr.f32.gmra.mxu0 %v848
        %v989 = vpop.f32.mrf.mxu0
        %v990 = vadd.f32 0.0, %v989
        %v991 = vpop.f32.mrf.mxu0
        %v992 = vadd.f32 0.0, %v991
        %993 = vdwg.mxu0
        %994 = vmatprep.subr.mxu0 0.0
        %995 = vmatpush1.msra.mxu0 0.0
        %996 = vmatprep.subr.mxu0 0.0
        %997 = vmatpush1.msra.mxu0 0.0
        %998 = vmatprep.subr.mxu0 0.0
        %999 = vmatpush1.msra.mxu0 0.0
        %1000 = vmatprep.subr.mxu0 0.0
        %1001 = vmatpush1.msra.mxu0 0.0
        %1002 = vmatprep.subr.mxu0 0.0
        %1003 = vmatpush1.msra.mxu0 0.0
        %1004 = vmatprep.subr.mxu0 0.0
        %1005 = vmatpush1.msra.mxu0 0.0
        %1006 = vmatprep.subr.mxu0 0.0
        %1007 = vmatpush1.msra.mxu0 0.0
        %1008 = vmatprep.subr.mxu0 0.0
        %1009 = vmatpush1.msra.mxu0 0.0
        %1010 = vmatprep.subr.mxu0 0.0
        %1011 = vmatpush1.msra.mxu0 0.0
        %1012 = vmatprep.subr.mxu0 0.0
        %1013 = vmatpush1.msra.mxu0 0.0
        %1014 = vmatprep.subr.mxu0 0.0
        %1015 = vmatpush1.msra.mxu0 0.0
        %1016 = vmatprep.subr.mxu0 0.0
        %1017 = vmatpush1.msra.mxu0 0.0
        %1018 = vmatprep.subr.mxu0 %v861
        %1019 = vmatpush1.msra.mxu0 %v858
        %1020 = vmatprep.subr.mxu0 %v804
        %1021 = vmatpush1.msra.mxu0 %v803
        %1022 = vmatprep.subr.mxu0 %v786
        %1023 = vmatpush1.msra.mxu0 %v785
        %1024 = vmatprep.subr.mxu0 %v768
        %1025 = vmatpush1.msra.mxu0 %v767
        %1026 = vmatprep.subr.mxu0 0.0
        %1027 = vmatpush2.msra.mxu0 0.0
        %1028 = vmatprep.subr.mxu0 0.0
        %1029 = vmatpush2.msra.mxu0 0.0
        %1030 = vmatprep.subr.mxu0 0.0
        %1031 = vmatpush2.msra.mxu0 0.0
        %1032 = vmatprep.subr.mxu0 0.0
        %1033 = vmatpush2.msra.mxu0 0.0
        %1034 = vmatprep.subr.mxu0 0.0
        %1035 = vmatpush2.msra.mxu0 0.0
        %1036 = vmatprep.subr.mxu0 0.0
        %1037 = vmatpush2.msra.mxu0 0.0
        %1038 = vmatprep.subr.mxu0 0.0
        %1039 = vmatpush2.msra.mxu0 0.0
        %1040 = vmatprep.subr.mxu0 0.0
        %1041 = vmatpush2.msra.mxu0 0.0
        %1042 = vmatprep.subr.mxu0 0.0
        %1043 = vmatpush2.msra.mxu0 0.0
        %1044 = vmatprep.subr.mxu0 0.0
        %1045 = vmatpush2.msra.mxu0 0.0
        %1046 = vmatprep.subr.mxu0 0.0
        %1047 = vmatpush2.msra.mxu0 0.0
        %1048 = vmatprep.subr.mxu0 0.0
        %1049 = vmatpush2.msra.mxu0 0.0
        %1050 = vmatprep.subr.mxu0 0.0
        %1051 = vmatpush2.msra.mxu0 0.0
        %1052 = vmatprep.subr.mxu0 0.0
        %1053 = vmatpush2.msra.mxu0 0.0
        %1054 = vmatprep.subr.mxu0 0.0
        %1055 = vmatpush2.msra.mxu0 0.0
        %1056 = vmatprep.subr.mxu0 0.0
        %1057 = vmatpush2.msra.mxu0 0.0
        %1058 = vmatprep.mubr.f32.mxu0 0.0
        %1059 = vmatmul.mubr.f32.gmra.mxu0 %v839
        %v1060 = vpop.f32.mrf.mxu0
        %v1061 = vadd.f32 0.0, %v1060
        %v1062 = vpop.f32.mrf.mxu0
        %v1063 = vadd.f32 0.0, %v1062
        %1064 = vmatprep.mubr.f32.mxu0 0.0
        %1065 = vmatmul.mubr.f32.gmra.mxu0 %v842
        %v1066 = vpop.f32.mrf.mxu0
        %v1067 = vadd.f32 0.0, %v1066
        %v1068 = vpop.f32.mrf.mxu0
        %v1069 = vadd.f32 0.0, %v1068
        %1070 = vmatprep.mubr.f32.mxu0 0.0
        %1071 = vmatmul.mubr.f32.gmra.mxu0 %v845
        %v1072 = vpop.f32.mrf.mxu0
        %v1073 = vadd.f32 0.0, %v1072
        %v1074 = vpop.f32.mrf.mxu0
        %v1075 = vadd.f32 0.0, %v1074
        %1076 = vmatprep.mubr.f32.mxu0 0.0
        %1077 = vmatmul.mubr.f32.gmra.mxu0 %v848
        %v1078 = vpop.f32.mrf.mxu0
        %v1079 = vadd.f32 0.0, %v1078
        %v1080 = vpop.f32.mrf.mxu0
        %v1081 = vadd.f32 0.0, %v1080
        %1082 = vdwg.mxu0
        %1083 = vmatprep.subr.mxu0 0.0
        %1084 = vmatpush1.msra.mxu0 0.0
        %1085 = vmatprep.subr.mxu0 0.0
        %1086 = vmatpush1.msra.mxu0 0.0
        %1087 = vmatprep.subr.mxu0 0.0
        %1088 = vmatpush1.msra.mxu0 0.0
        %1089 = vmatprep.subr.mxu0 0.0
        %1090 = vmatpush1.msra.mxu0 0.0
        %1091 = vmatprep.subr.mxu0 0.0
        %1092 = vmatpush1.msra.mxu0 0.0
        %1093 = vmatprep.subr.mxu0 0.0
        %1094 = vmatpush1.msra.mxu0 0.0
        %1095 = vmatprep.subr.mxu0 0.0
        %1096 = vmatpush1.msra.mxu0 0.0
        %1097 = vmatprep.subr.mxu0 0.0
        %1098 = vmatpush1.msra.mxu0 0.0
        %1099 = vmatprep.subr.mxu0 0.0
        %1100 = vmatpush1.msra.mxu0 0.0
        %1101 = vmatprep.subr.mxu0 0.0
        %1102 = vmatpush1.msra.mxu0 0.0
        %1103 = vmatprep.subr.mxu0 0.0
        %1104 = vmatpush1.msra.mxu0 0.0
        %1105 = vmatprep.subr.mxu0 0.0
        %1106 = vmatpush1.msra.mxu0 0.0
        %1107 = vmatprep.subr.mxu0 %v867
        %1108 = vmatpush1.msra.mxu0 %v864
        %1109 = vmatprep.subr.mxu0 %v806
        %1110 = vmatpush1.msra.mxu0 %v805
        %1111 = vmatprep.subr.mxu0 %v788
        %1112 = vmatpush1.msra.mxu0 %v787
        %1113 = vmatprep.subr.mxu0 %v770
        %1114 = vmatpush1.msra.mxu0 %v769
        %1115 = vmatprep.subr.mxu0 0.0
        %1116 = vmatpush2.msra.mxu0 0.0
        %1117 = vmatprep.subr.mxu0 0.0
        %1118 = vmatpush2.msra.mxu0 0.0
        %1119 = vmatprep.subr.mxu0 0.0
        %1120 = vmatpush2.msra.mxu0 0.0
        %1121 = vmatprep.subr.mxu0 0.0
        %1122 = vmatpush2.msra.mxu0 0.0
        %1123 = vmatprep.subr.mxu0 0.0
        %1124 = vmatpush2.msra.mxu0 0.0
        %1125 = vmatprep.subr.mxu0 0.0
        %1126 = vmatpush2.msra.mxu0 0.0
        %1127 = vmatprep.subr.mxu0 0.0
        %1128 = vmatpush2.msra.mxu0 0.0
        %1129 = vmatprep.subr.mxu0 0.0
        %1130 = vmatpush2.msra.mxu0 0.0
        %1131 = vmatprep.subr.mxu0 0.0
        %1132 = vmatpush2.msra.mxu0 0.0
        %1133 = vmatprep.subr.mxu0 0.0
        %1134 = vmatpush2.msra.mxu0 0.0
        %1135 = vmatprep.subr.mxu0 0.0
        %1136 = vmatpush2.msra.mxu0 0.0
        %1137 = vmatprep.subr.mxu0 0.0
        %1138 = vmatpush2.msra.mxu0 0.0
        %1139 = vmatprep.subr.mxu0 0.0
        %1140 = vmatpush2.msra.mxu0 0.0
        %1141 = vmatprep.subr.mxu0 0.0
        %1142 = vmatpush2.msra.mxu0 0.0
        %1143 = vmatprep.subr.mxu0 0.0
        %1144 = vmatpush2.msra.mxu0 0.0
        %1145 = vmatprep.subr.mxu0 0.0
        %1146 = vmatpush2.msra.mxu0 0.0
        %1147 = vmatprep.mubr.f32.mxu0 0.0
        %1148 = vmatmul.mubr.f32.gmra.mxu0 %v839
        %v1149 = vpop.f32.mrf.mxu0
        %v1150 = vadd.f32 0.0, %v1149
        %v1151 = vpop.f32.mrf.mxu0
        %v1152 = vadd.f32 0.0, %v1151
        %1153 = vmatprep.mubr.f32.mxu0 0.0
        %1154 = vmatmul.mubr.f32.gmra.mxu0 %v842
        %v1155 = vpop.f32.mrf.mxu0
        %v1156 = vadd.f32 0.0, %v1155
        %v1157 = vpop.f32.mrf.mxu0
        %v1158 = vadd.f32 0.0, %v1157
        %1159 = vmatprep.mubr.f32.mxu0 0.0
        %1160 = vmatmul.mubr.f32.gmra.mxu0 %v845
        %v1161 = vpop.f32.mrf.mxu0
        %v1162 = vadd.f32 0.0, %v1161
        %v1163 = vpop.f32.mrf.mxu0
        %v1164 = vadd.f32 0.0, %v1163
        %1165 = vmatprep.mubr.f32.mxu0 0.0
        %1166 = vmatmul.mubr.f32.gmra.mxu0 %v848
        %v1167 = vpop.f32.mrf.mxu0
        %v1168 = vadd.f32 0.0, %v1167
        %v1169 = vpop.f32.mrf.mxu0
        %v1170 = vadd.f32 0.0, %v1169
        %1171 = vdwg.mxu0
        %1172 = vmatprep.subr.mxu0 0.0
        %1173 = vmatpush1.msra.mxu0 0.0
        %1174 = vmatprep.subr.mxu0 0.0
        %1175 = vmatpush1.msra.mxu0 0.0
        %1176 = vmatprep.subr.mxu0 0.0
        %1177 = vmatpush1.msra.mxu0 0.0
        %1178 = vmatprep.subr.mxu0 0.0
        %1179 = vmatpush1.msra.mxu0 0.0
        %1180 = vmatprep.subr.mxu0 0.0
        %1181 = vmatpush1.msra.mxu0 0.0
        %1182 = vmatprep.subr.mxu0 0.0
        %1183 = vmatpush1.msra.mxu0 0.0
        %1184 = vmatprep.subr.mxu0 0.0
        %1185 = vmatpush1.msra.mxu0 0.0
        %1186 = vmatprep.subr.mxu0 0.0
        %1187 = vmatpush1.msra.mxu0 0.0
        %1188 = vmatprep.subr.mxu0 0.0
        %1189 = vmatpush1.msra.mxu0 0.0
        %1190 = vmatprep.subr.mxu0 0.0
        %1191 = vmatpush1.msra.mxu0 0.0
        %1192 = vmatprep.subr.mxu0 0.0
        %1193 = vmatpush1.msra.mxu0 0.0
        %1194 = vmatprep.subr.mxu0 0.0
        %1195 = vmatpush1.msra.mxu0 0.0
        %1196 = vmatprep.subr.mxu0 %v873
        %1197 = vmatpush1.msra.mxu0 %v870
        %1198 = vmatprep.subr.mxu0 %v808
        %1199 = vmatpush1.msra.mxu0 %v807
        %1200 = vmatprep.subr.mxu0 %v790
        %1201 = vmatpush1.msra.mxu0 %v789
        %1202 = vmatprep.subr.mxu0 %v772
        %1203 = vmatpush1.msra.mxu0 %v771
        %1204 = vmatprep.subr.mxu0 0.0
        %1205 = vmatpush2.msra.mxu0 0.0
        %1206 = vmatprep.subr.mxu0 0.0
        %1207 = vmatpush2.msra.mxu0 0.0
        %1208 = vmatprep.subr.mxu0 0.0
        %1209 = vmatpush2.msra.mxu0 0.0
        %1210 = vmatprep.subr.mxu0 0.0
        %1211 = vmatpush2.msra.mxu0 0.0
        %1212 = vmatprep.subr.mxu0 0.0
        %1213 = vmatpush2.msra.mxu0 0.0
        %1214 = vmatprep.subr.mxu0 0.0
        %1215 = vmatpush2.msra.mxu0 0.0
        %1216 = vmatprep.subr.mxu0 0.0
        %1217 = vmatpush2.msra.mxu0 0.0
        %1218 = vmatprep.subr.mxu0 0.0
        %1219 = vmatpush2.msra.mxu0 0.0
        %1220 = vmatprep.subr.mxu0 0.0
        %1221 = vmatpush2.msra.mxu0 0.0
        %1222 = vmatprep.subr.mxu0 0.0
        %1223 = vmatpush2.msra.mxu0 0.0
        %1224 = vmatprep.subr.mxu0 0.0
        %1225 = vmatpush2.msra.mxu0 0.0
        %1226 = vmatprep.subr.mxu0 0.0
        %1227 = vmatpush2.msra.mxu0 0.0
        %1228 = vmatprep.subr.mxu0 0.0
        %1229 = vmatpush2.msra.mxu0 0.0
        %1230 = vmatprep.subr.mxu0 0.0
        %1231 = vmatpush2.msra.mxu0 0.0
        %1232 = vmatprep.subr.mxu0 0.0
        %1233 = vmatpush2.msra.mxu0 0.0
        %1234 = vmatprep.subr.mxu0 0.0
        %1235 = vmatpush2.msra.mxu0 0.0
        %1236 = vmatprep.mubr.f32.mxu0 0.0
        %1237 = vmatmul.mubr.f32.gmra.mxu0 %v839
        %v1238 = vpop.f32.mrf.mxu0
        %v1239 = vadd.f32 0.0, %v1238
        %v1240 = vpop.f32.mrf.mxu0
        %v1241 = vadd.f32 0.0, %v1240
        %1242 = vmatprep.mubr.f32.mxu0 0.0
        %1243 = vmatmul.mubr.f32.gmra.mxu0 %v842
        %v1244 = vpop.f32.mrf.mxu0
        %v1245 = vadd.f32 0.0, %v1244
        %v1246 = vpop.f32.mrf.mxu0
        %v1247 = vadd.f32 0.0, %v1246
        %1248 = vmatprep.mubr.f32.mxu0 0.0
        %1249 = vmatmul.mubr.f32.gmra.mxu0 %v845
        %v1250 = vpop.f32.mrf.mxu0
        %v1251 = vadd.f32 0.0, %v1250
        %v1252 = vpop.f32.mrf.mxu0
        %v1253 = vadd.f32 0.0, %v1252
        %1254 = vmatprep.mubr.f32.mxu0 0.0
        %1255 = vmatmul.mubr.f32.gmra.mxu0 %v848
        %v1256 = vpop.f32.mrf.mxu0
        %v1257 = vadd.f32 0.0, %v1256
        %v1258 = vpop.f32.mrf.mxu0
        %v1259 = vadd.f32 0.0, %v1258
        %1260 = vdwg.mxu0
        %1261 = vmatprep.subr.mxu0 0.0
        %1262 = vmatpush1.msra.mxu0 0.0
        %1263 = vmatprep.subr.mxu0 0.0
        %1264 = vmatpush1.msra.mxu0 0.0
        %1265 = vmatprep.subr.mxu0 0.0
        %1266 = vmatpush1.msra.mxu0 0.0
        %1267 = vmatprep.subr.mxu0 0.0
        %1268 = vmatpush1.msra.mxu0 0.0
        %1269 = vmatprep.subr.mxu0 0.0
        %1270 = vmatpush1.msra.mxu0 0.0
        %1271 = vmatprep.subr.mxu0 0.0
        %1272 = vmatpush1.msra.mxu0 0.0
        %1273 = vmatprep.subr.mxu0 0.0
        %1274 = vmatpush1.msra.mxu0 0.0
        %1275 = vmatprep.subr.mxu0 0.0
        %1276 = vmatpush1.msra.mxu0 0.0
        %1277 = vmatprep.subr.mxu0 0.0
        %1278 = vmatpush1.msra.mxu0 0.0
        %1279 = vmatprep.subr.mxu0 0.0
        %1280 = vmatpush1.msra.mxu0 0.0
        %1281 = vmatprep.subr.mxu0 0.0
        %1282 = vmatpush1.msra.mxu0 0.0
        %1283 = vmatprep.subr.mxu0 0.0
        %1284 = vmatpush1.msra.mxu0 0.0
        %1285 = vmatprep.subr.mxu0 %v879
        %1286 = vmatpush1.msra.mxu0 %v876
        %1287 = vmatprep.subr.mxu0 %v810
        %1288 = vmatpush1.msra.mxu0 %v809
        %1289 = vmatprep.subr.mxu0 %v792
        %1290 = vmatpush1.msra.mxu0 %v791
        %1291 = vmatprep.subr.mxu0 %v774
        %1292 = vmatpush1.msra.mxu0 %v773
        %1293 = vmatprep.subr.mxu0 0.0
        %1294 = vmatpush2.msra.mxu0 0.0
        %1295 = vmatprep.subr.mxu0 0.0
        %1296 = vmatpush2.msra.mxu0 0.0
        %1297 = vmatprep.subr.mxu0 0.0
        %1298 = vmatpush2.msra.mxu0 0.0
        %1299 = vmatprep.subr.mxu0 0.0
        %1300 = vmatpush2.msra.mxu0 0.0
        %1301 = vmatprep.subr.mxu0 0.0
        %1302 = vmatpush2.msra.mxu0 0.0
        %1303 = vmatprep.subr.mxu0 0.0
        %1304 = vmatpush2.msra.mxu0 0.0
        %1305 = vmatprep.subr.mxu0 0.0
        %1306 = vmatpush2.msra.mxu0 0.0
        %1307 = vmatprep.subr.mxu0 0.0
        %1308 = vmatpush2.msra.mxu0 0.0
        %1309 = vmatprep.subr.mxu0 0.0
        %1310 = vmatpush2.msra.mxu0 0.0
        %1311 = vmatprep.subr.mxu0 0.0
        %1312 = vmatpush2.msra.mxu0 0.0
        %1313 = vmatprep.subr.mxu0 0.0
        %1314 = vmatpush2.msra.mxu0 0.0
        %1315 = vmatprep.subr.mxu0 0.0
        %1316 = vmatpush2.msra.mxu0 0.0
        %1317 = vmatprep.subr.mxu0 0.0
        %1318 = vmatpush2.msra.mxu0 0.0
        %1319 = vmatprep.subr.mxu0 0.0
        %1320 = vmatpush2.msra.mxu0 0.0
        %1321 = vmatprep.subr.mxu0 0.0
        %1322 = vmatpush2.msra.mxu0 0.0
        %1323 = vmatprep.subr.mxu0 0.0
        %1324 = vmatpush2.msra.mxu0 0.0
        %1325 = vmatprep.mubr.f32.mxu0 0.0
        %1326 = vmatmul.mubr.f32.gmra.mxu0 %v839
        %v1327 = vpop.f32.mrf.mxu0
        %v1328 = vadd.f32 0.0, %v1327
        %v1329 = vpop.f32.mrf.mxu0
        %v1330 = vadd.f32 0.0, %v1329
        %1331 = vmatprep.mubr.f32.mxu0 0.0
        %1332 = vmatmul.mubr.f32.gmra.mxu0 %v842
        %v1333 = vpop.f32.mrf.mxu0
        %v1334 = vadd.f32 0.0, %v1333
        %v1335 = vpop.f32.mrf.mxu0
        %v1336 = vadd.f32 0.0, %v1335
        %1337 = vmatprep.mubr.f32.mxu0 0.0
        %1338 = vmatmul.mubr.f32.gmra.mxu0 %v845
        %v1339 = vpop.f32.mrf.mxu0
        %v1340 = vadd.f32 0.0, %v1339
        %v1341 = vpop.f32.mrf.mxu0
        %v1342 = vadd.f32 0.0, %v1341
        %1343 = vmatprep.mubr.f32.mxu0 0.0
        %1344 = vmatmul.mubr.f32.gmra.mxu0 %v848
        %v1345 = vpop.f32.mrf.mxu0
        %v1346 = vadd.f32 0.0, %v1345
        %v1347 = vpop.f32.mrf.mxu0
        %v1348 = vadd.f32 0.0, %v1347
        %1349 = vdwg.mxu0
        %1350 = vmatprep.subr.mxu0 0.0
        %1351 = vmatpush1.msra.mxu0 0.0
        %1352 = vmatprep.subr.mxu0 0.0
        %1353 = vmatpush1.msra.mxu0 0.0
        %1354 = vmatprep.subr.mxu0 0.0
        %1355 = vmatpush1.msra.mxu0 0.0
        %1356 = vmatprep.subr.mxu0 0.0
        %1357 = vmatpush1.msra.mxu0 0.0
        %1358 = vmatprep.subr.mxu0 0.0
        %1359 = vmatpush1.msra.mxu0 0.0
        %1360 = vmatprep.subr.mxu0 0.0
        %1361 = vmatpush1.msra.mxu0 0.0
        %1362 = vmatprep.subr.mxu0 0.0
        %1363 = vmatpush1.msra.mxu0 0.0
        %1364 = vmatprep.subr.mxu0 0.0
        %1365 = vmatpush1.msra.mxu0 0.0
        %1366 = vmatprep.subr.mxu0 0.0
        %1367 = vmatpush1.msra.mxu0 0.0
        %1368 = vmatprep.subr.mxu0 0.0
        %1369 = vmatpush1.msra.mxu0 0.0
        %1370 = vmatprep.subr.mxu0 0.0
        %1371 = vmatpush1.msra.mxu0 0.0
        %1372 = vmatprep.subr.mxu0 0.0
        %1373 = vmatpush1.msra.mxu0 0.0
        %1374 = vmatprep.subr.mxu0 %v885
        %1375 = vmatpush1.msra.mxu0 %v882
        %1376 = vmatprep.subr.mxu0 %v812
        %1377 = vmatpush1.msra.mxu0 %v811
        %1378 = vmatprep.subr.mxu0 %v794
        %1379 = vmatpush1.msra.mxu0 %v793
        %1380 = vmatprep.subr.mxu0 %v776
        %1381 = vmatpush1.msra.mxu0 %v775
        %1382 = vmatprep.subr.mxu0 0.0
        %1383 = vmatpush2.msra.mxu0 0.0
        %1384 = vmatprep.subr.mxu0 0.0
        %1385 = vmatpush2.msra.mxu0 0.0
        %1386 = vmatprep.subr.mxu0 0.0
        %1387 = vmatpush2.msra.mxu0 0.0
        %1388 = vmatprep.subr.mxu0 0.0
        %1389 = vmatpush2.msra.mxu0 0.0
        %1390 = vmatprep.subr.mxu0 0.0
        %1391 = vmatpush2.msra.mxu0 0.0
        %1392 = vmatprep.subr.mxu0 0.0
        %1393 = vmatpush2.msra.mxu0 0.0
        %1394 = vmatprep.subr.mxu0 0.0
        %1395 = vmatpush2.msra.mxu0 0.0
        %1396 = vmatprep.subr.mxu0 0.0
        %1397 = vmatpush2.msra.mxu0 0.0
        %1398 = vmatprep.subr.mxu0 0.0
        %1399 = vmatpush2.msra.mxu0 0.0
        %1400 = vmatprep.subr.mxu0 0.0
        %1401 = vmatpush2.msra.mxu0 0.0
        %1402 = vmatprep.subr.mxu0 0.0
        %1403 = vmatpush2.msra.mxu0 0.0
        %1404 = vmatprep.subr.mxu0 0.0
        %1405 = vmatpush2.msra.mxu0 0.0
        %1406 = vmatprep.subr.mxu0 0.0
        %1407 = vmatpush2.msra.mxu0 0.0
        %1408 = vmatprep.subr.mxu0 0.0
        %1409 = vmatpush2.msra.mxu0 0.0
        %1410 = vmatprep.subr.mxu0 0.0
        %1411 = vmatpush2.msra.mxu0 0.0
        %1412 = vmatprep.subr.mxu0 0.0
        %1413 = vmatpush2.msra.mxu0 0.0
        %1414 = vmatprep.mubr.f32.mxu0 0.0
        %1415 = vmatmul.mubr.f32.gmra.mxu0 %v839
        %v1416 = vpop.f32.mrf.mxu0
        %v1417 = vadd.f32 0.0, %v1416
        %v1418 = vpop.f32.mrf.mxu0
        %v1419 = vadd.f32 0.0, %v1418
        %1420 = vmatprep.mubr.f32.mxu0 0.0
        %1421 = vmatmul.mubr.f32.gmra.mxu0 %v842
        %v1422 = vpop.f32.mrf.mxu0
        %v1423 = vadd.f32 0.0, %v1422
        %v1424 = vpop.f32.mrf.mxu0
        %v1425 = vadd.f32 0.0, %v1424
        %1426 = vmatprep.mubr.f32.mxu0 0.0
        %1427 = vmatmul.mubr.f32.gmra.mxu0 %v845
        %v1428 = vpop.f32.mrf.mxu0
        %v1429 = vadd.f32 0.0, %v1428
        %v1430 = vpop.f32.mrf.mxu0
        %v1431 = vadd.f32 0.0, %v1430
        %1432 = vmatprep.mubr.f32.mxu0 0.0
        %1433 = vmatmul.mubr.f32.gmra.mxu0 %v848
        %v1434 = vpop.f32.mrf.mxu0
        %v1435 = vadd.f32 0.0, %v1434
        %v1436 = vpop.f32.mrf.mxu0
        %v1437 = vadd.f32 0.0, %v1436
        %1438 = vdwg.mxu0
        %1439 = vmatprep.subr.mxu0 0.0
        %1440 = vmatpush1.msra.mxu0 0.0
        %1441 = vmatprep.subr.mxu0 0.0
        %1442 = vmatpush1.msra.mxu0 0.0
        %1443 = vmatprep.subr.mxu0 0.0
        %1444 = vmatpush1.msra.mxu0 0.0
        %1445 = vmatprep.subr.mxu0 0.0
        %1446 = vmatpush1.msra.mxu0 0.0
        %1447 = vmatprep.subr.mxu0 0.0
        %1448 = vmatpush1.msra.mxu0 0.0
        %1449 = vmatprep.subr.mxu0 0.0
        %1450 = vmatpush1.msra.mxu0 0.0
        %1451 = vmatprep.subr.mxu0 0.0
        %1452 = vmatpush1.msra.mxu0 0.0
        %1453 = vmatprep.subr.mxu0 0.0
        %1454 = vmatpush1.msra.mxu0 0.0
        %1455 = vmatprep.subr.mxu0 0.0
        %1456 = vmatpush1.msra.mxu0 0.0
        %1457 = vmatprep.subr.mxu0 0.0
        %1458 = vmatpush1.msra.mxu0 0.0
        %1459 = vmatprep.subr.mxu0 0.0
        %1460 = vmatpush1.msra.mxu0 0.0
        %1461 = vmatprep.subr.mxu0 0.0
        %1462 = vmatpush1.msra.mxu0 0.0
        %1463 = vmatprep.subr.mxu0 %v891
        %1464 = vmatpush1.msra.mxu0 %v888
        %1465 = vmatprep.subr.mxu0 %v814
        %1466 = vmatpush1.msra.mxu0 %v813
        %1467 = vmatprep.subr.mxu0 %v796
        %1468 = vmatpush1.msra.mxu0 %v795
        %1469 = vmatprep.subr.mxu0 %v778
        %1470 = vmatpush1.msra.mxu0 %v777
        %1471 = vmatprep.subr.mxu0 0.0
        %1472 = vmatpush2.msra.mxu0 0.0
        %1473 = vmatprep.subr.mxu0 0.0
        %1474 = vmatpush2.msra.mxu0 0.0
        %1475 = vmatprep.subr.mxu0 0.0
        %1476 = vmatpush2.msra.mxu0 0.0
        %1477 = vmatprep.subr.mxu0 0.0
        %1478 = vmatpush2.msra.mxu0 0.0
        %1479 = vmatprep.subr.mxu0 0.0
        %1480 = vmatpush2.msra.mxu0 0.0
        %1481 = vmatprep.subr.mxu0 0.0
        %1482 = vmatpush2.msra.mxu0 0.0
        %1483 = vmatprep.subr.mxu0 0.0
        %1484 = vmatpush2.msra.mxu0 0.0
        %1485 = vmatprep.subr.mxu0 0.0
        %1486 = vmatpush2.msra.mxu0 0.0
        %1487 = vmatprep.subr.mxu0 0.0
        %1488 = vmatpush2.msra.mxu0 0.0
        %1489 = vmatprep.subr.mxu0 0.0
        %1490 = vmatpush2.msra.mxu0 0.0
        %1491 = vmatprep.subr.mxu0 0.0
        %1492 = vmatpush2.msra.mxu0 0.0
        %1493 = vmatprep.subr.mxu0 0.0
        %1494 = vmatpush2.msra.mxu0 0.0
        %1495 = vmatprep.subr.mxu0 0.0
        %1496 = vmatpush2.msra.mxu0 0.0
        %1497 = vmatprep.subr.mxu0 0.0
        %1498 = vmatpush2.msra.mxu0 0.0
        %1499 = vmatprep.subr.mxu0 0.0
        %1500 = vmatpush2.msra.mxu0 0.0
        %1501 = vmatprep.subr.mxu0 0.0
        %1502 = vmatpush2.msra.mxu0 0.0
        %1503 = vmatprep.mubr.f32.mxu0 0.0
        %1504 = vmatmul.mubr.f32.gmra.mxu0 %v839
        %v1505 = vpop.f32.mrf.mxu0
        %v1506 = vadd.f32 0.0, %v1505
        %v1507 = vpop.f32.mrf.mxu0
        %v1508 = vadd.f32 0.0, %v1507
        %1509 = vmatprep.mubr.f32.mxu0 0.0
        %1510 = vmatmul.mubr.f32.gmra.mxu0 %v842
        %v1511 = vpop.f32.mrf.mxu0
        %v1512 = vadd.f32 0.0, %v1511
        %v1513 = vpop.f32.mrf.mxu0
        %v1514 = vadd.f32 0.0, %v1513
        %1515 = vmatprep.mubr.f32.mxu0 0.0
        %1516 = vmatmul.mubr.f32.gmra.mxu0 %v845
        %v1517 = vpop.f32.mrf.mxu0
        %v1518 = vadd.f32 0.0, %v1517
        %v1519 = vpop.f32.mrf.mxu0
        %v1520 = vadd.f32 0.0, %v1519
        %1521 = vmatprep.mubr.f32.mxu0 0.0
        %1522 = vmatmul.mubr.f32.gmra.mxu0 %v848
        %v1523 = vpop.f32.mrf.mxu0
        %v1524 = vadd.f32 0.0, %v1523
        %v1525 = vpop.f32.mrf.mxu0
        %v1526 = vadd.f32 0.0, %v1525
        %1527 = vdwg.mxu0
        %1528 = vmatprep.subr.mxu0 0.0
        %1529 = vmatpush1.msra.mxu0 0.0
        %1530 = vmatprep.subr.mxu0 0.0
        %1531 = vmatpush1.msra.mxu0 0.0
        %1532 = vmatprep.subr.mxu0 0.0
        %1533 = vmatpush1.msra.mxu0 0.0
        %1534 = vmatprep.subr.mxu0 0.0
        %1535 = vmatpush1.msra.mxu0 0.0
        %1536 = vmatprep.subr.mxu0 0.0
        %1537 = vmatpush1.msra.mxu0 0.0
        %1538 = vmatprep.subr.mxu0 0.0
        %1539 = vmatpush1.msra.mxu0 0.0
        %1540 = vmatprep.subr.mxu0 0.0
        %1541 = vmatpush1.msra.mxu0 0.0
        %1542 = vmatprep.subr.mxu0 0.0
        %1543 = vmatpush1.msra.mxu0 0.0
        %1544 = vmatprep.subr.mxu0 0.0
        %1545 = vmatpush1.msra.mxu0 0.0
        %1546 = vmatprep.subr.mxu0 0.0
        %1547 = vmatpush1.msra.mxu0 0.0
        %1548 = vmatprep.subr.mxu0 0.0
        %1549 = vmatpush1.msra.mxu0 0.0
        %1550 = vmatprep.subr.mxu0 0.0
        %1551 = vmatpush1.msra.mxu0 0.0
        %1552 = vmatprep.subr.mxu0 %v897
        %1553 = vmatpush1.msra.mxu0 %v894
        %1554 = vmatprep.subr.mxu0 %v816
        %1555 = vmatpush1.msra.mxu0 %v815
        %1556 = vmatprep.subr.mxu0 %v798
        %1557 = vmatpush1.msra.mxu0 %v797
        %1558 = vmatprep.subr.mxu0 %v780
        %1559 = vmatpush1.msra.mxu0 %v779
        %1560 = vmatprep.subr.mxu0 0.0
        %1561 = vmatpush2.msra.mxu0 0.0
        %1562 = vmatprep.subr.mxu0 0.0
        %1563 = vmatpush2.msra.mxu0 0.0
        %1564 = vmatprep.subr.mxu0 0.0
        %1565 = vmatpush2.msra.mxu0 0.0
        %1566 = vmatprep.subr.mxu0 0.0
        %1567 = vmatpush2.msra.mxu0 0.0
        %1568 = vmatprep.subr.mxu0 0.0
        %1569 = vmatpush2.msra.mxu0 0.0
        %1570 = vmatprep.subr.mxu0 0.0
        %1571 = vmatpush2.msra.mxu0 0.0
        %1572 = vmatprep.subr.mxu0 0.0
        %1573 = vmatpush2.msra.mxu0 0.0
        %1574 = vmatprep.subr.mxu0 0.0
        %1575 = vmatpush2.msra.mxu0 0.0
        %1576 = vmatprep.subr.mxu0 0.0
        %1577 = vmatpush2.msra.mxu0 0.0
        %1578 = vmatprep.subr.mxu0 0.0
        %1579 = vmatpush2.msra.mxu0 0.0
        %1580 = vmatprep.subr.mxu0 0.0
        %1581 = vmatpush2.msra.mxu0 0.0
        %1582 = vmatprep.subr.mxu0 0.0
        %1583 = vmatpush2.msra.mxu0 0.0
        %1584 = vmatprep.subr.mxu0 0.0
        %1585 = vmatpush2.msra.mxu0 0.0
        %1586 = vmatprep.subr.mxu0 0.0
        %1587 = vmatpush2.msra.mxu0 0.0
        %1588 = vmatprep.subr.mxu0 0.0
        %1589 = vmatpush2.msra.mxu0 0.0
        %1590 = vmatprep.subr.mxu0 0.0
        %1591 = vmatpush2.msra.mxu0 0.0
        %1592 = vmatprep.mubr.f32.mxu0 0.0
        %1593 = vmatmul.mubr.f32.gmra.mxu0 %v839
        %v1594 = vpop.f32.mrf.mxu0
        %v1595 = vadd.f32 0.0, %v1594
        %v1596 = vpop.f32.mrf.mxu0
        %v1597 = vadd.f32 0.0, %v1596
        %1598 = vmatprep.mubr.f32.mxu0 0.0
        %1599 = vmatmul.mubr.f32.gmra.mxu0 %v842
        %v1600 = vpop.f32.mrf.mxu0
        %v1601 = vadd.f32 0.0, %v1600
        %v1602 = vpop.f32.mrf.mxu0
        %v1603 = vadd.f32 0.0, %v1602
        %1604 = vmatprep.mubr.f32.mxu0 0.0
        %1605 = vmatmul.mubr.f32.gmra.mxu0 %v845
        %v1606 = vpop.f32.mrf.mxu0
        %v1607 = vadd.f32 0.0, %v1606
        %v1608 = vpop.f32.mrf.mxu0
        %v1609 = vadd.f32 0.0, %v1608
        %1610 = vmatprep.mubr.f32.mxu0 0.0
        %1611 = vmatmul.mubr.f32.gmra.mxu0 %v848
        %v1612 = vpop.f32.mrf.mxu0
        %v1613 = vadd.f32 0.0, %v1612
        %v1614 = vpop.f32.mrf.mxu0
        %v1615 = vadd.f32 0.0, %v1614
        %1616 = vdwg.mxu0
        %1617 = vmatprep.subr.mxu0 0.0
        %1618 = vmatpush1.msra.mxu0 0.0
        %1619 = vmatprep.subr.mxu0 0.0
        %1620 = vmatpush1.msra.mxu0 0.0
        %1621 = vmatprep.subr.mxu0 0.0
        %1622 = vmatpush1.msra.mxu0 0.0
        %1623 = vmatprep.subr.mxu0 0.0
        %1624 = vmatpush1.msra.mxu0 0.0
        %1625 = vmatprep.subr.mxu0 0.0
        %1626 = vmatpush1.msra.mxu0 0.0
        %1627 = vmatprep.subr.mxu0 0.0
        %1628 = vmatpush1.msra.mxu0 0.0
        %1629 = vmatprep.subr.mxu0 0.0
        %1630 = vmatpush1.msra.mxu0 0.0
        %1631 = vmatprep.subr.mxu0 0.0
        %1632 = vmatpush1.msra.mxu0 0.0
        %1633 = vmatprep.subr.mxu0 0.0
        %1634 = vmatpush1.msra.mxu0 0.0
        %1635 = vmatprep.subr.mxu0 0.0
        %1636 = vmatpush1.msra.mxu0 0.0
        %1637 = vmatprep.subr.mxu0 0.0
        %1638 = vmatpush1.msra.mxu0 0.0
        %1639 = vmatprep.subr.mxu0 0.0
        %1640 = vmatpush1.msra.mxu0 0.0
        %1641 = vmatprep.subr.mxu0 %v903
        %1642 = vmatpush1.msra.mxu0 %v900
        %1643 = vmatprep.subr.mxu0 %v818
        %1644 = vmatpush1.msra.mxu0 %v817
        %1645 = vmatprep.subr.mxu0 %v800
        %1646 = vmatpush1.msra.mxu0 %v799
        %1647 = vmatprep.subr.mxu0 %v782
        %1648 = vmatpush1.msra.mxu0 %v781
        %1649 = vmatprep.subr.mxu0 0.0
        %1650 = vmatpush2.msra.mxu0 0.0
        %1651 = vmatprep.subr.mxu0 0.0
        %1652 = vmatpush2.msra.mxu0 0.0
        %1653 = vmatprep.subr.mxu0 0.0
        %1654 = vmatpush2.msra.mxu0 0.0
        %1655 = vmatprep.subr.mxu0 0.0
        %1656 = vmatpush2.msra.mxu0 0.0
        %1657 = vmatprep.subr.mxu0 0.0
        %1658 = vmatpush2.msra.mxu0 0.0
        %1659 = vmatprep.subr.mxu0 0.0
        %1660 = vmatpush2.msra.mxu0 0.0
        %1661 = vmatprep.subr.mxu0 0.0
        %1662 = vmatpush2.msra.mxu0 0.0
        %1663 = vmatprep.subr.mxu0 0.0
        %1664 = vmatpush2.msra.mxu0 0.0
        %1665 = vmatprep.subr.mxu0 0.0
        %1666 = vmatpush2.msra.mxu0 0.0
        %1667 = vmatprep.subr.mxu0 0.0
        %1668 = vmatpush2.msra.mxu0 0.0
        %1669 = vmatprep.subr.mxu0 0.0
        %1670 = vmatpush2.msra.mxu0 0.0
        %1671 = vmatprep.subr.mxu0 0.0
        %1672 = vmatpush2.msra.mxu0 0.0
        %1673 = vmatprep.subr.mxu0 0.0
        %1674 = vmatpush2.msra.mxu0 0.0
        %1675 = vmatprep.subr.mxu0 0.0
        %1676 = vmatpush2.msra.mxu0 0.0
        %1677 = vmatprep.subr.mxu0 0.0
        %1678 = vmatpush2.msra.mxu0 0.0
        %1679 = vmatprep.subr.mxu0 0.0
        %1680 = vmatpush2.msra.mxu0 0.0
        %1681 = vmatprep.mubr.f32.mxu0 0.0
        %1682 = vmatmul.mubr.f32.gmra.mxu0 %v839
        %v1683 = vpop.f32.mrf.mxu0
        %v1684 = vadd.f32 0.0, %v1683
        %v1685 = vpop.f32.mrf.mxu0
        %v1686 = vadd.f32 0.0, %v1685
        %1687 = vmatprep.mubr.f32.mxu0 0.0
        %1688 = vmatmul.mubr.f32.gmra.mxu0 %v842
        %v1689 = vpop.f32.mrf.mxu0
        %v1690 = vadd.f32 0.0, %v1689
        %v1691 = vpop.f32.mrf.mxu0
        %v1692 = vadd.f32 0.0, %v1691
        %1693 = vmatprep.mubr.f32.mxu0 0.0
        %1694 = vmatmul.mubr.f32.gmra.mxu0 %v845
        %v1695 = vpop.f32.mrf.mxu0
        %v1696 = vadd.f32 0.0, %v1695
        %v1697 = vpop.f32.mrf.mxu0
        %v1698 = vadd.f32 0.0, %v1697
        %1699 = vmatprep.mubr.f32.mxu0 0.0
        %1700 = vmatmul.mubr.f32.gmra.mxu0 %v848
        %v1701 = vpop.f32.mrf.mxu0
        %v1702 = vadd.f32 0.0, %v1701
        %v1703 = vpop.f32.mrf.mxu0
        %v1704 = vadd.f32 0.0, %v1703
        %1705 = vdwg.mxu0
        %s1706 = scalar_lea.vmem %s739, 576 [#allocation2]
        %v1707 = vld [vmem:[%s1706] sm:$0xff]
        %v1708 = vld [vmem:[%s1706 + $0x8] sm:$0xff]
        %v1709 = vld [vmem:[%s1706 + $0x10] sm:$0xff]
        %v1710 = vld [vmem:[%s1706 + $0x18] sm:$0xff]
        %v1711 = vld [vmem:[%s1706 + $0x20] sm:$0xff]
        %v1712 = vld [vmem:[%s1706 + $0x28] sm:$0xff]
        %v1713 = vld [vmem:[%s1706 + $0x30] sm:$0xff]
        %v1714 = vld [vmem:[%s1706 + $0x38] sm:$0xff]
        %v1715 = vld [vmem:[%s1706 + $0x40] sm:$0xff]
        %v1716 = vld [vmem:[%s1706 + $0x48] sm:$0xff]
        %v1717 = vld [vmem:[%s1706 + $0x50] sm:$0xff]
        %v1718 = vld [vmem:[%s1706 + $0x58] sm:$0xff]
        %v1719 = vld [vmem:[%s1706 + $0x60] sm:$0xff]
        %v1720 = vld [vmem:[%s1706 + $0x68] sm:$0xff]
        %v1721 = vld [vmem:[%s1706 + $0x70] sm:$0xff]
        %v1722 = vld [vmem:[%s1706 + $0x78] sm:$0xff]
        %v1723 = vld [vmem:[%s1706 + $0x80] sm:$0xff]
        %v1724 = vld [vmem:[%s1706 + $0x88] sm:$0xff]
        %v1725 = vld [vmem:[%s1706 + $0x90] sm:$0xff]
        %v1726 = vld [vmem:[%s1706 + $0x98] sm:$0xff]
        %v1727 = vld [vmem:[%s1706 + $0xa0] sm:$0xff]
        %v1728 = vld [vmem:[%s1706 + $0xa8] sm:$0xff]
        %v1729 = vld [vmem:[%s1706 + $0xb0] sm:$0xff]
        %v1730 = vld [vmem:[%s1706 + $0xb8] sm:$0xff]
        %v1731 = vld [vmem:[%s1706 + $0xc0] sm:$0xff]
        %v1732 = vld [vmem:[%s1706 + $0xc8] sm:$0xff]
        %v1733 = vld [vmem:[%s1706 + $0xd0] sm:$0xff]
        %v1734 = vld [vmem:[%s1706 + $0xd8] sm:$0xff]
        %v1735 = vld [vmem:[%s1706 + $0xe0] sm:$0xff]
        %v1736 = vld [vmem:[%s1706 + $0xe8] sm:$0xff]
        %v1737 = vld [vmem:[%s1706 + $0xf0] sm:$0xff]
        %v1738 = vld [vmem:[%s1706 + $0xf8] sm:$0xff]
        %v1739 = vld [vmem:[%s1706 + $0x100] sm:$0xff]
        %v1740 = vld [vmem:[%s1706 + $0x108] sm:$0xff]
        %v1741 = vld [vmem:[%s1706 + $0x110] sm:$0xff]
        %v1742 = vld [vmem:[%s1706 + $0x118] sm:$0xff]
        %v1743 = vld [vmem:[%s1706 + $0x120] sm:$0xff]
        %v1744 = vld [vmem:[%s1706 + $0x128] sm:$0xff]
        %v1745 = vld [vmem:[%s1706 + $0x130] sm:$0xff]
        %v1746 = vld [vmem:[%s1706 + $0x138] sm:$0xff]
        %v1747 = vld [vmem:[%s1706 + $0x140] sm:$0xff]
        %v1748 = vld [vmem:[%s1706 + $0x148] sm:$0xff]
        %v1749 = vld [vmem:[%s1706 + $0x150] sm:$0xff]
        %v1750 = vld [vmem:[%s1706 + $0x158] sm:$0xff]
        %v1751 = vld [vmem:[%s1706 + $0x160] sm:$0xff]
        %v1752 = vld [vmem:[%s1706 + $0x168] sm:$0xff]
        %v1753 = vld [vmem:[%s1706 + $0x170] sm:$0xff]
        %v1754 = vld [vmem:[%s1706 + $0x178] sm:$0xff]
        %v1755 = vld [vmem:[%s1706 + $0x180] sm:$0xff]
        %v1756 = vld [vmem:[%s1706 + $0x188] sm:$0xff]
        %v1757 = vld [vmem:[%s1706 + $0x190] sm:$0xff]
        %v1758 = vld [vmem:[%s1706 + $0x198] sm:$0xff]
        %v1759 = vld [vmem:[%s1706 + $0x1a0] sm:$0xff]
        %v1760 = vld [vmem:[%s1706 + $0x1a8] sm:$0xff]
        %v1761 = vld [vmem:[%s1706 + $0x1b0] sm:$0x1]
        %v1762 = vld [vmem:[%s1706 + $0x1b8] sm:$0x1]
        %v1763 = vld [vmem:[%s1706 + $0x1c0] sm:$0x1]
        %v1764 = vld [vmem:[%s1706 + $0x1c8] sm:$0x1]
        %v1765 = vld [vmem:[%s1706 + $0x1d0] sm:$0x1]
        %v1766 = vld [vmem:[%s1706 + $0x1d8] sm:$0x1]
        %v1767 = vld [vmem:[%s1706 + $0x1e0] sm:$0x1]
        %v1768 = vld [vmem:[%s1706 + $0x1e8] sm:$0x1]
        %v1769 = vld [vmem:[%s1706 + $0x1f0] sm:$0x1]
        %v1770 = vld [vmem:[%s1706 + $0x1f8] sm:$0x1]
        %v1771 = vld [vmem:[%s1706 + $0x200] sm:$0x1]
        %v1772 = vld [vmem:[%s1706 + $0x208] sm:$0x1]
        %v1773 = vld [vmem:[%s1706 + $0x210] sm:$0x1]
        %v1774 = vld [vmem:[%s1706 + $0x218] sm:$0x1]
        %v1775 = vld [vmem:[%s1706 + $0x220] sm:$0x1]
        %v1776 = vld [vmem:[%s1706 + $0x228] sm:$0x1]
        %v1777 = vld [vmem:[%s1706 + $0x230] sm:$0x1]
        %v1778 = vld [vmem:[%s1706 + $0x238] sm:$0x1]
        %v1780 = vsel %vm850, %v1761, 0
        %v1783 = vsel %vm850, %v1762, 0
        %v1786 = vsel %vm850, %v1763, 0
        %v1789 = vsel %vm850, %v1764, 0
        %v1792 = vsel %vm850, %v1765, 0
        %v1795 = vsel %vm850, %v1766, 0
        %v1798 = vsel %vm850, %v1767, 0
        %v1801 = vsel %vm850, %v1768, 0
        %v1804 = vsel %vm850, %v1769, 0
        %v1807 = vsel %vm850, %v1770, 0
        %v1810 = vsel %vm850, %v1771, 0
        %v1813 = vsel %vm850, %v1772, 0
        %v1816 = vsel %vm850, %v1773, 0
        %v1819 = vsel %vm850, %v1774, 0
        %v1822 = vsel %vm850, %v1775, 0
        %v1825 = vsel %vm850, %v1776, 0
        %v1828 = vsel %vm850, %v1777, 0
        %v1831 = vsel %vm850, %v1778, 0
        %1833 = vmatprep.subr.mxu0 0.0
        %1834 = vmatpush1.msra.mxu0 0.0
        %1835 = vmatprep.subr.mxu0 0.0
        %1836 = vmatpush1.msra.mxu0 0.0
        %1837 = vmatprep.subr.mxu0 0.0
        %1838 = vmatpush1.msra.mxu0 0.0
        %1839 = vmatprep.subr.mxu0 0.0
        %1840 = vmatpush1.msra.mxu0 0.0
        %1841 = vmatprep.subr.mxu0 0.0
        %1842 = vmatpush1.msra.mxu0 0.0
        %1843 = vmatprep.subr.mxu0 0.0
        %1844 = vmatpush1.msra.mxu0 0.0
        %1845 = vmatprep.subr.mxu0 0.0
        %1846 = vmatpush1.msra.mxu0 0.0
        %1847 = vmatprep.subr.mxu0 0.0
        %1848 = vmatpush1.msra.mxu0 0.0
        %1849 = vmatprep.subr.mxu0 0.0
        %1850 = vmatpush1.msra.mxu0 0.0
        %1851 = vmatprep.subr.mxu0 0.0
        %1852 = vmatpush1.msra.mxu0 0.0
        %1853 = vmatprep.subr.mxu0 0.0
        %1854 = vmatpush1.msra.mxu0 0.0
        %1855 = vmatprep.subr.mxu0 0.0
        %1856 = vmatpush1.msra.mxu0 0.0
        %1857 = vmatprep.subr.mxu0 %v1783
        %1858 = vmatpush1.msra.mxu0 %v1780
        %1859 = vmatprep.subr.mxu0 %v1744
        %1860 = vmatpush1.msra.mxu0 %v1743
        %1861 = vmatprep.subr.mxu0 %v1726
        %1862 = vmatpush1.msra.mxu0 %v1725
        %1863 = vmatprep.subr.mxu0 %v1708
        %1864 = vmatpush1.msra.mxu0 %v1707
        %1865 = vmatprep.subr.mxu0 0.0
        %1866 = vmatpush2.msra.mxu0 0.0
        %1867 = vmatprep.subr.mxu0 0.0
        %1868 = vmatpush2.msra.mxu0 0.0
        %1869 = vmatprep.subr.mxu0 0.0
        %1870 = vmatpush2.msra.mxu0 0.0
        %1871 = vmatprep.subr.mxu0 0.0
        %1872 = vmatpush2.msra.mxu0 0.0
        %1873 = vmatprep.subr.mxu0 0.0
        %1874 = vmatpush2.msra.mxu0 0.0
        %1875 = vmatprep.subr.mxu0 0.0
        %1876 = vmatpush2.msra.mxu0 0.0
        %1877 = vmatprep.subr.mxu0 0.0
        %1878 = vmatpush2.msra.mxu0 0.0
        %1879 = vmatprep.subr.mxu0 0.0
        %1880 = vmatpush2.msra.mxu0 0.0
        %1881 = vmatprep.subr.mxu0 0.0
        %1882 = vmatpush2.msra.mxu0 0.0
        %1883 = vmatprep.subr.mxu0 0.0
        %1884 = vmatpush2.msra.mxu0 0.0
        %1885 = vmatprep.subr.mxu0 0.0
        %1886 = vmatpush2.msra.mxu0 0.0
        %1887 = vmatprep.subr.mxu0 0.0
        %1888 = vmatpush2.msra.mxu0 0.0
        %1889 = vmatprep.subr.mxu0 0.0
        %1890 = vmatpush2.msra.mxu0 0.0
        %1891 = vmatprep.subr.mxu0 0.0
        %1892 = vmatpush2.msra.mxu0 0.0
        %1893 = vmatprep.subr.mxu0 0.0
        %1894 = vmatpush2.msra.mxu0 0.0
        %1895 = vmatprep.subr.mxu0 0.0
        %1896 = vmatpush2.msra.mxu0 0.0
        %1897 = vmatprep.mubr.f32.mxu0 0.0
        %1898 = vmatmul.mubr.f32.gmra.mxu0 %v839
        %v1899 = vpop.f32.mrf.mxu0
        %v1900 = vadd.f32 0.0, %v1899
        %v1901 = vpop.f32.mrf.mxu0
        %v1902 = vadd.f32 0.0, %v1901
        %1903 = vmatprep.mubr.f32.mxu0 0.0
        %1904 = vmatmul.mubr.f32.gmra.mxu0 %v842
        %v1905 = vpop.f32.mrf.mxu0
        %v1906 = vadd.f32 0.0, %v1905
        %v1907 = vpop.f32.mrf.mxu0
        %v1908 = vadd.f32 0.0, %v1907
        %1909 = vmatprep.mubr.f32.mxu0 0.0
        %1910 = vmatmul.mubr.f32.gmra.mxu0 %v845
        %v1911 = vpop.f32.mrf.mxu0
        %v1912 = vadd.f32 0.0, %v1911
        %v1913 = vpop.f32.mrf.mxu0
        %v1914 = vadd.f32 0.0, %v1913
        %1915 = vmatprep.mubr.f32.mxu0 0.0
        %1916 = vmatmul.mubr.f32.gmra.mxu0 %v848
        %v1917 = vpop.f32.mrf.mxu0
        %v1918 = vadd.f32 0.0, %v1917
        %v1919 = vpop.f32.mrf.mxu0
        %v1920 = vadd.f32 0.0, %v1919
        %1921 = vdwg.mxu0
        %1922 = vmatprep.subr.mxu0 0.0
        %1923 = vmatpush1.msra.mxu0 0.0
        %1924 = vmatprep.subr.mxu0 0.0
        %1925 = vmatpush1.msra.mxu0 0.0
        %1926 = vmatprep.subr.mxu0 0.0
        %1927 = vmatpush1.msra.mxu0 0.0
        %1928 = vmatprep.subr.mxu0 0.0
        %1929 = vmatpush1.msra.mxu0 0.0
        %1930 = vmatprep.subr.mxu0 0.0
        %1931 = vmatpush1.msra.mxu0 0.0
        %1932 = vmatprep.subr.mxu0 0.0
        %1933 = vmatpush1.msra.mxu0 0.0
        %1934 = vmatprep.subr.mxu0 0.0
        %1935 = vmatpush1.msra.mxu0 0.0
        %1936 = vmatprep.subr.mxu0 0.0
        %1937 = vmatpush1.msra.mxu0 0.0
        %1938 = vmatprep.subr.mxu0 0.0
        %1939 = vmatpush1.msra.mxu0 0.0
        %1940 = vmatprep.subr.mxu0 0.0
        %1941 = vmatpush1.msra.mxu0 0.0
        %1942 = vmatprep.subr.mxu0 0.0
        %1943 = vmatpush1.msra.mxu0 0.0
        %1944 = vmatprep.subr.mxu0 0.0
        %1945 = vmatpush1.msra.mxu0 0.0
        %1946 = vmatprep.subr.mxu0 %v1789
        %1947 = vmatpush1.msra.mxu0 %v1786
        %1948 = vmatprep.subr.mxu0 %v1746
        %1949 = vmatpush1.msra.mxu0 %v1745
        %1950 = vmatprep.subr.mxu0 %v1728
        %1951 = vmatpush1.msra.mxu0 %v1727
        %1952 = vmatprep.subr.mxu0 %v1710
        %1953 = vmatpush1.msra.mxu0 %v1709
        %1954 = vmatprep.subr.mxu0 0.0
        %1955 = vmatpush2.msra.mxu0 0.0
        %1956 = vmatprep.subr.mxu0 0.0
        %1957 = vmatpush2.msra.mxu0 0.0
        %1958 = vmatprep.subr.mxu0 0.0
        %1959 = vmatpush2.msra.mxu0 0.0
        %1960 = vmatprep.subr.mxu0 0.0
        %1961 = vmatpush2.msra.mxu0 0.0
        %1962 = vmatprep.subr.mxu0 0.0
        %1963 = vmatpush2.msra.mxu0 0.0
        %1964 = vmatprep.subr.mxu0 0.0
        %1965 = vmatpush2.msra.mxu0 0.0
        %1966 = vmatprep.subr.mxu0 0.0
        %1967 = vmatpush2.msra.mxu0 0.0
        %1968 = vmatprep.subr.mxu0 0.0
        %1969 = vmatpush2.msra.mxu0 0.0
        %1970 = vmatprep.subr.mxu0 0.0
        %1971 = vmatpush2.msra.mxu0 0.0
        %1972 = vmatprep.subr.mxu0 0.0
        %1973 = vmatpush2.msra.mxu0 0.0
        %1974 = vmatprep.subr.mxu0 0.0
        %1975 = vmatpush2.msra.mxu0 0.0
        %1976 = vmatprep.subr.mxu0 0.0
        %1977 = vmatpush2.msra.mxu0 0.0
        %1978 = vmatprep.subr.mxu0 0.0
        %1979 = vmatpush2.msra.mxu0 0.0
        %1980 = vmatprep.subr.mxu0 0.0
        %1981 = vmatpush2.msra.mxu0 0.0
        %1982 = vmatprep.subr.mxu0 0.0
        %1983 = vmatpush2.msra.mxu0 0.0
        %1984 = vmatprep.subr.mxu0 0.0
        %1985 = vmatpush2.msra.mxu0 0.0
        %1986 = vmatprep.mubr.f32.mxu0 0.0
        %1987 = vmatmul.mubr.f32.gmra.mxu0 %v839
        %v1988 = vpop.f32.mrf.mxu0
        %v1989 = vadd.f32 0.0, %v1988
        %v1990 = vpop.f32.mrf.mxu0
        %v1991 = vadd.f32 0.0, %v1990
        %1992 = vmatprep.mubr.f32.mxu0 0.0
        %1993 = vmatmul.mubr.f32.gmra.mxu0 %v842
        %v1994 = vpop.f32.mrf.mxu0
        %v1995 = vadd.f32 0.0, %v1994
        %v1996 = vpop.f32.mrf.mxu0
        %v1997 = vadd.f32 0.0, %v1996
        %1998 = vmatprep.mubr.f32.mxu0 0.0
        %1999 = vmatmul.mubr.f32.gmra.mxu0 %v845
        %v2000 = vpop.f32.mrf.mxu0
        %v2001 = vadd.f32 0.0, %v2000
        %v2002 = vpop.f32.mrf.mxu0
        %v2003 = vadd.f32 0.0, %v2002
        %2004 = vmatprep.mubr.f32.mxu0 0.0
        %2005 = vmatmul.mubr.f32.gmra.mxu0 %v848
        %v2006 = vpop.f32.mrf.mxu0
        %v2007 = vadd.f32 0.0, %v2006
        %v2008 = vpop.f32.mrf.mxu0
        %v2009 = vadd.f32 0.0, %v2008
        %2010 = vdwg.mxu0
        %2011 = vmatprep.subr.mxu0 0.0
        %2012 = vmatpush1.msra.mxu0 0.0
        %2013 = vmatprep.subr.mxu0 0.0
        %2014 = vmatpush1.msra.mxu0 0.0
        %2015 = vmatprep.subr.mxu0 0.0
        %2016 = vmatpush1.msra.mxu0 0.0
        %2017 = vmatprep.subr.mxu0 0.0
        %2018 = vmatpush1.msra.mxu0 0.0
        %2019 = vmatprep.subr.mxu0 0.0
        %2020 = vmatpush1.msra.mxu0 0.0
        %2021 = vmatprep.subr.mxu0 0.0
        %2022 = vmatpush1.msra.mxu0 0.0
        %2023 = vmatprep.subr.mxu0 0.0
        %2024 = vmatpush1.msra.mxu0 0.0
        %2025 = vmatprep.subr.mxu0 0.0
        %2026 = vmatpush1.msra.mxu0 0.0
        %2027 = vmatprep.subr.mxu0 0.0
        %2028 = vmatpush1.msra.mxu0 0.0
        %2029 = vmatprep.subr.mxu0 0.0
        %2030 = vmatpush1.msra.mxu0 0.0
        %2031 = vmatprep.subr.mxu0 0.0
        %2032 = vmatpush1.msra.mxu0 0.0
        %2033 = vmatprep.subr.mxu0 0.0
        %2034 = vmatpush1.msra.mxu0 0.0
        %2035 = vmatprep.subr.mxu0 %v1795
        %2036 = vmatpush1.msra.mxu0 %v1792
        %2037 = vmatprep.subr.mxu0 %v1748
        %2038 = vmatpush1.msra.mxu0 %v1747
        %2039 = vmatprep.subr.mxu0 %v1730
        %2040 = vmatpush1.msra.mxu0 %v1729
        %2041 = vmatprep.subr.mxu0 %v1712
        %2042 = vmatpush1.msra.mxu0 %v1711
        %2043 = vmatprep.subr.mxu0 0.0
        %2044 = vmatpush2.msra.mxu0 0.0
        %2045 = vmatprep.subr.mxu0 0.0
        %2046 = vmatpush2.msra.mxu0 0.0
        %2047 = vmatprep.subr.mxu0 0.0
        %2048 = vmatpush2.msra.mxu0 0.0
        %2049 = vmatprep.subr.mxu0 0.0
        %2050 = vmatpush2.msra.mxu0 0.0
        %2051 = vmatprep.subr.mxu0 0.0
        %2052 = vmatpush2.msra.mxu0 0.0
        %2053 = vmatprep.subr.mxu0 0.0
        %2054 = vmatpush2.msra.mxu0 0.0
        %2055 = vmatprep.subr.mxu0 0.0
        %2056 = vmatpush2.msra.mxu0 0.0
        %2057 = vmatprep.subr.mxu0 0.0
        %2058 = vmatpush2.msra.mxu0 0.0
        %2059 = vmatprep.subr.mxu0 0.0
        %2060 = vmatpush2.msra.mxu0 0.0
        %2061 = vmatprep.subr.mxu0 0.0
        %2062 = vmatpush2.msra.mxu0 0.0
        %2063 = vmatprep.subr.mxu0 0.0
        %2064 = vmatpush2.msra.mxu0 0.0
        %2065 = vmatprep.subr.mxu0 0.0
        %2066 = vmatpush2.msra.mxu0 0.0
        %2067 = vmatprep.subr.mxu0 0.0
        %2068 = vmatpush2.msra.mxu0 0.0
        %2069 = vmatprep.subr.mxu0 0.0
        %2070 = vmatpush2.msra.mxu0 0.0
        %2071 = vmatprep.subr.mxu0 0.0
        %2072 = vmatpush2.msra.mxu0 0.0
        %2073 = vmatprep.subr.mxu0 0.0
        %2074 = vmatpush2.msra.mxu0 0.0
        %2075 = vmatprep.mubr.f32.mxu0 0.0
        %2076 = vmatmul.mubr.f32.gmra.mxu0 %v839
        %v2077 = vpop.f32.mrf.mxu0
        %v2078 = vadd.f32 0.0, %v2077
        %v2079 = vpop.f32.mrf.mxu0
        %v2080 = vadd.f32 0.0, %v2079
        %2081 = vmatprep.mubr.f32.mxu0 0.0
        %2082 = vmatmul.mubr.f32.gmra.mxu0 %v842
        %v2083 = vpop.f32.mrf.mxu0
        %v2084 = vadd.f32 0.0, %v2083
        %v2085 = vpop.f32.mrf.mxu0
        %v2086 = vadd.f32 0.0, %v2085
        %2087 = vmatprep.mubr.f32.mxu0 0.0
        %2088 = vmatmul.mubr.f32.gmra.mxu0 %v845
        %v2089 = vpop.f32.mrf.mxu0
        %v2090 = vadd.f32 0.0, %v2089
        %v2091 = vpop.f32.mrf.mxu0
        %v2092 = vadd.f32 0.0, %v2091
        %2093 = vmatprep.mubr.f32.mxu0 0.0
        %2094 = vmatmul.mubr.f32.gmra.mxu0 %v848
        %v2095 = vpop.f32.mrf.mxu0
        %v2096 = vadd.f32 0.0, %v2095
        %v2097 = vpop.f32.mrf.mxu0
        %v2098 = vadd.f32 0.0, %v2097
        %2099 = vdwg.mxu0
        %2100 = vmatprep.subr.mxu0 0.0
        %2101 = vmatpush1.msra.mxu0 0.0
        %2102 = vmatprep.subr.mxu0 0.0
        %2103 = vmatpush1.msra.mxu0 0.0
        %2104 = vmatprep.subr.mxu0 0.0
        %2105 = vmatpush1.msra.mxu0 0.0
        %2106 = vmatprep.subr.mxu0 0.0
        %2107 = vmatpush1.msra.mxu0 0.0
        %2108 = vmatprep.subr.mxu0 0.0
        %2109 = vmatpush1.msra.mxu0 0.0
        %2110 = vmatprep.subr.mxu0 0.0
        %2111 = vmatpush1.msra.mxu0 0.0
        %2112 = vmatprep.subr.mxu0 0.0
        %2113 = vmatpush1.msra.mxu0 0.0
        %2114 = vmatprep.subr.mxu0 0.0
        %2115 = vmatpush1.msra.mxu0 0.0
        %2116 = vmatprep.subr.mxu0 0.0
        %2117 = vmatpush1.msra.mxu0 0.0
        %2118 = vmatprep.subr.mxu0 0.0
        %2119 = vmatpush1.msra.mxu0 0.0
        %2120 = vmatprep.subr.mxu0 0.0
        %2121 = vmatpush1.msra.mxu0 0.0
        %2122 = vmatprep.subr.mxu0 0.0
        %2123 = vmatpush1.msra.mxu0 0.0
        %2124 = vmatprep.subr.mxu0 %v1801
        %2125 = vmatpush1.msra.mxu0 %v1798
        %2126 = vmatprep.subr.mxu0 %v1750
        %2127 = vmatpush1.msra.mxu0 %v1749
        %2128 = vmatprep.subr.mxu0 %v1732
        %2129 = vmatpush1.msra.mxu0 %v1731
        %2130 = vmatprep.subr.mxu0 %v1714
        %2131 = vmatpush1.msra.mxu0 %v1713
        %2132 = vmatprep.subr.mxu0 0.0
        %2133 = vmatpush2.msra.mxu0 0.0
        %2134 = vmatprep.subr.mxu0 0.0
        %2135 = vmatpush2.msra.mxu0 0.0
        %2136 = vmatprep.subr.mxu0 0.0
        %2137 = vmatpush2.msra.mxu0 0.0
        %2138 = vmatprep.subr.mxu0 0.0
        %2139 = vmatpush2.msra.mxu0 0.0
        %2140 = vmatprep.subr.mxu0 0.0
        %2141 = vmatpush2.msra.mxu0 0.0
        %2142 = vmatprep.subr.mxu0 0.0
        %2143 = vmatpush2.msra.mxu0 0.0
        %2144 = vmatprep.subr.mxu0 0.0
        %2145 = vmatpush2.msra.mxu0 0.0
        %2146 = vmatprep.subr.mxu0 0.0
        %2147 = vmatpush2.msra.mxu0 0.0
        %2148 = vmatprep.subr.mxu0 0.0
        %2149 = vmatpush2.msra.mxu0 0.0
        %2150 = vmatprep.subr.mxu0 0.0
        %2151 = vmatpush2.msra.mxu0 0.0
        %2152 = vmatprep.subr.mxu0 0.0
        %2153 = vmatpush2.msra.mxu0 0.0
        %2154 = vmatprep.subr.mxu0 0.0
        %2155 = vmatpush2.msra.mxu0 0.0
        %2156 = vmatprep.subr.mxu0 0.0
        %2157 = vmatpush2.msra.mxu0 0.0
        %2158 = vmatprep.subr.mxu0 0.0
        %2159 = vmatpush2.msra.mxu0 0.0
        %2160 = vmatprep.subr.mxu0 0.0
        %2161 = vmatpush2.msra.mxu0 0.0
        %2162 = vmatprep.subr.mxu0 0.0
        %2163 = vmatpush2.msra.mxu0 0.0
        %2164 = vmatprep.mubr.f32.mxu0 0.0
        %2165 = vmatmul.mubr.f32.gmra.mxu0 %v839
        %v2166 = vpop.f32.mrf.mxu0
        %v2167 = vadd.f32 0.0, %v2166
        %v2168 = vpop.f32.mrf.mxu0
        %v2169 = vadd.f32 0.0, %v2168
        %2170 = vmatprep.mubr.f32.mxu0 0.0
        %2171 = vmatmul.mubr.f32.gmra.mxu0 %v842
        %v2172 = vpop.f32.mrf.mxu0
        %v2173 = vadd.f32 0.0, %v2172
        %v2174 = vpop.f32.mrf.mxu0
        %v2175 = vadd.f32 0.0, %v2174
        %2176 = vmatprep.mubr.f32.mxu0 0.0
        %2177 = vmatmul.mubr.f32.gmra.mxu0 %v845
        %v2178 = vpop.f32.mrf.mxu0
        %v2179 = vadd.f32 0.0, %v2178
        %v2180 = vpop.f32.mrf.mxu0
        %v2181 = vadd.f32 0.0, %v2180
        %2182 = vmatprep.mubr.f32.mxu0 0.0
        %2183 = vmatmul.mubr.f32.gmra.mxu0 %v848
        %v2184 = vpop.f32.mrf.mxu0
        %v2185 = vadd.f32 0.0, %v2184
        %v2186 = vpop.f32.mrf.mxu0
        %v2187 = vadd.f32 0.0, %v2186
        %2188 = vdwg.mxu0
        %2189 = vmatprep.subr.mxu0 0.0
        %2190 = vmatpush1.msra.mxu0 0.0
        %2191 = vmatprep.subr.mxu0 0.0
        %2192 = vmatpush1.msra.mxu0 0.0
        %2193 = vmatprep.subr.mxu0 0.0
        %2194 = vmatpush1.msra.mxu0 0.0
        %2195 = vmatprep.subr.mxu0 0.0
        %2196 = vmatpush1.msra.mxu0 0.0
        %2197 = vmatprep.subr.mxu0 0.0
        %2198 = vmatpush1.msra.mxu0 0.0
        %2199 = vmatprep.subr.mxu0 0.0
        %2200 = vmatpush1.msra.mxu0 0.0
        %2201 = vmatprep.subr.mxu0 0.0
        %2202 = vmatpush1.msra.mxu0 0.0
        %2203 = vmatprep.subr.mxu0 0.0
        %2204 = vmatpush1.msra.mxu0 0.0
        %2205 = vmatprep.subr.mxu0 0.0
        %2206 = vmatpush1.msra.mxu0 0.0
        %2207 = vmatprep.subr.mxu0 0.0
        %2208 = vmatpush1.msra.mxu0 0.0
        %2209 = vmatprep.subr.mxu0 0.0
        %2210 = vmatpush1.msra.mxu0 0.0
        %2211 = vmatprep.subr.mxu0 0.0
        %2212 = vmatpush1.msra.mxu0 0.0
        %2213 = vmatprep.subr.mxu0 %v1807
        %2214 = vmatpush1.msra.mxu0 %v1804
        %2215 = vmatprep.subr.mxu0 %v1752
        %2216 = vmatpush1.msra.mxu0 %v1751
        %2217 = vmatprep.subr.mxu0 %v1734
        %2218 = vmatpush1.msra.mxu0 %v1733
        %2219 = vmatprep.subr.mxu0 %v1716
        %2220 = vmatpush1.msra.mxu0 %v1715
        %2221 = vmatprep.subr.mxu0 0.0
        %2222 = vmatpush2.msra.mxu0 0.0
        %2223 = vmatprep.subr.mxu0 0.0
        %2224 = vmatpush2.msra.mxu0 0.0
        %2225 = vmatprep.subr.mxu0 0.0
        %2226 = vmatpush2.msra.mxu0 0.0
        %2227 = vmatprep.subr.mxu0 0.0
        %2228 = vmatpush2.msra.mxu0 0.0
        %2229 = vmatprep.subr.mxu0 0.0
        %2230 = vmatpush2.msra.mxu0 0.0
        %2231 = vmatprep.subr.mxu0 0.0
        %2232 = vmatpush2.msra.mxu0 0.0
        %2233 = vmatprep.subr.mxu0 0.0
        %2234 = vmatpush2.msra.mxu0 0.0
        %2235 = vmatprep.subr.mxu0 0.0
        %2236 = vmatpush2.msra.mxu0 0.0
        %2237 = vmatprep.subr.mxu0 0.0
        %2238 = vmatpush2.msra.mxu0 0.0
        %2239 = vmatprep.subr.mxu0 0.0
        %2240 = vmatpush2.msra.mxu0 0.0
        %2241 = vmatprep.subr.mxu0 0.0
        %2242 = vmatpush2.msra.mxu0 0.0
        %2243 = vmatprep.subr.mxu0 0.0
        %2244 = vmatpush2.msra.mxu0 0.0
        %2245 = vmatprep.subr.mxu0 0.0
        %2246 = vmatpush2.msra.mxu0 0.0
        %2247 = vmatprep.subr.mxu0 0.0
        %2248 = vmatpush2.msra.mxu0 0.0
        %2249 = vmatprep.subr.mxu0 0.0
        %2250 = vmatpush2.msra.mxu0 0.0
        %2251 = vmatprep.subr.mxu0 0.0
        %2252 = vmatpush2.msra.mxu0 0.0
        %2253 = vmatprep.mubr.f32.mxu0 0.0
        %2254 = vmatmul.mubr.f32.gmra.mxu0 %v839
        %v2255 = vpop.f32.mrf.mxu0
        %v2256 = vadd.f32 0.0, %v2255
        %v2257 = vpop.f32.mrf.mxu0
        %v2258 = vadd.f32 0.0, %v2257
        %2259 = vmatprep.mubr.f32.mxu0 0.0
        %2260 = vmatmul.mubr.f32.gmra.mxu0 %v842
        %v2261 = vpop.f32.mrf.mxu0
        %v2262 = vadd.f32 0.0, %v2261
        %v2263 = vpop.f32.mrf.mxu0
        %v2264 = vadd.f32 0.0, %v2263
        %2265 = vmatprep.mubr.f32.mxu0 0.0
        %2266 = vmatmul.mubr.f32.gmra.mxu0 %v845
        %v2267 = vpop.f32.mrf.mxu0
        %v2268 = vadd.f32 0.0, %v2267
        %v2269 = vpop.f32.mrf.mxu0
        %v2270 = vadd.f32 0.0, %v2269
        %2271 = vmatprep.mubr.f32.mxu0 0.0
        %2272 = vmatmul.mubr.f32.gmra.mxu0 %v848
        %v2273 = vpop.f32.mrf.mxu0
        %v2274 = vadd.f32 0.0, %v2273
        %v2275 = vpop.f32.mrf.mxu0
        %v2276 = vadd.f32 0.0, %v2275
        %2277 = vdwg.mxu0
        %2278 = vmatprep.subr.mxu0 0.0
        %2279 = vmatpush1.msra.mxu0 0.0
        %2280 = vmatprep.subr.mxu0 0.0
        %2281 = vmatpush1.msra.mxu0 0.0
        %2282 = vmatprep.subr.mxu0 0.0
        %2283 = vmatpush1.msra.mxu0 0.0
        %2284 = vmatprep.subr.mxu0 0.0
        %2285 = vmatpush1.msra.mxu0 0.0
        %2286 = vmatprep.subr.mxu0 0.0
        %2287 = vmatpush1.msra.mxu0 0.0
        %2288 = vmatprep.subr.mxu0 0.0
        %2289 = vmatpush1.msra.mxu0 0.0
        %2290 = vmatprep.subr.mxu0 0.0
        %2291 = vmatpush1.msra.mxu0 0.0
        %2292 = vmatprep.subr.mxu0 0.0
        %2293 = vmatpush1.msra.mxu0 0.0
        %2294 = vmatprep.subr.mxu0 0.0
        %2295 = vmatpush1.msra.mxu0 0.0
        %2296 = vmatprep.subr.mxu0 0.0
        %2297 = vmatpush1.msra.mxu0 0.0
        %2298 = vmatprep.subr.mxu0 0.0
        %2299 = vmatpush1.msra.mxu0 0.0
        %2300 = vmatprep.subr.mxu0 0.0
        %2301 = vmatpush1.msra.mxu0 0.0
        %2302 = vmatprep.subr.mxu0 %v1813
        %2303 = vmatpush1.msra.mxu0 %v1810
        %2304 = vmatprep.subr.mxu0 %v1754
        %2305 = vmatpush1.msra.mxu0 %v1753
        %2306 = vmatprep.subr.mxu0 %v1736
        %2307 = vmatpush1.msra.mxu0 %v1735
        %2308 = vmatprep.subr.mxu0 %v1718
        %2309 = vmatpush1.msra.mxu0 %v1717
        %2310 = vmatprep.subr.mxu0 0.0
        %2311 = vmatpush2.msra.mxu0 0.0
        %2312 = vmatprep.subr.mxu0 0.0
        %2313 = vmatpush2.msra.mxu0 0.0
        %2314 = vmatprep.subr.mxu0 0.0
        %2315 = vmatpush2.msra.mxu0 0.0
        %2316 = vmatprep.subr.mxu0 0.0
        %2317 = vmatpush2.msra.mxu0 0.0
        %2318 = vmatprep.subr.mxu0 0.0
        %2319 = vmatpush2.msra.mxu0 0.0
        %2320 = vmatprep.subr.mxu0 0.0
        %2321 = vmatpush2.msra.mxu0 0.0
        %2322 = vmatprep.subr.mxu0 0.0
        %2323 = vmatpush2.msra.mxu0 0.0
        %2324 = vmatprep.subr.mxu0 0.0
        %2325 = vmatpush2.msra.mxu0 0.0
        %2326 = vmatprep.subr.mxu0 0.0
        %2327 = vmatpush2.msra.mxu0 0.0
        %2328 = vmatprep.subr.mxu0 0.0
        %2329 = vmatpush2.msra.mxu0 0.0
        %2330 = vmatprep.subr.mxu0 0.0
        %2331 = vmatpush2.msra.mxu0 0.0
        %2332 = vmatprep.subr.mxu0 0.0
        %2333 = vmatpush2.msra.mxu0 0.0
        %2334 = vmatprep.subr.mxu0 0.0
        %2335 = vmatpush2.msra.mxu0 0.0
        %2336 = vmatprep.subr.mxu0 0.0
        %2337 = vmatpush2.msra.mxu0 0.0
        %2338 = vmatprep.subr.mxu0 0.0
        %2339 = vmatpush2.msra.mxu0 0.0
        %2340 = vmatprep.subr.mxu0 0.0
        %2341 = vmatpush2.msra.mxu0 0.0
        %2342 = vmatprep.mubr.f32.mxu0 0.0
        %2343 = vmatmul.mubr.f32.gmra.mxu0 %v839
        %v2344 = vpop.f32.mrf.mxu0
        %v2345 = vadd.f32 0.0, %v2344
        %v2346 = vpop.f32.mrf.mxu0
        %v2347 = vadd.f32 0.0, %v2346
        %2348 = vmatprep.mubr.f32.mxu0 0.0
        %2349 = vmatmul.mubr.f32.gmra.mxu0 %v842
        %v2350 = vpop.f32.mrf.mxu0
        %v2351 = vadd.f32 0.0, %v2350
        %v2352 = vpop.f32.mrf.mxu0
        %v2353 = vadd.f32 0.0, %v2352
        %2354 = vmatprep.mubr.f32.mxu0 0.0
        %2355 = vmatmul.mubr.f32.gmra.mxu0 %v845
        %v2356 = vpop.f32.mrf.mxu0
        %v2357 = vadd.f32 0.0, %v2356
        %v2358 = vpop.f32.mrf.mxu0
        %v2359 = vadd.f32 0.0, %v2358
        %2360 = vmatprep.mubr.f32.mxu0 0.0
        %2361 = vmatmul.mubr.f32.gmra.mxu0 %v848
        %v2362 = vpop.f32.mrf.mxu0
        %v2363 = vadd.f32 0.0, %v2362
        %v2364 = vpop.f32.mrf.mxu0
        %v2365 = vadd.f32 0.0, %v2364
        %2366 = vdwg.mxu0
        %2367 = vmatprep.subr.mxu0 0.0
        %2368 = vmatpush1.msra.mxu0 0.0
        %2369 = vmatprep.subr.mxu0 0.0
        %2370 = vmatpush1.msra.mxu0 0.0
        %2371 = vmatprep.subr.mxu0 0.0
        %2372 = vmatpush1.msra.mxu0 0.0
        %2373 = vmatprep.subr.mxu0 0.0
        %2374 = vmatpush1.msra.mxu0 0.0
        %2375 = vmatprep.subr.mxu0 0.0
        %2376 = vmatpush1.msra.mxu0 0.0
        %2377 = vmatprep.subr.mxu0 0.0
        %2378 = vmatpush1.msra.mxu0 0.0
        %2379 = vmatprep.subr.mxu0 0.0
        %2380 = vmatpush1.msra.mxu0 0.0
        %2381 = vmatprep.subr.mxu0 0.0
        %2382 = vmatpush1.msra.mxu0 0.0
        %2383 = vmatprep.subr.mxu0 0.0
        %2384 = vmatpush1.msra.mxu0 0.0
        %2385 = vmatprep.subr.mxu0 0.0
        %2386 = vmatpush1.msra.mxu0 0.0
        %2387 = vmatprep.subr.mxu0 0.0
        %2388 = vmatpush1.msra.mxu0 0.0
        %2389 = vmatprep.subr.mxu0 0.0
        %2390 = vmatpush1.msra.mxu0 0.0
        %2391 = vmatprep.subr.mxu0 %v1819
        %2392 = vmatpush1.msra.mxu0 %v1816
        %2393 = vmatprep.subr.mxu0 %v1756
        %2394 = vmatpush1.msra.mxu0 %v1755
        %2395 = vmatprep.subr.mxu0 %v1738
        %2396 = vmatpush1.msra.mxu0 %v1737
        %2397 = vmatprep.subr.mxu0 %v1720
        %2398 = vmatpush1.msra.mxu0 %v1719
        %2399 = vmatprep.subr.mxu0 0.0
        %2400 = vmatpush2.msra.mxu0 0.0
        %2401 = vmatprep.subr.mxu0 0.0
        %2402 = vmatpush2.msra.mxu0 0.0
        %2403 = vmatprep.subr.mxu0 0.0
        %2404 = vmatpush2.msra.mxu0 0.0
        %2405 = vmatprep.subr.mxu0 0.0
        %2406 = vmatpush2.msra.mxu0 0.0
        %2407 = vmatprep.subr.mxu0 0.0
        %2408 = vmatpush2.msra.mxu0 0.0
        %2409 = vmatprep.subr.mxu0 0.0
        %2410 = vmatpush2.msra.mxu0 0.0
        %2411 = vmatprep.subr.mxu0 0.0
        %2412 = vmatpush2.msra.mxu0 0.0
        %2413 = vmatprep.subr.mxu0 0.0
        %2414 = vmatpush2.msra.mxu0 0.0
        %2415 = vmatprep.subr.mxu0 0.0
        %2416 = vmatpush2.msra.mxu0 0.0
        %2417 = vmatprep.subr.mxu0 0.0
        %2418 = vmatpush2.msra.mxu0 0.0
        %2419 = vmatprep.subr.mxu0 0.0
        %2420 = vmatpush2.msra.mxu0 0.0
        %2421 = vmatprep.subr.mxu0 0.0
        %2422 = vmatpush2.msra.mxu0 0.0
        %2423 = vmatprep.subr.mxu0 0.0
        %2424 = vmatpush2.msra.mxu0 0.0
        %2425 = vmatprep.subr.mxu0 0.0
        %2426 = vmatpush2.msra.mxu0 0.0
        %2427 = vmatprep.subr.mxu0 0.0
        %2428 = vmatpush2.msra.mxu0 0.0
        %2429 = vmatprep.subr.mxu0 0.0
        %2430 = vmatpush2.msra.mxu0 0.0
        %2431 = vmatprep.mubr.f32.mxu0 0.0
        %2432 = vmatmul.mubr.f32.gmra.mxu0 %v839
        %v2433 = vpop.f32.mrf.mxu0
        %v2434 = vadd.f32 0.0, %v2433
        %v2435 = vpop.f32.mrf.mxu0
        %v2436 = vadd.f32 0.0, %v2435
        %2437 = vmatprep.mubr.f32.mxu0 0.0
        %2438 = vmatmul.mubr.f32.gmra.mxu0 %v842
        %v2439 = vpop.f32.mrf.mxu0
        %v2440 = vadd.f32 0.0, %v2439
        %v2441 = vpop.f32.mrf.mxu0
        %v2442 = vadd.f32 0.0, %v2441
        %2443 = vmatprep.mubr.f32.mxu0 0.0
        %2444 = vmatmul.mubr.f32.gmra.mxu0 %v845
        %v2445 = vpop.f32.mrf.mxu0
        %v2446 = vadd.f32 0.0, %v2445
        %v2447 = vpop.f32.mrf.mxu0
        %v2448 = vadd.f32 0.0, %v2447
        %2449 = vmatprep.mubr.f32.mxu0 0.0
        %2450 = vmatmul.mubr.f32.gmra.mxu0 %v848
        %v2451 = vpop.f32.mrf.mxu0
        %v2452 = vadd.f32 0.0, %v2451
        %v2453 = vpop.f32.mrf.mxu0
        %v2454 = vadd.f32 0.0, %v2453
        %2455 = vdwg.mxu0
        %2456 = vmatprep.subr.mxu0 0.0
        %2457 = vmatpush1.msra.mxu0 0.0
        %2458 = vmatprep.subr.mxu0 0.0
        %2459 = vmatpush1.msra.mxu0 0.0
        %2460 = vmatprep.subr.mxu0 0.0
        %2461 = vmatpush1.msra.mxu0 0.0
        %2462 = vmatprep.subr.mxu0 0.0
        %2463 = vmatpush1.msra.mxu0 0.0
        %2464 = vmatprep.subr.mxu0 0.0
        %2465 = vmatpush1.msra.mxu0 0.0
        %2466 = vmatprep.subr.mxu0 0.0
        %2467 = vmatpush1.msra.mxu0 0.0
        %2468 = vmatprep.subr.mxu0 0.0
        %2469 = vmatpush1.msra.mxu0 0.0
        %2470 = vmatprep.subr.mxu0 0.0
        %2471 = vmatpush1.msra.mxu0 0.0
        %2472 = vmatprep.subr.mxu0 0.0
        %2473 = vmatpush1.msra.mxu0 0.0
        %2474 = vmatprep.subr.mxu0 0.0
        %2475 = vmatpush1.msra.mxu0 0.0
        %2476 = vmatprep.subr.mxu0 0.0
        %2477 = vmatpush1.msra.mxu0 0.0
        %2478 = vmatprep.subr.mxu0 0.0
        %2479 = vmatpush1.msra.mxu0 0.0
        %2480 = vmatprep.subr.mxu0 %v1825
        %2481 = vmatpush1.msra.mxu0 %v1822
        %2482 = vmatprep.subr.mxu0 %v1758
        %2483 = vmatpush1.msra.mxu0 %v1757
        %2484 = vmatprep.subr.mxu0 %v1740
        %2485 = vmatpush1.msra.mxu0 %v1739
        %2486 = vmatprep.subr.mxu0 %v1722
        %2487 = vmatpush1.msra.mxu0 %v1721
        %2488 = vmatprep.subr.mxu0 0.0
        %2489 = vmatpush2.msra.mxu0 0.0
        %2490 = vmatprep.subr.mxu0 0.0
        %2491 = vmatpush2.msra.mxu0 0.0
        %2492 = vmatprep.subr.mxu0 0.0
        %2493 = vmatpush2.msra.mxu0 0.0
        %2494 = vmatprep.subr.mxu0 0.0
        %2495 = vmatpush2.msra.mxu0 0.0
        %2496 = vmatprep.subr.mxu0 0.0
        %2497 = vmatpush2.msra.mxu0 0.0
        %2498 = vmatprep.subr.mxu0 0.0
        %2499 = vmatpush2.msra.mxu0 0.0
        %2500 = vmatprep.subr.mxu0 0.0
        %2501 = vmatpush2.msra.mxu0 0.0
        %2502 = vmatprep.subr.mxu0 0.0
        %2503 = vmatpush2.msra.mxu0 0.0
        %2504 = vmatprep.subr.mxu0 0.0
        %2505 = vmatpush2.msra.mxu0 0.0
        %2506 = vmatprep.subr.mxu0 0.0
        %2507 = vmatpush2.msra.mxu0 0.0
        %2508 = vmatprep.subr.mxu0 0.0
        %2509 = vmatpush2.msra.mxu0 0.0
        %2510 = vmatprep.subr.mxu0 0.0
        %2511 = vmatpush2.msra.mxu0 0.0
        %2512 = vmatprep.subr.mxu0 0.0
        %2513 = vmatpush2.msra.mxu0 0.0
        %2514 = vmatprep.subr.mxu0 0.0
        %2515 = vmatpush2.msra.mxu0 0.0
        %2516 = vmatprep.subr.mxu0 0.0
        %2517 = vmatpush2.msra.mxu0 0.0
        %2518 = vmatprep.subr.mxu0 0.0
        %2519 = vmatpush2.msra.mxu0 0.0
        %2520 = vmatprep.mubr.f32.mxu0 0.0
        %2521 = vmatmul.mubr.f32.gmra.mxu0 %v839
        %v2522 = vpop.f32.mrf.mxu0
        %v2523 = vadd.f32 0.0, %v2522
        %v2524 = vpop.f32.mrf.mxu0
        %v2525 = vadd.f32 0.0, %v2524
        %2526 = vmatprep.mubr.f32.mxu0 0.0
        %2527 = vmatmul.mubr.f32.gmra.mxu0 %v842
        %v2528 = vpop.f32.mrf.mxu0
        %v2529 = vadd.f32 0.0, %v2528
        %v2530 = vpop.f32.mrf.mxu0
        %v2531 = vadd.f32 0.0, %v2530
        %2532 = vmatprep.mubr.f32.mxu0 0.0
        %2533 = vmatmul.mubr.f32.gmra.mxu0 %v845
        %v2534 = vpop.f32.mrf.mxu0
        %v2535 = vadd.f32 0.0, %v2534
        %v2536 = vpop.f32.mrf.mxu0
        %v2537 = vadd.f32 0.0, %v2536
        %2538 = vmatprep.mubr.f32.mxu0 0.0
        %2539 = vmatmul.mubr.f32.gmra.mxu0 %v848
        %v2540 = vpop.f32.mrf.mxu0
        %v2541 = vadd.f32 0.0, %v2540
        %v2542 = vpop.f32.mrf.mxu0
        %v2543 = vadd.f32 0.0, %v2542
        %2544 = vdwg.mxu0
        %2545 = vmatprep.subr.mxu0 0.0
        %2546 = vmatpush1.msra.mxu0 0.0
        %2547 = vmatprep.subr.mxu0 0.0
        %2548 = vmatpush1.msra.mxu0 0.0
        %2549 = vmatprep.subr.mxu0 0.0
        %2550 = vmatpush1.msra.mxu0 0.0
        %2551 = vmatprep.subr.mxu0 0.0
        %2552 = vmatpush1.msra.mxu0 0.0
        %2553 = vmatprep.subr.mxu0 0.0
        %2554 = vmatpush1.msra.mxu0 0.0
        %2555 = vmatprep.subr.mxu0 0.0
        %2556 = vmatpush1.msra.mxu0 0.0
        %2557 = vmatprep.subr.mxu0 0.0
        %2558 = vmatpush1.msra.mxu0 0.0
        %2559 = vmatprep.subr.mxu0 0.0
        %2560 = vmatpush1.msra.mxu0 0.0
        %2561 = vmatprep.subr.mxu0 0.0
        %2562 = vmatpush1.msra.mxu0 0.0
        %2563 = vmatprep.subr.mxu0 0.0
        %2564 = vmatpush1.msra.mxu0 0.0
        %2565 = vmatprep.subr.mxu0 0.0
        %2566 = vmatpush1.msra.mxu0 0.0
        %2567 = vmatprep.subr.mxu0 0.0
        %2568 = vmatpush1.msra.mxu0 0.0
        %2569 = vmatprep.subr.mxu0 %v1831
        %2570 = vmatpush1.msra.mxu0 %v1828
        %2571 = vmatprep.subr.mxu0 %v1760
        %2572 = vmatpush1.msra.mxu0 %v1759
        %2573 = vmatprep.subr.mxu0 %v1742
        %2574 = vmatpush1.msra.mxu0 %v1741
        %2575 = vmatprep.subr.mxu0 %v1724
        %2576 = vmatpush1.msra.mxu0 %v1723
        %2577 = vmatprep.subr.mxu0 0.0
        %2578 = vmatpush2.msra.mxu0 0.0
        %2579 = vmatprep.subr.mxu0 0.0
        %2580 = vmatpush2.msra.mxu0 0.0
        %2581 = vmatprep.subr.mxu0 0.0
        %2582 = vmatpush2.msra.mxu0 0.0
        %2583 = vmatprep.subr.mxu0 0.0
        %2584 = vmatpush2.msra.mxu0 0.0
        %2585 = vmatprep.subr.mxu0 0.0
        %2586 = vmatpush2.msra.mxu0 0.0
        %2587 = vmatprep.subr.mxu0 0.0
        %2588 = vmatpush2.msra.mxu0 0.0
        %2589 = vmatprep.subr.mxu0 0.0
        %2590 = vmatpush2.msra.mxu0 0.0
        %2591 = vmatprep.subr.mxu0 0.0
        %2592 = vmatpush2.msra.mxu0 0.0
        %2593 = vmatprep.subr.mxu0 0.0
        %2594 = vmatpush2.msra.mxu0 0.0
        %2595 = vmatprep.subr.mxu0 0.0
        %2596 = vmatpush2.msra.mxu0 0.0
        %2597 = vmatprep.subr.mxu0 0.0
        %2598 = vmatpush2.msra.mxu0 0.0
        %2599 = vmatprep.subr.mxu0 0.0
        %2600 = vmatpush2.msra.mxu0 0.0
        %2601 = vmatprep.subr.mxu0 0.0
        %2602 = vmatpush2.msra.mxu0 0.0
        %2603 = vmatprep.subr.mxu0 0.0
        %2604 = vmatpush2.msra.mxu0 0.0
        %2605 = vmatprep.subr.mxu0 0.0
        %2606 = vmatpush2.msra.mxu0 0.0
        %2607 = vmatprep.subr.mxu0 0.0
        %2608 = vmatpush2.msra.mxu0 0.0
        %2609 = vmatprep.mubr.f32.mxu0 0.0
        %2610 = vmatmul.mubr.f32.gmra.mxu0 %v839
        %v2611 = vpop.f32.mrf.mxu0
        %v2612 = vadd.f32 0.0, %v2611
        %v2613 = vpop.f32.mrf.mxu0
        %v2614 = vadd.f32 0.0, %v2613
        %2615 = vmatprep.mubr.f32.mxu0 0.0
        %2616 = vmatmul.mubr.f32.gmra.mxu0 %v842
        %v2617 = vpop.f32.mrf.mxu0
        %v2618 = vadd.f32 0.0, %v2617
        %v2619 = vpop.f32.mrf.mxu0
        %v2620 = vadd.f32 0.0, %v2619
        %2621 = vmatprep.mubr.f32.mxu0 0.0
        %2622 = vmatmul.mubr.f32.gmra.mxu0 %v845
        %v2623 = vpop.f32.mrf.mxu0
        %v2624 = vadd.f32 0.0, %v2623
        %v2625 = vpop.f32.mrf.mxu0
        %v2626 = vadd.f32 0.0, %v2625
        %2627 = vmatprep.mubr.f32.mxu0 0.0
        %2628 = vmatmul.mubr.f32.gmra.mxu0 %v848
        %v2629 = vpop.f32.mrf.mxu0
        %v2630 = vadd.f32 0.0, %v2629
        %v2631 = vpop.f32.mrf.mxu0
        %v2632 = vadd.f32 0.0, %v2631
        %2633 = vdwg.mxu0
        %s2634 = scalar_lea.vmem %s739, 1152 [#allocation2]
        %v2635 = vld [vmem:[%s2634] sm:$0xff]
        %v2636 = vld [vmem:[%s2634 + $0x8] sm:$0xff]
        %v2637 = vld [vmem:[%s2634 + $0x10] sm:$0xff]
        %v2638 = vld [vmem:[%s2634 + $0x18] sm:$0xff]
        %v2639 = vld [vmem:[%s2634 + $0x20] sm:$0xff]
        %v2640 = vld [vmem:[%s2634 + $0x28] sm:$0xff]
        %v2641 = vld [vmem:[%s2634 + $0x30] sm:$0xff]
        %v2642 = vld [vmem:[%s2634 + $0x38] sm:$0xff]
        %v2643 = vld [vmem:[%s2634 + $0x40] sm:$0xff]
        %v2644 = vld [vmem:[%s2634 + $0x48] sm:$0xff]
        %v2645 = vld [vmem:[%s2634 + $0x50] sm:$0xff]
        %v2646 = vld [vmem:[%s2634 + $0x58] sm:$0xff]
        %v2647 = vld [vmem:[%s2634 + $0x60] sm:$0xff]
        %v2648 = vld [vmem:[%s2634 + $0x68] sm:$0xff]
        %v2649 = vld [vmem:[%s2634 + $0x70] sm:$0xff]
        %v2650 = vld [vmem:[%s2634 + $0x78] sm:$0xff]
        %v2651 = vld [vmem:[%s2634 + $0x80] sm:$0xff]
        %v2652 = vld [vmem:[%s2634 + $0x88] sm:$0xff]
        %v2653 = vld [vmem:[%s2634 + $0x90] sm:$0xff]
        %v2654 = vld [vmem:[%s2634 + $0x98] sm:$0xff]
        %v2655 = vld [vmem:[%s2634 + $0xa0] sm:$0xff]
        %v2656 = vld [vmem:[%s2634 + $0xa8] sm:$0xff]
        %v2657 = vld [vmem:[%s2634 + $0xb0] sm:$0xff]
        %v2658 = vld [vmem:[%s2634 + $0xb8] sm:$0xff]
        %v2659 = vld [vmem:[%s2634 + $0xc0] sm:$0xff]
        %v2660 = vld [vmem:[%s2634 + $0xc8] sm:$0xff]
        %v2661 = vld [vmem:[%s2634 + $0xd0] sm:$0xff]
        %v2662 = vld [vmem:[%s2634 + $0xd8] sm:$0xff]
        %v2663 = vld [vmem:[%s2634 + $0xe0] sm:$0xff]
        %v2664 = vld [vmem:[%s2634 + $0xe8] sm:$0xff]
        %v2665 = vld [vmem:[%s2634 + $0xf0] sm:$0xff]
        %v2666 = vld [vmem:[%s2634 + $0xf8] sm:$0xff]
        %v2667 = vld [vmem:[%s2634 + $0x100] sm:$0xff]
        %v2668 = vld [vmem:[%s2634 + $0x108] sm:$0xff]
        %v2669 = vld [vmem:[%s2634 + $0x110] sm:$0xff]
        %v2670 = vld [vmem:[%s2634 + $0x118] sm:$0xff]
        %v2671 = vld [vmem:[%s2634 + $0x120] sm:$0xff]
        %v2672 = vld [vmem:[%s2634 + $0x128] sm:$0xff]
        %v2673 = vld [vmem:[%s2634 + $0x130] sm:$0xff]
        %v2674 = vld [vmem:[%s2634 + $0x138] sm:$0xff]
        %v2675 = vld [vmem:[%s2634 + $0x140] sm:$0xff]
        %v2676 = vld [vmem:[%s2634 + $0x148] sm:$0xff]
        %v2677 = vld [vmem:[%s2634 + $0x150] sm:$0xff]
        %v2678 = vld [vmem:[%s2634 + $0x158] sm:$0xff]
        %v2679 = vld [vmem:[%s2634 + $0x160] sm:$0xff]
        %v2680 = vld [vmem:[%s2634 + $0x168] sm:$0xff]
        %v2681 = vld [vmem:[%s2634 + $0x170] sm:$0xff]
        %v2682 = vld [vmem:[%s2634 + $0x178] sm:$0xff]
        %v2683 = vld [vmem:[%s2634 + $0x180] sm:$0xff]
        %v2684 = vld [vmem:[%s2634 + $0x188] sm:$0xff]
        %v2685 = vld [vmem:[%s2634 + $0x190] sm:$0xff]
        %v2686 = vld [vmem:[%s2634 + $0x198] sm:$0xff]
        %v2687 = vld [vmem:[%s2634 + $0x1a0] sm:$0xff]
        %v2688 = vld [vmem:[%s2634 + $0x1a8] sm:$0xff]
        %v2689 = vld [vmem:[%s2634 + $0x1b0] sm:$0x1]
        %v2690 = vld [vmem:[%s2634 + $0x1b8] sm:$0x1]
        %v2691 = vld [vmem:[%s2634 + $0x1c0] sm:$0x1]
        %v2692 = vld [vmem:[%s2634 + $0x1c8] sm:$0x1]
        %v2693 = vld [vmem:[%s2634 + $0x1d0] sm:$0x1]
        %v2694 = vld [vmem:[%s2634 + $0x1d8] sm:$0x1]
        %v2695 = vld [vmem:[%s2634 + $0x1e0] sm:$0x1]
        %v2696 = vld [vmem:[%s2634 + $0x1e8] sm:$0x1]
        %v2697 = vld [vmem:[%s2634 + $0x1f0] sm:$0x1]
        %v2698 = vld [vmem:[%s2634 + $0x1f8] sm:$0x1]
        %v2699 = vld [vmem:[%s2634 + $0x200] sm:$0x1]
        %v2700 = vld [vmem:[%s2634 + $0x208] sm:$0x1]
        %v2701 = vld [vmem:[%s2634 + $0x210] sm:$0x1]
        %v2702 = vld [vmem:[%s2634 + $0x218] sm:$0x1]
        %v2703 = vld [vmem:[%s2634 + $0x220] sm:$0x1]
        %v2704 = vld [vmem:[%s2634 + $0x228] sm:$0x1]
        %v2705 = vld [vmem:[%s2634 + $0x230] sm:$0x1]
        %v2706 = vld [vmem:[%s2634 + $0x238] sm:$0x1]
        %v2708 = vsel %vm850, %v2689, 0
        %v2711 = vsel %vm850, %v2690, 0
        %v2714 = vsel %vm850, %v2691, 0
        %v2717 = vsel %vm850, %v2692, 0
        %v2720 = vsel %vm850, %v2693, 0
        %v2723 = vsel %vm850, %v2694, 0
        %v2726 = vsel %vm850, %v2695, 0
        %v2729 = vsel %vm850, %v2696, 0
        %v2732 = vsel %vm850, %v2697, 0
        %v2735 = vsel %vm850, %v2698, 0
        %v2738 = vsel %vm850, %v2699, 0
        %v2741 = vsel %vm850, %v2700, 0
        %v2744 = vsel %vm850, %v2701, 0
        %v2747 = vsel %vm850, %v2702, 0
        %v2750 = vsel %vm850, %v2703, 0
        %v2753 = vsel %vm850, %v2704, 0
        %v2756 = vsel %vm850, %v2705, 0
        %v2759 = vsel %vm850, %v2706, 0
        %2761 = vmatprep.subr.mxu0 0.0
        %2762 = vmatpush1.msra.mxu0 0.0
        %2763 = vmatprep.subr.mxu0 0.0
        %2764 = vmatpush1.msra.mxu0 0.0
        %2765 = vmatprep.subr.mxu0 0.0
        %2766 = vmatpush1.msra.mxu0 0.0
        %2767 = vmatprep.subr.mxu0 0.0
        %2768 = vmatpush1.msra.mxu0 0.0
        %2769 = vmatprep.subr.mxu0 0.0
        %2770 = vmatpush1.msra.mxu0 0.0
        %2771 = vmatprep.subr.mxu0 0.0
        %2772 = vmatpush1.msra.mxu0 0.0
        %2773 = vmatprep.subr.mxu0 0.0
        %2774 = vmatpush1.msra.mxu0 0.0
        %2775 = vmatprep.subr.mxu0 0.0
        %2776 = vmatpush1.msra.mxu0 0.0
        %2777 = vmatprep.subr.mxu0 0.0
        %2778 = vmatpush1.msra.mxu0 0.0
        %2779 = vmatprep.subr.mxu0 0.0
        %2780 = vmatpush1.msra.mxu0 0.0
        %2781 = vmatprep.subr.mxu0 0.0
        %2782 = vmatpush1.msra.mxu0 0.0
        %2783 = vmatprep.subr.mxu0 0.0
        %2784 = vmatpush1.msra.mxu0 0.0
        %2785 = vmatprep.subr.mxu0 %v2711
        %2786 = vmatpush1.msra.mxu0 %v2708
        %2787 = vmatprep.subr.mxu0 %v2672
        %2788 = vmatpush1.msra.mxu0 %v2671
        %2789 = vmatprep.subr.mxu0 %v2654
        %2790 = vmatpush1.msra.mxu0 %v2653
        %2791 = vmatprep.subr.mxu0 %v2636
        %2792 = vmatpush1.msra.mxu0 %v2635
        %2793 = vmatprep.subr.mxu0 0.0
        %2794 = vmatpush2.msra.mxu0 0.0
        %2795 = vmatprep.subr.mxu0 0.0
        %2796 = vmatpush2.msra.mxu0 0.0
        %2797 = vmatprep.subr.mxu0 0.0
        %2798 = vmatpush2.msra.mxu0 0.0
        %2799 = vmatprep.subr.mxu0 0.0
        %2800 = vmatpush2.msra.mxu0 0.0
        %2801 = vmatprep.subr.mxu0 0.0
        %2802 = vmatpush2.msra.mxu0 0.0
        %2803 = vmatprep.subr.mxu0 0.0
        %2804 = vmatpush2.msra.mxu0 0.0
        %2805 = vmatprep.subr.mxu0 0.0
        %2806 = vmatpush2.msra.mxu0 0.0
        %2807 = vmatprep.subr.mxu0 0.0
        %2808 = vmatpush2.msra.mxu0 0.0
        %2809 = vmatprep.subr.mxu0 0.0
        %2810 = vmatpush2.msra.mxu0 0.0
        %2811 = vmatprep.subr.mxu0 0.0
        %2812 = vmatpush2.msra.mxu0 0.0
        %2813 = vmatprep.subr.mxu0 0.0
        %2814 = vmatpush2.msra.mxu0 0.0
        %2815 = vmatprep.subr.mxu0 0.0
        %2816 = vmatpush2.msra.mxu0 0.0
        %2817 = vmatprep.subr.mxu0 0.0
        %2818 = vmatpush2.msra.mxu0 0.0
        %2819 = vmatprep.subr.mxu0 0.0
        %2820 = vmatpush2.msra.mxu0 0.0
        %2821 = vmatprep.subr.mxu0 0.0
        %2822 = vmatpush2.msra.mxu0 0.0
        %2823 = vmatprep.subr.mxu0 0.0
        %2824 = vmatpush2.msra.mxu0 0.0
        %2825 = vmatprep.mubr.f32.mxu0 0.0
        %2826 = vmatmul.mubr.f32.gmra.mxu0 %v839
        %v2827 = vpop.f32.mrf.mxu0
        %v2828 = vadd.f32 0.0, %v2827
        %v2829 = vpop.f32.mrf.mxu0
        %v2830 = vadd.f32 0.0, %v2829
        %2831 = vmatprep.mubr.f32.mxu0 0.0
        %2832 = vmatmul.mubr.f32.gmra.mxu0 %v842
        %v2833 = vpop.f32.mrf.mxu0
        %v2834 = vadd.f32 0.0, %v2833
        %v2835 = vpop.f32.mrf.mxu0
        %v2836 = vadd.f32 0.0, %v2835
        %2837 = vmatprep.mubr.f32.mxu0 0.0
        %2838 = vmatmul.mubr.f32.gmra.mxu0 %v845
        %v2839 = vpop.f32.mrf.mxu0
        %v2840 = vadd.f32 0.0, %v2839
        %v2841 = vpop.f32.mrf.mxu0
        %v2842 = vadd.f32 0.0, %v2841
        %2843 = vmatprep.mubr.f32.mxu0 0.0
        %2844 = vmatmul.mubr.f32.gmra.mxu0 %v848
        %v2845 = vpop.f32.mrf.mxu0
        %v2846 = vadd.f32 0.0, %v2845
        %v2847 = vpop.f32.mrf.mxu0
        %v2848 = vadd.f32 0.0, %v2847
        %2849 = vdwg.mxu0
        %2850 = vmatprep.subr.mxu0 0.0
        %2851 = vmatpush1.msra.mxu0 0.0
        %2852 = vmatprep.subr.mxu0 0.0
        %2853 = vmatpush1.msra.mxu0 0.0
        %2854 = vmatprep.subr.mxu0 0.0
        %2855 = vmatpush1.msra.mxu0 0.0
        %2856 = vmatprep.subr.mxu0 0.0
        %2857 = vmatpush1.msra.mxu0 0.0
        %2858 = vmatprep.subr.mxu0 0.0
        %2859 = vmatpush1.msra.mxu0 0.0
        %2860 = vmatprep.subr.mxu0 0.0
        %2861 = vmatpush1.msra.mxu0 0.0
        %2862 = vmatprep.subr.mxu0 0.0
        %2863 = vmatpush1.msra.mxu0 0.0
        %2864 = vmatprep.subr.mxu0 0.0
        %2865 = vmatpush1.msra.mxu0 0.0
        %2866 = vmatprep.subr.mxu0 0.0
        %2867 = vmatpush1.msra.mxu0 0.0
        %2868 = vmatprep.subr.mxu0 0.0
        %2869 = vmatpush1.msra.mxu0 0.0
        %2870 = vmatprep.subr.mxu0 0.0
        %2871 = vmatpush1.msra.mxu0 0.0
        %2872 = vmatprep.subr.mxu0 0.0
        %2873 = vmatpush1.msra.mxu0 0.0
        %2874 = vmatprep.subr.mxu0 %v2717
        %2875 = vmatpush1.msra.mxu0 %v2714
        %2876 = vmatprep.subr.mxu0 %v2674
        %2877 = vmatpush1.msra.mxu0 %v2673
        %2878 = vmatprep.subr.mxu0 %v2656
        %2879 = vmatpush1.msra.mxu0 %v2655
        %2880 = vmatprep.subr.mxu0 %v2638
        %2881 = vmatpush1.msra.mxu0 %v2637
        %2882 = vmatprep.subr.mxu0 0.0
        %2883 = vmatpush2.msra.mxu0 0.0
        %2884 = vmatprep.subr.mxu0 0.0
        %2885 = vmatpush2.msra.mxu0 0.0
        %2886 = vmatprep.subr.mxu0 0.0
        %2887 = vmatpush2.msra.mxu0 0.0
        %2888 = vmatprep.subr.mxu0 0.0
        %2889 = vmatpush2.msra.mxu0 0.0
        %2890 = vmatprep.subr.mxu0 0.0
        %2891 = vmatpush2.msra.mxu0 0.0
        %2892 = vmatprep.subr.mxu0 0.0
        %2893 = vmatpush2.msra.mxu0 0.0
        %2894 = vmatprep.subr.mxu0 0.0
        %2895 = vmatpush2.msra.mxu0 0.0
        %2896 = vmatprep.subr.mxu0 0.0
        %2897 = vmatpush2.msra.mxu0 0.0
        %2898 = vmatprep.subr.mxu0 0.0
        %2899 = vmatpush2.msra.mxu0 0.0
        %2900 = vmatprep.subr.mxu0 0.0
        %2901 = vmatpush2.msra.mxu0 0.0
        %2902 = vmatprep.subr.mxu0 0.0
        %2903 = vmatpush2.msra.mxu0 0.0
        %2904 = vmatprep.subr.mxu0 0.0
        %2905 = vmatpush2.msra.mxu0 0.0
        %2906 = vmatprep.subr.mxu0 0.0
        %2907 = vmatpush2.msra.mxu0 0.0
        %2908 = vmatprep.subr.mxu0 0.0
        %2909 = vmatpush2.msra.mxu0 0.0
        %2910 = vmatprep.subr.mxu0 0.0
        %2911 = vmatpush2.msra.mxu0 0.0
        %2912 = vmatprep.subr.mxu0 0.0
        %2913 = vmatpush2.msra.mxu0 0.0
        %2914 = vmatprep.mubr.f32.mxu0 0.0
        %2915 = vmatmul.mubr.f32.gmra.mxu0 %v839
        %v2916 = vpop.f32.mrf.mxu0
        %v2917 = vadd.f32 0.0, %v2916
        %v2918 = vpop.f32.mrf.mxu0
        %v2919 = vadd.f32 0.0, %v2918
        %2920 = vmatprep.mubr.f32.mxu0 0.0
        %2921 = vmatmul.mubr.f32.gmra.mxu0 %v842
        %v2922 = vpop.f32.mrf.mxu0
        %v2923 = vadd.f32 0.0, %v2922
        %v2924 = vpop.f32.mrf.mxu0
        %v2925 = vadd.f32 0.0, %v2924
        %2926 = vmatprep.mubr.f32.mxu0 0.0
        %2927 = vmatmul.mubr.f32.gmra.mxu0 %v845
        %v2928 = vpop.f32.mrf.mxu0
        %v2929 = vadd.f32 0.0, %v2928
        %v2930 = vpop.f32.mrf.mxu0
        %v2931 = vadd.f32 0.0, %v2930
        %2932 = vmatprep.mubr.f32.mxu0 0.0
        %2933 = vmatmul.mubr.f32.gmra.mxu0 %v848
        %v2934 = vpop.f32.mrf.mxu0
        %v2935 = vadd.f32 0.0, %v2934
        %v2936 = vpop.f32.mrf.mxu0
        %v2937 = vadd.f32 0.0, %v2936
        %2938 = vdwg.mxu0
        %2939 = vmatprep.subr.mxu0 0.0
        %2940 = vmatpush1.msra.mxu0 0.0
        %2941 = vmatprep.subr.mxu0 0.0
        %2942 = vmatpush1.msra.mxu0 0.0
        %2943 = vmatprep.subr.mxu0 0.0
        %2944 = vmatpush1.msra.mxu0 0.0
        %2945 = vmatprep.subr.mxu0 0.0
        %2946 = vmatpush1.msra.mxu0 0.0
        %2947 = vmatprep.subr.mxu0 0.0
        %2948 = vmatpush1.msra.mxu0 0.0
        %2949 = vmatprep.subr.mxu0 0.0
        %2950 = vmatpush1.msra.mxu0 0.0
        %2951 = vmatprep.subr.mxu0 0.0
        %2952 = vmatpush1.msra.mxu0 0.0
        %2953 = vmatprep.subr.mxu0 0.0
        %2954 = vmatpush1.msra.mxu0 0.0
        %2955 = vmatprep.subr.mxu0 0.0
        %2956 = vmatpush1.msra.mxu0 0.0
        %2957 = vmatprep.subr.mxu0 0.0
        %2958 = vmatpush1.msra.mxu0 0.0
        %2959 = vmatprep.subr.mxu0 0.0
        %2960 = vmatpush1.msra.mxu0 0.0
        %2961 = vmatprep.subr.mxu0 0.0
        %2962 = vmatpush1.msra.mxu0 0.0
        %2963 = vmatprep.subr.mxu0 %v2723
        %2964 = vmatpush1.msra.mxu0 %v2720
        %2965 = vmatprep.subr.mxu0 %v2676
        %2966 = vmatpush1.msra.mxu0 %v2675
        %2967 = vmatprep.subr.mxu0 %v2658
        %2968 = vmatpush1.msra.mxu0 %v2657
        %2969 = vmatprep.subr.mxu0 %v2640
        %2970 = vmatpush1.msra.mxu0 %v2639
        %2971 = vmatprep.subr.mxu0 0.0
        %2972 = vmatpush2.msra.mxu0 0.0
        %2973 = vmatprep.subr.mxu0 0.0
        %2974 = vmatpush2.msra.mxu0 0.0
        %2975 = vmatprep.subr.mxu0 0.0
        %2976 = vmatpush2.msra.mxu0 0.0
        %2977 = vmatprep.subr.mxu0 0.0
        %2978 = vmatpush2.msra.mxu0 0.0
        %2979 = vmatprep.subr.mxu0 0.0
        %2980 = vmatpush2.msra.mxu0 0.0
        %2981 = vmatprep.subr.mxu0 0.0
        %2982 = vmatpush2.msra.mxu0 0.0
        %2983 = vmatprep.subr.mxu0 0.0
        %2984 = vmatpush2.msra.mxu0 0.0
        %2985 = vmatprep.subr.mxu0 0.0
        %2986 = vmatpush2.msra.mxu0 0.0
        %2987 = vmatprep.subr.mxu0 0.0
        %2988 = vmatpush2.msra.mxu0 0.0
        %2989 = vmatprep.subr.mxu0 0.0
        %2990 = vmatpush2.msra.mxu0 0.0
        %2991 = vmatprep.subr.mxu0 0.0
        %2992 = vmatpush2.msra.mxu0 0.0
        %2993 = vmatprep.subr.mxu0 0.0
        %2994 = vmatpush2.msra.mxu0 0.0
        %2995 = vmatprep.subr.mxu0 0.0
        %2996 = vmatpush2.msra.mxu0 0.0
        %2997 = vmatprep.subr.mxu0 0.0
        %2998 = vmatpush2.msra.mxu0 0.0
        %2999 = vmatprep.subr.mxu0 0.0
        %3000 = vmatpush2.msra.mxu0 0.0
        %3001 = vmatprep.subr.mxu0 0.0
        %3002 = vmatpush2.msra.mxu0 0.0
        %3003 = vmatprep.mubr.f32.mxu0 0.0
        %3004 = vmatmul.mubr.f32.gmra.mxu0 %v839
        %v3005 = vpop.f32.mrf.mxu0
        %v3006 = vadd.f32 0.0, %v3005
        %v3007 = vpop.f32.mrf.mxu0
        %v3008 = vadd.f32 0.0, %v3007
        %3009 = vmatprep.mubr.f32.mxu0 0.0
        %3010 = vmatmul.mubr.f32.gmra.mxu0 %v842
        %v3011 = vpop.f32.mrf.mxu0
        %v3012 = vadd.f32 0.0, %v3011
        %v3013 = vpop.f32.mrf.mxu0
        %v3014 = vadd.f32 0.0, %v3013
        %3015 = vmatprep.mubr.f32.mxu0 0.0
        %3016 = vmatmul.mubr.f32.gmra.mxu0 %v845
        %v3017 = vpop.f32.mrf.mxu0
        %v3018 = vadd.f32 0.0, %v3017
        %v3019 = vpop.f32.mrf.mxu0
        %v3020 = vadd.f32 0.0, %v3019
        %3021 = vmatprep.mubr.f32.mxu0 0.0
        %3022 = vmatmul.mubr.f32.gmra.mxu0 %v848
        %v3023 = vpop.f32.mrf.mxu0
        %v3024 = vadd.f32 0.0, %v3023
        %v3025 = vpop.f32.mrf.mxu0
        %v3026 = vadd.f32 0.0, %v3025
        %3027 = vdwg.mxu0
        %3028 = vmatprep.subr.mxu0 0.0
        %3029 = vmatpush1.msra.mxu0 0.0
        %3030 = vmatprep.subr.mxu0 0.0
        %3031 = vmatpush1.msra.mxu0 0.0
        %3032 = vmatprep.subr.mxu0 0.0
        %3033 = vmatpush1.msra.mxu0 0.0
        %3034 = vmatprep.subr.mxu0 0.0
        %3035 = vmatpush1.msra.mxu0 0.0
        %3036 = vmatprep.subr.mxu0 0.0
        %3037 = vmatpush1.msra.mxu0 0.0
        %3038 = vmatprep.subr.mxu0 0.0
        %3039 = vmatpush1.msra.mxu0 0.0
        %3040 = vmatprep.subr.mxu0 0.0
        %3041 = vmatpush1.msra.mxu0 0.0
        %3042 = vmatprep.subr.mxu0 0.0
        %3043 = vmatpush1.msra.mxu0 0.0
        %3044 = vmatprep.subr.mxu0 0.0
        %3045 = vmatpush1.msra.mxu0 0.0
        %3046 = vmatprep.subr.mxu0 0.0
        %3047 = vmatpush1.msra.mxu0 0.0
        %3048 = vmatprep.subr.mxu0 0.0
        %3049 = vmatpush1.msra.mxu0 0.0
        %3050 = vmatprep.subr.mxu0 0.0
        %3051 = vmatpush1.msra.mxu0 0.0
        %3052 = vmatprep.subr.mxu0 %v2729
        %3053 = vmatpush1.msra.mxu0 %v2726
        %3054 = vmatprep.subr.mxu0 %v2678
        %3055 = vmatpush1.msra.mxu0 %v2677
        %3056 = vmatprep.subr.mxu0 %v2660
        %3057 = vmatpush1.msra.mxu0 %v2659
        %3058 = vmatprep.subr.mxu0 %v2642
        %3059 = vmatpush1.msra.mxu0 %v2641
        %3060 = vmatprep.subr.mxu0 0.0
        %3061 = vmatpush2.msra.mxu0 0.0
        %3062 = vmatprep.subr.mxu0 0.0
        %3063 = vmatpush2.msra.mxu0 0.0
        %3064 = vmatprep.subr.mxu0 0.0
        %3065 = vmatpush2.msra.mxu0 0.0
        %3066 = vmatprep.subr.mxu0 0.0
        %3067 = vmatpush2.msra.mxu0 0.0
        %3068 = vmatprep.subr.mxu0 0.0
        %3069 = vmatpush2.msra.mxu0 0.0
        %3070 = vmatprep.subr.mxu0 0.0
        %3071 = vmatpush2.msra.mxu0 0.0
        %3072 = vmatprep.subr.mxu0 0.0
        %3073 = vmatpush2.msra.mxu0 0.0
        %3074 = vmatprep.subr.mxu0 0.0
        %3075 = vmatpush2.msra.mxu0 0.0
        %3076 = vmatprep.subr.mxu0 0.0
        %3077 = vmatpush2.msra.mxu0 0.0
        %3078 = vmatprep.subr.mxu0 0.0
        %3079 = vmatpush2.msra.mxu0 0.0
        %3080 = vmatprep.subr.mxu0 0.0
        %3081 = vmatpush2.msra.mxu0 0.0
        %3082 = vmatprep.subr.mxu0 0.0
        %3083 = vmatpush2.msra.mxu0 0.0
        %3084 = vmatprep.subr.mxu0 0.0
        %3085 = vmatpush2.msra.mxu0 0.0
        %3086 = vmatprep.subr.mxu0 0.0
        %3087 = vmatpush2.msra.mxu0 0.0
        %3088 = vmatprep.subr.mxu0 0.0
        %3089 = vmatpush2.msra.mxu0 0.0
        %3090 = vmatprep.subr.mxu0 0.0
        %3091 = vmatpush2.msra.mxu0 0.0
        %3092 = vmatprep.mubr.f32.mxu0 0.0
        %3093 = vmatmul.mubr.f32.gmra.mxu0 %v839
        %v3094 = vpop.f32.mrf.mxu0
        %v3095 = vadd.f32 0.0, %v3094
        %v3096 = vpop.f32.mrf.mxu0
        %v3097 = vadd.f32 0.0, %v3096
        %3098 = vmatprep.mubr.f32.mxu0 0.0
        %3099 = vmatmul.mubr.f32.gmra.mxu0 %v842
        %v3100 = vpop.f32.mrf.mxu0
        %v3101 = vadd.f32 0.0, %v3100
        %v3102 = vpop.f32.mrf.mxu0
        %v3103 = vadd.f32 0.0, %v3102
        %3104 = vmatprep.mubr.f32.mxu0 0.0
        %3105 = vmatmul.mubr.f32.gmra.mxu0 %v845
        %v3106 = vpop.f32.mrf.mxu0
        %v3107 = vadd.f32 0.0, %v3106
        %v3108 = vpop.f32.mrf.mxu0
        %v3109 = vadd.f32 0.0, %v3108
        %3110 = vmatprep.mubr.f32.mxu0 0.0
        %3111 = vmatmul.mubr.f32.gmra.mxu0 %v848
        %v3112 = vpop.f32.mrf.mxu0
        %v3113 = vadd.f32 0.0, %v3112
        %v3114 = vpop.f32.mrf.mxu0
        %v3115 = vadd.f32 0.0, %v3114
        %3116 = vdwg.mxu0
        %3117 = vmatprep.subr.mxu0 0.0
        %3118 = vmatpush1.msra.mxu0 0.0
        %3119 = vmatprep.subr.mxu0 0.0
        %3120 = vmatpush1.msra.mxu0 0.0
        %3121 = vmatprep.subr.mxu0 0.0
        %3122 = vmatpush1.msra.mxu0 0.0
        %3123 = vmatprep.subr.mxu0 0.0
        %3124 = vmatpush1.msra.mxu0 0.0
        %3125 = vmatprep.subr.mxu0 0.0
        %3126 = vmatpush1.msra.mxu0 0.0
        %3127 = vmatprep.subr.mxu0 0.0
        %3128 = vmatpush1.msra.mxu0 0.0
        %3129 = vmatprep.subr.mxu0 0.0
        %3130 = vmatpush1.msra.mxu0 0.0
        %3131 = vmatprep.subr.mxu0 0.0
        %3132 = vmatpush1.msra.mxu0 0.0
        %3133 = vmatprep.subr.mxu0 0.0
        %3134 = vmatpush1.msra.mxu0 0.0
        %3135 = vmatprep.subr.mxu0 0.0
        %3136 = vmatpush1.msra.mxu0 0.0
        %3137 = vmatprep.subr.mxu0 0.0
        %3138 = vmatpush1.msra.mxu0 0.0
        %3139 = vmatprep.subr.mxu0 0.0
        %3140 = vmatpush1.msra.mxu0 0.0
        %3141 = vmatprep.subr.mxu0 %v2735
        %3142 = vmatpush1.msra.mxu0 %v2732
        %3143 = vmatprep.subr.mxu0 %v2680
        %3144 = vmatpush1.msra.mxu0 %v2679
        %3145 = vmatprep.subr.mxu0 %v2662
        %3146 = vmatpush1.msra.mxu0 %v2661
        %3147 = vmatprep.subr.mxu0 %v2644
        %3148 = vmatpush1.msra.mxu0 %v2643
        %3149 = vmatprep.subr.mxu0 0.0
        %3150 = vmatpush2.msra.mxu0 0.0
        %3151 = vmatprep.subr.mxu0 0.0
        %3152 = vmatpush2.msra.mxu0 0.0
        %3153 = vmatprep.subr.mxu0 0.0
        %3154 = vmatpush2.msra.mxu0 0.0
        %3155 = vmatprep.subr.mxu0 0.0
        %3156 = vmatpush2.msra.mxu0 0.0
        %3157 = vmatprep.subr.mxu0 0.0
        %3158 = vmatpush2.msra.mxu0 0.0
        %3159 = vmatprep.subr.mxu0 0.0
        %3160 = vmatpush2.msra.mxu0 0.0
        %3161 = vmatprep.subr.mxu0 0.0
        %3162 = vmatpush2.msra.mxu0 0.0
        %3163 = vmatprep.subr.mxu0 0.0
        %3164 = vmatpush2.msra.mxu0 0.0
        %3165 = vmatprep.subr.mxu0 0.0
        %3166 = vmatpush2.msra.mxu0 0.0
        %3167 = vmatprep.subr.mxu0 0.0
        %3168 = vmatpush2.msra.mxu0 0.0
        %3169 = vmatprep.subr.mxu0 0.0
        %3170 = vmatpush2.msra.mxu0 0.0
        %3171 = vmatprep.subr.mxu0 0.0
        %3172 = vmatpush2.msra.mxu0 0.0
        %3173 = vmatprep.subr.mxu0 0.0
        %3174 = vmatpush2.msra.mxu0 0.0
        %3175 = vmatprep.subr.mxu0 0.0
        %3176 = vmatpush2.msra.mxu0 0.0
        %3177 = vmatprep.subr.mxu0 0.0
        %3178 = vmatpush2.msra.mxu0 0.0
        %3179 = vmatprep.subr.mxu0 0.0
        %3180 = vmatpush2.msra.mxu0 0.0
        %3181 = vmatprep.mubr.f32.mxu0 0.0
        %3182 = vmatmul.mubr.f32.gmra.mxu0 %v839
        %v3183 = vpop.f32.mrf.mxu0
        %v3184 = vadd.f32 0.0, %v3183
        %v3185 = vpop.f32.mrf.mxu0
        %v3186 = vadd.f32 0.0, %v3185
        %3187 = vmatprep.mubr.f32.mxu0 0.0
        %3188 = vmatmul.mubr.f32.gmra.mxu0 %v842
        %v3189 = vpop.f32.mrf.mxu0
        %v3190 = vadd.f32 0.0, %v3189
        %v3191 = vpop.f32.mrf.mxu0
        %v3192 = vadd.f32 0.0, %v3191
        %3193 = vmatprep.mubr.f32.mxu0 0.0
        %3194 = vmatmul.mubr.f32.gmra.mxu0 %v845
        %v3195 = vpop.f32.mrf.mxu0
        %v3196 = vadd.f32 0.0, %v3195
        %v3197 = vpop.f32.mrf.mxu0
        %v3198 = vadd.f32 0.0, %v3197
        %3199 = vmatprep.mubr.f32.mxu0 0.0
        %3200 = vmatmul.mubr.f32.gmra.mxu0 %v848
        %v3201 = vpop.f32.mrf.mxu0
        %v3202 = vadd.f32 0.0, %v3201
        %v3203 = vpop.f32.mrf.mxu0
        %v3204 = vadd.f32 0.0, %v3203
        %3205 = vdwg.mxu0
        %3206 = vmatprep.subr.mxu0 0.0
        %3207 = vmatpush1.msra.mxu0 0.0
        %3208 = vmatprep.subr.mxu0 0.0
        %3209 = vmatpush1.msra.mxu0 0.0
        %3210 = vmatprep.subr.mxu0 0.0
        %3211 = vmatpush1.msra.mxu0 0.0
        %3212 = vmatprep.subr.mxu0 0.0
        %3213 = vmatpush1.msra.mxu0 0.0
        %3214 = vmatprep.subr.mxu0 0.0
        %3215 = vmatpush1.msra.mxu0 0.0
        %3216 = vmatprep.subr.mxu0 0.0
        %3217 = vmatpush1.msra.mxu0 0.0
        %3218 = vmatprep.subr.mxu0 0.0
        %3219 = vmatpush1.msra.mxu0 0.0
        %3220 = vmatprep.subr.mxu0 0.0
        %3221 = vmatpush1.msra.mxu0 0.0
        %3222 = vmatprep.subr.mxu0 0.0
        %3223 = vmatpush1.msra.mxu0 0.0
        %3224 = vmatprep.subr.mxu0 0.0
        %3225 = vmatpush1.msra.mxu0 0.0
        %3226 = vmatprep.subr.mxu0 0.0
        %3227 = vmatpush1.msra.mxu0 0.0
        %3228 = vmatprep.subr.mxu0 0.0
        %3229 = vmatpush1.msra.mxu0 0.0
        %3230 = vmatprep.subr.mxu0 %v2741
        %3231 = vmatpush1.msra.mxu0 %v2738
        %3232 = vmatprep.subr.mxu0 %v2682
        %3233 = vmatpush1.msra.mxu0 %v2681
        %3234 = vmatprep.subr.mxu0 %v2664
        %3235 = vmatpush1.msra.mxu0 %v2663
        %3236 = vmatprep.subr.mxu0 %v2646
        %3237 = vmatpush1.msra.mxu0 %v2645
        %3238 = vmatprep.subr.mxu0 0.0
        %3239 = vmatpush2.msra.mxu0 0.0
        %3240 = vmatprep.subr.mxu0 0.0
        %3241 = vmatpush2.msra.mxu0 0.0
        %3242 = vmatprep.subr.mxu0 0.0
        %3243 = vmatpush2.msra.mxu0 0.0
        %3244 = vmatprep.subr.mxu0 0.0
        %3245 = vmatpush2.msra.mxu0 0.0
        %3246 = vmatprep.subr.mxu0 0.0
        %3247 = vmatpush2.msra.mxu0 0.0
        %3248 = vmatprep.subr.mxu0 0.0
        %3249 = vmatpush2.msra.mxu0 0.0
        %3250 = vmatprep.subr.mxu0 0.0
        %3251 = vmatpush2.msra.mxu0 0.0
        %3252 = vmatprep.subr.mxu0 0.0
        %3253 = vmatpush2.msra.mxu0 0.0
        %3254 = vmatprep.subr.mxu0 0.0
        %3255 = vmatpush2.msra.mxu0 0.0
        %3256 = vmatprep.subr.mxu0 0.0
        %3257 = vmatpush2.msra.mxu0 0.0
        %3258 = vmatprep.subr.mxu0 0.0
        %3259 = vmatpush2.msra.mxu0 0.0
        %3260 = vmatprep.subr.mxu0 0.0
        %3261 = vmatpush2.msra.mxu0 0.0
        %3262 = vmatprep.subr.mxu0 0.0
        %3263 = vmatpush2.msra.mxu0 0.0
        %3264 = vmatprep.subr.mxu0 0.0
        %3265 = vmatpush2.msra.mxu0 0.0
        %3266 = vmatprep.subr.mxu0 0.0
        %3267 = vmatpush2.msra.mxu0 0.0
        %3268 = vmatprep.subr.mxu0 0.0
        %3269 = vmatpush2.msra.mxu0 0.0
        %3270 = vmatprep.mubr.f32.mxu0 0.0
        %3271 = vmatmul.mubr.f32.gmra.mxu0 %v839
        %v3272 = vpop.f32.mrf.mxu0
        %v3273 = vadd.f32 0.0, %v3272
        %v3274 = vpop.f32.mrf.mxu0
        %v3275 = vadd.f32 0.0, %v3274
        %3276 = vmatprep.mubr.f32.mxu0 0.0
        %3277 = vmatmul.mubr.f32.gmra.mxu0 %v842
        %v3278 = vpop.f32.mrf.mxu0
        %v3279 = vadd.f32 0.0, %v3278
        %v3280 = vpop.f32.mrf.mxu0
        %v3281 = vadd.f32 0.0, %v3280
        %3282 = vmatprep.mubr.f32.mxu0 0.0
        %3283 = vmatmul.mubr.f32.gmra.mxu0 %v845
        %v3284 = vpop.f32.mrf.mxu0
        %v3285 = vadd.f32 0.0, %v3284
        %v3286 = vpop.f32.mrf.mxu0
        %v3287 = vadd.f32 0.0, %v3286
        %3288 = vmatprep.mubr.f32.mxu0 0.0
        %3289 = vmatmul.mubr.f32.gmra.mxu0 %v848
        %v3290 = vpop.f32.mrf.mxu0
        %v3291 = vadd.f32 0.0, %v3290
        %v3292 = vpop.f32.mrf.mxu0
        %v3293 = vadd.f32 0.0, %v3292
        %3294 = vdwg.mxu0
        %3295 = vmatprep.subr.mxu0 0.0
        %3296 = vmatpush1.msra.mxu0 0.0
        %3297 = vmatprep.subr.mxu0 0.0
        %3298 = vmatpush1.msra.mxu0 0.0
        %3299 = vmatprep.subr.mxu0 0.0
        %3300 = vmatpush1.msra.mxu0 0.0
        %3301 = vmatprep.subr.mxu0 0.0
        %3302 = vmatpush1.msra.mxu0 0.0
        %3303 = vmatprep.subr.mxu0 0.0
        %3304 = vmatpush1.msra.mxu0 0.0
        %3305 = vmatprep.subr.mxu0 0.0
        %3306 = vmatpush1.msra.mxu0 0.0
        %3307 = vmatprep.subr.mxu0 0.0
        %3308 = vmatpush1.msra.mxu0 0.0
        %3309 = vmatprep.subr.mxu0 0.0
        %3310 = vmatpush1.msra.mxu0 0.0
        %3311 = vmatprep.subr.mxu0 0.0
        %3312 = vmatpush1.msra.mxu0 0.0
        %3313 = vmatprep.subr.mxu0 0.0
        %3314 = vmatpush1.msra.mxu0 0.0
        %3315 = vmatprep.subr.mxu0 0.0
        %3316 = vmatpush1.msra.mxu0 0.0
        %3317 = vmatprep.subr.mxu0 0.0
        %3318 = vmatpush1.msra.mxu0 0.0
        %3319 = vmatprep.subr.mxu0 %v2747
        %3320 = vmatpush1.msra.mxu0 %v2744
        %3321 = vmatprep.subr.mxu0 %v2684
        %3322 = vmatpush1.msra.mxu0 %v2683
        %3323 = vmatprep.subr.mxu0 %v2666
        %3324 = vmatpush1.msra.mxu0 %v2665
        %3325 = vmatprep.subr.mxu0 %v2648
        %3326 = vmatpush1.msra.mxu0 %v2647
        %3327 = vmatprep.subr.mxu0 0.0
        %3328 = vmatpush2.msra.mxu0 0.0
        %3329 = vmatprep.subr.mxu0 0.0
        %3330 = vmatpush2.msra.mxu0 0.0
        %3331 = vmatprep.subr.mxu0 0.0
        %3332 = vmatpush2.msra.mxu0 0.0
        %3333 = vmatprep.subr.mxu0 0.0
        %3334 = vmatpush2.msra.mxu0 0.0
        %3335 = vmatprep.subr.mxu0 0.0
        %3336 = vmatpush2.msra.mxu0 0.0
        %3337 = vmatprep.subr.mxu0 0.0
        %3338 = vmatpush2.msra.mxu0 0.0
        %3339 = vmatprep.subr.mxu0 0.0
        %3340 = vmatpush2.msra.mxu0 0.0
        %3341 = vmatprep.subr.mxu0 0.0
        %3342 = vmatpush2.msra.mxu0 0.0
        %3343 = vmatprep.subr.mxu0 0.0
        %3344 = vmatpush2.msra.mxu0 0.0
        %3345 = vmatprep.subr.mxu0 0.0
        %3346 = vmatpush2.msra.mxu0 0.0
        %3347 = vmatprep.subr.mxu0 0.0
        %3348 = vmatpush2.msra.mxu0 0.0
        %3349 = vmatprep.subr.mxu0 0.0
        %3350 = vmatpush2.msra.mxu0 0.0
        %3351 = vmatprep.subr.mxu0 0.0
        %3352 = vmatpush2.msra.mxu0 0.0
        %3353 = vmatprep.subr.mxu0 0.0
        %3354 = vmatpush2.msra.mxu0 0.0
        %3355 = vmatprep.subr.mxu0 0.0
        %3356 = vmatpush2.msra.mxu0 0.0
        %3357 = vmatprep.subr.mxu0 0.0
        %3358 = vmatpush2.msra.mxu0 0.0
        %3359 = vmatprep.mubr.f32.mxu0 0.0
        %3360 = vmatmul.mubr.f32.gmra.mxu0 %v839
        %v3361 = vpop.f32.mrf.mxu0
        %v3362 = vadd.f32 0.0, %v3361
        %v3363 = vpop.f32.mrf.mxu0
        %v3364 = vadd.f32 0.0, %v3363
        %3365 = vmatprep.mubr.f32.mxu0 0.0
        %3366 = vmatmul.mubr.f32.gmra.mxu0 %v842
        %v3367 = vpop.f32.mrf.mxu0
        %v3368 = vadd.f32 0.0, %v3367
        %v3369 = vpop.f32.mrf.mxu0
        %v3370 = vadd.f32 0.0, %v3369
        %3371 = vmatprep.mubr.f32.mxu0 0.0
        %3372 = vmatmul.mubr.f32.gmra.mxu0 %v845
        %v3373 = vpop.f32.mrf.mxu0
        %v3374 = vadd.f32 0.0, %v3373
        %v3375 = vpop.f32.mrf.mxu0
        %v3376 = vadd.f32 0.0, %v3375
        %3377 = vmatprep.mubr.f32.mxu0 0.0
        %3378 = vmatmul.mubr.f32.gmra.mxu0 %v848
        %v3379 = vpop.f32.mrf.mxu0
        %v3380 = vadd.f32 0.0, %v3379
        %v3381 = vpop.f32.mrf.mxu0
        %v3382 = vadd.f32 0.0, %v3381
        %3383 = vdwg.mxu0
        %3384 = vmatprep.subr.mxu0 0.0
        %3385 = vmatpush1.msra.mxu0 0.0
        %3386 = vmatprep.subr.mxu0 0.0
        %3387 = vmatpush1.msra.mxu0 0.0
        %3388 = vmatprep.subr.mxu0 0.0
        %3389 = vmatpush1.msra.mxu0 0.0
        %3390 = vmatprep.subr.mxu0 0.0
        %3391 = vmatpush1.msra.mxu0 0.0
        %3392 = vmatprep.subr.mxu0 0.0
        %3393 = vmatpush1.msra.mxu0 0.0
        %3394 = vmatprep.subr.mxu0 0.0
        %3395 = vmatpush1.msra.mxu0 0.0
        %3396 = vmatprep.subr.mxu0 0.0
        %3397 = vmatpush1.msra.mxu0 0.0
        %3398 = vmatprep.subr.mxu0 0.0
        %3399 = vmatpush1.msra.mxu0 0.0
        %3400 = vmatprep.subr.mxu0 0.0
        %3401 = vmatpush1.msra.mxu0 0.0
        %3402 = vmatprep.subr.mxu0 0.0
        %3403 = vmatpush1.msra.mxu0 0.0
        %3404 = vmatprep.subr.mxu0 0.0
        %3405 = vmatpush1.msra.mxu0 0.0
        %3406 = vmatprep.subr.mxu0 0.0
        %3407 = vmatpush1.msra.mxu0 0.0
        %3408 = vmatprep.subr.mxu0 %v2753
        %3409 = vmatpush1.msra.mxu0 %v2750
        %3410 = vmatprep.subr.mxu0 %v2686
        %3411 = vmatpush1.msra.mxu0 %v2685
        %3412 = vmatprep.subr.mxu0 %v2668
        %3413 = vmatpush1.msra.mxu0 %v2667
        %3414 = vmatprep.subr.mxu0 %v2650
        %3415 = vmatpush1.msra.mxu0 %v2649
        %3416 = vmatprep.subr.mxu0 0.0
        %3417 = vmatpush2.msra.mxu0 0.0
        %3418 = vmatprep.subr.mxu0 0.0
        %3419 = vmatpush2.msra.mxu0 0.0
        %3420 = vmatprep.subr.mxu0 0.0
        %3421 = vmatpush2.msra.mxu0 0.0
        %3422 = vmatprep.subr.mxu0 0.0
        %3423 = vmatpush2.msra.mxu0 0.0
        %3424 = vmatprep.subr.mxu0 0.0
        %3425 = vmatpush2.msra.mxu0 0.0
        %3426 = vmatprep.subr.mxu0 0.0
        %3427 = vmatpush2.msra.mxu0 0.0
        %3428 = vmatprep.subr.mxu0 0.0
        %3429 = vmatpush2.msra.mxu0 0.0
        %3430 = vmatprep.subr.mxu0 0.0
        %3431 = vmatpush2.msra.mxu0 0.0
        %3432 = vmatprep.subr.mxu0 0.0
        %3433 = vmatpush2.msra.mxu0 0.0
        %3434 = vmatprep.subr.mxu0 0.0
        %3435 = vmatpush2.msra.mxu0 0.0
        %3436 = vmatprep.subr.mxu0 0.0
        %3437 = vmatpush2.msra.mxu0 0.0
        %3438 = vmatprep.subr.mxu0 0.0
        %3439 = vmatpush2.msra.mxu0 0.0
        %3440 = vmatprep.subr.mxu0 0.0
        %3441 = vmatpush2.msra.mxu0 0.0
        %3442 = vmatprep.subr.mxu0 0.0
        %3443 = vmatpush2.msra.mxu0 0.0
        %3444 = vmatprep.subr.mxu0 0.0
        %3445 = vmatpush2.msra.mxu0 0.0
        %3446 = vmatprep.subr.mxu0 0.0
        %3447 = vmatpush2.msra.mxu0 0.0
        %3448 = vmatprep.mubr.f32.mxu0 0.0
        %3449 = vmatmul.mubr.f32.gmra.mxu0 %v839
        %v3450 = vpop.f32.mrf.mxu0
        %v3451 = vadd.f32 0.0, %v3450
        %v3452 = vpop.f32.mrf.mxu0
        %v3453 = vadd.f32 0.0, %v3452
        %3454 = vmatprep.mubr.f32.mxu0 0.0
        %3455 = vmatmul.mubr.f32.gmra.mxu0 %v842
        %v3456 = vpop.f32.mrf.mxu0
        %v3457 = vadd.f32 0.0, %v3456
        %v3458 = vpop.f32.mrf.mxu0
        %v3459 = vadd.f32 0.0, %v3458
        %3460 = vmatprep.mubr.f32.mxu0 0.0
        %3461 = vmatmul.mubr.f32.gmra.mxu0 %v845
        %v3462 = vpop.f32.mrf.mxu0
        %v3463 = vadd.f32 0.0, %v3462
        %v3464 = vpop.f32.mrf.mxu0
        %v3465 = vadd.f32 0.0, %v3464
        %3466 = vmatprep.mubr.f32.mxu0 0.0
        %3467 = vmatmul.mubr.f32.gmra.mxu0 %v848
        %v3468 = vpop.f32.mrf.mxu0
        %v3469 = vadd.f32 0.0, %v3468
        %v3470 = vpop.f32.mrf.mxu0
        %v3471 = vadd.f32 0.0, %v3470
        %3472 = vdwg.mxu0
        %3473 = vmatprep.subr.mxu0 0.0
        %3474 = vmatpush1.msra.mxu0 0.0
        %3475 = vmatprep.subr.mxu0 0.0
        %3476 = vmatpush1.msra.mxu0 0.0
        %3477 = vmatprep.subr.mxu0 0.0
        %3478 = vmatpush1.msra.mxu0 0.0
        %3479 = vmatprep.subr.mxu0 0.0
        %3480 = vmatpush1.msra.mxu0 0.0
        %3481 = vmatprep.subr.mxu0 0.0
        %3482 = vmatpush1.msra.mxu0 0.0
        %3483 = vmatprep.subr.mxu0 0.0
        %3484 = vmatpush1.msra.mxu0 0.0
        %3485 = vmatprep.subr.mxu0 0.0
        %3486 = vmatpush1.msra.mxu0 0.0
        %3487 = vmatprep.subr.mxu0 0.0
        %3488 = vmatpush1.msra.mxu0 0.0
        %3489 = vmatprep.subr.mxu0 0.0
        %3490 = vmatpush1.msra.mxu0 0.0
        %3491 = vmatprep.subr.mxu0 0.0
        %3492 = vmatpush1.msra.mxu0 0.0
        %3493 = vmatprep.subr.mxu0 0.0
        %3494 = vmatpush1.msra.mxu0 0.0
        %3495 = vmatprep.subr.mxu0 0.0
        %3496 = vmatpush1.msra.mxu0 0.0
        %3497 = vmatprep.subr.mxu0 %v2759
        %3498 = vmatpush1.msra.mxu0 %v2756
        %3499 = vmatprep.subr.mxu0 %v2688
        %3500 = vmatpush1.msra.mxu0 %v2687
        %3501 = vmatprep.subr.mxu0 %v2670
        %3502 = vmatpush1.msra.mxu0 %v2669
        %3503 = vmatprep.subr.mxu0 %v2652
        %3504 = vmatpush1.msra.mxu0 %v2651
        %3505 = vmatprep.subr.mxu0 0.0
        %3506 = vmatpush2.msra.mxu0 0.0
        %3507 = vmatprep.subr.mxu0 0.0
        %3508 = vmatpush2.msra.mxu0 0.0
        %3509 = vmatprep.subr.mxu0 0.0
        %3510 = vmatpush2.msra.mxu0 0.0
        %3511 = vmatprep.subr.mxu0 0.0
        %3512 = vmatpush2.msra.mxu0 0.0
        %3513 = vmatprep.subr.mxu0 0.0
        %3514 = vmatpush2.msra.mxu0 0.0
        %3515 = vmatprep.subr.mxu0 0.0
        %3516 = vmatpush2.msra.mxu0 0.0
        %3517 = vmatprep.subr.mxu0 0.0
        %3518 = vmatpush2.msra.mxu0 0.0
        %3519 = vmatprep.subr.mxu0 0.0
        %3520 = vmatpush2.msra.mxu0 0.0
        %3521 = vmatprep.subr.mxu0 0.0
        %3522 = vmatpush2.msra.mxu0 0.0
        %3523 = vmatprep.subr.mxu0 0.0
        %3524 = vmatpush2.msra.mxu0 0.0
        %3525 = vmatprep.subr.mxu0 0.0
        %3526 = vmatpush2.msra.mxu0 0.0
        %3527 = vmatprep.subr.mxu0 0.0
        %3528 = vmatpush2.msra.mxu0 0.0
        %3529 = vmatprep.subr.mxu0 0.0
        %3530 = vmatpush2.msra.mxu0 0.0
        %3531 = vmatprep.subr.mxu0 0.0
        %3532 = vmatpush2.msra.mxu0 0.0
        %3533 = vmatprep.subr.mxu0 0.0
        %3534 = vmatpush2.msra.mxu0 0.0
        %3535 = vmatprep.subr.mxu0 0.0
        %3536 = vmatpush2.msra.mxu0 0.0
        %3537 = vmatprep.mubr.f32.mxu0 0.0
        %3538 = vmatmul.mubr.f32.gmra.mxu0 %v839
        %v3539 = vpop.f32.mrf.mxu0
        %v3540 = vadd.f32 0.0, %v3539
        %v3541 = vpop.f32.mrf.mxu0
        %v3542 = vadd.f32 0.0, %v3541
        %3543 = vmatprep.mubr.f32.mxu0 0.0
        %3544 = vmatmul.mubr.f32.gmra.mxu0 %v842
        %v3545 = vpop.f32.mrf.mxu0
        %v3546 = vadd.f32 0.0, %v3545
        %v3547 = vpop.f32.mrf.mxu0
        %v3548 = vadd.f32 0.0, %v3547
        %3549 = vmatprep.mubr.f32.mxu0 0.0
        %3550 = vmatmul.mubr.f32.gmra.mxu0 %v845
        %v3551 = vpop.f32.mrf.mxu0
        %v3552 = vadd.f32 0.0, %v3551
        %v3553 = vpop.f32.mrf.mxu0
        %v3554 = vadd.f32 0.0, %v3553
        %3555 = vmatprep.mubr.f32.mxu0 0.0
        %3556 = vmatmul.mubr.f32.gmra.mxu0 %v848
        %v3557 = vpop.f32.mrf.mxu0
        %v3558 = vadd.f32 0.0, %v3557
        %v3559 = vpop.f32.mrf.mxu0
        %v3560 = vadd.f32 0.0, %v3559
        %3561 = vdwg.mxu0
        %s3562 = scalar_lea.vmem %s739, 1728 [#allocation2]
        %v3563 = vld [vmem:[%s3562] sm:$0xff]
        %v3564 = vld [vmem:[%s3562 + $0x8] sm:$0xff]
        %v3565 = vld [vmem:[%s3562 + $0x10] sm:$0xff]
        %v3566 = vld [vmem:[%s3562 + $0x18] sm:$0xff]
        %v3567 = vld [vmem:[%s3562 + $0x20] sm:$0xff]
        %v3568 = vld [vmem:[%s3562 + $0x28] sm:$0xff]
        %v3569 = vld [vmem:[%s3562 + $0x30] sm:$0xff]
        %v3570 = vld [vmem:[%s3562 + $0x38] sm:$0xff]
        %v3571 = vld [vmem:[%s3562 + $0x40] sm:$0xff]
        %v3572 = vld [vmem:[%s3562 + $0x48] sm:$0xff]
        %v3573 = vld [vmem:[%s3562 + $0x50] sm:$0xff]
        %v3574 = vld [vmem:[%s3562 + $0x58] sm:$0xff]
        %v3575 = vld [vmem:[%s3562 + $0x60] sm:$0xff]
        %v3576 = vld [vmem:[%s3562 + $0x68] sm:$0xff]
        %v3577 = vld [vmem:[%s3562 + $0x70] sm:$0xff]
        %v3578 = vld [vmem:[%s3562 + $0x78] sm:$0xff]
        %v3579 = vld [vmem:[%s3562 + $0x80] sm:$0xff]
        %v3580 = vld [vmem:[%s3562 + $0x88] sm:$0xff]
        %v3581 = vld [vmem:[%s3562 + $0x90] sm:$0xff]
        %v3582 = vld [vmem:[%s3562 + $0x98] sm:$0xff]
        %v3583 = vld [vmem:[%s3562 + $0xa0] sm:$0xff]
        %v3584 = vld [vmem:[%s3562 + $0xa8] sm:$0xff]
        %v3585 = vld [vmem:[%s3562 + $0xb0] sm:$0xff]
        %v3586 = vld [vmem:[%s3562 + $0xb8] sm:$0xff]
        %v3587 = vld [vmem:[%s3562 + $0xc0] sm:$0xff]
        %v3588 = vld [vmem:[%s3562 + $0xc8] sm:$0xff]
        %v3589 = vld [vmem:[%s3562 + $0xd0] sm:$0xff]
        %v3590 = vld [vmem:[%s3562 + $0xd8] sm:$0xff]
        %v3591 = vld [vmem:[%s3562 + $0xe0] sm:$0xff]
        %v3592 = vld [vmem:[%s3562 + $0xe8] sm:$0xff]
        %v3593 = vld [vmem:[%s3562 + $0xf0] sm:$0xff]
        %v3594 = vld [vmem:[%s3562 + $0xf8] sm:$0xff]
        %v3595 = vld [vmem:[%s3562 + $0x100] sm:$0xff]
        %v3596 = vld [vmem:[%s3562 + $0x108] sm:$0xff]
        %v3597 = vld [vmem:[%s3562 + $0x110] sm:$0xff]
        %v3598 = vld [vmem:[%s3562 + $0x118] sm:$0xff]
        %v3599 = vld [vmem:[%s3562 + $0x120] sm:$0xff]
        %v3600 = vld [vmem:[%s3562 + $0x128] sm:$0xff]
        %v3601 = vld [vmem:[%s3562 + $0x130] sm:$0xff]
        %v3602 = vld [vmem:[%s3562 + $0x138] sm:$0xff]
        %v3603 = vld [vmem:[%s3562 + $0x140] sm:$0xff]
        %v3604 = vld [vmem:[%s3562 + $0x148] sm:$0xff]
        %v3605 = vld [vmem:[%s3562 + $0x150] sm:$0xff]
        %v3606 = vld [vmem:[%s3562 + $0x158] sm:$0xff]
        %v3607 = vld [vmem:[%s3562 + $0x160] sm:$0xff]
        %v3608 = vld [vmem:[%s3562 + $0x168] sm:$0xff]
        %v3609 = vld [vmem:[%s3562 + $0x170] sm:$0xff]
        %v3610 = vld [vmem:[%s3562 + $0x178] sm:$0xff]
        %v3611 = vld [vmem:[%s3562 + $0x180] sm:$0xff]
        %v3612 = vld [vmem:[%s3562 + $0x188] sm:$0xff]
        %v3613 = vld [vmem:[%s3562 + $0x190] sm:$0xff]
        %v3614 = vld [vmem:[%s3562 + $0x198] sm:$0xff]
        %v3615 = vld [vmem:[%s3562 + $0x1a0] sm:$0xff]
        %v3616 = vld [vmem:[%s3562 + $0x1a8] sm:$0xff]
        %v3617 = vld [vmem:[%s3562 + $0x1b0] sm:$0x1]
        %v3618 = vld [vmem:[%s3562 + $0x1b8] sm:$0x1]
        %v3619 = vld [vmem:[%s3562 + $0x1c0] sm:$0x1]
        %v3620 = vld [vmem:[%s3562 + $0x1c8] sm:$0x1]
        %v3621 = vld [vmem:[%s3562 + $0x1d0] sm:$0x1]
        %v3622 = vld [vmem:[%s3562 + $0x1d8] sm:$0x1]
        %v3623 = vld [vmem:[%s3562 + $0x1e0] sm:$0x1]
        %v3624 = vld [vmem:[%s3562 + $0x1e8] sm:$0x1]
        %v3625 = vld [vmem:[%s3562 + $0x1f0] sm:$0x1]
        %v3626 = vld [vmem:[%s3562 + $0x1f8] sm:$0x1]
        %v3627 = vld [vmem:[%s3562 + $0x200] sm:$0x1]
        %v3628 = vld [vmem:[%s3562 + $0x208] sm:$0x1]
        %v3629 = vld [vmem:[%s3562 + $0x210] sm:$0x1]
        %v3630 = vld [vmem:[%s3562 + $0x218] sm:$0x1]
        %v3631 = vld [vmem:[%s3562 + $0x220] sm:$0x1]
        %v3632 = vld [vmem:[%s3562 + $0x228] sm:$0x1]
        %v3633 = vld [vmem:[%s3562 + $0x230] sm:$0x1]
        %v3634 = vld [vmem:[%s3562 + $0x238] sm:$0x1]
        %v3636 = vsel %vm850, %v3617, 0
        %v3639 = vsel %vm850, %v3618, 0
        %v3642 = vsel %vm850, %v3619, 0
        %v3645 = vsel %vm850, %v3620, 0
        %v3648 = vsel %vm850, %v3621, 0
        %v3651 = vsel %vm850, %v3622, 0
        %v3654 = vsel %vm850, %v3623, 0
        %v3657 = vsel %vm850, %v3624, 0
        %v3660 = vsel %vm850, %v3625, 0
        %v3663 = vsel %vm850, %v3626, 0
        %v3666 = vsel %vm850, %v3627, 0
        %v3669 = vsel %vm850, %v3628, 0
        %v3672 = vsel %vm850, %v3629, 0
        %v3675 = vsel %vm850, %v3630, 0
        %v3678 = vsel %vm850, %v3631, 0
        %v3681 = vsel %vm850, %v3632, 0
        %v3684 = vsel %vm850, %v3633, 0
        %v3687 = vsel %vm850, %v3634, 0
        %3689 = vmatprep.subr.mxu0 0.0
        %3690 = vmatpush1.msra.mxu0 0.0
        %3691 = vmatprep.subr.mxu0 0.0
        %3692 = vmatpush1.msra.mxu0 0.0
        %3693 = vmatprep.subr.mxu0 0.0
        %3694 = vmatpush1.msra.mxu0 0.0
        %3695 = vmatprep.subr.mxu0 0.0
        %3696 = vmatpush1.msra.mxu0 0.0
        %3697 = vmatprep.subr.mxu0 0.0
        %3698 = vmatpush1.msra.mxu0 0.0
        %3699 = vmatprep.subr.mxu0 0.0
        %3700 = vmatpush1.msra.mxu0 0.0
        %3701 = vmatprep.subr.mxu0 0.0
        %3702 = vmatpush1.msra.mxu0 0.0
        %3703 = vmatprep.subr.mxu0 0.0
        %3704 = vmatpush1.msra.mxu0 0.0
        %3705 = vmatprep.subr.mxu0 0.0
        %3706 = vmatpush1.msra.mxu0 0.0
        %3707 = vmatprep.subr.mxu0 0.0
        %3708 = vmatpush1.msra.mxu0 0.0
        %3709 = vmatprep.subr.mxu0 0.0
        %3710 = vmatpush1.msra.mxu0 0.0
        %3711 = vmatprep.subr.mxu0 0.0
        %3712 = vmatpush1.msra.mxu0 0.0
        %3713 = vmatprep.subr.mxu0 %v3639
        %3714 = vmatpush1.msra.mxu0 %v3636
        %3715 = vmatprep.subr.mxu0 %v3600
        %3716 = vmatpush1.msra.mxu0 %v3599
        %3717 = vmatprep.subr.mxu0 %v3582
        %3718 = vmatpush1.msra.mxu0 %v3581
        %3719 = vmatprep.subr.mxu0 %v3564
        %3720 = vmatpush1.msra.mxu0 %v3563
        %3721 = vmatprep.subr.mxu0 0.0
        %3722 = vmatpush2.msra.mxu0 0.0
        %3723 = vmatprep.subr.mxu0 0.0
        %3724 = vmatpush2.msra.mxu0 0.0
        %3725 = vmatprep.subr.mxu0 0.0
        %3726 = vmatpush2.msra.mxu0 0.0
        %3727 = vmatprep.subr.mxu0 0.0
        %3728 = vmatpush2.msra.mxu0 0.0
        %3729 = vmatprep.subr.mxu0 0.0
        %3730 = vmatpush2.msra.mxu0 0.0
        %3731 = vmatprep.subr.mxu0 0.0
        %3732 = vmatpush2.msra.mxu0 0.0
        %3733 = vmatprep.subr.mxu0 0.0
        %3734 = vmatpush2.msra.mxu0 0.0
        %3735 = vmatprep.subr.mxu0 0.0
        %3736 = vmatpush2.msra.mxu0 0.0
        %3737 = vmatprep.subr.mxu0 0.0
        %3738 = vmatpush2.msra.mxu0 0.0
        %3739 = vmatprep.subr.mxu0 0.0
        %3740 = vmatpush2.msra.mxu0 0.0
        %3741 = vmatprep.subr.mxu0 0.0
        %3742 = vmatpush2.msra.mxu0 0.0
        %3743 = vmatprep.subr.mxu0 0.0
        %3744 = vmatpush2.msra.mxu0 0.0
        %3745 = vmatprep.subr.mxu0 0.0
        %3746 = vmatpush2.msra.mxu0 0.0
        %3747 = vmatprep.subr.mxu0 0.0
        %3748 = vmatpush2.msra.mxu0 0.0
        %3749 = vmatprep.subr.mxu0 0.0
        %3750 = vmatpush2.msra.mxu0 0.0
        %3751 = vmatprep.subr.mxu0 0.0
        %3752 = vmatpush2.msra.mxu0 0.0
        %3753 = vmatprep.mubr.f32.mxu0 0.0
        %3754 = vmatmul.mubr.f32.gmra.mxu0 %v839
        %v3755 = vpop.f32.mrf.mxu0
        %v3756 = vadd.f32 0.0, %v3755
        %v3757 = vpop.f32.mrf.mxu0
        %v3758 = vadd.f32 0.0, %v3757
        %3759 = vmatprep.mubr.f32.mxu0 0.0
        %3760 = vmatmul.mubr.f32.gmra.mxu0 %v842
        %v3761 = vpop.f32.mrf.mxu0
        %v3762 = vadd.f32 0.0, %v3761
        %v3763 = vpop.f32.mrf.mxu0
        %v3764 = vadd.f32 0.0, %v3763
        %3765 = vmatprep.mubr.f32.mxu0 0.0
        %3766 = vmatmul.mubr.f32.gmra.mxu0 %v845
        %v3767 = vpop.f32.mrf.mxu0
        %v3768 = vadd.f32 0.0, %v3767
        %v3769 = vpop.f32.mrf.mxu0
        %v3770 = vadd.f32 0.0, %v3769
        %3771 = vmatprep.mubr.f32.mxu0 0.0
        %3772 = vmatmul.mubr.f32.gmra.mxu0 %v848
        %v3773 = vpop.f32.mrf.mxu0
        %v3774 = vadd.f32 0.0, %v3773
        %v3775 = vpop.f32.mrf.mxu0
        %v3776 = vadd.f32 0.0, %v3775
        %3777 = vdwg.mxu0
        %3778 = vmatprep.subr.mxu0 0.0
        %3779 = vmatpush1.msra.mxu0 0.0
        %3780 = vmatprep.subr.mxu0 0.0
        %3781 = vmatpush1.msra.mxu0 0.0
        %3782 = vmatprep.subr.mxu0 0.0
        %3783 = vmatpush1.msra.mxu0 0.0
        %3784 = vmatprep.subr.mxu0 0.0
        %3785 = vmatpush1.msra.mxu0 0.0
        %3786 = vmatprep.subr.mxu0 0.0
        %3787 = vmatpush1.msra.mxu0 0.0
        %3788 = vmatprep.subr.mxu0 0.0
        %3789 = vmatpush1.msra.mxu0 0.0
        %3790 = vmatprep.subr.mxu0 0.0
        %3791 = vmatpush1.msra.mxu0 0.0
        %3792 = vmatprep.subr.mxu0 0.0
        %3793 = vmatpush1.msra.mxu0 0.0
        %3794 = vmatprep.subr.mxu0 0.0
        %3795 = vmatpush1.msra.mxu0 0.0
        %3796 = vmatprep.subr.mxu0 0.0
        %3797 = vmatpush1.msra.mxu0 0.0
        %3798 = vmatprep.subr.mxu0 0.0
        %3799 = vmatpush1.msra.mxu0 0.0
        %3800 = vmatprep.subr.mxu0 0.0
        %3801 = vmatpush1.msra.mxu0 0.0
        %3802 = vmatprep.subr.mxu0 %v3645
        %3803 = vmatpush1.msra.mxu0 %v3642
        %3804 = vmatprep.subr.mxu0 %v3602
        %3805 = vmatpush1.msra.mxu0 %v3601
        %3806 = vmatprep.subr.mxu0 %v3584
        %3807 = vmatpush1.msra.mxu0 %v3583
        %3808 = vmatprep.subr.mxu0 %v3566
        %3809 = vmatpush1.msra.mxu0 %v3565
        %3810 = vmatprep.subr.mxu0 0.0
        %3811 = vmatpush2.msra.mxu0 0.0
        %3812 = vmatprep.subr.mxu0 0.0
        %3813 = vmatpush2.msra.mxu0 0.0
        %3814 = vmatprep.subr.mxu0 0.0
        %3815 = vmatpush2.msra.mxu0 0.0
        %3816 = vmatprep.subr.mxu0 0.0
        %3817 = vmatpush2.msra.mxu0 0.0
        %3818 = vmatprep.subr.mxu0 0.0
        %3819 = vmatpush2.msra.mxu0 0.0
        %3820 = vmatprep.subr.mxu0 0.0
        %3821 = vmatpush2.msra.mxu0 0.0
        %3822 = vmatprep.subr.mxu0 0.0
        %3823 = vmatpush2.msra.mxu0 0.0
        %3824 = vmatprep.subr.mxu0 0.0
        %3825 = vmatpush2.msra.mxu0 0.0
        %3826 = vmatprep.subr.mxu0 0.0
        %3827 = vmatpush2.msra.mxu0 0.0
        %3828 = vmatprep.subr.mxu0 0.0
        %3829 = vmatpush2.msra.mxu0 0.0
        %3830 = vmatprep.subr.mxu0 0.0
        %3831 = vmatpush2.msra.mxu0 0.0
        %3832 = vmatprep.subr.mxu0 0.0
        %3833 = vmatpush2.msra.mxu0 0.0
        %3834 = vmatprep.subr.mxu0 0.0
        %3835 = vmatpush2.msra.mxu0 0.0
        %3836 = vmatprep.subr.mxu0 0.0
        %3837 = vmatpush2.msra.mxu0 0.0
        %3838 = vmatprep.subr.mxu0 0.0
        %3839 = vmatpush2.msra.mxu0 0.0
        %3840 = vmatprep.subr.mxu0 0.0
        %3841 = vmatpush2.msra.mxu0 0.0
        %3842 = vmatprep.mubr.f32.mxu0 0.0
        %3843 = vmatmul.mubr.f32.gmra.mxu0 %v839
        %v3844 = vpop.f32.mrf.mxu0
        %v3845 = vadd.f32 0.0, %v3844
        %v3846 = vpop.f32.mrf.mxu0
        %v3847 = vadd.f32 0.0, %v3846
        %3848 = vmatprep.mubr.f32.mxu0 0.0
        %3849 = vmatmul.mubr.f32.gmra.mxu0 %v842
        %v3850 = vpop.f32.mrf.mxu0
        %v3851 = vadd.f32 0.0, %v3850
        %v3852 = vpop.f32.mrf.mxu0
        %v3853 = vadd.f32 0.0, %v3852
        %3854 = vmatprep.mubr.f32.mxu0 0.0
        %3855 = vmatmul.mubr.f32.gmra.mxu0 %v845
        %v3856 = vpop.f32.mrf.mxu0
        %v3857 = vadd.f32 0.0, %v3856
        %v3858 = vpop.f32.mrf.mxu0
        %v3859 = vadd.f32 0.0, %v3858
        %3860 = vmatprep.mubr.f32.mxu0 0.0
        %3861 = vmatmul.mubr.f32.gmra.mxu0 %v848
        %v3862 = vpop.f32.mrf.mxu0
        %v3863 = vadd.f32 0.0, %v3862
        %v3864 = vpop.f32.mrf.mxu0
        %v3865 = vadd.f32 0.0, %v3864
        %3866 = vdwg.mxu0
        %3867 = vmatprep.subr.mxu0 0.0
        %3868 = vmatpush1.msra.mxu0 0.0
        %3869 = vmatprep.subr.mxu0 0.0
        %3870 = vmatpush1.msra.mxu0 0.0
        %3871 = vmatprep.subr.mxu0 0.0
        %3872 = vmatpush1.msra.mxu0 0.0
        %3873 = vmatprep.subr.mxu0 0.0
        %3874 = vmatpush1.msra.mxu0 0.0
        %3875 = vmatprep.subr.mxu0 0.0
        %3876 = vmatpush1.msra.mxu0 0.0
        %3877 = vmatprep.subr.mxu0 0.0
        %3878 = vmatpush1.msra.mxu0 0.0
        %3879 = vmatprep.subr.mxu0 0.0
        %3880 = vmatpush1.msra.mxu0 0.0
        %3881 = vmatprep.subr.mxu0 0.0
        %3882 = vmatpush1.msra.mxu0 0.0
        %3883 = vmatprep.subr.mxu0 0.0
        %3884 = vmatpush1.msra.mxu0 0.0
        %3885 = vmatprep.subr.mxu0 0.0
        %3886 = vmatpush1.msra.mxu0 0.0
        %3887 = vmatprep.subr.mxu0 0.0
        %3888 = vmatpush1.msra.mxu0 0.0
        %3889 = vmatprep.subr.mxu0 0.0
        %3890 = vmatpush1.msra.mxu0 0.0
        %3891 = vmatprep.subr.mxu0 %v3651
        %3892 = vmatpush1.msra.mxu0 %v3648
        %3893 = vmatprep.subr.mxu0 %v3604
        %3894 = vmatpush1.msra.mxu0 %v3603
        %3895 = vmatprep.subr.mxu0 %v3586
        %3896 = vmatpush1.msra.mxu0 %v3585
        %3897 = vmatprep.subr.mxu0 %v3568
        %3898 = vmatpush1.msra.mxu0 %v3567
        %3899 = vmatprep.subr.mxu0 0.0
        %3900 = vmatpush2.msra.mxu0 0.0
        %3901 = vmatprep.subr.mxu0 0.0
        %3902 = vmatpush2.msra.mxu0 0.0
        %3903 = vmatprep.subr.mxu0 0.0
        %3904 = vmatpush2.msra.mxu0 0.0
        %3905 = vmatprep.subr.mxu0 0.0
        %3906 = vmatpush2.msra.mxu0 0.0
        %3907 = vmatprep.subr.mxu0 0.0
        %3908 = vmatpush2.msra.mxu0 0.0
        %3909 = vmatprep.subr.mxu0 0.0
        %3910 = vmatpush2.msra.mxu0 0.0
        %3911 = vmatprep.subr.mxu0 0.0
        %3912 = vmatpush2.msra.mxu0 0.0
        %3913 = vmatprep.subr.mxu0 0.0
        %3914 = vmatpush2.msra.mxu0 0.0
        %3915 = vmatprep.subr.mxu0 0.0
        %3916 = vmatpush2.msra.mxu0 0.0
        %3917 = vmatprep.subr.mxu0 0.0
        %3918 = vmatpush2.msra.mxu0 0.0
        %3919 = vmatprep.subr.mxu0 0.0
        %3920 = vmatpush2.msra.mxu0 0.0
        %3921 = vmatprep.subr.mxu0 0.0
        %3922 = vmatpush2.msra.mxu0 0.0
        %3923 = vmatprep.subr.mxu0 0.0
        %3924 = vmatpush2.msra.mxu0 0.0
        %3925 = vmatprep.subr.mxu0 0.0
        %3926 = vmatpush2.msra.mxu0 0.0
        %3927 = vmatprep.subr.mxu0 0.0
        %3928 = vmatpush2.msra.mxu0 0.0
        %3929 = vmatprep.subr.mxu0 0.0
        %3930 = vmatpush2.msra.mxu0 0.0
        %3931 = vmatprep.mubr.f32.mxu0 0.0
        %3932 = vmatmul.mubr.f32.gmra.mxu0 %v839
        %v3933 = vpop.f32.mrf.mxu0
        %v3934 = vadd.f32 0.0, %v3933
        %v3935 = vpop.f32.mrf.mxu0
        %v3936 = vadd.f32 0.0, %v3935
        %3937 = vmatprep.mubr.f32.mxu0 0.0
        %3938 = vmatmul.mubr.f32.gmra.mxu0 %v842
        %v3939 = vpop.f32.mrf.mxu0
        %v3940 = vadd.f32 0.0, %v3939
        %v3941 = vpop.f32.mrf.mxu0
        %v3942 = vadd.f32 0.0, %v3941
        %3943 = vmatprep.mubr.f32.mxu0 0.0
        %3944 = vmatmul.mubr.f32.gmra.mxu0 %v845
        %v3945 = vpop.f32.mrf.mxu0
        %v3946 = vadd.f32 0.0, %v3945
        %v3947 = vpop.f32.mrf.mxu0
        %v3948 = vadd.f32 0.0, %v3947
        %3949 = vmatprep.mubr.f32.mxu0 0.0
        %3950 = vmatmul.mubr.f32.gmra.mxu0 %v848
        %v3951 = vpop.f32.mrf.mxu0
        %v3952 = vadd.f32 0.0, %v3951
        %v3953 = vpop.f32.mrf.mxu0
        %v3954 = vadd.f32 0.0, %v3953
        %3955 = vdwg.mxu0
        %3956 = vmatprep.subr.mxu0 0.0
        %3957 = vmatpush1.msra.mxu0 0.0
        %3958 = vmatprep.subr.mxu0 0.0
        %3959 = vmatpush1.msra.mxu0 0.0
        %3960 = vmatprep.subr.mxu0 0.0
        %3961 = vmatpush1.msra.mxu0 0.0
        %3962 = vmatprep.subr.mxu0 0.0
        %3963 = vmatpush1.msra.mxu0 0.0
        %3964 = vmatprep.subr.mxu0 0.0
        %3965 = vmatpush1.msra.mxu0 0.0
        %3966 = vmatprep.subr.mxu0 0.0
        %3967 = vmatpush1.msra.mxu0 0.0
        %3968 = vmatprep.subr.mxu0 0.0
        %3969 = vmatpush1.msra.mxu0 0.0
        %3970 = vmatprep.subr.mxu0 0.0
        %3971 = vmatpush1.msra.mxu0 0.0
        %3972 = vmatprep.subr.mxu0 0.0
        %3973 = vmatpush1.msra.mxu0 0.0
        %3974 = vmatprep.subr.mxu0 0.0
        %3975 = vmatpush1.msra.mxu0 0.0
        %3976 = vmatprep.subr.mxu0 0.0
        %3977 = vmatpush1.msra.mxu0 0.0
        %3978 = vmatprep.subr.mxu0 0.0
        %3979 = vmatpush1.msra.mxu0 0.0
        %3980 = vmatprep.subr.mxu0 %v3657
        %3981 = vmatpush1.msra.mxu0 %v3654
        %3982 = vmatprep.subr.mxu0 %v3606
        %3983 = vmatpush1.msra.mxu0 %v3605
        %3984 = vmatprep.subr.mxu0 %v3588
        %3985 = vmatpush1.msra.mxu0 %v3587
        %3986 = vmatprep.subr.mxu0 %v3570
        %3987 = vmatpush1.msra.mxu0 %v3569
        %3988 = vmatprep.subr.mxu0 0.0
        %3989 = vmatpush2.msra.mxu0 0.0
        %3990 = vmatprep.subr.mxu0 0.0
        %3991 = vmatpush2.msra.mxu0 0.0
        %3992 = vmatprep.subr.mxu0 0.0
        %3993 = vmatpush2.msra.mxu0 0.0
        %3994 = vmatprep.subr.mxu0 0.0
        %3995 = vmatpush2.msra.mxu0 0.0
        %3996 = vmatprep.subr.mxu0 0.0
        %3997 = vmatpush2.msra.mxu0 0.0
        %3998 = vmatprep.subr.mxu0 0.0
        %3999 = vmatpush2.msra.mxu0 0.0
        %4000 = vmatprep.subr.mxu0 0.0
        %4001 = vmatpush2.msra.mxu0 0.0
        %4002 = vmatprep.subr.mxu0 0.0
        %4003 = vmatpush2.msra.mxu0 0.0
        %4004 = vmatprep.subr.mxu0 0.0
        %4005 = vmatpush2.msra.mxu0 0.0
        %4006 = vmatprep.subr.mxu0 0.0
        %4007 = vmatpush2.msra.mxu0 0.0
        %4008 = vmatprep.subr.mxu0 0.0
        %4009 = vmatpush2.msra.mxu0 0.0
        %4010 = vmatprep.subr.mxu0 0.0
        %4011 = vmatpush2.msra.mxu0 0.0
        %4012 = vmatprep.subr.mxu0 0.0
        %4013 = vmatpush2.msra.mxu0 0.0
        %4014 = vmatprep.subr.mxu0 0.0
        %4015 = vmatpush2.msra.mxu0 0.0
        %4016 = vmatprep.subr.mxu0 0.0
        %4017 = vmatpush2.msra.mxu0 0.0
        %4018 = vmatprep.subr.mxu0 0.0
        %4019 = vmatpush2.msra.mxu0 0.0
        %4020 = vmatprep.mubr.f32.mxu0 0.0
        %4021 = vmatmul.mubr.f32.gmra.mxu0 %v839
        %v4022 = vpop.f32.mrf.mxu0
        %v4023 = vadd.f32 0.0, %v4022
        %v4024 = vpop.f32.mrf.mxu0
        %v4025 = vadd.f32 0.0, %v4024
        %4026 = vmatprep.mubr.f32.mxu0 0.0
        %4027 = vmatmul.mubr.f32.gmra.mxu0 %v842
        %v4028 = vpop.f32.mrf.mxu0
        %v4029 = vadd.f32 0.0, %v4028
        %v4030 = vpop.f32.mrf.mxu0
        %v4031 = vadd.f32 0.0, %v4030
        %4032 = vmatprep.mubr.f32.mxu0 0.0
        %4033 = vmatmul.mubr.f32.gmra.mxu0 %v845
        %v4034 = vpop.f32.mrf.mxu0
        %v4035 = vadd.f32 0.0, %v4034
        %v4036 = vpop.f32.mrf.mxu0
        %v4037 = vadd.f32 0.0, %v4036
        %4038 = vmatprep.mubr.f32.mxu0 0.0
        %4039 = vmatmul.mubr.f32.gmra.mxu0 %v848
        %v4040 = vpop.f32.mrf.mxu0
        %v4041 = vadd.f32 0.0, %v4040
        %v4042 = vpop.f32.mrf.mxu0
        %v4043 = vadd.f32 0.0, %v4042
        %4044 = vdwg.mxu0
        %4045 = vmatprep.subr.mxu0 0.0
        %4046 = vmatpush1.msra.mxu0 0.0
        %4047 = vmatprep.subr.mxu0 0.0
        %4048 = vmatpush1.msra.mxu0 0.0
        %4049 = vmatprep.subr.mxu0 0.0
        %4050 = vmatpush1.msra.mxu0 0.0
        %4051 = vmatprep.subr.mxu0 0.0
        %4052 = vmatpush1.msra.mxu0 0.0
        %4053 = vmatprep.subr.mxu0 0.0
        %4054 = vmatpush1.msra.mxu0 0.0
        %4055 = vmatprep.subr.mxu0 0.0
        %4056 = vmatpush1.msra.mxu0 0.0
        %4057 = vmatprep.subr.mxu0 0.0
        %4058 = vmatpush1.msra.mxu0 0.0
        %4059 = vmatprep.subr.mxu0 0.0
        %4060 = vmatpush1.msra.mxu0 0.0
        %4061 = vmatprep.subr.mxu0 0.0
        %4062 = vmatpush1.msra.mxu0 0.0
        %4063 = vmatprep.subr.mxu0 0.0
        %4064 = vmatpush1.msra.mxu0 0.0
        %4065 = vmatprep.subr.mxu0 0.0
        %4066 = vmatpush1.msra.mxu0 0.0
        %4067 = vmatprep.subr.mxu0 0.0
        %4068 = vmatpush1.msra.mxu0 0.0
        %4069 = vmatprep.subr.mxu0 %v3663
        %4070 = vmatpush1.msra.mxu0 %v3660
        %4071 = vmatprep.subr.mxu0 %v3608
        %4072 = vmatpush1.msra.mxu0 %v3607
        %4073 = vmatprep.subr.mxu0 %v3590
        %4074 = vmatpush1.msra.mxu0 %v3589
        %4075 = vmatprep.subr.mxu0 %v3572
        %4076 = vmatpush1.msra.mxu0 %v3571
        %4077 = vmatprep.subr.mxu0 0.0
        %4078 = vmatpush2.msra.mxu0 0.0
        %4079 = vmatprep.subr.mxu0 0.0
        %4080 = vmatpush2.msra.mxu0 0.0
        %4081 = vmatprep.subr.mxu0 0.0
        %4082 = vmatpush2.msra.mxu0 0.0
        %4083 = vmatprep.subr.mxu0 0.0
        %4084 = vmatpush2.msra.mxu0 0.0
        %4085 = vmatprep.subr.mxu0 0.0
        %4086 = vmatpush2.msra.mxu0 0.0
        %4087 = vmatprep.subr.mxu0 0.0
        %4088 = vmatpush2.msra.mxu0 0.0
        %4089 = vmatprep.subr.mxu0 0.0
        %4090 = vmatpush2.msra.mxu0 0.0
        %4091 = vmatprep.subr.mxu0 0.0
        %4092 = vmatpush2.msra.mxu0 0.0
        %4093 = vmatprep.subr.mxu0 0.0
        %4094 = vmatpush2.msra.mxu0 0.0
        %4095 = vmatprep.subr.mxu0 0.0
        %4096 = vmatpush2.msra.mxu0 0.0
        %4097 = vmatprep.subr.mxu0 0.0
        %4098 = vmatpush2.msra.mxu0 0.0
        %4099 = vmatprep.subr.mxu0 0.0
        %4100 = vmatpush2.msra.mxu0 0.0
        %4101 = vmatprep.subr.mxu0 0.0
        %4102 = vmatpush2.msra.mxu0 0.0
        %4103 = vmatprep.subr.mxu0 0.0
        %4104 = vmatpush2.msra.mxu0 0.0
        %4105 = vmatprep.subr.mxu0 0.0
        %4106 = vmatpush2.msra.mxu0 0.0
        %4107 = vmatprep.subr.mxu0 0.0
        %4108 = vmatpush2.msra.mxu0 0.0
        %4109 = vmatprep.mubr.f32.mxu0 0.0
        %4110 = vmatmul.mubr.f32.gmra.mxu0 %v839
        %v4111 = vpop.f32.mrf.mxu0
        %v4112 = vadd.f32 0.0, %v4111
        %v4113 = vpop.f32.mrf.mxu0
        %v4114 = vadd.f32 0.0, %v4113
        %4115 = vmatprep.mubr.f32.mxu0 0.0
        %4116 = vmatmul.mubr.f32.gmra.mxu0 %v842
        %v4117 = vpop.f32.mrf.mxu0
        %v4118 = vadd.f32 0.0, %v4117
        %v4119 = vpop.f32.mrf.mxu0
        %v4120 = vadd.f32 0.0, %v4119
        %4121 = vmatprep.mubr.f32.mxu0 0.0
        %4122 = vmatmul.mubr.f32.gmra.mxu0 %v845
        %v4123 = vpop.f32.mrf.mxu0
        %v4124 = vadd.f32 0.0, %v4123
        %v4125 = vpop.f32.mrf.mxu0
        %v4126 = vadd.f32 0.0, %v4125
        %4127 = vmatprep.mubr.f32.mxu0 0.0
        %4128 = vmatmul.mubr.f32.gmra.mxu0 %v848
        %v4129 = vpop.f32.mrf.mxu0
        %v4130 = vadd.f32 0.0, %v4129
        %v4131 = vpop.f32.mrf.mxu0
        %v4132 = vadd.f32 0.0, %v4131
        %4133 = vdwg.mxu0
        %4134 = vmatprep.subr.mxu0 0.0
        %4135 = vmatpush1.msra.mxu0 0.0
        %4136 = vmatprep.subr.mxu0 0.0
        %4137 = vmatpush1.msra.mxu0 0.0
        %4138 = vmatprep.subr.mxu0 0.0
        %4139 = vmatpush1.msra.mxu0 0.0
        %4140 = vmatprep.subr.mxu0 0.0
        %4141 = vmatpush1.msra.mxu0 0.0
        %4142 = vmatprep.subr.mxu0 0.0
        %4143 = vmatpush1.msra.mxu0 0.0
        %4144 = vmatprep.subr.mxu0 0.0
        %4145 = vmatpush1.msra.mxu0 0.0
        %4146 = vmatprep.subr.mxu0 0.0
        %4147 = vmatpush1.msra.mxu0 0.0
        %4148 = vmatprep.subr.mxu0 0.0
        %4149 = vmatpush1.msra.mxu0 0.0
        %4150 = vmatprep.subr.mxu0 0.0
        %4151 = vmatpush1.msra.mxu0 0.0
        %4152 = vmatprep.subr.mxu0 0.0
        %4153 = vmatpush1.msra.mxu0 0.0
        %4154 = vmatprep.subr.mxu0 0.0
        %4155 = vmatpush1.msra.mxu0 0.0
        %4156 = vmatprep.subr.mxu0 0.0
        %4157 = vmatpush1.msra.mxu0 0.0
        %4158 = vmatprep.subr.mxu0 %v3669
        %4159 = vmatpush1.msra.mxu0 %v3666
        %4160 = vmatprep.subr.mxu0 %v3610
        %4161 = vmatpush1.msra.mxu0 %v3609
        %4162 = vmatprep.subr.mxu0 %v3592
        %4163 = vmatpush1.msra.mxu0 %v3591
        %4164 = vmatprep.subr.mxu0 %v3574
        %4165 = vmatpush1.msra.mxu0 %v3573
        %4166 = vmatprep.subr.mxu0 0.0
        %4167 = vmatpush2.msra.mxu0 0.0
        %4168 = vmatprep.subr.mxu0 0.0
        %4169 = vmatpush2.msra.mxu0 0.0
        %4170 = vmatprep.subr.mxu0 0.0
        %4171 = vmatpush2.msra.mxu0 0.0
        %4172 = vmatprep.subr.mxu0 0.0
        %4173 = vmatpush2.msra.mxu0 0.0
        %4174 = vmatprep.subr.mxu0 0.0
        %4175 = vmatpush2.msra.mxu0 0.0
        %4176 = vmatprep.subr.mxu0 0.0
        %4177 = vmatpush2.msra.mxu0 0.0
        %4178 = vmatprep.subr.mxu0 0.0
        %4179 = vmatpush2.msra.mxu0 0.0
        %4180 = vmatprep.subr.mxu0 0.0
        %4181 = vmatpush2.msra.mxu0 0.0
        %4182 = vmatprep.subr.mxu0 0.0
        %4183 = vmatpush2.msra.mxu0 0.0
        %4184 = vmatprep.subr.mxu0 0.0
        %4185 = vmatpush2.msra.mxu0 0.0
        %4186 = vmatprep.subr.mxu0 0.0
        %4187 = vmatpush2.msra.mxu0 0.0
        %4188 = vmatprep.subr.mxu0 0.0
        %4189 = vmatpush2.msra.mxu0 0.0
        %4190 = vmatprep.subr.mxu0 0.0
        %4191 = vmatpush2.msra.mxu0 0.0
        %4192 = vmatprep.subr.mxu0 0.0
        %4193 = vmatpush2.msra.mxu0 0.0
        %4194 = vmatprep.subr.mxu0 0.0
        %4195 = vmatpush2.msra.mxu0 0.0
        %4196 = vmatprep.subr.mxu0 0.0
        %4197 = vmatpush2.msra.mxu0 0.0
        %4198 = vmatprep.mubr.f32.mxu0 0.0
        %4199 = vmatmul.mubr.f32.gmra.mxu0 %v839
        %v4200 = vpop.f32.mrf.mxu0
        %v4201 = vadd.f32 0.0, %v4200
        %v4202 = vpop.f32.mrf.mxu0
        %v4203 = vadd.f32 0.0, %v4202
        %4204 = vmatprep.mubr.f32.mxu0 0.0
        %4205 = vmatmul.mubr.f32.gmra.mxu0 %v842
        %v4206 = vpop.f32.mrf.mxu0
        %v4207 = vadd.f32 0.0, %v4206
        %v4208 = vpop.f32.mrf.mxu0
        %v4209 = vadd.f32 0.0, %v4208
        %4210 = vmatprep.mubr.f32.mxu0 0.0
        %4211 = vmatmul.mubr.f32.gmra.mxu0 %v845
        %v4212 = vpop.f32.mrf.mxu0
        %v4213 = vadd.f32 0.0, %v4212
        %v4214 = vpop.f32.mrf.mxu0
        %v4215 = vadd.f32 0.0, %v4214
        %4216 = vmatprep.mubr.f32.mxu0 0.0
        %4217 = vmatmul.mubr.f32.gmra.mxu0 %v848
        %v4218 = vpop.f32.mrf.mxu0
        %v4219 = vadd.f32 0.0, %v4218
        %v4220 = vpop.f32.mrf.mxu0
        %v4221 = vadd.f32 0.0, %v4220
        %4222 = vdwg.mxu0
        %4223 = vmatprep.subr.mxu0 0.0
        %4224 = vmatpush1.msra.mxu0 0.0
        %4225 = vmatprep.subr.mxu0 0.0
        %4226 = vmatpush1.msra.mxu0 0.0
        %4227 = vmatprep.subr.mxu0 0.0
        %4228 = vmatpush1.msra.mxu0 0.0
        %4229 = vmatprep.subr.mxu0 0.0
        %4230 = vmatpush1.msra.mxu0 0.0
        %4231 = vmatprep.subr.mxu0 0.0
        %4232 = vmatpush1.msra.mxu0 0.0
        %4233 = vmatprep.subr.mxu0 0.0
        %4234 = vmatpush1.msra.mxu0 0.0
        %4235 = vmatprep.subr.mxu0 0.0
        %4236 = vmatpush1.msra.mxu0 0.0
        %4237 = vmatprep.subr.mxu0 0.0
        %4238 = vmatpush1.msra.mxu0 0.0
        %4239 = vmatprep.subr.mxu0 0.0
        %4240 = vmatpush1.msra.mxu0 0.0
        %4241 = vmatprep.subr.mxu0 0.0
        %4242 = vmatpush1.msra.mxu0 0.0
        %4243 = vmatprep.subr.mxu0 0.0
        %4244 = vmatpush1.msra.mxu0 0.0
        %4245 = vmatprep.subr.mxu0 0.0
        %4246 = vmatpush1.msra.mxu0 0.0
        %4247 = vmatprep.subr.mxu0 %v3675
        %4248 = vmatpush1.msra.mxu0 %v3672
        %4249 = vmatprep.subr.mxu0 %v3612
        %4250 = vmatpush1.msra.mxu0 %v3611
        %4251 = vmatprep.subr.mxu0 %v3594
        %4252 = vmatpush1.msra.mxu0 %v3593
        %4253 = vmatprep.subr.mxu0 %v3576
        %4254 = vmatpush1.msra.mxu0 %v3575
        %4255 = vmatprep.subr.mxu0 0.0
        %4256 = vmatpush2.msra.mxu0 0.0
        %4257 = vmatprep.subr.mxu0 0.0
        %4258 = vmatpush2.msra.mxu0 0.0
        %4259 = vmatprep.subr.mxu0 0.0
        %4260 = vmatpush2.msra.mxu0 0.0
        %4261 = vmatprep.subr.mxu0 0.0
        %4262 = vmatpush2.msra.mxu0 0.0
        %4263 = vmatprep.subr.mxu0 0.0
        %4264 = vmatpush2.msra.mxu0 0.0
        %4265 = vmatprep.subr.mxu0 0.0
        %4266 = vmatpush2.msra.mxu0 0.0
        %4267 = vmatprep.subr.mxu0 0.0
        %4268 = vmatpush2.msra.mxu0 0.0
        %4269 = vmatprep.subr.mxu0 0.0
        %4270 = vmatpush2.msra.mxu0 0.0
        %4271 = vmatprep.subr.mxu0 0.0
        %4272 = vmatpush2.msra.mxu0 0.0
        %4273 = vmatprep.subr.mxu0 0.0
        %4274 = vmatpush2.msra.mxu0 0.0
        %4275 = vmatprep.subr.mxu0 0.0
        %4276 = vmatpush2.msra.mxu0 0.0
        %4277 = vmatprep.subr.mxu0 0.0
        %4278 = vmatpush2.msra.mxu0 0.0
        %4279 = vmatprep.subr.mxu0 0.0
        %4280 = vmatpush2.msra.mxu0 0.0
        %4281 = vmatprep.subr.mxu0 0.0
        %4282 = vmatpush2.msra.mxu0 0.0
        %4283 = vmatprep.subr.mxu0 0.0
        %4284 = vmatpush2.msra.mxu0 0.0
        %4285 = vmatprep.subr.mxu0 0.0
        %4286 = vmatpush2.msra.mxu0 0.0
        %4287 = vmatprep.mubr.f32.mxu0 0.0
        %4288 = vmatmul.mubr.f32.gmra.mxu0 %v839
        %v4289 = vpop.f32.mrf.mxu0
        %v4290 = vadd.f32 0.0, %v4289
        %v4291 = vpop.f32.mrf.mxu0
        %v4292 = vadd.f32 0.0, %v4291
        %4293 = vmatprep.mubr.f32.mxu0 0.0
        %4294 = vmatmul.mubr.f32.gmra.mxu0 %v842
        %v4295 = vpop.f32.mrf.mxu0
        %v4296 = vadd.f32 0.0, %v4295
        %v4297 = vpop.f32.mrf.mxu0
        %v4298 = vadd.f32 0.0, %v4297
        %4299 = vmatprep.mubr.f32.mxu0 0.0
        %4300 = vmatmul.mubr.f32.gmra.mxu0 %v845
        %v4301 = vpop.f32.mrf.mxu0
        %v4302 = vadd.f32 0.0, %v4301
        %v4303 = vpop.f32.mrf.mxu0
        %v4304 = vadd.f32 0.0, %v4303
        %4305 = vmatprep.mubr.f32.mxu0 0.0
        %4306 = vmatmul.mubr.f32.gmra.mxu0 %v848
        %v4307 = vpop.f32.mrf.mxu0
        %v4308 = vadd.f32 0.0, %v4307
        %v4309 = vpop.f32.mrf.mxu0
        %v4310 = vadd.f32 0.0, %v4309
        %4311 = vdwg.mxu0
        %4312 = vmatprep.subr.mxu0 0.0
        %4313 = vmatpush1.msra.mxu0 0.0
        %4314 = vmatprep.subr.mxu0 0.0
        %4315 = vmatpush1.msra.mxu0 0.0
        %4316 = vmatprep.subr.mxu0 0.0
        %4317 = vmatpush1.msra.mxu0 0.0
        %4318 = vmatprep.subr.mxu0 0.0
        %4319 = vmatpush1.msra.mxu0 0.0
        %4320 = vmatprep.subr.mxu0 0.0
        %4321 = vmatpush1.msra.mxu0 0.0
        %4322 = vmatprep.subr.mxu0 0.0
        %4323 = vmatpush1.msra.mxu0 0.0
        %4324 = vmatprep.subr.mxu0 0.0
        %4325 = vmatpush1.msra.mxu0 0.0
        %4326 = vmatprep.subr.mxu0 0.0
        %4327 = vmatpush1.msra.mxu0 0.0
        %4328 = vmatprep.subr.mxu0 0.0
        %4329 = vmatpush1.msra.mxu0 0.0
        %4330 = vmatprep.subr.mxu0 0.0
        %4331 = vmatpush1.msra.mxu0 0.0
        %4332 = vmatprep.subr.mxu0 0.0
        %4333 = vmatpush1.msra.mxu0 0.0
        %4334 = vmatprep.subr.mxu0 0.0
        %4335 = vmatpush1.msra.mxu0 0.0
        %4336 = vmatprep.subr.mxu0 %v3681
        %4337 = vmatpush1.msra.mxu0 %v3678
        %4338 = vmatprep.subr.mxu0 %v3614
        %4339 = vmatpush1.msra.mxu0 %v3613
        %4340 = vmatprep.subr.mxu0 %v3596
        %4341 = vmatpush1.msra.mxu0 %v3595
        %4342 = vmatprep.subr.mxu0 %v3578
        %4343 = vmatpush1.msra.mxu0 %v3577
        %4344 = vmatprep.subr.mxu0 0.0
        %4345 = vmatpush2.msra.mxu0 0.0
        %4346 = vmatprep.subr.mxu0 0.0
        %4347 = vmatpush2.msra.mxu0 0.0
        %4348 = vmatprep.subr.mxu0 0.0
        %4349 = vmatpush2.msra.mxu0 0.0
        %4350 = vmatprep.subr.mxu0 0.0
        %4351 = vmatpush2.msra.mxu0 0.0
        %4352 = vmatprep.subr.mxu0 0.0
        %4353 = vmatpush2.msra.mxu0 0.0
        %4354 = vmatprep.subr.mxu0 0.0
        %4355 = vmatpush2.msra.mxu0 0.0
        %4356 = vmatprep.subr.mxu0 0.0
        %4357 = vmatpush2.msra.mxu0 0.0
        %4358 = vmatprep.subr.mxu0 0.0
        %4359 = vmatpush2.msra.mxu0 0.0
        %4360 = vmatprep.subr.mxu0 0.0
        %4361 = vmatpush2.msra.mxu0 0.0
        %4362 = vmatprep.subr.mxu0 0.0
        %4363 = vmatpush2.msra.mxu0 0.0
        %4364 = vmatprep.subr.mxu0 0.0
        %4365 = vmatpush2.msra.mxu0 0.0
        %4366 = vmatprep.subr.mxu0 0.0
        %4367 = vmatpush2.msra.mxu0 0.0
        %4368 = vmatprep.subr.mxu0 0.0
        %4369 = vmatpush2.msra.mxu0 0.0
        %4370 = vmatprep.subr.mxu0 0.0
        %4371 = vmatpush2.msra.mxu0 0.0
        %4372 = vmatprep.subr.mxu0 0.0
        %4373 = vmatpush2.msra.mxu0 0.0
        %4374 = vmatprep.subr.mxu0 0.0
        %4375 = vmatpush2.msra.mxu0 0.0
        %4376 = vmatprep.mubr.f32.mxu0 0.0
        %4377 = vmatmul.mubr.f32.gmra.mxu0 %v839
        %v4378 = vpop.f32.mrf.mxu0
        %v4379 = vadd.f32 0.0, %v4378
        %v4380 = vpop.f32.mrf.mxu0
        %v4381 = vadd.f32 0.0, %v4380
        %4382 = vmatprep.mubr.f32.mxu0 0.0
        %4383 = vmatmul.mubr.f32.gmra.mxu0 %v842
        %v4384 = vpop.f32.mrf.mxu0
        %v4385 = vadd.f32 0.0, %v4384
        %v4386 = vpop.f32.mrf.mxu0
        %v4387 = vadd.f32 0.0, %v4386
        %4388 = vmatprep.mubr.f32.mxu0 0.0
        %4389 = vmatmul.mubr.f32.gmra.mxu0 %v845
        %v4390 = vpop.f32.mrf.mxu0
        %v4391 = vadd.f32 0.0, %v4390
        %v4392 = vpop.f32.mrf.mxu0
        %v4393 = vadd.f32 0.0, %v4392
        %4394 = vmatprep.mubr.f32.mxu0 0.0
        %4395 = vmatmul.mubr.f32.gmra.mxu0 %v848
        %v4396 = vpop.f32.mrf.mxu0
        %v4397 = vadd.f32 0.0, %v4396
        %v4398 = vpop.f32.mrf.mxu0
        %v4399 = vadd.f32 0.0, %v4398
        %4400 = vdwg.mxu0
        %4401 = vmatprep.subr.mxu0 0.0
        %4402 = vmatpush1.msra.mxu0 0.0
        %4403 = vmatprep.subr.mxu0 0.0
        %4404 = vmatpush1.msra.mxu0 0.0
        %4405 = vmatprep.subr.mxu0 0.0
        %4406 = vmatpush1.msra.mxu0 0.0
        %4407 = vmatprep.subr.mxu0 0.0
        %4408 = vmatpush1.msra.mxu0 0.0
        %4409 = vmatprep.subr.mxu0 0.0
        %4410 = vmatpush1.msra.mxu0 0.0
        %4411 = vmatprep.subr.mxu0 0.0
        %4412 = vmatpush1.msra.mxu0 0.0
        %4413 = vmatprep.subr.mxu0 0.0
        %4414 = vmatpush1.msra.mxu0 0.0
        %4415 = vmatprep.subr.mxu0 0.0
        %4416 = vmatpush1.msra.mxu0 0.0
        %4417 = vmatprep.subr.mxu0 0.0
        %4418 = vmatpush1.msra.mxu0 0.0
        %4419 = vmatprep.subr.mxu0 0.0
        %4420 = vmatpush1.msra.mxu0 0.0
        %4421 = vmatprep.subr.mxu0 0.0
        %4422 = vmatpush1.msra.mxu0 0.0
        %4423 = vmatprep.subr.mxu0 0.0
        %4424 = vmatpush1.msra.mxu0 0.0
        %4425 = vmatprep.subr.mxu0 %v3687
        %4426 = vmatpush1.msra.mxu0 %v3684
        %4427 = vmatprep.subr.mxu0 %v3616
        %4428 = vmatpush1.msra.mxu0 %v3615
        %4429 = vmatprep.subr.mxu0 %v3598
        %4430 = vmatpush1.msra.mxu0 %v3597
        %4431 = vmatprep.subr.mxu0 %v3580
        %4432 = vmatpush1.msra.mxu0 %v3579
        %4433 = vmatprep.subr.mxu0 0.0
        %4434 = vmatpush2.msra.mxu0 0.0
        %4435 = vmatprep.subr.mxu0 0.0
        %4436 = vmatpush2.msra.mxu0 0.0
        %4437 = vmatprep.subr.mxu0 0.0
        %4438 = vmatpush2.msra.mxu0 0.0
        %4439 = vmatprep.subr.mxu0 0.0
        %4440 = vmatpush2.msra.mxu0 0.0
        %4441 = vmatprep.subr.mxu0 0.0
        %4442 = vmatpush2.msra.mxu0 0.0
        %4443 = vmatprep.subr.mxu0 0.0
        %4444 = vmatpush2.msra.mxu0 0.0
        %4445 = vmatprep.subr.mxu0 0.0
        %4446 = vmatpush2.msra.mxu0 0.0
        %4447 = vmatprep.subr.mxu0 0.0
        %4448 = vmatpush2.msra.mxu0 0.0
        %4449 = vmatprep.subr.mxu0 0.0
        %4450 = vmatpush2.msra.mxu0 0.0
        %4451 = vmatprep.subr.mxu0 0.0
        %4452 = vmatpush2.msra.mxu0 0.0
        %4453 = vmatprep.subr.mxu0 0.0
        %4454 = vmatpush2.msra.mxu0 0.0
        %4455 = vmatprep.subr.mxu0 0.0
        %4456 = vmatpush2.msra.mxu0 0.0
        %4457 = vmatprep.subr.mxu0 0.0
        %4458 = vmatpush2.msra.mxu0 0.0
        %4459 = vmatprep.subr.mxu0 0.0
        %4460 = vmatpush2.msra.mxu0 0.0
        %4461 = vmatprep.subr.mxu0 0.0
        %4462 = vmatpush2.msra.mxu0 0.0
        %4463 = vmatprep.subr.mxu0 0.0
        %4464 = vmatpush2.msra.mxu0 0.0
        %4465 = vmatprep.mubr.f32.mxu0 0.0
        %4466 = vmatmul.mubr.f32.gmra.mxu0 %v839
        %v4467 = vpop.f32.mrf.mxu0
        %v4468 = vadd.f32 0.0, %v4467
        %v4469 = vpop.f32.mrf.mxu0
        %v4470 = vadd.f32 0.0, %v4469
        %4471 = vmatprep.mubr.f32.mxu0 0.0
        %4472 = vmatmul.mubr.f32.gmra.mxu0 %v842
        %v4473 = vpop.f32.mrf.mxu0
        %v4474 = vadd.f32 0.0, %v4473
        %v4475 = vpop.f32.mrf.mxu0
        %v4476 = vadd.f32 0.0, %v4475
        %4477 = vmatprep.mubr.f32.mxu0 0.0
        %4478 = vmatmul.mubr.f32.gmra.mxu0 %v845
        %v4479 = vpop.f32.mrf.mxu0
        %v4480 = vadd.f32 0.0, %v4479
        %v4481 = vpop.f32.mrf.mxu0
        %v4482 = vadd.f32 0.0, %v4481
        %4483 = vmatprep.mubr.f32.mxu0 0.0
        %4484 = vmatmul.mubr.f32.gmra.mxu0 %v848
        %v4485 = vpop.f32.mrf.mxu0
        %v4486 = vadd.f32 0.0, %v4485
        %v4487 = vpop.f32.mrf.mxu0
        %v4488 = vadd.f32 0.0, %v4487
        %4489 = vdwg.mxu0
        %v4490 = vmax.f32 %v972, %v1900
        %v4491 = vmax.f32 %v974, %v1902
        %v4492 = vmax.f32 %v1061, %v1989
        %v4493 = vmax.f32 %v1063, %v1991
        %v4494 = vmax.f32 %v1150, %v2078
        %v4495 = vmax.f32 %v1152, %v2080
        %v4496 = vmax.f32 %v1239, %v2167
        %v4497 = vmax.f32 %v1241, %v2169
        %v4498 = vmax.f32 %v1328, %v2256
        %v4499 = vmax.f32 %v1330, %v2258
        %v4500 = vmax.f32 %v1417, %v2345
        %v4501 = vmax.f32 %v1419, %v2347
        %v4502 = vmax.f32 %v1506, %v2434
        %v4503 = vmax.f32 %v1508, %v2436
        %v4504 = vmax.f32 %v1595, %v2523
        %v4505 = vmax.f32 %v1597, %v2525
        %v4506 = vmax.f32 %v1684, %v2612
        %v4507 = vmax.f32 %v1686, %v2614
        %v4508 = vmax.f32 %v978, %v1906
        %v4509 = vmax.f32 %v980, %v1908
        %v4510 = vmax.f32 %v1067, %v1995
        %v4511 = vmax.f32 %v1069, %v1997
        %v4512 = vmax.f32 %v1156, %v2084
        %v4513 = vmax.f32 %v1158, %v2086
        %v4514 = vmax.f32 %v1245, %v2173
        %v4515 = vmax.f32 %v1247, %v2175
        %v4516 = vmax.f32 %v1334, %v2262
        %v4517 = vmax.f32 %v1336, %v2264
        %v4518 = vmax.f32 %v1423, %v2351
        %v4519 = vmax.f32 %v1425, %v2353
        %v4520 = vmax.f32 %v1512, %v2440
        %v4521 = vmax.f32 %v1514, %v2442
        %v4522 = vmax.f32 %v1601, %v2529
        %v4523 = vmax.f32 %v1603, %v2531
        %v4524 = vmax.f32 %v1690, %v2618
        %v4525 = vmax.f32 %v1692, %v2620
        %v4526 = vmax.f32 %v984, %v1912
        %v4527 = vmax.f32 %v986, %v1914
        %v4528 = vmax.f32 %v1073, %v2001
        %v4529 = vmax.f32 %v1075, %v2003
        %v4530 = vmax.f32 %v1162, %v2090
        %v4531 = vmax.f32 %v1164, %v2092
        %v4532 = vmax.f32 %v1251, %v2179
        %v4533 = vmax.f32 %v1253, %v2181
        %v4534 = vmax.f32 %v1340, %v2268
        %v4535 = vmax.f32 %v1342, %v2270
        %v4536 = vmax.f32 %v1429, %v2357
        %v4537 = vmax.f32 %v1431, %v2359
        %v4538 = vmax.f32 %v1518, %v2446
        %v4539 = vmax.f32 %v1520, %v2448
        %v4540 = vmax.f32 %v1607, %v2535
        %v4541 = vmax.f32 %v1609, %v2537
        %v4542 = vmax.f32 %v1696, %v2624
        %v4543 = vmax.f32 %v1698, %v2626
        %v4544 = vmax.f32 %v990, %v1918
        %v4545 = vmax.f32 %v992, %v1920
        %v4546 = vmax.f32 %v1079, %v2007
        %v4547 = vmax.f32 %v1081, %v2009
        %v4548 = vmax.f32 %v1168, %v2096
        %v4549 = vmax.f32 %v1170, %v2098
        %v4550 = vmax.f32 %v1257, %v2185
        %v4551 = vmax.f32 %v1259, %v2187
        %v4552 = vmax.f32 %v1346, %v2274
        %v4553 = vmax.f32 %v1348, %v2276
        %v4554 = vmax.f32 %v1435, %v2363
        %v4555 = vmax.f32 %v1437, %v2365
        %v4556 = vmax.f32 %v1524, %v2452
        %v4557 = vmax.f32 %v1526, %v2454
        %v4558 = vmax.f32 %v1613, %v2541
        %v4559 = vmax.f32 %v1615, %v2543
        %v4560 = vmax.f32 %v1702, %v2630
        %v4561 = vmax.f32 %v1704, %v2632
        %v4562 = vmax.f32 %v2828, %v3756
        %v4563 = vmax.f32 %v2830, %v3758
        %v4564 = vmax.f32 %v2917, %v3845
        %v4565 = vmax.f32 %v2919, %v3847
        %v4566 = vmax.f32 %v3006, %v3934
        %v4567 = vmax.f32 %v3008, %v3936
        %v4568 = vmax.f32 %v3095, %v4023
        %v4569 = vmax.f32 %v3097, %v4025
        %v4570 = vmax.f32 %v3184, %v4112
        %v4571 = vmax.f32 %v3186, %v4114
        %v4572 = vmax.f32 %v3273, %v4201
        %v4573 = vmax.f32 %v3275, %v4203
        %v4574 = vmax.f32 %v3362, %v4290
        %v4575 = vmax.f32 %v3364, %v4292
        %v4576 = vmax.f32 %v3451, %v4379
        %v4577 = vmax.f32 %v3453, %v4381
        %v4578 = vmax.f32 %v3540, %v4468
        %v4579 = vmax.f32 %v3542, %v4470
        %v4580 = vmax.f32 %v2834, %v3762
        %v4581 = vmax.f32 %v2836, %v3764
        %v4582 = vmax.f32 %v2923, %v3851
        %v4583 = vmax.f32 %v2925, %v3853
        %v4584 = vmax.f32 %v3012, %v3940
        %v4585 = vmax.f32 %v3014, %v3942
        %v4586 = vmax.f32 %v3101, %v4029
        %v4587 = vmax.f32 %v3103, %v4031
        %v4588 = vmax.f32 %v3190, %v4118
        %v4589 = vmax.f32 %v3192, %v4120
        %v4590 = vmax.f32 %v3279, %v4207
        %v4591 = vmax.f32 %v3281, %v4209
        %v4592 = vmax.f32 %v3368, %v4296
        %v4593 = vmax.f32 %v3370, %v4298
        %v4594 = vmax.f32 %v3457, %v4385
        %v4595 = vmax.f32 %v3459, %v4387
        %v4596 = vmax.f32 %v3546, %v4474
        %v4597 = vmax.f32 %v3548, %v4476
        %v4598 = vmax.f32 %v2840, %v3768
        %v4599 = vmax.f32 %v2842, %v3770
        %v4600 = vmax.f32 %v2929, %v3857
        %v4601 = vmax.f32 %v2931, %v3859
        %v4602 = vmax.f32 %v3018, %v3946
        %v4603 = vmax.f32 %v3020, %v3948
        %v4604 = vmax.f32 %v3107, %v4035
        %v4605 = vmax.f32 %v3109, %v4037
        %v4606 = vmax.f32 %v3196, %v4124
        %v4607 = vmax.f32 %v3198, %v4126
        %v4608 = vmax.f32 %v3285, %v4213
        %v4609 = vmax.f32 %v3287, %v4215
        %v4610 = vmax.f32 %v3374, %v4302
        %v4611 = vmax.f32 %v3376, %v4304
        %v4612 = vmax.f32 %v3463, %v4391
        %v4613 = vmax.f32 %v3465, %v4393
        %v4614 = vmax.f32 %v3552, %v4480
        %v4615 = vmax.f32 %v3554, %v4482
        %v4616 = vmax.f32 %v2846, %v3774
        %v4617 = vmax.f32 %v2848, %v3776
        %v4618 = vmax.f32 %v2935, %v3863
        %v4619 = vmax.f32 %v2937, %v3865
        %v4620 = vmax.f32 %v3024, %v3952
        %v4621 = vmax.f32 %v3026, %v3954
        %v4622 = vmax.f32 %v3113, %v4041
        %v4623 = vmax.f32 %v3115, %v4043
        %v4624 = vmax.f32 %v3202, %v4130
        %v4625 = vmax.f32 %v3204, %v4132
        %v4626 = vmax.f32 %v3291, %v4219
        %v4627 = vmax.f32 %v3293, %v4221
        %v4628 = vmax.f32 %v3380, %v4308
        %v4629 = vmax.f32 %v3382, %v4310
        %v4630 = vmax.f32 %v3469, %v4397
        %v4631 = vmax.f32 %v3471, %v4399
        %v4632 = vmax.f32 %v3558, %v4486
        %v4633 = vmax.f32 %v3560, %v4488
        %v4634 = vmax.f32 %v4490, %v4562
        %v4635 = vmax.f32 %v4491, %v4563
        %v4636 = vmax.f32 %v4492, %v4564
        %v4637 = vmax.f32 %v4493, %v4565
        %v4638 = vmax.f32 %v4494, %v4566
        %v4639 = vmax.f32 %v4495, %v4567
        %v4640 = vmax.f32 %v4496, %v4568
        %v4641 = vmax.f32 %v4497, %v4569
        %v4642 = vmax.f32 %v4498, %v4570
        %v4643 = vmax.f32 %v4499, %v4571
        %v4644 = vmax.f32 %v4500, %v4572
        %v4645 = vmax.f32 %v4501, %v4573
        %v4646 = vmax.f32 %v4502, %v4574
        %v4647 = vmax.f32 %v4503, %v4575
        %v4648 = vmax.f32 %v4504, %v4576
        %v4649 = vmax.f32 %v4505, %v4577
        %v4650 = vmax.f32 %v4506, %v4578
        %v4651 = vmax.f32 %v4507, %v4579
        %v4652 = vmax.f32 %v4508, %v4580
        %v4653 = vmax.f32 %v4509, %v4581
        %v4654 = vmax.f32 %v4510, %v4582
        %v4655 = vmax.f32 %v4511, %v4583
        %v4656 = vmax.f32 %v4512, %v4584
        %v4657 = vmax.f32 %v4513, %v4585
        %v4658 = vmax.f32 %v4514, %v4586
        %v4659 = vmax.f32 %v4515, %v4587
        %v4660 = vmax.f32 %v4516, %v4588
        %v4661 = vmax.f32 %v4517, %v4589
        %v4662 = vmax.f32 %v4518, %v4590
        %v4663 = vmax.f32 %v4519, %v4591
        %v4664 = vmax.f32 %v4520, %v4592
        %v4665 = vmax.f32 %v4521, %v4593
        %v4666 = vmax.f32 %v4522, %v4594
        %v4667 = vmax.f32 %v4523, %v4595
        %v4668 = vmax.f32 %v4524, %v4596
        %v4669 = vmax.f32 %v4525, %v4597
        %v4670 = vmax.f32 %v4526, %v4598
        %v4671 = vmax.f32 %v4527, %v4599
        %v4672 = vmax.f32 %v4528, %v4600
        %v4673 = vmax.f32 %v4529, %v4601
        %v4674 = vmax.f32 %v4530, %v4602
        %v4675 = vmax.f32 %v4531, %v4603
        %v4676 = vmax.f32 %v4532, %v4604
        %v4677 = vmax.f32 %v4533, %v4605
        %v4678 = vmax.f32 %v4534, %v4606
        %v4679 = vmax.f32 %v4535, %v4607
        %v4680 = vmax.f32 %v4536, %v4608
        %v4681 = vmax.f32 %v4537, %v4609
        %v4682 = vmax.f32 %v4538, %v4610
        %v4683 = vmax.f32 %v4539, %v4611
        %v4684 = vmax.f32 %v4540, %v4612
        %v4685 = vmax.f32 %v4541, %v4613
        %v4686 = vmax.f32 %v4542, %v4614
        %v4687 = vmax.f32 %v4543, %v4615
        %v4688 = vmax.f32 %v4544, %v4616
        %v4689 = vmax.f32 %v4545, %v4617
        %v4690 = vmax.f32 %v4546, %v4618
        %v4691 = vmax.f32 %v4547, %v4619
        %v4692 = vmax.f32 %v4548, %v4620
        %v4693 = vmax.f32 %v4549, %v4621
        %v4694 = vmax.f32 %v4550, %v4622
        %v4695 = vmax.f32 %v4551, %v4623
        %v4696 = vmax.f32 %v4552, %v4624
        %v4697 = vmax.f32 %v4553, %v4625
        %v4698 = vmax.f32 %v4554, %v4626
        %v4699 = vmax.f32 %v4555, %v4627
        %v4700 = vmax.f32 %v4556, %v4628
        %v4701 = vmax.f32 %v4557, %v4629
        %v4702 = vmax.f32 %v4558, %v4630
        %v4703 = vmax.f32 %v4559, %v4631
        %v4704 = vmax.f32 %v4560, %v4632
        %v4705 = vmax.f32 %v4561, %v4633
        %v4706 = vld [vmem:[%s2] sm:$0xff]
        %v4707 = vld [vmem:[%s2 + $0x8] sm:$0xff]
        %v4708 = vld [vmem:[%s2 + $0x10] sm:$0xff]
        %v4709 = vld [vmem:[%s2 + $0x18] sm:$0xf]
        %4711 = vset.pattern.permute.xlu0 0
        %4712 = vperm.xlu0 %4711, %v4706
        %v4713 = vpop.permute.xlu0 %4712
        %4716 = vset.pattern.permute.xlu0 0
        %4717 = vperm.xlu0 %4716, %v4707
        %v4718 = vpop.permute.xlu0 %4717
        %4721 = vset.pattern.permute.xlu0 0
        %4722 = vperm.xlu0 %4721, %v4708
        %v4723 = vpop.permute.xlu0 %4722
        %4726 = vset.pattern.permute.xlu0 0
        %4727 = vperm.xlu0 %4726, %v4709
        %v4728 = vpop.permute.xlu0 %4727
        %v4730 = vadd.f32 %v4634, %v4713
        %v4731 = vadd.f32 %v4635, %v4713
        %v4732 = vadd.f32 %v4636, %v4713
        %v4733 = vadd.f32 %v4637, %v4713
        %v4734 = vadd.f32 %v4638, %v4713
        %v4735 = vadd.f32 %v4639, %v4713
        %v4736 = vadd.f32 %v4640, %v4713
        %v4737 = vadd.f32 %v4641, %v4713
        %v4738 = vadd.f32 %v4642, %v4713
        %v4739 = vadd.f32 %v4643, %v4713
        %v4740 = vadd.f32 %v4644, %v4713
        %v4741 = vadd.f32 %v4645, %v4713
        %v4742 = vadd.f32 %v4646, %v4713
        %v4743 = vadd.f32 %v4647, %v4713
        %v4744 = vadd.f32 %v4648, %v4713
        %v4745 = vadd.f32 %v4649, %v4713
        %v4746 = vadd.f32 %v4650, %v4713
        %v4747 = vadd.f32 %v4651, %v4713
        %v4748 = vadd.f32 %v4652, %v4718
        %v4749 = vadd.f32 %v4653, %v4718
        %v4750 = vadd.f32 %v4654, %v4718
        %v4751 = vadd.f32 %v4655, %v4718
        %v4752 = vadd.f32 %v4656, %v4718
        %v4753 = vadd.f32 %v4657, %v4718
        %v4754 = vadd.f32 %v4658, %v4718
        %v4755 = vadd.f32 %v4659, %v4718
        %v4756 = vadd.f32 %v4660, %v4718
        %v4757 = vadd.f32 %v4661, %v4718
        %v4758 = vadd.f32 %v4662, %v4718
        %v4759 = vadd.f32 %v4663, %v4718
        %v4760 = vadd.f32 %v4664, %v4718
        %v4761 = vadd.f32 %v4665, %v4718
        %v4762 = vadd.f32 %v4666, %v4718
        %v4763 = vadd.f32 %v4667, %v4718
        %v4764 = vadd.f32 %v4668, %v4718
        %v4765 = vadd.f32 %v4669, %v4718
        %v4766 = vadd.f32 %v4670, %v4723
        %v4767 = vadd.f32 %v4671, %v4723
        %v4768 = vadd.f32 %v4672, %v4723
        %v4769 = vadd.f32 %v4673, %v4723
        %v4770 = vadd.f32 %v4674, %v4723
        %v4771 = vadd.f32 %v4675, %v4723
        %v4772 = vadd.f32 %v4676, %v4723
        %v4773 = vadd.f32 %v4677, %v4723
        %v4774 = vadd.f32 %v4678, %v4723
        %v4775 = vadd.f32 %v4679, %v4723
        %v4776 = vadd.f32 %v4680, %v4723
        %v4777 = vadd.f32 %v4681, %v4723
        %v4778 = vadd.f32 %v4682, %v4723
        %v4779 = vadd.f32 %v4683, %v4723
        %v4780 = vadd.f32 %v4684, %v4723
        %v4781 = vadd.f32 %v4685, %v4723
        %v4782 = vadd.f32 %v4686, %v4723
        %v4783 = vadd.f32 %v4687, %v4723
        %v4784 = vadd.f32 %v4688, %v4728
        %v4785 = vadd.f32 %v4689, %v4728
        %v4786 = vadd.f32 %v4690, %v4728
        %v4787 = vadd.f32 %v4691, %v4728
        %v4788 = vadd.f32 %v4692, %v4728
        %v4789 = vadd.f32 %v4693, %v4728
        %v4790 = vadd.f32 %v4694, %v4728
        %v4791 = vadd.f32 %v4695, %v4728
        %v4792 = vadd.f32 %v4696, %v4728
        %v4793 = vadd.f32 %v4697, %v4728
        %v4794 = vadd.f32 %v4698, %v4728
        %v4795 = vadd.f32 %v4699, %v4728
        %v4796 = vadd.f32 %v4700, %v4728
        %v4797 = vadd.f32 %v4701, %v4728
        %v4798 = vadd.f32 %v4702, %v4728
        %v4799 = vadd.f32 %v4703, %v4728
        %v4800 = vadd.f32 %v4704, %v4728
        %v4801 = vadd.f32 %v4705, %v4728
        %v4802 = vmax.f32 %v4730, 0.0
        %v4803 = vmax.f32 %v4731, 0.0
        %v4804 = vmax.f32 %v4732, 0.0
        %v4805 = vmax.f32 %v4733, 0.0
        %v4806 = vmax.f32 %v4734, 0.0
        %v4807 = vmax.f32 %v4735, 0.0
        %v4808 = vmax.f32 %v4736, 0.0
        %v4809 = vmax.f32 %v4737, 0.0
        %v4810 = vmax.f32 %v4738, 0.0
        %v4811 = vmax.f32 %v4739, 0.0
        %v4812 = vmax.f32 %v4740, 0.0
        %v4813 = vmax.f32 %v4741, 0.0
        %v4814 = vmax.f32 %v4742, 0.0
        %v4815 = vmax.f32 %v4743, 0.0
        %v4816 = vmax.f32 %v4744, 0.0
        %v4817 = vmax.f32 %v4745, 0.0
        %v4818 = vmax.f32 %v4746, 0.0
        %v4819 = vmax.f32 %v4747, 0.0
        %v4820 = vmax.f32 %v4748, 0.0
        %v4821 = vmax.f32 %v4749, 0.0
        %v4822 = vmax.f32 %v4750, 0.0
        %v4823 = vmax.f32 %v4751, 0.0
        %v4824 = vmax.f32 %v4752, 0.0
        %v4825 = vmax.f32 %v4753, 0.0
        %v4826 = vmax.f32 %v4754, 0.0
        %v4827 = vmax.f32 %v4755, 0.0
        %v4828 = vmax.f32 %v4756, 0.0
        %v4829 = vmax.f32 %v4757, 0.0
        %v4830 = vmax.f32 %v4758, 0.0
        %v4831 = vmax.f32 %v4759, 0.0
        %v4832 = vmax.f32 %v4760, 0.0
        %v4833 = vmax.f32 %v4761, 0.0
        %v4834 = vmax.f32 %v4762, 0.0
        %v4835 = vmax.f32 %v4763, 0.0
        %v4836 = vmax.f32 %v4764, 0.0
        %v4837 = vmax.f32 %v4765, 0.0
        %v4838 = vmax.f32 %v4766, 0.0
        %v4839 = vmax.f32 %v4767, 0.0
        %v4840 = vmax.f32 %v4768, 0.0
        %v4841 = vmax.f32 %v4769, 0.0
        %v4842 = vmax.f32 %v4770, 0.0
        %v4843 = vmax.f32 %v4771, 0.0
        %v4844 = vmax.f32 %v4772, 0.0
        %v4845 = vmax.f32 %v4773, 0.0
        %v4846 = vmax.f32 %v4774, 0.0
        %v4847 = vmax.f32 %v4775, 0.0
        %v4848 = vmax.f32 %v4776, 0.0
        %v4849 = vmax.f32 %v4777, 0.0
        %v4850 = vmax.f32 %v4778, 0.0
        %v4851 = vmax.f32 %v4779, 0.0
        %v4852 = vmax.f32 %v4780, 0.0
        %v4853 = vmax.f32 %v4781, 0.0
        %v4854 = vmax.f32 %v4782, 0.0
        %v4855 = vmax.f32 %v4783, 0.0
        %v4856 = vmax.f32 %v4784, 0.0
        %v4857 = vmax.f32 %v4785, 0.0
        %v4858 = vmax.f32 %v4786, 0.0
        %v4859 = vmax.f32 %v4787, 0.0
        %v4860 = vmax.f32 %v4788, 0.0
        %v4861 = vmax.f32 %v4789, 0.0
        %v4862 = vmax.f32 %v4790, 0.0
        %v4863 = vmax.f32 %v4791, 0.0
        %v4864 = vmax.f32 %v4792, 0.0
        %v4865 = vmax.f32 %v4793, 0.0
        %v4866 = vmax.f32 %v4794, 0.0
        %v4867 = vmax.f32 %v4795, 0.0
        %v4868 = vmax.f32 %v4796, 0.0
        %v4869 = vmax.f32 %v4797, 0.0
        %v4870 = vmax.f32 %v4798, 0.0
        %v4871 = vmax.f32 %v4799, 0.0
        %v4872 = vmax.f32 %v4800, 0.0
        %v4873 = vmax.f32 %v4801, 0.0
        %4874 = vst [vmem:[%s758] sm:$0xff] %v4802
        %4875 = vst [vmem:[%s758 + $0x8] sm:$0xff] %v4803
        %4876 = vst [vmem:[%s758 + $0x10] sm:$0xff] %v4804
        %4877 = vst [vmem:[%s758 + $0x18] sm:$0xff] %v4805
        %4878 = vst [vmem:[%s758 + $0x20] sm:$0xff] %v4806
        %4879 = vst [vmem:[%s758 + $0x28] sm:$0xff] %v4807
        %4880 = vst [vmem:[%s758 + $0x30] sm:$0xff] %v4808
        %4881 = vst [vmem:[%s758 + $0x38] sm:$0xff] %v4809
        %4882 = vst [vmem:[%s758 + $0x40] sm:$0xff] %v4810
        %4883 = vst [vmem:[%s758 + $0x48] sm:$0xff] %v4811
        %4884 = vst [vmem:[%s758 + $0x50] sm:$0xff] %v4812
        %4885 = vst [vmem:[%s758 + $0x58] sm:$0xff] %v4813
        %4886 = vst [vmem:[%s758 + $0x60] sm:$0xff] %v4814
        %4887 = vst [vmem:[%s758 + $0x68] sm:$0xff] %v4815
        %4888 = vst [vmem:[%s758 + $0x70] sm:$0xff] %v4816
        %4889 = vst [vmem:[%s758 + $0x78] sm:$0xff] %v4817
        %4890 = vst [vmem:[%s758 + $0x80] sm:$0xff] %v4818
        %4891 = vst [vmem:[%s758 + $0x88] sm:$0xff] %v4819
        %4892 = vst [vmem:[%s758 + $0x90] sm:$0xff] %v4820
        %4893 = vst [vmem:[%s758 + $0x98] sm:$0xff] %v4821
        %4894 = vst [vmem:[%s758 + $0xa0] sm:$0xff] %v4822
        %4895 = vst [vmem:[%s758 + $0xa8] sm:$0xff] %v4823
        %4896 = vst [vmem:[%s758 + $0xb0] sm:$0xff] %v4824
        %4897 = vst [vmem:[%s758 + $0xb8] sm:$0xff] %v4825
        %4898 = vst [vmem:[%s758 + $0xc0] sm:$0xff] %v4826
        %4899 = vst [vmem:[%s758 + $0xc8] sm:$0xff] %v4827
        %4900 = vst [vmem:[%s758 + $0xd0] sm:$0xff] %v4828
        %4901 = vst [vmem:[%s758 + $0xd8] sm:$0xff] %v4829
        %4902 = vst [vmem:[%s758 + $0xe0] sm:$0xff] %v4830
        %4903 = vst [vmem:[%s758 + $0xe8] sm:$0xff] %v4831
        %4904 = vst [vmem:[%s758 + $0xf0] sm:$0xff] %v4832
        %4905 = vst [vmem:[%s758 + $0xf8] sm:$0xff] %v4833
        %4906 = vst [vmem:[%s758 + $0x100] sm:$0xff] %v4834
        %4907 = vst [vmem:[%s758 + $0x108] sm:$0xff] %v4835
        %4908 = vst [vmem:[%s758 + $0x110] sm:$0xff] %v4836
        %4909 = vst [vmem:[%s758 + $0x118] sm:$0xff] %v4837
        %4910 = vst [vmem:[%s758 + $0x120] sm:$0xff] %v4838
        %4911 = vst [vmem:[%s758 + $0x128] sm:$0xff] %v4839
        %4912 = vst [vmem:[%s758 + $0x130] sm:$0xff] %v4840
        %4913 = vst [vmem:[%s758 + $0x138] sm:$0xff] %v4841
        %4914 = vst [vmem:[%s758 + $0x140] sm:$0xff] %v4842
        %4915 = vst [vmem:[%s758 + $0x148] sm:$0xff] %v4843
        %4916 = vst [vmem:[%s758 + $0x150] sm:$0xff] %v4844
        %4917 = vst [vmem:[%s758 + $0x158] sm:$0xff] %v4845
        %4918 = vst [vmem:[%s758 + $0x160] sm:$0xff] %v4846
        %4919 = vst [vmem:[%s758 + $0x168] sm:$0xff] %v4847
        %4920 = vst [vmem:[%s758 + $0x170] sm:$0xff] %v4848
        %4921 = vst [vmem:[%s758 + $0x178] sm:$0xff] %v4849
        %4922 = vst [vmem:[%s758 + $0x180] sm:$0xff] %v4850
        %4923 = vst [vmem:[%s758 + $0x188] sm:$0xff] %v4851
        %4924 = vst [vmem:[%s758 + $0x190] sm:$0xff] %v4852
        %4925 = vst [vmem:[%s758 + $0x198] sm:$0xff] %v4853
        %4926 = vst [vmem:[%s758 + $0x1a0] sm:$0xff] %v4854
        %4927 = vst [vmem:[%s758 + $0x1a8] sm:$0xff] %v4855
        %4928 = vst [vmem:[%s758 + $0x1b0] sm:$0xf] %v4856
        %4929 = vst [vmem:[%s758 + $0x1b8] sm:$0xf] %v4857
        %4930 = vst [vmem:[%s758 + $0x1c0] sm:$0xf] %v4858
        %4931 = vst [vmem:[%s758 + $0x1c8] sm:$0xf] %v4859
        %4932 = vst [vmem:[%s758 + $0x1d0] sm:$0xf] %v4860
        %4933 = vst [vmem:[%s758 + $0x1d8] sm:$0xf] %v4861
        %4934 = vst [vmem:[%s758 + $0x1e0] sm:$0xf] %v4862
        %4935 = vst [vmem:[%s758 + $0x1e8] sm:$0xf] %v4863
        %4936 = vst [vmem:[%s758 + $0x1f0] sm:$0xf] %v4864
        %4937 = vst [vmem:[%s758 + $0x1f8] sm:$0xf] %v4865
        %4938 = vst [vmem:[%s758 + $0x200] sm:$0xf] %v4866
        %4939 = vst [vmem:[%s758 + $0x208] sm:$0xf] %v4867
        %4940 = vst [vmem:[%s758 + $0x210] sm:$0xf] %v4868
        %4941 = vst [vmem:[%s758 + $0x218] sm:$0xf] %v4869
        %4942 = vst [vmem:[%s758 + $0x220] sm:$0xf] %v4870
        %4943 = vst [vmem:[%s758 + $0x228] sm:$0xf] %v4871
        %4944 = vst [vmem:[%s758 + $0x230] sm:$0xf] %v4872
        %4945 = vst [vmem:[%s758 + $0x238] sm:$0xf] %v4873
        %s4946 = sand.u32 %s90, 1
        %s4947 = sand.u32 %s90, 1
        %s4948 = smul.addr %s4947, 576
        %s4949 = scalar_lea.vmem [#allocation3], %s4948
        // Predicated region
        $region56: #{cnn_model_forward.2} parent=50 // pred_check
          %p4950 = pneg %p100
        $region57: #{cnn_model_forward.2} parent=50 // pred_check_branch
          %4952 = sbr.rel (%p4950) target = $region59
        $region58: #{cnn_model_forward.2} parent=50 // pred_region
          %s4953 = smul.u32 18, %s14
          %s4954 = smul.addr %s4953, 8
          %s4955 = scalar_lea.vmem %s3, %s4954
          // Predicated region
          $region60: #{cnn_model_forward.2} parent=58 // pred_check
            _
          $region61: #{cnn_model_forward.2} parent=58 // pred_check_branch
            %4957 = sbr.rel (0) target = $region63
          $region62: #{cnn_model_forward.2} parent=58 // pred_region
            // Predicated region
            $region64: #{cnn_model_forward.2} parent=62 // pred_check
              _
            $region65: #{cnn_model_forward.2} parent=62 // pred_check_branch
              %4959 = sbr.rel (0) target = $region67
            $region66: #{cnn_model_forward.2} parent=62 // pred_region
              loop: start=0, step=1, limit=1
              $region68: #{cnn_model_forward.2} parent=66 // loop_pre_header
                _
              $region69: #{cnn_model_forward.2} parent=66 // loop_header
                %s4961 = sphi 0, %s4965
                %p4962 = scmp.ge.s32.totalorder %s4961, 1
                %s4966 = sphi %s4949, %s4949
                %s4967 = sphi %s4955, %s4955
              $region70: #{cnn_model_forward.2} parent=66 // loop_header_branch
                %4964 = sbr.rel (%p4962) target = $region74
              $region71: #{cnn_model_forward.2} parent=66 // loop_body
                %v4968 = vld [vmem:[%s4966] sm:$0xff]
                %4969 = vst [vmem:[%s4967] sm:$0xff] %v4968
                %v4970 = vld [vmem:[%s4966 + $0x8] sm:$0xff]
                %4971 = vst [vmem:[%s4967 + $0x8] sm:$0xff] %v4970
                %v4972 = vld [vmem:[%s4966 + $0x10] sm:$0xff]
                %4973 = vst [vmem:[%s4967 + $0x10] sm:$0xff] %v4972
                %v4974 = vld [vmem:[%s4966 + $0x18] sm:$0xff]
                %4975 = vst [vmem:[%s4967 + $0x18] sm:$0xff] %v4974
                %v4976 = vld [vmem:[%s4966 + $0x20] sm:$0xff]
                %4977 = vst [vmem:[%s4967 + $0x20] sm:$0xff] %v4976
                %v4978 = vld [vmem:[%s4966 + $0x28] sm:$0xff]
                %4979 = vst [vmem:[%s4967 + $0x28] sm:$0xff] %v4978
                %v4980 = vld [vmem:[%s4966 + $0x30] sm:$0xff]
                %4981 = vst [vmem:[%s4967 + $0x30] sm:$0xff] %v4980
                %v4982 = vld [vmem:[%s4966 + $0x38] sm:$0xff]
                %4983 = vst [vmem:[%s4967 + $0x38] sm:$0xff] %v4982
                %v4984 = vld [vmem:[%s4966 + $0x40] sm:$0xff]
                %4985 = vst [vmem:[%s4967 + $0x40] sm:$0xff] %v4984
                %v4986 = vld [vmem:[%s4966 + $0x48] sm:$0xff]
                %4987 = vst [vmem:[%s4967 + $0x48] sm:$0xff] %v4986
                %v4988 = vld [vmem:[%s4966 + $0x50] sm:$0xff]
                %4989 = vst [vmem:[%s4967 + $0x50] sm:$0xff] %v4988
                %v4990 = vld [vmem:[%s4966 + $0x58] sm:$0xff]
                %4991 = vst [vmem:[%s4967 + $0x58] sm:$0xff] %v4990
                %v4992 = vld [vmem:[%s4966 + $0x60] sm:$0xff]
                %4993 = vst [vmem:[%s4967 + $0x60] sm:$0xff] %v4992
                %v4994 = vld [vmem:[%s4966 + $0x68] sm:$0xff]
                %4995 = vst [vmem:[%s4967 + $0x68] sm:$0xff] %v4994
                %v4996 = vld [vmem:[%s4966 + $0x70] sm:$0xff]
                %4997 = vst [vmem:[%s4967 + $0x70] sm:$0xff] %v4996
                %v4998 = vld [vmem:[%s4966 + $0x78] sm:$0xff]
                %4999 = vst [vmem:[%s4967 + $0x78] sm:$0xff] %v4998
                %v5000 = vld [vmem:[%s4966 + $0x80] sm:$0xff]
                %5001 = vst [vmem:[%s4967 + $0x80] sm:$0xff] %v5000
                %v5002 = vld [vmem:[%s4966 + $0x88] sm:$0xff]
                %5003 = vst [vmem:[%s4967 + $0x88] sm:$0xff] %v5002
                %v5004 = vld [vmem:[%s4966 + $0x90] sm:$0xff]
                %5005 = vst [vmem:[%s4967 + $0x120] sm:$0xff] %v5004
                %v5006 = vld [vmem:[%s4966 + $0x98] sm:$0xff]
                %5007 = vst [vmem:[%s4967 + $0x128] sm:$0xff] %v5006
                %v5008 = vld [vmem:[%s4966 + $0xa0] sm:$0xff]
                %5009 = vst [vmem:[%s4967 + $0x130] sm:$0xff] %v5008
                %v5010 = vld [vmem:[%s4966 + $0xa8] sm:$0xff]
                %5011 = vst [vmem:[%s4967 + $0x138] sm:$0xff] %v5010
                %v5012 = vld [vmem:[%s4966 + $0xb0] sm:$0xff]
                %5013 = vst [vmem:[%s4967 + $0x140] sm:$0xff] %v5012
                %v5014 = vld [vmem:[%s4966 + $0xb8] sm:$0xff]
                %5015 = vst [vmem:[%s4967 + $0x148] sm:$0xff] %v5014
                %v5016 = vld [vmem:[%s4966 + $0xc0] sm:$0xff]
                %5017 = vst [vmem:[%s4967 + $0x150] sm:$0xff] %v5016
                %v5018 = vld [vmem:[%s4966 + $0xc8] sm:$0xff]
                %5019 = vst [vmem:[%s4967 + $0x158] sm:$0xff] %v5018
                %v5020 = vld [vmem:[%s4966 + $0xd0] sm:$0xff]
                %5021 = vst [vmem:[%s4967 + $0x160] sm:$0xff] %v5020
                %v5022 = vld [vmem:[%s4966 + $0xd8] sm:$0xff]
                %5023 = vst [vmem:[%s4967 + $0x168] sm:$0xff] %v5022
                %v5024 = vld [vmem:[%s4966 + $0xe0] sm:$0xff]
                %5025 = vst [vmem:[%s4967 + $0x170] sm:$0xff] %v5024
                %v5026 = vld [vmem:[%s4966 + $0xe8] sm:$0xff]
                %5027 = vst [vmem:[%s4967 + $0x178] sm:$0xff] %v5026
                %v5028 = vld [vmem:[%s4966 + $0xf0] sm:$0xff]
                %5029 = vst [vmem:[%s4967 + $0x180] sm:$0xff] %v5028
                %v5030 = vld [vmem:[%s4966 + $0xf8] sm:$0xff]
                %5031 = vst [vmem:[%s4967 + $0x188] sm:$0xff] %v5030
                %v5032 = vld [vmem:[%s4966 + $0x100] sm:$0xff]
                %5033 = vst [vmem:[%s4967 + $0x190] sm:$0xff] %v5032
                %v5034 = vld [vmem:[%s4966 + $0x108] sm:$0xff]
                %5035 = vst [vmem:[%s4967 + $0x198] sm:$0xff] %v5034
                %v5036 = vld [vmem:[%s4966 + $0x110] sm:$0xff]
                %5037 = vst [vmem:[%s4967 + $0x1a0] sm:$0xff] %v5036
                %v5038 = vld [vmem:[%s4966 + $0x118] sm:$0xff]
                %5039 = vst [vmem:[%s4967 + $0x1a8] sm:$0xff] %v5038
                %v5040 = vld [vmem:[%s4966 + $0x120] sm:$0xff]
                %5041 = vst [vmem:[%s4967 + $0x240] sm:$0xff] %v5040
                %v5042 = vld [vmem:[%s4966 + $0x128] sm:$0xff]
                %5043 = vst [vmem:[%s4967 + $0x248] sm:$0xff] %v5042
                %v5044 = vld [vmem:[%s4966 + $0x130] sm:$0xff]
                %5045 = vst [vmem:[%s4967 + $0x250] sm:$0xff] %v5044
                %v5046 = vld [vmem:[%s4966 + $0x138] sm:$0xff]
                %5047 = vst [vmem:[%s4967 + $0x258] sm:$0xff] %v5046
                %v5048 = vld [vmem:[%s4966 + $0x140] sm:$0xff]
                %5049 = vst [vmem:[%s4967 + $0x260] sm:$0xff] %v5048
                %v5050 = vld [vmem:[%s4966 + $0x148] sm:$0xff]
                %5051 = vst [vmem:[%s4967 + $0x268] sm:$0xff] %v5050
                %v5052 = vld [vmem:[%s4966 + $0x150] sm:$0xff]
                %5053 = vst [vmem:[%s4967 + $0x270] sm:$0xff] %v5052
                %v5054 = vld [vmem:[%s4966 + $0x158] sm:$0xff]
                %5055 = vst [vmem:[%s4967 + $0x278] sm:$0xff] %v5054
                %v5056 = vld [vmem:[%s4966 + $0x160] sm:$0xff]
                %5057 = vst [vmem:[%s4967 + $0x280] sm:$0xff] %v5056
                %v5058 = vld [vmem:[%s4966 + $0x168] sm:$0xff]
                %5059 = vst [vmem:[%s4967 + $0x288] sm:$0xff] %v5058
                %v5060 = vld [vmem:[%s4966 + $0x170] sm:$0xff]
                %5061 = vst [vmem:[%s4967 + $0x290] sm:$0xff] %v5060
                %v5062 = vld [vmem:[%s4966 + $0x178] sm:$0xff]
                %5063 = vst [vmem:[%s4967 + $0x298] sm:$0xff] %v5062
                %v5064 = vld [vmem:[%s4966 + $0x180] sm:$0xff]
                %5065 = vst [vmem:[%s4967 + $0x2a0] sm:$0xff] %v5064
                %v5066 = vld [vmem:[%s4966 + $0x188] sm:$0xff]
                %5067 = vst [vmem:[%s4967 + $0x2a8] sm:$0xff] %v5066
                %v5068 = vld [vmem:[%s4966 + $0x190] sm:$0xff]
                %5069 = vst [vmem:[%s4967 + $0x2b0] sm:$0xff] %v5068
                %v5070 = vld [vmem:[%s4966 + $0x198] sm:$0xff]
                %5071 = vst [vmem:[%s4967 + $0x2b8] sm:$0xff] %v5070
                %v5072 = vld [vmem:[%s4966 + $0x1a0] sm:$0xff]
                %5073 = vst [vmem:[%s4967 + $0x2c0] sm:$0xff] %v5072
                %v5074 = vld [vmem:[%s4966 + $0x1a8] sm:$0xff]
                %5075 = vst [vmem:[%s4967 + $0x2c8] sm:$0xff] %v5074
                %v5076 = vld [vmem:[%s4966 + $0x1b0] sm:$0xff]
                %5077 = vst [vmem:[%s4967 + $0x360] sm:$0xff] %v5076
                %v5078 = vld [vmem:[%s4966 + $0x1b8] sm:$0xff]
                %5079 = vst [vmem:[%s4967 + $0x368] sm:$0xff] %v5078
                %v5080 = vld [vmem:[%s4966 + $0x1c0] sm:$0xff]
                %5081 = vst [vmem:[%s4967 + $0x370] sm:$0xff] %v5080
                %v5082 = vld [vmem:[%s4966 + $0x1c8] sm:$0xff]
                %5083 = vst [vmem:[%s4967 + $0x378] sm:$0xff] %v5082
                %v5084 = vld [vmem:[%s4966 + $0x1d0] sm:$0xff]
                %5085 = vst [vmem:[%s4967 + $0x380] sm:$0xff] %v5084
                %v5086 = vld [vmem:[%s4966 + $0x1d8] sm:$0xff]
                %5087 = vst [vmem:[%s4967 + $0x388] sm:$0xff] %v5086
                %v5088 = vld [vmem:[%s4966 + $0x1e0] sm:$0xff]
                %5089 = vst [vmem:[%s4967 + $0x390] sm:$0xff] %v5088
                %v5090 = vld [vmem:[%s4966 + $0x1e8] sm:$0xff]
                %5091 = vst [vmem:[%s4967 + $0x398] sm:$0xff] %v5090
                %v5092 = vld [vmem:[%s4966 + $0x1f0] sm:$0xff]
                %5093 = vst [vmem:[%s4967 + $0x3a0] sm:$0xff] %v5092
                %v5094 = vld [vmem:[%s4966 + $0x1f8] sm:$0xff]
                %5095 = vst [vmem:[%s4967 + $0x3a8] sm:$0xff] %v5094
                %v5096 = vld [vmem:[%s4966 + $0x200] sm:$0xff]
                %5097 = vst [vmem:[%s4967 + $0x3b0] sm:$0xff] %v5096
                %v5098 = vld [vmem:[%s4966 + $0x208] sm:$0xff]
                %5099 = vst [vmem:[%s4967 + $0x3b8] sm:$0xff] %v5098
                %v5100 = vld [vmem:[%s4966 + $0x210] sm:$0xff]
                %5101 = vst [vmem:[%s4967 + $0x3c0] sm:$0xff] %v5100
                %v5102 = vld [vmem:[%s4966 + $0x218] sm:$0xff]
                %5103 = vst [vmem:[%s4967 + $0x3c8] sm:$0xff] %v5102
                %v5104 = vld [vmem:[%s4966 + $0x220] sm:$0xff]
                %5105 = vst [vmem:[%s4967 + $0x3d0] sm:$0xff] %v5104
                %v5106 = vld [vmem:[%s4966 + $0x228] sm:$0xff]
                %5107 = vst [vmem:[%s4967 + $0x3d8] sm:$0xff] %v5106
                %v5108 = vld [vmem:[%s4966 + $0x230] sm:$0xff]
                %5109 = vst [vmem:[%s4967 + $0x3e0] sm:$0xff] %v5108
                %v5110 = vld [vmem:[%s4966 + $0x238] sm:$0xff]
                %5111 = vst [vmem:[%s4967 + $0x3e8] sm:$0xff] %v5110
              $region72: #{cnn_model_forward.2} parent=66 // loop_footer
                %s4965 = sadd.s32 1, %s4961
              $region73: #{cnn_model_forward.2} parent=66 // loop_footer_branch
                %4960 = sbr.rel target = $region69
              $region74: #{cnn_model_forward.2} parent=66 // loop_exit
                _
            $region67: #{cnn_model_forward.2} parent=62 // pred_fallthru
              _
            // Predicated region
            $region75: #{cnn_model_forward.2} parent=62 // pred_check
              _
            $region76: #{cnn_model_forward.2} parent=62 // pred_check_branch
              %5113 = sbr.rel target = $region78
            $region77: #{cnn_model_forward.2} parent=62 // pred_region
              _
            $region78: #{cnn_model_forward.2} parent=62 // pred_fallthru
              _
          $region63: #{cnn_model_forward.2} parent=58 // pred_fallthru
            _
          %5114 = vnop
        $region59: #{cnn_model_forward.2} parent=50 // pred_fallthru
          _
      $region51: #{cnn_model_forward.2} parent=5 // pred_fallthru
        _
      %p5115 = scmp.le.s32.totalorder 2, %s9
      // Predicated region
      $region79: #{cnn_model_forward.2} parent=5 // pred_check
        %p5116 = pneg %p5115
      $region80: #{cnn_model_forward.2} parent=5 // pred_check_branch
        %5118 = sbr.rel (%p5116) target = $region82
      $region81: #{cnn_model_forward.2} parent=5 // pred_region
        %s5119 = ssub.s32 %s9, 2
        // Predicated region
        $region83: #{cnn_model_forward.2} parent=81 // pred_check
          %p5120 = pneg %p106
        $region84: #{cnn_model_forward.2} parent=81 // pred_check_branch
          %5122 = sbr.rel (%p5120) target = $region86
        $region85: #{cnn_model_forward.2} parent=81 // pred_region
          %s5123 = sand.u32 %s91, 1
          %s5124 = sand.u32 %s91, 1
          %s5125 = smul.addr %s5124, 576
          %s5126 = scalar_lea.vmem [#allocation3], %s5125
        $region86: #{cnn_model_forward.2} parent=81 // pred_fallthru
          _
      $region82: #{cnn_model_forward.2} parent=5 // pred_fallthru
        _
    $region6: #{cnn_model_forward.2} parent=1 // loop_footer
      %s13 = sadd.s32 1, %s9
    $region7: #{cnn_model_forward.2} parent=1 // loop_footer_branch
      %8 = sbr.rel target = $region3
    $region8: #{cnn_model_forward.2} parent=1 // loop_exit
      _

// kernel: cnn_model_forward.3
$region0: #{cnn_model_forward.3}
  #allocation0 [shape = 'u32[]', space=smem, size = 0x4, offset = 0x4, fixed_abs, tag = 'smem constant byte address 0x4 - core index']
  #allocation1 [shape = 'u32[144,128]{1,0:T(1,128)}', space=vmem, size = 0x12000, scoped, tag = 'internal scratch']
  %s0 = inlined_call_operand.vmem [shape: f32[28,32,144], index: 0, kind: input, shape index: {}]
  %s1 = inlined_call_operand.vmem [shape: f32[28,144,128], index: 1, kind: input, shape index: {}]
  %s2 = inlined_call_operand.vmem [shape: f32[1,128], index: 2, kind: input, shape index: {}]
  %s3 = inlined_call_operand.vmem [shape: f32[32,128], index: 3, kind: output, shape index: {}]
  %s4 = sld [smem:[#allocation0]]
  $region68: #{cnn_model_forward.3} parent=0
    _
  %s6 = ssub.s32 1, %s4
  %s7 = scalar_select 0, %s6, %s4
  $region1: #{cnn_model_forward.3} parent=0
    #allocation2 [shape = 'u8[917504]{0}', space=vmem, size = 0xe0000, scoped, tag = 'input window, operand 0']
    loop: start=0, step=1, limit=4
    $region2: #{cnn_model_forward.3} parent=1 // loop_pre_header
      _
    $region3: #{cnn_model_forward.3} parent=1 // loop_header
      %s9 = sphi 0, %s13
      %p10 = scmp.ge.s32.totalorder %s9, 4
      %s19 = sphi 0, %s21
      %s22 = sphi 0, %s19
      %s23 = sphi 0, %s22
      %s39 = sphi 0, %s23
      %s43 = sphi 0, %s43
      %s45 = sphi 0, %s43
      %s46 = sphi 0, %s45
      %s60 = sphi 0, %s46
      %s64 = sphi 0, %s64
      %s66 = sphi 0, %s64
      %s67 = sphi 0, %s66
      %s81 = sphi 0, %s67
      %s87 = sphi 0, %s89
      %s90 = sphi 0, %s87
      %s91 = sphi 0, %s90
      %s107 = sphi 0, %s91
    $region4: #{cnn_model_forward.3} parent=1 // loop_header_branch
      %12 = sbr.rel (%p10) target = $region8
    $region5: #{cnn_model_forward.3} parent=1 // loop_body
      %s14 = ssub.s32 %s9, 1
      %s15 = ssub.s32 %s9, 2
      %s16 = sadd.s32 %s9, 1
      %s17 = ssub.s32 %s9, %s16
      %p18 = scmp.eq.s32.totalorder %s17, 0
      %s20 = sadd.s32 %s19, 1
      %s21 = scalar_select %p18, %s19, %s20
      %p24 = pneg %p18
      %p25 = scmp.eq.s32.totalorder %s9, 1
      %p26 = por %p24, %p25
      %p27 = scmp.ne.s32.totalorder %s19, %s22
      %p28 = scmp.eq.s32.totalorder %s9, 0
      %p29 = por %p27, %p28
      %p30 = scmp.ne.s32.totalorder %s19, %s22
      %p31 = scmp.eq.s32.totalorder %s14, 1
      %p32 = por %p30, %p31
      %p33 = scmp.ne.s32.totalorder %s22, %s23
      %p34 = scmp.eq.s32.totalorder %s14, 0
      %p35 = por %p33, %p34
      %p36 = scmp.ne.s32.totalorder %s22, %s23
      %p37 = scmp.eq.s32.totalorder %s15, 1
      %p38 = por %p36, %p37
      %p40 = scmp.ne.s32.totalorder %s23, %s39
      %p41 = scmp.eq.s32.totalorder %s15, 0
      %p42 = por %p40, %p41
      %s44 = sadd.s32 %s43, 1
      %p47 = scmp.eq.s32.totalorder %s9, 1
      %p48 = scmp.ne.s32.totalorder %s43, %s45
      %p49 = scmp.eq.s32.totalorder %s9, 0
      %p50 = por %p48, %p49
      %p51 = scmp.ne.s32.totalorder %s43, %s45
      %p52 = scmp.eq.s32.totalorder %s14, 1
      %p53 = por %p51, %p52
      %p54 = scmp.ne.s32.totalorder %s45, %s46
      %p55 = scmp.eq.s32.totalorder %s14, 0
      %p56 = por %p54, %p55
      %p57 = scmp.ne.s32.totalorder %s45, %s46
      %p58 = scmp.eq.s32.totalorder %s15, 1
      %p59 = por %p57, %p58
      %p61 = scmp.ne.s32.totalorder %s46, %s60
      %p62 = scmp.eq.s32.totalorder %s15, 0
      %p63 = por %p61, %p62
      %s65 = sadd.s32 %s64, 1
      %p68 = scmp.eq.s32.totalorder %s9, 1
      %p69 = scmp.ne.s32.totalorder %s64, %s66
      %p70 = scmp.eq.s32.totalorder %s9, 0
      %p71 = por %p69, %p70
      %p72 = scmp.ne.s32.totalorder %s64, %s66
      %p73 = scmp.eq.s32.totalorder %s14, 1
      %p74 = por %p72, %p73
      %p75 = scmp.ne.s32.totalorder %s66, %s67
      %p76 = scmp.eq.s32.totalorder %s14, 0
      %p77 = por %p75, %p76
      %p78 = scmp.ne.s32.totalorder %s66, %s67
      %p79 = scmp.eq.s32.totalorder %s15, 1
      %p80 = por %p78, %p79
      %p82 = scmp.ne.s32.totalorder %s67, %s81
      %p83 = scmp.eq.s32.totalorder %s15, 0
      %p84 = por %p82, %p83
      %s85 = ssub.s32 %s9, %s16
      %p86 = scmp.eq.s32.totalorder %s85, 0
      %s88 = sadd.s32 %s87, 1
      %s89 = scalar_select %p86, %s87, %s88
      %p92 = pneg %p86
      %p93 = scmp.eq.s32.totalorder %s9, 1
      %p94 = por %p92, %p93
      %p95 = scmp.ne.s32.totalorder %s87, %s90
      %p96 = scmp.eq.s32.totalorder %s9, 0
      %p97 = por %p95, %p96
      %p98 = scmp.ne.s32.totalorder %s87, %s90
      %p99 = scmp.eq.s32.totalorder %s14, 1
      %p100 = por %p98, %p99
      %p101 = scmp.ne.s32.totalorder %s90, %s91
      %p102 = scmp.eq.s32.totalorder %s14, 0
      %p103 = por %p101, %p102
      %p104 = scmp.ne.s32.totalorder %s90, %s91
      %p105 = scmp.eq.s32.totalorder %s15, 1
      %p106 = por %p104, %p105
      %p108 = scmp.ne.s32.totalorder %s91, %s107
      %p109 = scmp.eq.s32.totalorder %s15, 0
      %p110 = por %p108, %p109
      %p111 = scmp.le.s32.totalorder 1, %s9
      %p112 = scmp.lt.s32.totalorder %s9, 3
      %p113 = pnand %p111, %p112
      %p114 = pneg %p113
      // Predicated region
      $region9: #{cnn_model_forward.3} parent=5 // pred_check
        _
      $region10: #{cnn_model_forward.3} parent=5 // pred_check_branch
        %116 = sbr.rel (%p113) target = $region12
      $region11: #{cnn_model_forward.3} parent=5 // pred_region
        %s117 = ssub.s32 %s9, 1
        // Predicated region
        $region13: #{cnn_model_forward.3} parent=11 // pred_check
          %p118 = pneg %p56
        $region14: #{cnn_model_forward.3} parent=11 // pred_check_branch
          %120 = sbr.rel (%p118) target = $region16
        $region15: #{cnn_model_forward.3} parent=11 // pred_region
          _
        $region16: #{cnn_model_forward.3} parent=11 // pred_fallthru
          _
        // Predicated region
        $region17: #{cnn_model_forward.3} parent=11 // pred_check
          %p121 = pneg %p77
        $region18: #{cnn_model_forward.3} parent=11 // pred_check_branch
          %123 = sbr.rel (%p121) target = $region20
        $region19: #{cnn_model_forward.3} parent=11 // pred_region
          _
        $region20: #{cnn_model_forward.3} parent=11 // pred_fallthru
          _
      $region12: #{cnn_model_forward.3} parent=5 // pred_fallthru
        _
      %p124 = scmp.lt.s32.totalorder %s9, 2
      // Predicated region
      $region21: #{cnn_model_forward.3} parent=5 // pred_check
        %p125 = pneg %p124
      $region22: #{cnn_model_forward.3} parent=5 // pred_check_branch
        %127 = sbr.rel (%p125) target = $region24
      $region23: #{cnn_model_forward.3} parent=5 // pred_region
        // Predicated region
        $region25: #{cnn_model_forward.3} parent=23 // pred_check
          %p128 = pneg %p29
        $region26: #{cnn_model_forward.3} parent=23 // pred_check_branch
          %130 = sbr.rel (%p128) target = $region28
        $region27: #{cnn_model_forward.3} parent=23 // pred_region
          %s131 = sand.u32 %s19, 1
          %s132 = sand.u32 %s19, 1
          %s133 = smul.addr %s132, 896
          %s134 = scalar_lea.vmem [#allocation2], %s133
          %s135 = smul.u32 2, %s9
          %s136 = smul.addr %s135, 2
          %s137 = smul.addr %s136, 8
          %s138 = scalar_lea.vmem %s0, %s137
          // Predicated region
          $region29: #{cnn_model_forward.3} parent=27 // pred_check
            _
          $region30: #{cnn_model_forward.3} parent=27 // pred_check_branch
            %140 = sbr.rel (0) target = $region32
          $region31: #{cnn_model_forward.3} parent=27 // pred_region
            // Predicated region
            $region33: #{cnn_model_forward.3} parent=31 // pred_check
              _
            $region34: #{cnn_model_forward.3} parent=31 // pred_check_branch
              %142 = sbr.rel (0) target = $region36
            $region35: #{cnn_model_forward.3} parent=31 // pred_region
              loop: start=0, step=1, limit=1
              $region37: #{cnn_model_forward.3} parent=35 // loop_pre_header
                _
              $region38: #{cnn_model_forward.3} parent=35 // loop_header
                %s144 = sphi 0, %s148
                %p145 = scmp.ge.s32.totalorder %s144, 1
                %s149 = sphi %s138, %s138
                %s150 = sphi %s134, %s134
              $region39: #{cnn_model_forward.3} parent=35 // loop_header_branch
                %147 = sbr.rel (%p145) target = $region43
              $region40: #{cnn_model_forward.3} parent=35 // loop_body
                %v151 = vld [vmem:[%s149] sm:$0xff]
                %152 = vst [vmem:[%s150] sm:$0xff] %v151
                %v153 = vld [vmem:[%s149 + $0x8] sm:$0xff]
                %154 = vst [vmem:[%s150 + $0x8] sm:$0xff] %v153
                %v155 = vld [vmem:[%s149 + $0x10] sm:$0xff]
                %156 = vst [vmem:[%s150 + $0x10] sm:$0xff] %v155
                %v157 = vld [vmem:[%s149 + $0x18] sm:$0xff]
                %158 = vst [vmem:[%s150 + $0x18] sm:$0xff] %v157
                %v159 = vld [vmem:[%s149 + $0x40] sm:$0xff]
                %160 = vst [vmem:[%s150 + $0x20] sm:$0xff] %v159
                %v161 = vld [vmem:[%s149 + $0x48] sm:$0xff]
                %162 = vst [vmem:[%s150 + $0x28] sm:$0xff] %v161
                %v163 = vld [vmem:[%s149 + $0x50] sm:$0xff]
                %164 = vst [vmem:[%s150 + $0x30] sm:$0xff] %v163
                %v165 = vld [vmem:[%s149 + $0x58] sm:$0xff]
                %166 = vst [vmem:[%s150 + $0x38] sm:$0xff] %v165
                %v167 = vld [vmem:[%s149 + $0x80] sm:$0xff]
                %168 = vst [vmem:[%s150 + $0x40] sm:$0xff] %v167
                %v169 = vld [vmem:[%s149 + $0x88] sm:$0xff]
                %170 = vst [vmem:[%s150 + $0x48] sm:$0xff] %v169
                %v171 = vld [vmem:[%s149 + $0x90] sm:$0xff]
                %172 = vst [vmem:[%s150 + $0x50] sm:$0xff] %v171
                %v173 = vld [vmem:[%s149 + $0x98] sm:$0xff]
                %174 = vst [vmem:[%s150 + $0x58] sm:$0xff] %v173
                %v175 = vld [vmem:[%s149 + $0xc0] sm:$0xff]
                %176 = vst [vmem:[%s150 + $0x60] sm:$0xff] %v175
                %v177 = vld [vmem:[%s149 + $0xc8] sm:$0xff]
                %178 = vst [vmem:[%s150 + $0x68] sm:$0xff] %v177
                %v179 = vld [vmem:[%s149 + $0xd0] sm:$0xff]
                %180 = vst [vmem:[%s150 + $0x70] sm:$0xff] %v179
                %v181 = vld [vmem:[%s149 + $0xd8] sm:$0xff]
                %182 = vst [vmem:[%s150 + $0x78] sm:$0xff] %v181
                %v183 = vld [vmem:[%s149 + $0x100] sm:$0xff]
                %184 = vst [vmem:[%s150 + $0x80] sm:$0xff] %v183
                %v185 = vld [vmem:[%s149 + $0x108] sm:$0xff]
                %186 = vst [vmem:[%s150 + $0x88] sm:$0xff] %v185
                %v187 = vld [vmem:[%s149 + $0x110] sm:$0xff]
                %188 = vst [vmem:[%s150 + $0x90] sm:$0xff] %v187
                %v189 = vld [vmem:[%s149 + $0x118] sm:$0xff]
                %190 = vst [vmem:[%s150 + $0x98] sm:$0xff] %v189
                %v191 = vld [vmem:[%s149 + $0x140] sm:$0xff]
                %192 = vst [vmem:[%s150 + $0xa0] sm:$0xff] %v191
                %v193 = vld [vmem:[%s149 + $0x148] sm:$0xff]
                %194 = vst [vmem:[%s150 + $0xa8] sm:$0xff] %v193
                %v195 = vld [vmem:[%s149 + $0x150] sm:$0xff]
                %196 = vst [vmem:[%s150 + $0xb0] sm:$0xff] %v195
                %v197 = vld [vmem:[%s149 + $0x158] sm:$0xff]
                %198 = vst [vmem:[%s150 + $0xb8] sm:$0xff] %v197
                %v199 = vld [vmem:[%s149 + $0x180] sm:$0xff]
                %200 = vst [vmem:[%s150 + $0xc0] sm:$0xff] %v199
                %v201 = vld [vmem:[%s149 + $0x188] sm:$0xff]
                %202 = vst [vmem:[%s150 + $0xc8] sm:$0xff] %v201
                %v203 = vld [vmem:[%s149 + $0x190] sm:$0xff]
                %204 = vst [vmem:[%s150 + $0xd0] sm:$0xff] %v203
                %v205 = vld [vmem:[%s149 + $0x198] sm:$0xff]
                %206 = vst [vmem:[%s150 + $0xd8] sm:$0xff] %v205
                %v207 = vld [vmem:[%s149 + $0x1c0] sm:$0xff]
                %208 = vst [vmem:[%s150 + $0xe0] sm:$0xff] %v207
                %v209 = vld [vmem:[%s149 + $0x1c8] sm:$0xff]
                %210 = vst [vmem:[%s150 + $0xe8] sm:$0xff] %v209
                %v211 = vld [vmem:[%s149 + $0x1d0] sm:$0xff]
                %212 = vst [vmem:[%s150 + $0xf0] sm:$0xff] %v211
                %v213 = vld [vmem:[%s149 + $0x1d8] sm:$0xff]
                %214 = vst [vmem:[%s150 + $0xf8] sm:$0xff] %v213
                %v215 = vld [vmem:[%s149 + $0x200] sm:$0xff]
                %216 = vst [vmem:[%s150 + $0x100] sm:$0xff] %v215
                %v217 = vld [vmem:[%s149 + $0x208] sm:$0xff]
                %218 = vst [vmem:[%s150 + $0x108] sm:$0xff] %v217
                %v219 = vld [vmem:[%s149 + $0x210] sm:$0xff]
                %220 = vst [vmem:[%s150 + $0x110] sm:$0xff] %v219
                %v221 = vld [vmem:[%s149 + $0x218] sm:$0xff]
                %222 = vst [vmem:[%s150 + $0x118] sm:$0xff] %v221
                %v223 = vld [vmem:[%s149 + $0x240] sm:$0xff]
                %224 = vst [vmem:[%s150 + $0x120] sm:$0xff] %v223
                %v225 = vld [vmem:[%s149 + $0x248] sm:$0xff]
                %226 = vst [vmem:[%s150 + $0x128] sm:$0xff] %v225
                %v227 = vld [vmem:[%s149 + $0x250] sm:$0xff]
                %228 = vst [vmem:[%s150 + $0x130] sm:$0xff] %v227
                %v229 = vld [vmem:[%s149 + $0x258] sm:$0xff]
                %230 = vst [vmem:[%s150 + $0x138] sm:$0xff] %v229
                %v231 = vld [vmem:[%s149 + $0x280] sm:$0xff]
                %232 = vst [vmem:[%s150 + $0x140] sm:$0xff] %v231
                %v233 = vld [vmem:[%s149 + $0x288] sm:$0xff]
                %234 = vst [vmem:[%s150 + $0x148] sm:$0xff] %v233
                %v235 = vld [vmem:[%s149 + $0x290] sm:$0xff]
                %236 = vst [vmem:[%s150 + $0x150] sm:$0xff] %v235
                %v237 = vld [vmem:[%s149 + $0x298] sm:$0xff]
                %238 = vst [vmem:[%s150 + $0x158] sm:$0xff] %v237
                %v239 = vld [vmem:[%s149 + $0x2c0] sm:$0xff]
                %240 = vst [vmem:[%s150 + $0x160] sm:$0xff] %v239
                %v241 = vld [vmem:[%s149 + $0x2c8] sm:$0xff]
                %242 = vst [vmem:[%s150 + $0x168] sm:$0xff] %v241
                %v243 = vld [vmem:[%s149 + $0x2d0] sm:$0xff]
                %244 = vst [vmem:[%s150 + $0x170] sm:$0xff] %v243
                %v245 = vld [vmem:[%s149 + $0x2d8] sm:$0xff]
                %246 = vst [vmem:[%s150 + $0x178] sm:$0xff] %v245
                %v247 = vld [vmem:[%s149 + $0x300] sm:$0xff]
                %248 = vst [vmem:[%s150 + $0x180] sm:$0xff] %v247
                %v249 = vld [vmem:[%s149 + $0x308] sm:$0xff]
                %250 = vst [vmem:[%s150 + $0x188] sm:$0xff] %v249
                %v251 = vld [vmem:[%s149 + $0x310] sm:$0xff]
                %252 = vst [vmem:[%s150 + $0x190] sm:$0xff] %v251
                %v253 = vld [vmem:[%s149 + $0x318] sm:$0xff]
                %254 = vst [vmem:[%s150 + $0x198] sm:$0xff] %v253
                %v255 = vld [vmem:[%s149 + $0x340] sm:$0xff]
                %256 = vst [vmem:[%s150 + $0x1a0] sm:$0xff] %v255
                %v257 = vld [vmem:[%s149 + $0x348] sm:$0xff]
                %258 = vst [vmem:[%s150 + $0x1a8] sm:$0xff] %v257
                %v259 = vld [vmem:[%s149 + $0x350] sm:$0xff]
                %260 = vst [vmem:[%s150 + $0x1b0] sm:$0xff] %v259
                %v261 = vld [vmem:[%s149 + $0x358] sm:$0xff]
                %262 = vst [vmem:[%s150 + $0x1b8] sm:$0xff] %v261
                %v263 = vld [vmem:[%s149 + $0x380] sm:$0xff]
                %264 = vst [vmem:[%s150 + $0x1c0] sm:$0xff] %v263
                %v265 = vld [vmem:[%s149 + $0x388] sm:$0xff]
                %266 = vst [vmem:[%s150 + $0x1c8] sm:$0xff] %v265
                %v267 = vld [vmem:[%s149 + $0x390] sm:$0xff]
                %268 = vst [vmem:[%s150 + $0x1d0] sm:$0xff] %v267
                %v269 = vld [vmem:[%s149 + $0x398] sm:$0xff]
                %270 = vst [vmem:[%s150 + $0x1d8] sm:$0xff] %v269
                %v271 = vld [vmem:[%s149 + $0x3c0] sm:$0xff]
                %272 = vst [vmem:[%s150 + $0x1e0] sm:$0xff] %v271
                %v273 = vld [vmem:[%s149 + $0x3c8] sm:$0xff]
                %274 = vst [vmem:[%s150 + $0x1e8] sm:$0xff] %v273
                %v275 = vld [vmem:[%s149 + $0x3d0] sm:$0xff]
                %276 = vst [vmem:[%s150 + $0x1f0] sm:$0xff] %v275
                %v277 = vld [vmem:[%s149 + $0x3d8] sm:$0xff]
                %278 = vst [vmem:[%s150 + $0x1f8] sm:$0xff] %v277
                %v279 = vld [vmem:[%s149 + $0x400] sm:$0xff]
                %280 = vst [vmem:[%s150 + $0x200] sm:$0xff] %v279
                %v281 = vld [vmem:[%s149 + $0x408] sm:$0xff]
                %282 = vst [vmem:[%s150 + $0x208] sm:$0xff] %v281
                %v283 = vld [vmem:[%s149 + $0x410] sm:$0xff]
                %284 = vst [vmem:[%s150 + $0x210] sm:$0xff] %v283
                %v285 = vld [vmem:[%s149 + $0x418] sm:$0xff]
                %286 = vst [vmem:[%s150 + $0x218] sm:$0xff] %v285
                %v287 = vld [vmem:[%s149 + $0x440] sm:$0xff]
                %288 = vst [vmem:[%s150 + $0x220] sm:$0xff] %v287
                %v289 = vld [vmem:[%s149 + $0x448] sm:$0xff]
                %290 = vst [vmem:[%s150 + $0x228] sm:$0xff] %v289
                %v291 = vld [vmem:[%s149 + $0x450] sm:$0xff]
                %292 = vst [vmem:[%s150 + $0x230] sm:$0xff] %v291
                %v293 = vld [vmem:[%s149 + $0x458] sm:$0xff]
                %294 = vst [vmem:[%s150 + $0x238] sm:$0xff] %v293
                %v295 = vld [vmem:[%s149 + $0x480] sm:$0xff]
                %296 = vst [vmem:[%s150 + $0x240] sm:$0xff] %v295
                %v297 = vld [vmem:[%s149 + $0x488] sm:$0xff]
                %298 = vst [vmem:[%s150 + $0x248] sm:$0xff] %v297
                %v299 = vld [vmem:[%s149 + $0x490] sm:$0xff]
                %300 = vst [vmem:[%s150 + $0x250] sm:$0xff] %v299
                %v301 = vld [vmem:[%s149 + $0x498] sm:$0xff]
                %302 = vst [vmem:[%s150 + $0x258] sm:$0xff] %v301
                %v303 = vld [vmem:[%s149 + $0x4c0] sm:$0xff]
                %304 = vst [vmem:[%s150 + $0x260] sm:$0xff] %v303
                %v305 = vld [vmem:[%s149 + $0x4c8] sm:$0xff]
                %306 = vst [vmem:[%s150 + $0x268] sm:$0xff] %v305
                %v307 = vld [vmem:[%s149 + $0x4d0] sm:$0xff]
                %308 = vst [vmem:[%s150 + $0x270] sm:$0xff] %v307
                %v309 = vld [vmem:[%s149 + $0x4d8] sm:$0xff]
                %310 = vst [vmem:[%s150 + $0x278] sm:$0xff] %v309
                %v311 = vld [vmem:[%s149 + $0x500] sm:$0xff]
                %312 = vst [vmem:[%s150 + $0x280] sm:$0xff] %v311
                %v313 = vld [vmem:[%s149 + $0x508] sm:$0xff]
                %314 = vst [vmem:[%s150 + $0x288] sm:$0xff] %v313
                %v315 = vld [vmem:[%s149 + $0x510] sm:$0xff]
                %316 = vst [vmem:[%s150 + $0x290] sm:$0xff] %v315
                %v317 = vld [vmem:[%s149 + $0x518] sm:$0xff]
                %318 = vst [vmem:[%s150 + $0x298] sm:$0xff] %v317
                %v319 = vld [vmem:[%s149 + $0x540] sm:$0xff]
                %320 = vst [vmem:[%s150 + $0x2a0] sm:$0xff] %v319
                %v321 = vld [vmem:[%s149 + $0x548] sm:$0xff]
                %322 = vst [vmem:[%s150 + $0x2a8] sm:$0xff] %v321
                %v323 = vld [vmem:[%s149 + $0x550] sm:$0xff]
                %324 = vst [vmem:[%s150 + $0x2b0] sm:$0xff] %v323
                %v325 = vld [vmem:[%s149 + $0x558] sm:$0xff]
                %326 = vst [vmem:[%s150 + $0x2b8] sm:$0xff] %v325
                %v327 = vld [vmem:[%s149 + $0x580] sm:$0xff]
                %328 = vst [vmem:[%s150 + $0x2c0] sm:$0xff] %v327
                %v329 = vld [vmem:[%s149 + $0x588] sm:$0xff]
                %330 = vst [vmem:[%s150 + $0x2c8] sm:$0xff] %v329
                %v331 = vld [vmem:[%s149 + $0x590] sm:$0xff]
                %332 = vst [vmem:[%s150 + $0x2d0] sm:$0xff] %v331
                %v333 = vld [vmem:[%s149 + $0x598] sm:$0xff]
                %334 = vst [vmem:[%s150 + $0x2d8] sm:$0xff] %v333
                %v335 = vld [vmem:[%s149 + $0x5c0] sm:$0xff]
                %336 = vst [vmem:[%s150 + $0x2e0] sm:$0xff] %v335
                %v337 = vld [vmem:[%s149 + $0x5c8] sm:$0xff]
                %338 = vst [vmem:[%s150 + $0x2e8] sm:$0xff] %v337
                %v339 = vld [vmem:[%s149 + $0x5d0] sm:$0xff]
                %340 = vst [vmem:[%s150 + $0x2f0] sm:$0xff] %v339
                %v341 = vld [vmem:[%s149 + $0x5d8] sm:$0xff]
                %342 = vst [vmem:[%s150 + $0x2f8] sm:$0xff] %v341
                %v343 = vld [vmem:[%s149 + $0x600] sm:$0xff]
                %344 = vst [vmem:[%s150 + $0x300] sm:$0xff] %v343
                %v345 = vld [vmem:[%s149 + $0x608] sm:$0xff]
                %346 = vst [vmem:[%s150 + $0x308] sm:$0xff] %v345
                %v347 = vld [vmem:[%s149 + $0x610] sm:$0xff]
                %348 = vst [vmem:[%s150 + $0x310] sm:$0xff] %v347
                %v349 = vld [vmem:[%s149 + $0x618] sm:$0xff]
                %350 = vst [vmem:[%s150 + $0x318] sm:$0xff] %v349
                %v351 = vld [vmem:[%s149 + $0x640] sm:$0xff]
                %352 = vst [vmem:[%s150 + $0x320] sm:$0xff] %v351
                %v353 = vld [vmem:[%s149 + $0x648] sm:$0xff]
                %354 = vst [vmem:[%s150 + $0x328] sm:$0xff] %v353
                %v355 = vld [vmem:[%s149 + $0x650] sm:$0xff]
                %356 = vst [vmem:[%s150 + $0x330] sm:$0xff] %v355
                %v357 = vld [vmem:[%s149 + $0x658] sm:$0xff]
                %358 = vst [vmem:[%s150 + $0x338] sm:$0xff] %v357
                %v359 = vld [vmem:[%s149 + $0x680] sm:$0xff]
                %360 = vst [vmem:[%s150 + $0x340] sm:$0xff] %v359
                %v361 = vld [vmem:[%s149 + $0x688] sm:$0xff]
                %362 = vst [vmem:[%s150 + $0x348] sm:$0xff] %v361
                %v363 = vld [vmem:[%s149 + $0x690] sm:$0xff]
                %364 = vst [vmem:[%s150 + $0x350] sm:$0xff] %v363
                %v365 = vld [vmem:[%s149 + $0x698] sm:$0xff]
                %366 = vst [vmem:[%s150 + $0x358] sm:$0xff] %v365
                %v367 = vld [vmem:[%s149 + $0x6c0] sm:$0xff]
                %368 = vst [vmem:[%s150 + $0x360] sm:$0xff] %v367
                %v369 = vld [vmem:[%s149 + $0x6c8] sm:$0xff]
                %370 = vst [vmem:[%s150 + $0x368] sm:$0xff] %v369
                %v371 = vld [vmem:[%s149 + $0x6d0] sm:$0xff]
                %372 = vst [vmem:[%s150 + $0x370] sm:$0xff] %v371
                %v373 = vld [vmem:[%s149 + $0x6d8] sm:$0xff]
                %374 = vst [vmem:[%s150 + $0x378] sm:$0xff] %v373
              $region41: #{cnn_model_forward.3} parent=35 // loop_footer
                %s148 = sadd.s32 1, %s144
              $region42: #{cnn_model_forward.3} parent=35 // loop_footer_branch
                %143 = sbr.rel target = $region38
              $region43: #{cnn_model_forward.3} parent=35 // loop_exit
                _
            $region36: #{cnn_model_forward.3} parent=31 // pred_fallthru
              _
            // Predicated region
            $region44: #{cnn_model_forward.3} parent=31 // pred_check
              _
            $region45: #{cnn_model_forward.3} parent=31 // pred_check_branch
              %376 = sbr.rel target = $region47
            $region46: #{cnn_model_forward.3} parent=31 // pred_region
              _
            $region47: #{cnn_model_forward.3} parent=31 // pred_fallthru
              _
          $region32: #{cnn_model_forward.3} parent=27 // pred_fallthru
            _
          %377 = vnop
        $region28: #{cnn_model_forward.3} parent=23 // pred_fallthru
          _
      $region24: #{cnn_model_forward.3} parent=5 // pred_fallthru
        _
      %p378 = scmp.le.s32.totalorder 1, %s9
      %p379 = scmp.lt.s32.totalorder %s9, 3
      %p380 = pnand %p378, %p379
      %p381 = pneg %p380
      // Predicated region
      $region48: #{cnn_model_forward.3} parent=5 // pred_check
        _
      $region49: #{cnn_model_forward.3} parent=5 // pred_check_branch
        %383 = sbr.rel (%p380) target = $region51
      $region50: #{cnn_model_forward.3} parent=5 // pred_region
        %s384 = ssub.s32 %s9, 1
        %s385 = sand.u32 %s22, 1
        %s386 = sand.u32 %s22, 1
        %s387 = smul.addr %s386, 896
        %s388 = scalar_lea.vmem [#allocation2], %s387
        // Predicated region
        $region52: #{cnn_model_forward.3} parent=50 // pred_check
          %p389 = pneg %p35
        $region53: #{cnn_model_forward.3} parent=50 // pred_check_branch
          %391 = sbr.rel (%p389) target = $region55
        $region54: #{cnn_model_forward.3} parent=50 // pred_region
          _
        $region55: #{cnn_model_forward.3} parent=50 // pred_fallthru
          _
        %s392 = sand.u32 %s22, 1
        %s393 = sand.u32 %s22, 1
        %s394 = smul.addr %s393, 896
        %s395 = scalar_lea.vmem [#allocation2], %s394
        %p396 = pneg %p35
        %p397 = pneg %p32
        %p398 = pneg %p56
        %p399 = pneg %p53
        %p400 = pneg %p77
        %p401 = pneg %p74
        %p402 = pneg %p103
        %p403 = pneg %p100
        %s404 = smul.u32 2, %s14
        %p405 = scmp.lt.s32.totalorder %s404, 3
        %s406 = scalar_select %p405, %s404, 3
        %s407 = smul.addr %s406, 8
        %s408 = scalar_lea.vmem %s3, %s407
        %s409 = smul.u32 2, %s14
        %s410 = smul.u32 2, %s14
        %p411 = scmp.lt.s32.totalorder %s410, 3
        %s412 = scalar_select %p411, %s410, 3
        %s413 = smul.addr %s412, 8
        %s414 = scalar_lea.vmem %s3, %s413
        %s415 = smul.u32 2, %s14
        %v416 = vld [vmem:[%s388] sm:$0xff]
        %v417 = vld [vmem:[%s388 + $0x8] sm:$0xff]
        %v418 = vld [vmem:[%s388 + $0x10] sm:$0xff]
        %v419 = vld [vmem:[%s388 + $0x18] sm:$0xff]
        %v420 = vld [vmem:[%s388 + $0x20] sm:$0xff]
        %v421 = vld [vmem:[%s388 + $0x28] sm:$0xff]
        %v422 = vld [vmem:[%s388 + $0x30] sm:$0xff]
        %v423 = vld [vmem:[%s388 + $0x38] sm:$0xff]
        %v424 = vld [vmem:[%s388 + $0x40] sm:$0xff]
        %v425 = vld [vmem:[%s388 + $0x48] sm:$0xff]
        %v426 = vld [vmem:[%s388 + $0x50] sm:$0xff]
        %v427 = vld [vmem:[%s388 + $0x58] sm:$0xff]
        %v428 = vld [vmem:[%s388 + $0x60] sm:$0xff]
        %v429 = vld [vmem:[%s388 + $0x68] sm:$0xff]
        %v430 = vld [vmem:[%s388 + $0x70] sm:$0xff]
        %v431 = vld [vmem:[%s388 + $0x78] sm:$0xff]
        %v432 = vld [vmem:[%s388 + $0x80] sm:$0xff]
        %v433 = vld [vmem:[%s388 + $0x88] sm:$0xff]
        %v434 = vld [vmem:[%s388 + $0x90] sm:$0xff]
        %v435 = vld [vmem:[%s388 + $0x98] sm:$0xff]
        %v436 = vld [vmem:[%s388 + $0xa0] sm:$0xff]
        %v437 = vld [vmem:[%s388 + $0xa8] sm:$0xff]
        %v438 = vld [vmem:[%s388 + $0xb0] sm:$0xff]
        %v439 = vld [vmem:[%s388 + $0xb8] sm:$0xff]
        %v440 = vld [vmem:[%s388 + $0xc0] sm:$0xff]
        %v441 = vld [vmem:[%s388 + $0xc8] sm:$0xff]
        %v442 = vld [vmem:[%s388 + $0xd0] sm:$0xff]
        %v443 = vld [vmem:[%s388 + $0xd8] sm:$0xff]
        %v444 = vld [vmem:[%s388 + $0xe0] sm:$0xff]
        %v445 = vld [vmem:[%s388 + $0xe8] sm:$0xff]
        %v446 = vld [vmem:[%s388 + $0xf0] sm:$0xff]
        %v447 = vld [vmem:[%s388 + $0xf8] sm:$0xff]
        %v448 = vld [vmem:[%s388 + $0x100] sm:$0xff]
        %v449 = vld [vmem:[%s388 + $0x108] sm:$0xff]
        %v450 = vld [vmem:[%s388 + $0x110] sm:$0xff]
        %v451 = vld [vmem:[%s388 + $0x118] sm:$0xff]
        %v452 = vld [vmem:[%s388 + $0x120] sm:$0xff]
        %v453 = vld [vmem:[%s388 + $0x128] sm:$0xff]
        %v454 = vld [vmem:[%s388 + $0x130] sm:$0xff]
        %v455 = vld [vmem:[%s388 + $0x138] sm:$0xff]
        %v456 = vld [vmem:[%s388 + $0x140] sm:$0xff]
        %v457 = vld [vmem:[%s388 + $0x148] sm:$0xff]
        %v458 = vld [vmem:[%s388 + $0x150] sm:$0xff]
        %v459 = vld [vmem:[%s388 + $0x158] sm:$0xff]
        %v460 = vld [vmem:[%s388 + $0x160] sm:$0xff]
        %v461 = vld [vmem:[%s388 + $0x168] sm:$0xff]
        %v462 = vld [vmem:[%s388 + $0x170] sm:$0xff]
        %v463 = vld [vmem:[%s388 + $0x178] sm:$0xff]
        %v464 = vld [vmem:[%s388 + $0x180] sm:$0xff]
        %v465 = vld [vmem:[%s388 + $0x188] sm:$0xff]
        %v466 = vld [vmem:[%s388 + $0x190] sm:$0xff]
        %v467 = vld [vmem:[%s388 + $0x198] sm:$0xff]
        %v468 = vld [vmem:[%s388 + $0x1a0] sm:$0xff]
        %v469 = vld [vmem:[%s388 + $0x1a8] sm:$0xff]
        %v470 = vld [vmem:[%s388 + $0x1b0] sm:$0xff]
        %v471 = vld [vmem:[%s388 + $0x1b8] sm:$0xff]
        %v472 = vld [vmem:[%s388 + $0x1c0] sm:$0xff]
        %v473 = vld [vmem:[%s388 + $0x1c8] sm:$0xff]
        %v474 = vld [vmem:[%s388 + $0x1d0] sm:$0xff]
        %v475 = vld [vmem:[%s388 + $0x1d8] sm:$0xff]
        %v476 = vld [vmem:[%s388 + $0x1e0] sm:$0xff]
        %v477 = vld [vmem:[%s388 + $0x1e8] sm:$0xff]
        %v478 = vld [vmem:[%s388 + $0x1f0] sm:$0xff]
        %v479 = vld [vmem:[%s388 + $0x1f8] sm:$0xff]
        %v480 = vld [vmem:[%s388 + $0x200] sm:$0xff]
        %v481 = vld [vmem:[%s388 + $0x208] sm:$0xff]
        %v482 = vld [vmem:[%s388 + $0x210] sm:$0xff]
        %v483 = vld [vmem:[%s388 + $0x218] sm:$0xff]
        %v484 = vld [vmem:[%s388 + $0x220] sm:$0xff]
        %v485 = vld [vmem:[%s388 + $0x228] sm:$0xff]
        %v486 = vld [vmem:[%s388 + $0x230] sm:$0xff]
        %v487 = vld [vmem:[%s388 + $0x238] sm:$0xff]
        %v488 = vld [vmem:[%s388 + $0x240] sm:$0xff]
        %v489 = vld [vmem:[%s388 + $0x248] sm:$0xff]
        %v490 = vld [vmem:[%s388 + $0x250] sm:$0xff]
        %v491 = vld [vmem:[%s388 + $0x258] sm:$0xff]
        %v492 = vld [vmem:[%s388 + $0x260] sm:$0xff]
        %v493 = vld [vmem:[%s388 + $0x268] sm:$0xff]
        %v494 = vld [vmem:[%s388 + $0x270] sm:$0xff]
        %v495 = vld [vmem:[%s388 + $0x278] sm:$0xff]
        %v496 = vld [vmem:[%s388 + $0x280] sm:$0xff]
        %v497 = vld [vmem:[%s388 + $0x288] sm:$0xff]
        %v498 = vld [vmem:[%s388 + $0x290] sm:$0xff]
        %v499 = vld [vmem:[%s388 + $0x298] sm:$0xff]
        %v500 = vld [vmem:[%s388 + $0x2a0] sm:$0xff]
        %v501 = vld [vmem:[%s388 + $0x2a8] sm:$0xff]
        %v502 = vld [vmem:[%s388 + $0x2b0] sm:$0xff]
        %v503 = vld [vmem:[%s388 + $0x2b8] sm:$0xff]
        %v504 = vld [vmem:[%s388 + $0x2c0] sm:$0xff]
        %v505 = vld [vmem:[%s388 + $0x2c8] sm:$0xff]
        %v506 = vld [vmem:[%s388 + $0x2d0] sm:$0xff]
        %v507 = vld [vmem:[%s388 + $0x2d8] sm:$0xff]
        %v508 = vld [vmem:[%s388 + $0x2e0] sm:$0xff]
        %v509 = vld [vmem:[%s388 + $0x2e8] sm:$0xff]
        %v510 = vld [vmem:[%s388 + $0x2f0] sm:$0xff]
        %v511 = vld [vmem:[%s388 + $0x2f8] sm:$0xff]
        %v512 = vld [vmem:[%s388 + $0x300] sm:$0xff]
        %v513 = vld [vmem:[%s388 + $0x308] sm:$0xff]
        %v514 = vld [vmem:[%s388 + $0x310] sm:$0xff]
        %v515 = vld [vmem:[%s388 + $0x318] sm:$0xff]
        %v516 = vld [vmem:[%s388 + $0x320] sm:$0xff]
        %v517 = vld [vmem:[%s388 + $0x328] sm:$0xff]
        %v518 = vld [vmem:[%s388 + $0x330] sm:$0xff]
        %v519 = vld [vmem:[%s388 + $0x338] sm:$0xff]
        %v520 = vld [vmem:[%s388 + $0x340] sm:$0xff]
        %v521 = vld [vmem:[%s388 + $0x348] sm:$0xff]
        %v522 = vld [vmem:[%s388 + $0x350] sm:$0xff]
        %v523 = vld [vmem:[%s388 + $0x358] sm:$0xff]
        %v524 = vld [vmem:[%s388 + $0x360] sm:$0xff]
        %v525 = vld [vmem:[%s388 + $0x368] sm:$0xff]
        %v526 = vld [vmem:[%s388 + $0x370] sm:$0xff]
        %v527 = vld [vmem:[%s388 + $0x378] sm:$0xff]
        %v528 = vld [vmem:[%s1] sm:$0xff]
        %v529 = vld [vmem:[%s1 + $0x8] sm:$0xff]
        %v530 = vld [vmem:[%s1 + $0x10] sm:$0xff]
        %v531 = vld [vmem:[%s1 + $0x18] sm:$0xff]
        %v532 = vld [vmem:[%s1 + $0x20] sm:$0xff]
        %v533 = vld [vmem:[%s1 + $0x28] sm:$0xff]
        %v534 = vld [vmem:[%s1 + $0x30] sm:$0xff]
        %v535 = vld [vmem:[%s1 + $0x38] sm:$0xff]
        %v536 = vld [vmem:[%s1 + $0x40] sm:$0xff]
        %v537 = vld [vmem:[%s1 + $0x48] sm:$0xff]
        %v538 = vld [vmem:[%s1 + $0x50] sm:$0xff]
        %v539 = vld [vmem:[%s1 + $0x58] sm:$0xff]
        %v540 = vld [vmem:[%s1 + $0x60] sm:$0xff]
        %v541 = vld [vmem:[%s1 + $0x68] sm:$0xff]
        %v542 = vld [vmem:[%s1 + $0x70] sm:$0xff]
        %v543 = vld [vmem:[%s1 + $0x78] sm:$0xff]
        %v544 = vld [vmem:[%s1 + $0x80] sm:$0xff]
        %v545 = vld [vmem:[%s1 + $0x88] sm:$0xff]
        %v546 = vld [vmem:[%s1 + $0x90] sm:$0xff]
        %v547 = vld [vmem:[%s1 + $0x98] sm:$0xff]
        %v548 = vld [vmem:[%s1 + $0xa0] sm:$0xff]
        %v549 = vld [vmem:[%s1 + $0xa8] sm:$0xff]
        %v550 = vld [vmem:[%s1 + $0xb0] sm:$0xff]
        %v551 = vld [vmem:[%s1 + $0xb8] sm:$0xff]
        %v552 = vld [vmem:[%s1 + $0xc0] sm:$0xff]
        %v553 = vld [vmem:[%s1 + $0xc8] sm:$0xff]
        %v554 = vld [vmem:[%s1 + $0xd0] sm:$0xff]
        %v555 = vld [vmem:[%s1 + $0xd8] sm:$0xff]
        %v556 = vld [vmem:[%s1 + $0xe0] sm:$0xff]
        %v557 = vld [vmem:[%s1 + $0xe8] sm:$0xff]
        %v558 = vld [vmem:[%s1 + $0xf0] sm:$0xff]
        %v559 = vld [vmem:[%s1 + $0xf8] sm:$0xff]
        %v560 = vld [vmem:[%s1 + $0x100] sm:$0xff]
        %v561 = vld [vmem:[%s1 + $0x108] sm:$0xff]
        %v562 = vld [vmem:[%s1 + $0x110] sm:$0xff]
        %v563 = vld [vmem:[%s1 + $0x118] sm:$0xff]
        %v564 = vld [vmem:[%s1 + $0x120] sm:$0xff]
        %v565 = vld [vmem:[%s1 + $0x128] sm:$0xff]
        %v566 = vld [vmem:[%s1 + $0x130] sm:$0xff]
        %v567 = vld [vmem:[%s1 + $0x138] sm:$0xff]
        %v568 = vld [vmem:[%s1 + $0x140] sm:$0xff]
        %v569 = vld [vmem:[%s1 + $0x148] sm:$0xff]
        %v570 = vld [vmem:[%s1 + $0x150] sm:$0xff]
        %v571 = vld [vmem:[%s1 + $0x158] sm:$0xff]
        %v572 = vld [vmem:[%s1 + $0x160] sm:$0xff]
        %v573 = vld [vmem:[%s1 + $0x168] sm:$0xff]
        %v574 = vld [vmem:[%s1 + $0x170] sm:$0xff]
        %v575 = vld [vmem:[%s1 + $0x178] sm:$0xff]
        %v576 = vld [vmem:[%s1 + $0x180] sm:$0xff]
        %v577 = vld [vmem:[%s1 + $0x188] sm:$0xff]
        %v578 = vld [vmem:[%s1 + $0x190] sm:$0xff]
        %v579 = vld [vmem:[%s1 + $0x198] sm:$0xff]
        %v580 = vld [vmem:[%s1 + $0x1a0] sm:$0xff]
        %v581 = vld [vmem:[%s1 + $0x1a8] sm:$0xff]
        %v582 = vld [vmem:[%s1 + $0x1b0] sm:$0xff]
        %v583 = vld [vmem:[%s1 + $0x1b8] sm:$0xff]
        %v584 = vld [vmem:[%s1 + $0x1c0] sm:$0xff]
        %v585 = vld [vmem:[%s1 + $0x1c8] sm:$0xff]
        %v586 = vld [vmem:[%s1 + $0x1d0] sm:$0xff]
        %v587 = vld [vmem:[%s1 + $0x1d8] sm:$0xff]
        %v588 = vld [vmem:[%s1 + $0x1e0] sm:$0xff]
        %v589 = vld [vmem:[%s1 + $0x1e8] sm:$0xff]
        %v590 = vld [vmem:[%s1 + $0x1f0] sm:$0xff]
        %v591 = vld [vmem:[%s1 + $0x1f8] sm:$0xff]
        %v592 = vld [vmem:[%s1 + $0x200] sm:$0xff]
        %v593 = vld [vmem:[%s1 + $0x208] sm:$0xff]
        %v594 = vld [vmem:[%s1 + $0x210] sm:$0xff]
        %v595 = vld [vmem:[%s1 + $0x218] sm:$0xff]
        %v596 = vld [vmem:[%s1 + $0x220] sm:$0xff]
        %v597 = vld [vmem:[%s1 + $0x228] sm:$0xff]
        %v598 = vld [vmem:[%s1 + $0x230] sm:$0xff]
        %v599 = vld [vmem:[%s1 + $0x238] sm:$0xff]
        %v600 = vld [vmem:[%s1 + $0x240] sm:$0xff]
        %v601 = vld [vmem:[%s1 + $0x248] sm:$0xff]
        %v602 = vld [vmem:[%s1 + $0x250] sm:$0xff]
        %v603 = vld [vmem:[%s1 + $0x258] sm:$0xff]
        %v604 = vld [vmem:[%s1 + $0x260] sm:$0xff]
        %v605 = vld [vmem:[%s1 + $0x268] sm:$0xff]
        %v606 = vld [vmem:[%s1 + $0x270] sm:$0xff]
        %v607 = vld [vmem:[%s1 + $0x278] sm:$0xff]
        %v608 = vld [vmem:[%s1 + $0x280] sm:$0xff]
        %v609 = vld [vmem:[%s1 + $0x288] sm:$0xff]
        %v610 = vld [vmem:[%s1 + $0x290] sm:$0xff]
        %v611 = vld [vmem:[%s1 + $0x298] sm:$0xff]
        %v612 = vld [vmem:[%s1 + $0x2a0] sm:$0xff]
        %v613 = vld [vmem:[%s1 + $0x2a8] sm:$0xff]
        %v614 = vld [vmem:[%s1 + $0x2b0] sm:$0xff]
        %v615 = vld [vmem:[%s1 + $0x2b8] sm:$0xff]
        %v616 = vld [vmem:[%s1 + $0x2c0] sm:$0xff]
        %v617 = vld [vmem:[%s1 + $0x2c8] sm:$0xff]
        %v618 = vld [vmem:[%s1 + $0x2d0] sm:$0xff]
        %v619 = vld [vmem:[%s1 + $0x2d8] sm:$0xff]
        %v620 = vld [vmem:[%s1 + $0x2e0] sm:$0xff]
        %v621 = vld [vmem:[%s1 + $0x2e8] sm:$0xff]
        %v622 = vld [vmem:[%s1 + $0x2f0] sm:$0xff]
        %v623 = vld [vmem:[%s1 + $0x2f8] sm:$0xff]
        %v624 = vld [vmem:[%s1 + $0x300] sm:$0xff]
        %v625 = vld [vmem:[%s1 + $0x308] sm:$0xff]
        %v626 = vld [vmem:[%s1 + $0x310] sm:$0xff]
        %v627 = vld [vmem:[%s1 + $0x318] sm:$0xff]
        %v628 = vld [vmem:[%s1 + $0x320] sm:$0xff]
        %v629 = vld [vmem:[%s1 + $0x328] sm:$0xff]
        %v630 = vld [vmem:[%s1 + $0x330] sm:$0xff]
        %v631 = vld [vmem:[%s1 + $0x338] sm:$0xff]
        %v632 = vld [vmem:[%s1 + $0x340] sm:$0xff]
        %v633 = vld [vmem:[%s1 + $0x348] sm:$0xff]
        %v634 = vld [vmem:[%s1 + $0x350] sm:$0xff]
        %v635 = vld [vmem:[%s1 + $0x358] sm:$0xff]
        %v636 = vld [vmem:[%s1 + $0x360] sm:$0xff]
        %v637 = vld [vmem:[%s1 + $0x368] sm:$0xff]
        %v638 = vld [vmem:[%s1 + $0x370] sm:$0xff]
        %v639 = vld [vmem:[%s1 + $0x378] sm:$0xff]
        %v640 = vld [vmem:[%s1 + $0x380] sm:$0xff]
        %v641 = vld [vmem:[%s1 + $0x388] sm:$0xff]
        %v642 = vld [vmem:[%s1 + $0x390] sm:$0xff]
        %v643 = vld [vmem:[%s1 + $0x398] sm:$0xff]
        %v644 = vld [vmem:[%s1 + $0x3a0] sm:$0xff]
        %v645 = vld [vmem:[%s1 + $0x3a8] sm:$0xff]
        %v646 = vld [vmem:[%s1 + $0x3b0] sm:$0xff]
        %v647 = vld [vmem:[%s1 + $0x3b8] sm:$0xff]
        %v648 = vld [vmem:[%s1 + $0x3c0] sm:$0xff]
        %v649 = vld [vmem:[%s1 + $0x3c8] sm:$0xff]
        %v650 = vld [vmem:[%s1 + $0x3d0] sm:$0xff]
        %v651 = vld [vmem:[%s1 + $0x3d8] sm:$0xff]
        %v652 = vld [vmem:[%s1 + $0x3e0] sm:$0xff]
        %v653 = vld [vmem:[%s1 + $0x3e8] sm:$0xff]
        %v654 = vld [vmem:[%s1 + $0x3f0] sm:$0xff]
        %v655 = vld [vmem:[%s1 + $0x3f8] sm:$0xff]
        %v656 = vld [vmem:[%s1 + $0x400] sm:$0xff]
        %v657 = vld [vmem:[%s1 + $0x408] sm:$0xff]
        %v658 = vld [vmem:[%s1 + $0x410] sm:$0xff]
        %v659 = vld [vmem:[%s1 + $0x418] sm:$0xff]
        %v660 = vld [vmem:[%s1 + $0x420] sm:$0xff]
        %v661 = vld [vmem:[%s1 + $0x428] sm:$0xff]
        %v662 = vld [vmem:[%s1 + $0x430] sm:$0xff]
        %v663 = vld [vmem:[%s1 + $0x438] sm:$0xff]
        %v664 = vld [vmem:[%s1 + $0x440] sm:$0xff]
        %v665 = vld [vmem:[%s1 + $0x448] sm:$0xff]
        %v666 = vld [vmem:[%s1 + $0x450] sm:$0xff]
        %v667 = vld [vmem:[%s1 + $0x458] sm:$0xff]
        %v668 = vld [vmem:[%s1 + $0x460] sm:$0xff]
        %v669 = vld [vmem:[%s1 + $0x468] sm:$0xff]
        %v670 = vld [vmem:[%s1 + $0x470] sm:$0xff]
        %v671 = vld [vmem:[%s1 + $0x478] sm:$0xff]
        %v672 = vld [vmem:[%s1 + $0x480] sm:$0xff]
        %v673 = vld [vmem:[%s1 + $0x488] sm:$0xff]
        %v674 = vld [vmem:[%s1 + $0x490] sm:$0xff]
        %v675 = vld [vmem:[%s1 + $0x498] sm:$0xff]
        %v676 = vld [vmem:[%s1 + $0x4a0] sm:$0xff]
        %v677 = vld [vmem:[%s1 + $0x4a8] sm:$0xff]
        %v678 = vld [vmem:[%s1 + $0x4b0] sm:$0xff]
        %v679 = vld [vmem:[%s1 + $0x4b8] sm:$0xff]
        %v680 = vld [vmem:[%s1 + $0x4c0] sm:$0xff]
        %v681 = vld [vmem:[%s1 + $0x4c8] sm:$0xff]
        %v682 = vld [vmem:[%s1 + $0x4d0] sm:$0xff]
        %v683 = vld [vmem:[%s1 + $0x4d8] sm:$0xff]
        %v684 = vld [vmem:[%s1 + $0x4e0] sm:$0xff]
        %v685 = vld [vmem:[%s1 + $0x4e8] sm:$0xff]
        %v686 = vld [vmem:[%s1 + $0x4f0] sm:$0xff]
        %v687 = vld [vmem:[%s1 + $0x4f8] sm:$0xff]
        %v688 = vld [vmem:[%s1 + $0x500] sm:$0xff]
        %v689 = vld [vmem:[%s1 + $0x508] sm:$0xff]
        %v690 = vld [vmem:[%s1 + $0x510] sm:$0xff]
        %v691 = vld [vmem:[%s1 + $0x518] sm:$0xff]
        %v692 = vld [vmem:[%s1 + $0x520] sm:$0xff]
        %v693 = vld [vmem:[%s1 + $0x528] sm:$0xff]
        %v694 = vld [vmem:[%s1 + $0x530] sm:$0xff]
        %v695 = vld [vmem:[%s1 + $0x538] sm:$0xff]
        %v696 = vld [vmem:[%s1 + $0x540] sm:$0xff]
        %v697 = vld [vmem:[%s1 + $0x548] sm:$0xff]
        %v698 = vld [vmem:[%s1 + $0x550] sm:$0xff]
        %v699 = vld [vmem:[%s1 + $0x558] sm:$0xff]
        %v700 = vld [vmem:[%s1 + $0x560] sm:$0xff]
        %v701 = vld [vmem:[%s1 + $0x568] sm:$0xff]
        %v702 = vld [vmem:[%s1 + $0x570] sm:$0xff]
        %v703 = vld [vmem:[%s1 + $0x578] sm:$0xff]
        %v704 = vld [vmem:[%s1 + $0x580] sm:$0xff]
        %v705 = vld [vmem:[%s1 + $0x588] sm:$0xff]
        %v706 = vld [vmem:[%s1 + $0x590] sm:$0xff]
        %v707 = vld [vmem:[%s1 + $0x598] sm:$0xff]
        %v708 = vld [vmem:[%s1 + $0x5a0] sm:$0xff]
        %v709 = vld [vmem:[%s1 + $0x5a8] sm:$0xff]
        %v710 = vld [vmem:[%s1 + $0x5b0] sm:$0xff]
        %v711 = vld [vmem:[%s1 + $0x5b8] sm:$0xff]
        %v712 = vld [vmem:[%s1 + $0x5c0] sm:$0xff]
        %v713 = vld [vmem:[%s1 + $0x5c8] sm:$0xff]
        %v714 = vld [vmem:[%s1 + $0x5d0] sm:$0xff]
        %v715 = vld [vmem:[%s1 + $0x5d8] sm:$0xff]
        %v716 = vld [vmem:[%s1 + $0x5e0] sm:$0xff]
        %v717 = vld [vmem:[%s1 + $0x5e8] sm:$0xff]
        %v718 = vld [vmem:[%s1 + $0x5f0] sm:$0xff]
        %v719 = vld [vmem:[%s1 + $0x5f8] sm:$0xff]
        %v720 = vld [vmem:[%s1 + $0x600] sm:$0xff]
        %v721 = vld [vmem:[%s1 + $0x608] sm:$0xff]
        %v722 = vld [vmem:[%s1 + $0x610] sm:$0xff]
        %v723 = vld [vmem:[%s1 + $0x618] sm:$0xff]
        %v724 = vld [vmem:[%s1 + $0x620] sm:$0xff]
        %v725 = vld [vmem:[%s1 + $0x628] sm:$0xff]
        %v726 = vld [vmem:[%s1 + $0x630] sm:$0xff]
        %v727 = vld [vmem:[%s1 + $0x638] sm:$0xff]
        %v728 = vld [vmem:[%s1 + $0x640] sm:$0xff]
        %v729 = vld [vmem:[%s1 + $0x648] sm:$0xff]
        %v730 = vld [vmem:[%s1 + $0x650] sm:$0xff]
        %v731 = vld [vmem:[%s1 + $0x658] sm:$0xff]
        %v732 = vld [vmem:[%s1 + $0x660] sm:$0xff]
        %v733 = vld [vmem:[%s1 + $0x668] sm:$0xff]
        %v734 = vld [vmem:[%s1 + $0x670] sm:$0xff]
        %v735 = vld [vmem:[%s1 + $0x678] sm:$0xff]
        %v736 = vld [vmem:[%s1 + $0x680] sm:$0xff]
        %v737 = vld [vmem:[%s1 + $0x688] sm:$0xff]
        %v738 = vld [vmem:[%s1 + $0x690] sm:$0xff]
        %v739 = vld [vmem:[%s1 + $0x698] sm:$0xff]
        %v740 = vld [vmem:[%s1 + $0x6a0] sm:$0xff]
        %v741 = vld [vmem:[%s1 + $0x6a8] sm:$0xff]
        %v742 = vld [vmem:[%s1 + $0x6b0] sm:$0xff]
        %v743 = vld [vmem:[%s1 + $0x6b8] sm:$0xff]
        %v744 = vld [vmem:[%s1 + $0x6c0] sm:$0xff]
        %v745 = vld [vmem:[%s1 + $0x6c8] sm:$0xff]
        %v746 = vld [vmem:[%s1 + $0x6d0] sm:$0xff]
        %v747 = vld [vmem:[%s1 + $0x6d8] sm:$0xff]
        %v748 = vld [vmem:[%s1 + $0x6e0] sm:$0xff]
        %v749 = vld [vmem:[%s1 + $0x6e8] sm:$0xff]
        %v750 = vld [vmem:[%s1 + $0x6f0] sm:$0xff]
        %v751 = vld [vmem:[%s1 + $0x6f8] sm:$0xff]
        %v752 = vld [vmem:[%s1 + $0x700] sm:$0xff]
        %v753 = vld [vmem:[%s1 + $0x708] sm:$0xff]
        %v754 = vld [vmem:[%s1 + $0x710] sm:$0xff]
        %v755 = vld [vmem:[%s1 + $0x718] sm:$0xff]
        %v756 = vld [vmem:[%s1 + $0x720] sm:$0xff]
        %v757 = vld [vmem:[%s1 + $0x728] sm:$0xff]
        %v758 = vld [vmem:[%s1 + $0x730] sm:$0xff]
        %v759 = vld [vmem:[%s1 + $0x738] sm:$0xff]
        %v760 = vld [vmem:[%s1 + $0x740] sm:$0xff]
        %v761 = vld [vmem:[%s1 + $0x748] sm:$0xff]
        %v762 = vld [vmem:[%s1 + $0x750] sm:$0xff]
        %v763 = vld [vmem:[%s1 + $0x758] sm:$0xff]
        %v764 = vld [vmem:[%s1 + $0x760] sm:$0xff]
        %v765 = vld [vmem:[%s1 + $0x768] sm:$0xff]
        %v766 = vld [vmem:[%s1 + $0x770] sm:$0xff]
        %v767 = vld [vmem:[%s1 + $0x778] sm:$0xff]
        %v768 = vld [vmem:[%s1 + $0x780] sm:$0xff]
        %v769 = vld [vmem:[%s1 + $0x788] sm:$0xff]
        %v770 = vld [vmem:[%s1 + $0x790] sm:$0xff]
        %v771 = vld [vmem:[%s1 + $0x798] sm:$0xff]
        %v772 = vld [vmem:[%s1 + $0x7a0] sm:$0xff]
        %v773 = vld [vmem:[%s1 + $0x7a8] sm:$0xff]
        %v774 = vld [vmem:[%s1 + $0x7b0] sm:$0xff]
        %v775 = vld [vmem:[%s1 + $0x7b8] sm:$0xff]
        %v776 = vld [vmem:[%s1 + $0x7c0] sm:$0xff]
        %v777 = vld [vmem:[%s1 + $0x7c8] sm:$0xff]
        %v778 = vld [vmem:[%s1 + $0x7d0] sm:$0xff]
        %v779 = vld [vmem:[%s1 + $0x7d8] sm:$0xff]
        %v780 = vld [vmem:[%s1 + $0x7e0] sm:$0xff]
        %v781 = vld [vmem:[%s1 + $0x7e8] sm:$0xff]
        %v782 = vld [vmem:[%s1 + $0x7f0] sm:$0xff]
        %v783 = vld [vmem:[%s1 + $0x7f8] sm:$0xff]
        %v784 = vld [vmem:[%s1 + $0x800] sm:$0xff]
        %v785 = vld [vmem:[%s1 + $0x808] sm:$0xff]
        %v786 = vld [vmem:[%s1 + $0x810] sm:$0xff]
        %v787 = vld [vmem:[%s1 + $0x818] sm:$0xff]
        %v788 = vld [vmem:[%s1 + $0x820] sm:$0xff]
        %v789 = vld [vmem:[%s1 + $0x828] sm:$0xff]
        %v790 = vld [vmem:[%s1 + $0x830] sm:$0xff]
        %v791 = vld [vmem:[%s1 + $0x838] sm:$0xff]
        %v792 = vld [vmem:[%s1 + $0x840] sm:$0xff]
        %v793 = vld [vmem:[%s1 + $0x848] sm:$0xff]
        %v794 = vld [vmem:[%s1 + $0x850] sm:$0xff]
        %v795 = vld [vmem:[%s1 + $0x858] sm:$0xff]
        %v796 = vld [vmem:[%s1 + $0x860] sm:$0xff]
        %v797 = vld [vmem:[%s1 + $0x868] sm:$0xff]
        %v798 = vld [vmem:[%s1 + $0x870] sm:$0xff]
        %v799 = vld [vmem:[%s1 + $0x878] sm:$0xff]
        %v800 = vld [vmem:[%s1 + $0x880] sm:$0xff]
        %v801 = vld [vmem:[%s1 + $0x888] sm:$0xff]
        %v802 = vld [vmem:[%s1 + $0x890] sm:$0xff]
        %v803 = vld [vmem:[%s1 + $0x898] sm:$0xff]
        %v804 = vld [vmem:[%s1 + $0x8a0] sm:$0xff]
        %v805 = vld [vmem:[%s1 + $0x8a8] sm:$0xff]
        %v806 = vld [vmem:[%s1 + $0x8b0] sm:$0xff]
        %v807 = vld [vmem:[%s1 + $0x8b8] sm:$0xff]
        %v808 = vld [vmem:[%s1 + $0x8c0] sm:$0xff]
        %v809 = vld [vmem:[%s1 + $0x8c8] sm:$0xff]
        %v810 = vld [vmem:[%s1 + $0x8d0] sm:$0xff]
        %v811 = vld [vmem:[%s1 + $0x8d8] sm:$0xff]
        %v812 = vld [vmem:[%s1 + $0x8e0] sm:$0xff]
        %v813 = vld [vmem:[%s1 + $0x8e8] sm:$0xff]
        %v814 = vld [vmem:[%s1 + $0x8f0] sm:$0xff]
        %v815 = vld [vmem:[%s1 + $0x8f8] sm:$0xff]
        %v816 = vld [vmem:[%s1 + $0x900] sm:$0xff]
        %v817 = vld [vmem:[%s1 + $0x908] sm:$0xff]
        %v818 = vld [vmem:[%s1 + $0x910] sm:$0xff]
        %v819 = vld [vmem:[%s1 + $0x918] sm:$0xff]
        %v820 = vld [vmem:[%s1 + $0x920] sm:$0xff]
        %v821 = vld [vmem:[%s1 + $0x928] sm:$0xff]
        %v822 = vld [vmem:[%s1 + $0x930] sm:$0xff]
        %v823 = vld [vmem:[%s1 + $0x938] sm:$0xff]
        %v824 = vld [vmem:[%s1 + $0x940] sm:$0xff]
        %v825 = vld [vmem:[%s1 + $0x948] sm:$0xff]
        %v826 = vld [vmem:[%s1 + $0x950] sm:$0xff]
        %v827 = vld [vmem:[%s1 + $0x958] sm:$0xff]
        %v828 = vld [vmem:[%s1 + $0x960] sm:$0xff]
        %v829 = vld [vmem:[%s1 + $0x968] sm:$0xff]
        %v830 = vld [vmem:[%s1 + $0x970] sm:$0xff]
        %v831 = vld [vmem:[%s1 + $0x978] sm:$0xff]
        %v832 = vld [vmem:[%s1 + $0x980] sm:$0xff]
        %v833 = vld [vmem:[%s1 + $0x988] sm:$0xff]
        %v834 = vld [vmem:[%s1 + $0x990] sm:$0xff]
        %v835 = vld [vmem:[%s1 + $0x998] sm:$0xff]
        %v836 = vld [vmem:[%s1 + $0x9a0] sm:$0xff]
        %v837 = vld [vmem:[%s1 + $0x9a8] sm:$0xff]
        %v838 = vld [vmem:[%s1 + $0x9b0] sm:$0xff]
        %v839 = vld [vmem:[%s1 + $0x9b8] sm:$0xff]
        %v840 = vld [vmem:[%s1 + $0x9c0] sm:$0xff]
        %v841 = vld [vmem:[%s1 + $0x9c8] sm:$0xff]
        %v842 = vld [vmem:[%s1 + $0x9d0] sm:$0xff]
        %v843 = vld [vmem:[%s1 + $0x9d8] sm:$0xff]
        %v844 = vld [vmem:[%s1 + $0x9e0] sm:$0xff]
        %v845 = vld [vmem:[%s1 + $0x9e8] sm:$0xff]
        %v846 = vld [vmem:[%s1 + $0x9f0] sm:$0xff]
        %v847 = vld [vmem:[%s1 + $0x9f8] sm:$0xff]
        %v848 = vld [vmem:[%s1 + $0xa00] sm:$0xff]
        %v849 = vld [vmem:[%s1 + $0xa08] sm:$0xff]
        %v850 = vld [vmem:[%s1 + $0xa10] sm:$0xff]
        %v851 = vld [vmem:[%s1 + $0xa18] sm:$0xff]
        %v852 = vld [vmem:[%s1 + $0xa20] sm:$0xff]
        %v853 = vld [vmem:[%s1 + $0xa28] sm:$0xff]
        %v854 = vld [vmem:[%s1 + $0xa30] sm:$0xff]
        %v855 = vld [vmem:[%s1 + $0xa38] sm:$0xff]
        %v856 = vld [vmem:[%s1 + $0xa40] sm:$0xff]
        %v857 = vld [vmem:[%s1 + $0xa48] sm:$0xff]
        %v858 = vld [vmem:[%s1 + $0xa50] sm:$0xff]
        %v859 = vld [vmem:[%s1 + $0xa58] sm:$0xff]
        %v860 = vld [vmem:[%s1 + $0xa60] sm:$0xff]
        %v861 = vld [vmem:[%s1 + $0xa68] sm:$0xff]
        %v862 = vld [vmem:[%s1 + $0xa70] sm:$0xff]
        %v863 = vld [vmem:[%s1 + $0xa78] sm:$0xff]
        %v864 = vld [vmem:[%s1 + $0xa80] sm:$0xff]
        %v865 = vld [vmem:[%s1 + $0xa88] sm:$0xff]
        %v866 = vld [vmem:[%s1 + $0xa90] sm:$0xff]
        %v867 = vld [vmem:[%s1 + $0xa98] sm:$0xff]
        %v868 = vld [vmem:[%s1 + $0xaa0] sm:$0xff]
        %v869 = vld [vmem:[%s1 + $0xaa8] sm:$0xff]
        %v870 = vld [vmem:[%s1 + $0xab0] sm:$0xff]
        %v871 = vld [vmem:[%s1 + $0xab8] sm:$0xff]
        %v872 = vld [vmem:[%s1 + $0xac0] sm:$0xff]
        %v873 = vld [vmem:[%s1 + $0xac8] sm:$0xff]
        %v874 = vld [vmem:[%s1 + $0xad0] sm:$0xff]
        %v875 = vld [vmem:[%s1 + $0xad8] sm:$0xff]
        %v876 = vld [vmem:[%s1 + $0xae0] sm:$0xff]
        %v877 = vld [vmem:[%s1 + $0xae8] sm:$0xff]
        %v878 = vld [vmem:[%s1 + $0xaf0] sm:$0xff]
        %v879 = vld [vmem:[%s1 + $0xaf8] sm:$0xff]
        %v880 = vld [vmem:[%s1 + $0xb00] sm:$0xff]
        %v881 = vld [vmem:[%s1 + $0xb08] sm:$0xff]
        %v882 = vld [vmem:[%s1 + $0xb10] sm:$0xff]
        %v883 = vld [vmem:[%s1 + $0xb18] sm:$0xff]
        %v884 = vld [vmem:[%s1 + $0xb20] sm:$0xff]
        %v885 = vld [vmem:[%s1 + $0xb28] sm:$0xff]
        %v886 = vld [vmem:[%s1 + $0xb30] sm:$0xff]
        %v887 = vld [vmem:[%s1 + $0xb38] sm:$0xff]
        %v888 = vld [vmem:[%s1 + $0xb40] sm:$0xff]
        %v889 = vld [vmem:[%s1 + $0xb48] sm:$0xff]
        %v890 = vld [vmem:[%s1 + $0xb50] sm:$0xff]
        %v891 = vld [vmem:[%s1 + $0xb58] sm:$0xff]
        %v892 = vld [vmem:[%s1 + $0xb60] sm:$0xff]
        %v893 = vld [vmem:[%s1 + $0xb68] sm:$0xff]
        %v894 = vld [vmem:[%s1 + $0xb70] sm:$0xff]
        %v895 = vld [vmem:[%s1 + $0xb78] sm:$0xff]
        %v896 = vld [vmem:[%s1 + $0xb80] sm:$0xff]
        %v897 = vld [vmem:[%s1 + $0xb88] sm:$0xff]
        %v898 = vld [vmem:[%s1 + $0xb90] sm:$0xff]
        %v899 = vld [vmem:[%s1 + $0xb98] sm:$0xff]
        %v900 = vld [vmem:[%s1 + $0xba0] sm:$0xff]
        %v901 = vld [vmem:[%s1 + $0xba8] sm:$0xff]
        %v902 = vld [vmem:[%s1 + $0xbb0] sm:$0xff]
        %v903 = vld [vmem:[%s1 + $0xbb8] sm:$0xff]
        %v904 = vld [vmem:[%s1 + $0xbc0] sm:$0xff]
        %v905 = vld [vmem:[%s1 + $0xbc8] sm:$0xff]
        %v906 = vld [vmem:[%s1 + $0xbd0] sm:$0xff]
        %v907 = vld [vmem:[%s1 + $0xbd8] sm:$0xff]
        %v908 = vld [vmem:[%s1 + $0xbe0] sm:$0xff]
        %v909 = vld [vmem:[%s1 + $0xbe8] sm:$0xff]
        %v910 = vld [vmem:[%s1 + $0xbf0] sm:$0xff]
        %v911 = vld [vmem:[%s1 + $0xbf8] sm:$0xff]
        %v912 = vld [vmem:[%s1 + $0xc00] sm:$0xff]
        %v913 = vld [vmem:[%s1 + $0xc08] sm:$0xff]
        %v914 = vld [vmem:[%s1 + $0xc10] sm:$0xff]
        %v915 = vld [vmem:[%s1 + $0xc18] sm:$0xff]
        %v916 = vld [vmem:[%s1 + $0xc20] sm:$0xff]
        %v917 = vld [vmem:[%s1 + $0xc28] sm:$0xff]
        %v918 = vld [vmem:[%s1 + $0xc30] sm:$0xff]
        %v919 = vld [vmem:[%s1 + $0xc38] sm:$0xff]
        %v920 = vld [vmem:[%s1 + $0xc40] sm:$0xff]
        %v921 = vld [vmem:[%s1 + $0xc48] sm:$0xff]
        %v922 = vld [vmem:[%s1 + $0xc50] sm:$0xff]
        %v923 = vld [vmem:[%s1 + $0xc58] sm:$0xff]
        %v924 = vld [vmem:[%s1 + $0xc60] sm:$0xff]
        %v925 = vld [vmem:[%s1 + $0xc68] sm:$0xff]
        %v926 = vld [vmem:[%s1 + $0xc70] sm:$0xff]
        %v927 = vld [vmem:[%s1 + $0xc78] sm:$0xff]
        %v928 = vld [vmem:[%s1 + $0xc80] sm:$0xff]
        %v929 = vld [vmem:[%s1 + $0xc88] sm:$0xff]
        %v930 = vld [vmem:[%s1 + $0xc90] sm:$0xff]
        %v931 = vld [vmem:[%s1 + $0xc98] sm:$0xff]
        %v932 = vld [vmem:[%s1 + $0xca0] sm:$0xff]
        %v933 = vld [vmem:[%s1 + $0xca8] sm:$0xff]
        %v934 = vld [vmem:[%s1 + $0xcb0] sm:$0xff]
        %v935 = vld [vmem:[%s1 + $0xcb8] sm:$0xff]
        %v936 = vld [vmem:[%s1 + $0xcc0] sm:$0xff]
        %v937 = vld [vmem:[%s1 + $0xcc8] sm:$0xff]
        %v938 = vld [vmem:[%s1 + $0xcd0] sm:$0xff]
        %v939 = vld [vmem:[%s1 + $0xcd8] sm:$0xff]
        %v940 = vld [vmem:[%s1 + $0xce0] sm:$0xff]
        %v941 = vld [vmem:[%s1 + $0xce8] sm:$0xff]
        %v942 = vld [vmem:[%s1 + $0xcf0] sm:$0xff]
        %v943 = vld [vmem:[%s1 + $0xcf8] sm:$0xff]
        %v944 = vld [vmem:[%s1 + $0xd00] sm:$0xff]
        %v945 = vld [vmem:[%s1 + $0xd08] sm:$0xff]
        %v946 = vld [vmem:[%s1 + $0xd10] sm:$0xff]
        %v947 = vld [vmem:[%s1 + $0xd18] sm:$0xff]
        %v948 = vld [vmem:[%s1 + $0xd20] sm:$0xff]
        %v949 = vld [vmem:[%s1 + $0xd28] sm:$0xff]
        %v950 = vld [vmem:[%s1 + $0xd30] sm:$0xff]
        %v951 = vld [vmem:[%s1 + $0xd38] sm:$0xff]
        %v952 = vld [vmem:[%s1 + $0xd40] sm:$0xff]
        %v953 = vld [vmem:[%s1 + $0xd48] sm:$0xff]
        %v954 = vld [vmem:[%s1 + $0xd50] sm:$0xff]
        %v955 = vld [vmem:[%s1 + $0xd58] sm:$0xff]
        %v956 = vld [vmem:[%s1 + $0xd60] sm:$0xff]
        %v957 = vld [vmem:[%s1 + $0xd68] sm:$0xff]
        %v958 = vld [vmem:[%s1 + $0xd70] sm:$0xff]
        %v959 = vld [vmem:[%s1 + $0xd78] sm:$0xff]
        %v960 = vld [vmem:[%s1 + $0xd80] sm:$0xff]
        %v961 = vld [vmem:[%s1 + $0xd88] sm:$0xff]
        %v962 = vld [vmem:[%s1 + $0xd90] sm:$0xff]
        %v963 = vld [vmem:[%s1 + $0xd98] sm:$0xff]
        %v964 = vld [vmem:[%s1 + $0xda0] sm:$0xff]
        %v965 = vld [vmem:[%s1 + $0xda8] sm:$0xff]
        %v966 = vld [vmem:[%s1 + $0xdb0] sm:$0xff]
        %v967 = vld [vmem:[%s1 + $0xdb8] sm:$0xff]
        %v968 = vld [vmem:[%s1 + $0xdc0] sm:$0xff]
        %v969 = vld [vmem:[%s1 + $0xdc8] sm:$0xff]
        %v970 = vld [vmem:[%s1 + $0xdd0] sm:$0xff]
        %v971 = vld [vmem:[%s1 + $0xdd8] sm:$0xff]
        %v972 = vld [vmem:[%s1 + $0xde0] sm:$0xff]
        %v973 = vld [vmem:[%s1 + $0xde8] sm:$0xff]
        %v974 = vld [vmem:[%s1 + $0xdf0] sm:$0xff]
        %v975 = vld [vmem:[%s1 + $0xdf8] sm:$0xff]
        %v976 = vld [vmem:[%s1 + $0xe00] sm:$0xff]
        %v977 = vld [vmem:[%s1 + $0xe08] sm:$0xff]
        %v978 = vld [vmem:[%s1 + $0xe10] sm:$0xff]
        %v979 = vld [vmem:[%s1 + $0xe18] sm:$0xff]
        %v980 = vld [vmem:[%s1 + $0xe20] sm:$0xff]
        %v981 = vld [vmem:[%s1 + $0xe28] sm:$0xff]
        %v982 = vld [vmem:[%s1 + $0xe30] sm:$0xff]
        %v983 = vld [vmem:[%s1 + $0xe38] sm:$0xff]
        %v984 = vld [vmem:[%s1 + $0xe40] sm:$0xff]
        %v985 = vld [vmem:[%s1 + $0xe48] sm:$0xff]
        %v986 = vld [vmem:[%s1 + $0xe50] sm:$0xff]
        %v987 = vld [vmem:[%s1 + $0xe58] sm:$0xff]
        %v988 = vld [vmem:[%s1 + $0xe60] sm:$0xff]
        %v989 = vld [vmem:[%s1 + $0xe68] sm:$0xff]
        %v990 = vld [vmem:[%s1 + $0xe70] sm:$0xff]
        %v991 = vld [vmem:[%s1 + $0xe78] sm:$0xff]
        %v992 = vld [vmem:[%s1 + $0xe80] sm:$0xff]
        %v993 = vld [vmem:[%s1 + $0xe88] sm:$0xff]
        %v994 = vld [vmem:[%s1 + $0xe90] sm:$0xff]
        %v995 = vld [vmem:[%s1 + $0xe98] sm:$0xff]
        %v996 = vld [vmem:[%s1 + $0xea0] sm:$0xff]
        %v997 = vld [vmem:[%s1 + $0xea8] sm:$0xff]
        %v998 = vld [vmem:[%s1 + $0xeb0] sm:$0xff]
        %v999 = vld [vmem:[%s1 + $0xeb8] sm:$0xff]
        %v1000 = vld [vmem:[%s1 + $0xec0] sm:$0xff]
        %v1001 = vld [vmem:[%s1 + $0xec8] sm:$0xff]
        %v1002 = vld [vmem:[%s1 + $0xed0] sm:$0xff]
        %v1003 = vld [vmem:[%s1 + $0xed8] sm:$0xff]
        %v1004 = vld [vmem:[%s1 + $0xee0] sm:$0xff]
        %v1005 = vld [vmem:[%s1 + $0xee8] sm:$0xff]
        %v1006 = vld [vmem:[%s1 + $0xef0] sm:$0xff]
        %v1007 = vld [vmem:[%s1 + $0xef8] sm:$0xff]
        %v1008 = vld [vmem:[%s1 + $0xf00] sm:$0xff]
        %v1009 = vld [vmem:[%s1 + $0xf08] sm:$0xff]
        %v1010 = vld [vmem:[%s1 + $0xf10] sm:$0xff]
        %v1011 = vld [vmem:[%s1 + $0xf18] sm:$0xff]
        %v1012 = vld [vmem:[%s1 + $0xf20] sm:$0xff]
        %v1013 = vld [vmem:[%s1 + $0xf28] sm:$0xff]
        %v1014 = vld [vmem:[%s1 + $0xf30] sm:$0xff]
        %v1015 = vld [vmem:[%s1 + $0xf38] sm:$0xff]
        %v1016 = vld [vmem:[%s1 + $0xf40] sm:$0xff]
        %v1017 = vld [vmem:[%s1 + $0xf48] sm:$0xff]
        %v1018 = vld [vmem:[%s1 + $0xf50] sm:$0xff]
        %v1019 = vld [vmem:[%s1 + $0xf58] sm:$0xff]
        %v1020 = vld [vmem:[%s1 + $0xf60] sm:$0xff]
        %v1021 = vld [vmem:[%s1 + $0xf68] sm:$0xff]
        %v1022 = vld [vmem:[%s1 + $0xf70] sm:$0xff]
        %v1023 = vld [vmem:[%s1 + $0xf78] sm:$0xff]
        %v1024 = vld [vmem:[%s1 + $0xf80] sm:$0xff]
        %v1025 = vld [vmem:[%s1 + $0xf88] sm:$0xff]
        %v1026 = vld [vmem:[%s1 + $0xf90] sm:$0xff]
        %v1027 = vld [vmem:[%s1 + $0xf98] sm:$0xff]
        %v1028 = vld [vmem:[%s1 + $0xfa0] sm:$0xff]
        %v1029 = vld [vmem:[%s1 + $0xfa8] sm:$0xff]
        %v1030 = vld [vmem:[%s1 + $0xfb0] sm:$0xff]
        %v1031 = vld [vmem:[%s1 + $0xfb8] sm:$0xff]
        %vm1032 = vcmask 130048
        %v1034 = vsel %vm1032, %v417, 0
        %v1037 = vsel %vm1032, %v419, 0
        %1039 = vmatprep.subr.mxu0 0.0
        %1040 = vmatpush1.msra.mxu0 %v543
        %1041 = vmatprep.subr.mxu0 0.0
        %1042 = vmatpush1.msra.mxu0 %v542
        %1043 = vmatprep.subr.mxu0 0.0
        %1044 = vmatpush1.msra.mxu0 %v541
        %1045 = vmatprep.subr.mxu0 0.0
        %1046 = vmatpush1.msra.mxu0 %v540
        %1047 = vmatprep.subr.mxu0 0.0
        %1048 = vmatpush1.msra.mxu0 %v539
        %1049 = vmatprep.subr.mxu0 0.0
        %1050 = vmatpush1.msra.mxu0 %v538
        %1051 = vmatprep.subr.mxu0 0.0
        %1052 = vmatpush1.msra.mxu0 %v537
        %1053 = vmatprep.subr.mxu0 0.0
        %1054 = vmatpush1.msra.mxu0 %v536
        %1055 = vmatprep.subr.mxu0 0.0
        %1056 = vmatpush1.msra.mxu0 %v535
        %1057 = vmatprep.subr.mxu0 0.0
        %1058 = vmatpush1.msra.mxu0 %v534
        %1059 = vmatprep.subr.mxu0 0.0
        %1060 = vmatpush1.msra.mxu0 %v533
        %1061 = vmatprep.subr.mxu0 0.0
        %1062 = vmatpush1.msra.mxu0 %v532
        %1063 = vmatprep.subr.mxu0 0.0
        %1064 = vmatpush1.msra.mxu0 %v531
        %1065 = vmatprep.subr.mxu0 0.0
        %1066 = vmatpush1.msra.mxu0 %v530
        %1067 = vmatprep.subr.mxu0 0.0
        %1068 = vmatpush1.msra.mxu0 %v529
        %1069 = vmatprep.subr.mxu0 0.0
        %1070 = vmatpush1.msra.mxu0 %v528
        %1071 = vmatprep.subr.mxu0 0.0
        %1072 = vmatpush2.msra.mxu0 0.0
        %1073 = vmatprep.subr.mxu0 0.0
        %1074 = vmatpush2.msra.mxu0 0.0
        %1075 = vmatprep.subr.mxu0 0.0
        %1076 = vmatpush2.msra.mxu0 0.0
        %1077 = vmatprep.subr.mxu0 0.0
        %1078 = vmatpush2.msra.mxu0 0.0
        %1079 = vmatprep.subr.mxu0 0.0
        %1080 = vmatpush2.msra.mxu0 0.0
        %1081 = vmatprep.subr.mxu0 0.0
        %1082 = vmatpush2.msra.mxu0 0.0
        %1083 = vmatprep.subr.mxu0 0.0
        %1084 = vmatpush2.msra.mxu0 0.0
        %1085 = vmatprep.subr.mxu0 0.0
        %1086 = vmatpush2.msra.mxu0 0.0
        %1087 = vmatprep.subr.mxu0 0.0
        %1088 = vmatpush2.msra.mxu0 0.0
        %1089 = vmatprep.subr.mxu0 0.0
        %1090 = vmatpush2.msra.mxu0 0.0
        %1091 = vmatprep.subr.mxu0 0.0
        %1092 = vmatpush2.msra.mxu0 0.0
        %1093 = vmatprep.subr.mxu0 0.0
        %1094 = vmatpush2.msra.mxu0 0.0
        %1095 = vmatprep.subr.mxu0 0.0
        %1096 = vmatpush2.msra.mxu0 0.0
        %1097 = vmatprep.subr.mxu0 0.0
        %1098 = vmatpush2.msra.mxu0 0.0
        %1099 = vmatprep.subr.mxu0 0.0
        %1100 = vmatpush2.msra.mxu0 %v545
        %1101 = vmatprep.subr.mxu0 0.0
        %1102 = vmatpush2.msra.mxu0 %v544
        %1103 = vmatprep.mubr.f32.mxu0 %v1034
        %1104 = vmatmul.mubr.f32.gmra.mxu0 %v416
        %v1105 = vpop.f32.mrf.mxu0
        %v1106 = vadd.f32 0.0, %v1105
        %v1107 = vpop.f32.mrf.mxu0
        %1108 = vmatprep.mubr.f32.mxu0 %v1037
        %1109 = vmatmul.mubr.f32.gmra.mxu0 %v418
        %v1110 = vpop.f32.mrf.mxu0
        %v1111 = vadd.f32 0.0, %v1110
        %v1112 = vpop.f32.mrf.mxu0
        %1113 = vdwg.mxu0
        %v1115 = vsel %vm1032, %v421, 0
        %v1118 = vsel %vm1032, %v423, 0
        %1120 = vmatprep.subr.mxu0 0.0
        %1121 = vmatpush1.msra.mxu0 %v561
        %1122 = vmatprep.subr.mxu0 0.0
        %1123 = vmatpush1.msra.mxu0 %v560
        %1124 = vmatprep.subr.mxu0 0.0
        %1125 = vmatpush1.msra.mxu0 %v559
        %1126 = vmatprep.subr.mxu0 0.0
        %1127 = vmatpush1.msra.mxu0 %v558
        %1128 = vmatprep.subr.mxu0 0.0
        %1129 = vmatpush1.msra.mxu0 %v557
        %1130 = vmatprep.subr.mxu0 0.0
        %1131 = vmatpush1.msra.mxu0 %v556
        %1132 = vmatprep.subr.mxu0 0.0
        %1133 = vmatpush1.msra.mxu0 %v555
        %1134 = vmatprep.subr.mxu0 0.0
        %1135 = vmatpush1.msra.mxu0 %v554
        %1136 = vmatprep.subr.mxu0 0.0
        %1137 = vmatpush1.msra.mxu0 %v553
        %1138 = vmatprep.subr.mxu0 0.0
        %1139 = vmatpush1.msra.mxu0 %v552
        %1140 = vmatprep.subr.mxu0 0.0
        %1141 = vmatpush1.msra.mxu0 %v551
        %1142 = vmatprep.subr.mxu0 0.0
        %1143 = vmatpush1.msra.mxu0 %v550
        %1144 = vmatprep.subr.mxu0 0.0
        %1145 = vmatpush1.msra.mxu0 %v549
        %1146 = vmatprep.subr.mxu0 0.0
        %1147 = vmatpush1.msra.mxu0 %v548
        %1148 = vmatprep.subr.mxu0 0.0
        %1149 = vmatpush1.msra.mxu0 %v547
        %1150 = vmatprep.subr.mxu0 0.0
        %1151 = vmatpush1.msra.mxu0 %v546
        %1152 = vmatprep.subr.mxu0 0.0
        %1153 = vmatpush2.msra.mxu0 0.0
        %1154 = vmatprep.subr.mxu0 0.0
        %1155 = vmatpush2.msra.mxu0 0.0
        %1156 = vmatprep.subr.mxu0 0.0
        %1157 = vmatpush2.msra.mxu0 0.0
        %1158 = vmatprep.subr.mxu0 0.0
        %1159 = vmatpush2.msra.mxu0 0.0
        %1160 = vmatprep.subr.mxu0 0.0
        %1161 = vmatpush2.msra.mxu0 0.0
        %1162 = vmatprep.subr.mxu0 0.0
        %1163 = vmatpush2.msra.mxu0 0.0
        %1164 = vmatprep.subr.mxu0 0.0
        %1165 = vmatpush2.msra.mxu0 0.0
        %1166 = vmatprep.subr.mxu0 0.0
        %1167 = vmatpush2.msra.mxu0 0.0
        %1168 = vmatprep.subr.mxu0 0.0
        %1169 = vmatpush2.msra.mxu0 0.0
        %1170 = vmatprep.subr.mxu0 0.0
        %1171 = vmatpush2.msra.mxu0 0.0
        %1172 = vmatprep.subr.mxu0 0.0
        %1173 = vmatpush2.msra.mxu0 0.0
        %1174 = vmatprep.subr.mxu0 0.0
        %1175 = vmatpush2.msra.mxu0 0.0
        %1176 = vmatprep.subr.mxu0 0.0
        %1177 = vmatpush2.msra.mxu0 0.0
        %1178 = vmatprep.subr.mxu0 0.0
        %1179 = vmatpush2.msra.mxu0 0.0
        %1180 = vmatprep.subr.mxu0 0.0
        %1181 = vmatpush2.msra.mxu0 %v563
        %1182 = vmatprep.subr.mxu0 0.0
        %1183 = vmatpush2.msra.mxu0 %v562
        %1184 = vmatprep.mubr.f32.mxu0 %v1115
        %1185 = vmatmul.mubr.f32.gmra.mxu0 %v420
        %v1186 = vpop.f32.mrf.mxu0
        %v1187 = vadd.f32 0.0, %v1186
        %v1188 = vpop.f32.mrf.mxu0
        %1189 = vmatprep.mubr.f32.mxu0 %v1118
        %1190 = vmatmul.mubr.f32.gmra.mxu0 %v422
        %v1191 = vpop.f32.mrf.mxu0
        %v1192 = vadd.f32 0.0, %v1191
        %v1193 = vpop.f32.mrf.mxu0
        %1194 = vdwg.mxu0
        %v1196 = vsel %vm1032, %v425, 0
        %v1199 = vsel %vm1032, %v427, 0
        %1201 = vmatprep.subr.mxu0 0.0
        %1202 = vmatpush1.msra.mxu0 %v579
        %1203 = vmatprep.subr.mxu0 0.0
        %1204 = vmatpush1.msra.mxu0 %v578
        %1205 = vmatprep.subr.mxu0 0.0
        %1206 = vmatpush1.msra.mxu0 %v577
        %1207 = vmatprep.subr.mxu0 0.0
        %1208 = vmatpush1.msra.mxu0 %v576
        %1209 = vmatprep.subr.mxu0 0.0
        %1210 = vmatpush1.msra.mxu0 %v575
        %1211 = vmatprep.subr.mxu0 0.0
        %1212 = vmatpush1.msra.mxu0 %v574
        %1213 = vmatprep.subr.mxu0 0.0
        %1214 = vmatpush1.msra.mxu0 %v573
        %1215 = vmatprep.subr.mxu0 0.0
        %1216 = vmatpush1.msra.mxu0 %v572
        %1217 = vmatprep.subr.mxu0 0.0
        %1218 = vmatpush1.msra.mxu0 %v571
        %1219 = vmatprep.subr.mxu0 0.0
        %1220 = vmatpush1.msra.mxu0 %v570
        %1221 = vmatprep.subr.mxu0 0.0
        %1222 = vmatpush1.msra.mxu0 %v569
        %1223 = vmatprep.subr.mxu0 0.0
        %1224 = vmatpush1.msra.mxu0 %v568
        %1225 = vmatprep.subr.mxu0 0.0
        %1226 = vmatpush1.msra.mxu0 %v567
        %1227 = vmatprep.subr.mxu0 0.0
        %1228 = vmatpush1.msra.mxu0 %v566
        %1229 = vmatprep.subr.mxu0 0.0
        %1230 = vmatpush1.msra.mxu0 %v565
        %1231 = vmatprep.subr.mxu0 0.0
        %1232 = vmatpush1.msra.mxu0 %v564
        %1233 = vmatprep.subr.mxu0 0.0
        %1234 = vmatpush2.msra.mxu0 0.0
        %1235 = vmatprep.subr.mxu0 0.0
        %1236 = vmatpush2.msra.mxu0 0.0
        %1237 = vmatprep.subr.mxu0 0.0
        %1238 = vmatpush2.msra.mxu0 0.0
        %1239 = vmatprep.subr.mxu0 0.0
        %1240 = vmatpush2.msra.mxu0 0.0
        %1241 = vmatprep.subr.mxu0 0.0
        %1242 = vmatpush2.msra.mxu0 0.0
        %1243 = vmatprep.subr.mxu0 0.0
        %1244 = vmatpush2.msra.mxu0 0.0
        %1245 = vmatprep.subr.mxu0 0.0
        %1246 = vmatpush2.msra.mxu0 0.0
        %1247 = vmatprep.subr.mxu0 0.0
        %1248 = vmatpush2.msra.mxu0 0.0
        %1249 = vmatprep.subr.mxu0 0.0
        %1250 = vmatpush2.msra.mxu0 0.0
        %1251 = vmatprep.subr.mxu0 0.0
        %1252 = vmatpush2.msra.mxu0 0.0
        %1253 = vmatprep.subr.mxu0 0.0
        %1254 = vmatpush2.msra.mxu0 0.0
        %1255 = vmatprep.subr.mxu0 0.0
        %1256 = vmatpush2.msra.mxu0 0.0
        %1257 = vmatprep.subr.mxu0 0.0
        %1258 = vmatpush2.msra.mxu0 0.0
        %1259 = vmatprep.subr.mxu0 0.0
        %1260 = vmatpush2.msra.mxu0 0.0
        %1261 = vmatprep.subr.mxu0 0.0
        %1262 = vmatpush2.msra.mxu0 %v581
        %1263 = vmatprep.subr.mxu0 0.0
        %1264 = vmatpush2.msra.mxu0 %v580
        %1265 = vmatprep.mubr.f32.mxu0 %v1196
        %1266 = vmatmul.mubr.f32.gmra.mxu0 %v424
        %v1267 = vpop.f32.mrf.mxu0
        %v1268 = vadd.f32 0.0, %v1267
        %v1269 = vpop.f32.mrf.mxu0
        %1270 = vmatprep.mubr.f32.mxu0 %v1199
        %1271 = vmatmul.mubr.f32.gmra.mxu0 %v426
        %v1272 = vpop.f32.mrf.mxu0
        %v1273 = vadd.f32 0.0, %v1272
        %v1274 = vpop.f32.mrf.mxu0
        %1275 = vdwg.mxu0
        %v1277 = vsel %vm1032, %v429, 0
        %v1280 = vsel %vm1032, %v431, 0
        %1282 = vmatprep.subr.mxu0 0.0
        %1283 = vmatpush1.msra.mxu0 %v597
        %1284 = vmatprep.subr.mxu0 0.0
        %1285 = vmatpush1.msra.mxu0 %v596
        %1286 = vmatprep.subr.mxu0 0.0
        %1287 = vmatpush1.msra.mxu0 %v595
        %1288 = vmatprep.subr.mxu0 0.0
        %1289 = vmatpush1.msra.mxu0 %v594
        %1290 = vmatprep.subr.mxu0 0.0
        %1291 = vmatpush1.msra.mxu0 %v593
        %1292 = vmatprep.subr.mxu0 0.0
        %1293 = vmatpush1.msra.mxu0 %v592
        %1294 = vmatprep.subr.mxu0 0.0
        %1295 = vmatpush1.msra.mxu0 %v591
        %1296 = vmatprep.subr.mxu0 0.0
        %1297 = vmatpush1.msra.mxu0 %v590
        %1298 = vmatprep.subr.mxu0 0.0
        %1299 = vmatpush1.msra.mxu0 %v589
        %1300 = vmatprep.subr.mxu0 0.0
        %1301 = vmatpush1.msra.mxu0 %v588
        %1302 = vmatprep.subr.mxu0 0.0
        %1303 = vmatpush1.msra.mxu0 %v587
        %1304 = vmatprep.subr.mxu0 0.0
        %1305 = vmatpush1.msra.mxu0 %v586
        %1306 = vmatprep.subr.mxu0 0.0
        %1307 = vmatpush1.msra.mxu0 %v585
        %1308 = vmatprep.subr.mxu0 0.0
        %1309 = vmatpush1.msra.mxu0 %v584
        %1310 = vmatprep.subr.mxu0 0.0
        %1311 = vmatpush1.msra.mxu0 %v583
        %1312 = vmatprep.subr.mxu0 0.0
        %1313 = vmatpush1.msra.mxu0 %v582
        %1314 = vmatprep.subr.mxu0 0.0
        %1315 = vmatpush2.msra.mxu0 0.0
        %1316 = vmatprep.subr.mxu0 0.0
        %1317 = vmatpush2.msra.mxu0 0.0
        %1318 = vmatprep.subr.mxu0 0.0
        %1319 = vmatpush2.msra.mxu0 0.0
        %1320 = vmatprep.subr.mxu0 0.0
        %1321 = vmatpush2.msra.mxu0 0.0
        %1322 = vmatprep.subr.mxu0 0.0
        %1323 = vmatpush2.msra.mxu0 0.0
        %1324 = vmatprep.subr.mxu0 0.0
        %1325 = vmatpush2.msra.mxu0 0.0
        %1326 = vmatprep.subr.mxu0 0.0
        %1327 = vmatpush2.msra.mxu0 0.0
        %1328 = vmatprep.subr.mxu0 0.0
        %1329 = vmatpush2.msra.mxu0 0.0
        %1330 = vmatprep.subr.mxu0 0.0
        %1331 = vmatpush2.msra.mxu0 0.0
        %1332 = vmatprep.subr.mxu0 0.0
        %1333 = vmatpush2.msra.mxu0 0.0
        %1334 = vmatprep.subr.mxu0 0.0
        %1335 = vmatpush2.msra.mxu0 0.0
        %1336 = vmatprep.subr.mxu0 0.0
        %1337 = vmatpush2.msra.mxu0 0.0
        %1338 = vmatprep.subr.mxu0 0.0
        %1339 = vmatpush2.msra.mxu0 0.0
        %1340 = vmatprep.subr.mxu0 0.0
        %1341 = vmatpush2.msra.mxu0 0.0
        %1342 = vmatprep.subr.mxu0 0.0
        %1343 = vmatpush2.msra.mxu0 %v599
        %1344 = vmatprep.subr.mxu0 0.0
        %1345 = vmatpush2.msra.mxu0 %v598
        %1346 = vmatprep.mubr.f32.mxu0 %v1277
        %1347 = vmatmul.mubr.f32.gmra.mxu0 %v428
        %v1348 = vpop.f32.mrf.mxu0
        %v1349 = vadd.f32 0.0, %v1348
        %v1350 = vpop.f32.mrf.mxu0
        %1351 = vmatprep.mubr.f32.mxu0 %v1280
        %1352 = vmatmul.mubr.f32.gmra.mxu0 %v430
        %v1353 = vpop.f32.mrf.mxu0
        %v1354 = vadd.f32 0.0, %v1353
        %v1355 = vpop.f32.mrf.mxu0
        %1356 = vdwg.mxu0
        %v1358 = vsel %vm1032, %v433, 0
        %v1361 = vsel %vm1032, %v435, 0
        %1363 = vmatprep.subr.mxu0 0.0
        %1364 = vmatpush1.msra.mxu0 %v615
        %1365 = vmatprep.subr.mxu0 0.0
        %1366 = vmatpush1.msra.mxu0 %v614
        %1367 = vmatprep.subr.mxu0 0.0
        %1368 = vmatpush1.msra.mxu0 %v613
        %1369 = vmatprep.subr.mxu0 0.0
        %1370 = vmatpush1.msra.mxu0 %v612
        %1371 = vmatprep.subr.mxu0 0.0
        %1372 = vmatpush1.msra.mxu0 %v611
        %1373 = vmatprep.subr.mxu0 0.0
        %1374 = vmatpush1.msra.mxu0 %v610
        %1375 = vmatprep.subr.mxu0 0.0
        %1376 = vmatpush1.msra.mxu0 %v609
        %1377 = vmatprep.subr.mxu0 0.0
        %1378 = vmatpush1.msra.mxu0 %v608
        %1379 = vmatprep.subr.mxu0 0.0
        %1380 = vmatpush1.msra.mxu0 %v607
        %1381 = vmatprep.subr.mxu0 0.0
        %1382 = vmatpush1.msra.mxu0 %v606
        %1383 = vmatprep.subr.mxu0 0.0
        %1384 = vmatpush1.msra.mxu0 %v605
        %1385 = vmatprep.subr.mxu0 0.0
        %1386 = vmatpush1.msra.mxu0 %v604
        %1387 = vmatprep.subr.mxu0 0.0
        %1388 = vmatpush1.msra.mxu0 %v603
        %1389 = vmatprep.subr.mxu0 0.0
        %1390 = vmatpush1.msra.mxu0 %v602
        %1391 = vmatprep.subr.mxu0 0.0
        %1392 = vmatpush1.msra.mxu0 %v601
        %1393 = vmatprep.subr.mxu0 0.0
        %1394 = vmatpush1.msra.mxu0 %v600
        %1395 = vmatprep.subr.mxu0 0.0
        %1396 = vmatpush2.msra.mxu0 0.0
        %1397 = vmatprep.subr.mxu0 0.0
        %1398 = vmatpush2.msra.mxu0 0.0
        %1399 = vmatprep.subr.mxu0 0.0
        %1400 = vmatpush2.msra.mxu0 0.0
        %1401 = vmatprep.subr.mxu0 0.0
        %1402 = vmatpush2.msra.mxu0 0.0
        %1403 = vmatprep.subr.mxu0 0.0
        %1404 = vmatpush2.msra.mxu0 0.0
        %1405 = vmatprep.subr.mxu0 0.0
        %1406 = vmatpush2.msra.mxu0 0.0
        %1407 = vmatprep.subr.mxu0 0.0
        %1408 = vmatpush2.msra.mxu0 0.0
        %1409 = vmatprep.subr.mxu0 0.0
        %1410 = vmatpush2.msra.mxu0 0.0
        %1411 = vmatprep.subr.mxu0 0.0
        %1412 = vmatpush2.msra.mxu0 0.0
        %1413 = vmatprep.subr.mxu0 0.0
        %1414 = vmatpush2.msra.mxu0 0.0
        %1415 = vmatprep.subr.mxu0 0.0
        %1416 = vmatpush2.msra.mxu0 0.0
        %1417 = vmatprep.subr.mxu0 0.0
        %1418 = vmatpush2.msra.mxu0 0.0
        %1419 = vmatprep.subr.mxu0 0.0
        %1420 = vmatpush2.msra.mxu0 0.0
        %1421 = vmatprep.subr.mxu0 0.0
        %1422 = vmatpush2.msra.mxu0 0.0
        %1423 = vmatprep.subr.mxu0 0.0
        %1424 = vmatpush2.msra.mxu0 %v617
        %1425 = vmatprep.subr.mxu0 0.0
        %1426 = vmatpush2.msra.mxu0 %v616
        %1427 = vmatprep.mubr.f32.mxu0 %v1358
        %1428 = vmatmul.mubr.f32.gmra.mxu0 %v432
        %v1429 = vpop.f32.mrf.mxu0
        %v1430 = vadd.f32 0.0, %v1429
        %v1431 = vpop.f32.mrf.mxu0
        %1432 = vmatprep.mubr.f32.mxu0 %v1361
        %1433 = vmatmul.mubr.f32.gmra.mxu0 %v434
        %v1434 = vpop.f32.mrf.mxu0
        %v1435 = vadd.f32 0.0, %v1434
        %v1436 = vpop.f32.mrf.mxu0
        %1437 = vdwg.mxu0
        %v1439 = vsel %vm1032, %v437, 0
        %v1442 = vsel %vm1032, %v439, 0
        %1444 = vmatprep.subr.mxu0 0.0
        %1445 = vmatpush1.msra.mxu0 %v633
        %1446 = vmatprep.subr.mxu0 0.0
        %1447 = vmatpush1.msra.mxu0 %v632
        %1448 = vmatprep.subr.mxu0 0.0
        %1449 = vmatpush1.msra.mxu0 %v631
        %1450 = vmatprep.subr.mxu0 0.0
        %1451 = vmatpush1.msra.mxu0 %v630
        %1452 = vmatprep.subr.mxu0 0.0
        %1453 = vmatpush1.msra.mxu0 %v629
        %1454 = vmatprep.subr.mxu0 0.0
        %1455 = vmatpush1.msra.mxu0 %v628
        %1456 = vmatprep.subr.mxu0 0.0
        %1457 = vmatpush1.msra.mxu0 %v627
        %1458 = vmatprep.subr.mxu0 0.0
        %1459 = vmatpush1.msra.mxu0 %v626
        %1460 = vmatprep.subr.mxu0 0.0
        %1461 = vmatpush1.msra.mxu0 %v625
        %1462 = vmatprep.subr.mxu0 0.0
        %1463 = vmatpush1.msra.mxu0 %v624
        %1464 = vmatprep.subr.mxu0 0.0
        %1465 = vmatpush1.msra.mxu0 %v623
        %1466 = vmatprep.subr.mxu0 0.0
        %1467 = vmatpush1.msra.mxu0 %v622
        %1468 = vmatprep.subr.mxu0 0.0
        %1469 = vmatpush1.msra.mxu0 %v621
        %1470 = vmatprep.subr.mxu0 0.0
        %1471 = vmatpush1.msra.mxu0 %v620
        %1472 = vmatprep.subr.mxu0 0.0
        %1473 = vmatpush1.msra.mxu0 %v619
        %1474 = vmatprep.subr.mxu0 0.0
        %1475 = vmatpush1.msra.mxu0 %v618
        %1476 = vmatprep.subr.mxu0 0.0
        %1477 = vmatpush2.msra.mxu0 0.0
        %1478 = vmatprep.subr.mxu0 0.0
        %1479 = vmatpush2.msra.mxu0 0.0
        %1480 = vmatprep.subr.mxu0 0.0
        %1481 = vmatpush2.msra.mxu0 0.0
        %1482 = vmatprep.subr.mxu0 0.0
        %1483 = vmatpush2.msra.mxu0 0.0
        %1484 = vmatprep.subr.mxu0 0.0
        %1485 = vmatpush2.msra.mxu0 0.0
        %1486 = vmatprep.subr.mxu0 0.0
        %1487 = vmatpush2.msra.mxu0 0.0
        %1488 = vmatprep.subr.mxu0 0.0
        %1489 = vmatpush2.msra.mxu0 0.0
        %1490 = vmatprep.subr.mxu0 0.0
        %1491 = vmatpush2.msra.mxu0 0.0
        %1492 = vmatprep.subr.mxu0 0.0
        %1493 = vmatpush2.msra.mxu0 0.0
        %1494 = vmatprep.subr.mxu0 0.0
        %1495 = vmatpush2.msra.mxu0 0.0
        %1496 = vmatprep.subr.mxu0 0.0
        %1497 = vmatpush2.msra.mxu0 0.0
        %1498 = vmatprep.subr.mxu0 0.0
        %1499 = vmatpush2.msra.mxu0 0.0
        %1500 = vmatprep.subr.mxu0 0.0
        %1501 = vmatpush2.msra.mxu0 0.0
        %1502 = vmatprep.subr.mxu0 0.0
        %1503 = vmatpush2.msra.mxu0 0.0
        %1504 = vmatprep.subr.mxu0 0.0
        %1505 = vmatpush2.msra.mxu0 %v635
        %1506 = vmatprep.subr.mxu0 0.0
        %1507 = vmatpush2.msra.mxu0 %v634
        %1508 = vmatprep.mubr.f32.mxu0 %v1439
        %1509 = vmatmul.mubr.f32.gmra.mxu0 %v436
        %v1510 = vpop.f32.mrf.mxu0
        %v1511 = vadd.f32 0.0, %v1510
        %v1512 = vpop.f32.mrf.mxu0
        %1513 = vmatprep.mubr.f32.mxu0 %v1442
        %1514 = vmatmul.mubr.f32.gmra.mxu0 %v438
        %v1515 = vpop.f32.mrf.mxu0
        %v1516 = vadd.f32 0.0, %v1515
        %v1517 = vpop.f32.mrf.mxu0
        %1518 = vdwg.mxu0
        %v1520 = vsel %vm1032, %v441, 0
        %v1523 = vsel %vm1032, %v443, 0
        %1525 = vmatprep.subr.mxu0 0.0
        %1526 = vmatpush1.msra.mxu0 %v651
        %1527 = vmatprep.subr.mxu0 0.0
        %1528 = vmatpush1.msra.mxu0 %v650
        %1529 = vmatprep.subr.mxu0 0.0
        %1530 = vmatpush1.msra.mxu0 %v649
        %1531 = vmatprep.subr.mxu0 0.0
        %1532 = vmatpush1.msra.mxu0 %v648
        %1533 = vmatprep.subr.mxu0 0.0
        %1534 = vmatpush1.msra.mxu0 %v647
        %1535 = vmatprep.subr.mxu0 0.0
        %1536 = vmatpush1.msra.mxu0 %v646
        %1537 = vmatprep.subr.mxu0 0.0
        %1538 = vmatpush1.msra.mxu0 %v645
        %1539 = vmatprep.subr.mxu0 0.0
        %1540 = vmatpush1.msra.mxu0 %v644
        %1541 = vmatprep.subr.mxu0 0.0
        %1542 = vmatpush1.msra.mxu0 %v643
        %1543 = vmatprep.subr.mxu0 0.0
        %1544 = vmatpush1.msra.mxu0 %v642
        %1545 = vmatprep.subr.mxu0 0.0
        %1546 = vmatpush1.msra.mxu0 %v641
        %1547 = vmatprep.subr.mxu0 0.0
        %1548 = vmatpush1.msra.mxu0 %v640
        %1549 = vmatprep.subr.mxu0 0.0
        %1550 = vmatpush1.msra.mxu0 %v639
        %1551 = vmatprep.subr.mxu0 0.0
        %1552 = vmatpush1.msra.mxu0 %v638
        %1553 = vmatprep.subr.mxu0 0.0
        %1554 = vmatpush1.msra.mxu0 %v637
        %1555 = vmatprep.subr.mxu0 0.0
        %1556 = vmatpush1.msra.mxu0 %v636
        %1557 = vmatprep.subr.mxu0 0.0
        %1558 = vmatpush2.msra.mxu0 0.0
        %1559 = vmatprep.subr.mxu0 0.0
        %1560 = vmatpush2.msra.mxu0 0.0
        %1561 = vmatprep.subr.mxu0 0.0
        %1562 = vmatpush2.msra.mxu0 0.0
        %1563 = vmatprep.subr.mxu0 0.0
        %1564 = vmatpush2.msra.mxu0 0.0
        %1565 = vmatprep.subr.mxu0 0.0
        %1566 = vmatpush2.msra.mxu0 0.0
        %1567 = vmatprep.subr.mxu0 0.0
        %1568 = vmatpush2.msra.mxu0 0.0
        %1569 = vmatprep.subr.mxu0 0.0
        %1570 = vmatpush2.msra.mxu0 0.0
        %1571 = vmatprep.subr.mxu0 0.0
        %1572 = vmatpush2.msra.mxu0 0.0
        %1573 = vmatprep.subr.mxu0 0.0
        %1574 = vmatpush2.msra.mxu0 0.0
        %1575 = vmatprep.subr.mxu0 0.0
        %1576 = vmatpush2.msra.mxu0 0.0
        %1577 = vmatprep.subr.mxu0 0.0
        %1578 = vmatpush2.msra.mxu0 0.0
        %1579 = vmatprep.subr.mxu0 0.0
        %1580 = vmatpush2.msra.mxu0 0.0
        %1581 = vmatprep.subr.mxu0 0.0
        %1582 = vmatpush2.msra.mxu0 0.0
        %1583 = vmatprep.subr.mxu0 0.0
        %1584 = vmatpush2.msra.mxu0 0.0
        %1585 = vmatprep.subr.mxu0 0.0
        %1586 = vmatpush2.msra.mxu0 %v653
        %1587 = vmatprep.subr.mxu0 0.0
        %1588 = vmatpush2.msra.mxu0 %v652
        %1589 = vmatprep.mubr.f32.mxu0 %v1520
        %1590 = vmatmul.mubr.f32.gmra.mxu0 %v440
        %v1591 = vpop.f32.mrf.mxu0
        %v1592 = vadd.f32 0.0, %v1591
        %v1593 = vpop.f32.mrf.mxu0
        %1594 = vmatprep.mubr.f32.mxu0 %v1523
        %1595 = vmatmul.mubr.f32.gmra.mxu0 %v442
        %v1596 = vpop.f32.mrf.mxu0
        %v1597 = vadd.f32 0.0, %v1596
        %v1598 = vpop.f32.mrf.mxu0
        %1599 = vdwg.mxu0
        %v1601 = vsel %vm1032, %v445, 0
        %v1604 = vsel %vm1032, %v447, 0
        %1606 = vmatprep.subr.mxu0 0.0
        %1607 = vmatpush1.msra.mxu0 %v669
        %1608 = vmatprep.subr.mxu0 0.0
        %1609 = vmatpush1.msra.mxu0 %v668
        %1610 = vmatprep.subr.mxu0 0.0
        %1611 = vmatpush1.msra.mxu0 %v667
        %1612 = vmatprep.subr.mxu0 0.0
        %1613 = vmatpush1.msra.mxu0 %v666
        %1614 = vmatprep.subr.mxu0 0.0
        %1615 = vmatpush1.msra.mxu0 %v665
        %1616 = vmatprep.subr.mxu0 0.0
        %1617 = vmatpush1.msra.mxu0 %v664
        %1618 = vmatprep.subr.mxu0 0.0
        %1619 = vmatpush1.msra.mxu0 %v663
        %1620 = vmatprep.subr.mxu0 0.0
        %1621 = vmatpush1.msra.mxu0 %v662
        %1622 = vmatprep.subr.mxu0 0.0
        %1623 = vmatpush1.msra.mxu0 %v661
        %1624 = vmatprep.subr.mxu0 0.0
        %1625 = vmatpush1.msra.mxu0 %v660
        %1626 = vmatprep.subr.mxu0 0.0
        %1627 = vmatpush1.msra.mxu0 %v659
        %1628 = vmatprep.subr.mxu0 0.0
        %1629 = vmatpush1.msra.mxu0 %v658
        %1630 = vmatprep.subr.mxu0 0.0
        %1631 = vmatpush1.msra.mxu0 %v657
        %1632 = vmatprep.subr.mxu0 0.0
        %1633 = vmatpush1.msra.mxu0 %v656
        %1634 = vmatprep.subr.mxu0 0.0
        %1635 = vmatpush1.msra.mxu0 %v655
        %1636 = vmatprep.subr.mxu0 0.0
        %1637 = vmatpush1.msra.mxu0 %v654
        %1638 = vmatprep.subr.mxu0 0.0
        %1639 = vmatpush2.msra.mxu0 0.0
        %1640 = vmatprep.subr.mxu0 0.0
        %1641 = vmatpush2.msra.mxu0 0.0
        %1642 = vmatprep.subr.mxu0 0.0
        %1643 = vmatpush2.msra.mxu0 0.0
        %1644 = vmatprep.subr.mxu0 0.0
        %1645 = vmatpush2.msra.mxu0 0.0
        %1646 = vmatprep.subr.mxu0 0.0
        %1647 = vmatpush2.msra.mxu0 0.0
        %1648 = vmatprep.subr.mxu0 0.0
        %1649 = vmatpush2.msra.mxu0 0.0
        %1650 = vmatprep.subr.mxu0 0.0
        %1651 = vmatpush2.msra.mxu0 0.0
        %1652 = vmatprep.subr.mxu0 0.0
        %1653 = vmatpush2.msra.mxu0 0.0
        %1654 = vmatprep.subr.mxu0 0.0
        %1655 = vmatpush2.msra.mxu0 0.0
        %1656 = vmatprep.subr.mxu0 0.0
        %1657 = vmatpush2.msra.mxu0 0.0
        %1658 = vmatprep.subr.mxu0 0.0
        %1659 = vmatpush2.msra.mxu0 0.0
        %1660 = vmatprep.subr.mxu0 0.0
        %1661 = vmatpush2.msra.mxu0 0.0
        %1662 = vmatprep.subr.mxu0 0.0
        %1663 = vmatpush2.msra.mxu0 0.0
        %1664 = vmatprep.subr.mxu0 0.0
        %1665 = vmatpush2.msra.mxu0 0.0
        %1666 = vmatprep.subr.mxu0 0.0
        %1667 = vmatpush2.msra.mxu0 %v671
        %1668 = vmatprep.subr.mxu0 0.0
        %1669 = vmatpush2.msra.mxu0 %v670
        %1670 = vmatprep.mubr.f32.mxu0 %v1601
        %1671 = vmatmul.mubr.f32.gmra.mxu0 %v444
        %v1672 = vpop.f32.mrf.mxu0
        %v1673 = vadd.f32 0.0, %v1672
        %v1674 = vpop.f32.mrf.mxu0
        %1675 = vmatprep.mubr.f32.mxu0 %v1604
        %1676 = vmatmul.mubr.f32.gmra.mxu0 %v446
        %v1677 = vpop.f32.mrf.mxu0
        %v1678 = vadd.f32 0.0, %v1677
        %v1679 = vpop.f32.mrf.mxu0
        %1680 = vdwg.mxu0
        %v1682 = vsel %vm1032, %v449, 0
        %v1685 = vsel %vm1032, %v451, 0
        %1687 = vmatprep.subr.mxu0 0.0
        %1688 = vmatpush1.msra.mxu0 %v687
        %1689 = vmatprep.subr.mxu0 0.0
        %1690 = vmatpush1.msra.mxu0 %v686
        %1691 = vmatprep.subr.mxu0 0.0
        %1692 = vmatpush1.msra.mxu0 %v685
        %1693 = vmatprep.subr.mxu0 0.0
        %1694 = vmatpush1.msra.mxu0 %v684
        %1695 = vmatprep.subr.mxu0 0.0
        %1696 = vmatpush1.msra.mxu0 %v683
        %1697 = vmatprep.subr.mxu0 0.0
        %1698 = vmatpush1.msra.mxu0 %v682
        %1699 = vmatprep.subr.mxu0 0.0
        %1700 = vmatpush1.msra.mxu0 %v681
        %1701 = vmatprep.subr.mxu0 0.0
        %1702 = vmatpush1.msra.mxu0 %v680
        %1703 = vmatprep.subr.mxu0 0.0
        %1704 = vmatpush1.msra.mxu0 %v679
        %1705 = vmatprep.subr.mxu0 0.0
        %1706 = vmatpush1.msra.mxu0 %v678
        %1707 = vmatprep.subr.mxu0 0.0
        %1708 = vmatpush1.msra.mxu0 %v677
        %1709 = vmatprep.subr.mxu0 0.0
        %1710 = vmatpush1.msra.mxu0 %v676
        %1711 = vmatprep.subr.mxu0 0.0
        %1712 = vmatpush1.msra.mxu0 %v675
        %1713 = vmatprep.subr.mxu0 0.0
        %1714 = vmatpush1.msra.mxu0 %v674
        %1715 = vmatprep.subr.mxu0 0.0
        %1716 = vmatpush1.msra.mxu0 %v673
        %1717 = vmatprep.subr.mxu0 0.0
        %1718 = vmatpush1.msra.mxu0 %v672
        %1719 = vmatprep.subr.mxu0 0.0
        %1720 = vmatpush2.msra.mxu0 0.0
        %1721 = vmatprep.subr.mxu0 0.0
        %1722 = vmatpush2.msra.mxu0 0.0
        %1723 = vmatprep.subr.mxu0 0.0
        %1724 = vmatpush2.msra.mxu0 0.0
        %1725 = vmatprep.subr.mxu0 0.0
        %1726 = vmatpush2.msra.mxu0 0.0
        %1727 = vmatprep.subr.mxu0 0.0
        %1728 = vmatpush2.msra.mxu0 0.0
        %1729 = vmatprep.subr.mxu0 0.0
        %1730 = vmatpush2.msra.mxu0 0.0
        %1731 = vmatprep.subr.mxu0 0.0
        %1732 = vmatpush2.msra.mxu0 0.0
        %1733 = vmatprep.subr.mxu0 0.0
        %1734 = vmatpush2.msra.mxu0 0.0
        %1735 = vmatprep.subr.mxu0 0.0
        %1736 = vmatpush2.msra.mxu0 0.0
        %1737 = vmatprep.subr.mxu0 0.0
        %1738 = vmatpush2.msra.mxu0 0.0
        %1739 = vmatprep.subr.mxu0 0.0
        %1740 = vmatpush2.msra.mxu0 0.0
        %1741 = vmatprep.subr.mxu0 0.0
        %1742 = vmatpush2.msra.mxu0 0.0
        %1743 = vmatprep.subr.mxu0 0.0
        %1744 = vmatpush2.msra.mxu0 0.0
        %1745 = vmatprep.subr.mxu0 0.0
        %1746 = vmatpush2.msra.mxu0 0.0
        %1747 = vmatprep.subr.mxu0 0.0
        %1748 = vmatpush2.msra.mxu0 %v689
        %1749 = vmatprep.subr.mxu0 0.0
        %1750 = vmatpush2.msra.mxu0 %v688
        %1751 = vmatprep.mubr.f32.mxu0 %v1682
        %1752 = vmatmul.mubr.f32.gmra.mxu0 %v448
        %v1753 = vpop.f32.mrf.mxu0
        %v1754 = vadd.f32 0.0, %v1753
        %v1755 = vpop.f32.mrf.mxu0
        %1756 = vmatprep.mubr.f32.mxu0 %v1685
        %1757 = vmatmul.mubr.f32.gmra.mxu0 %v450
        %v1758 = vpop.f32.mrf.mxu0
        %v1759 = vadd.f32 0.0, %v1758
        %v1760 = vpop.f32.mrf.mxu0
        %1761 = vdwg.mxu0
        %v1763 = vsel %vm1032, %v453, 0
        %v1766 = vsel %vm1032, %v455, 0
        %1768 = vmatprep.subr.mxu0 0.0
        %1769 = vmatpush1.msra.mxu0 %v705
        %1770 = vmatprep.subr.mxu0 0.0
        %1771 = vmatpush1.msra.mxu0 %v704
        %1772 = vmatprep.subr.mxu0 0.0
        %1773 = vmatpush1.msra.mxu0 %v703
        %1774 = vmatprep.subr.mxu0 0.0
        %1775 = vmatpush1.msra.mxu0 %v702
        %1776 = vmatprep.subr.mxu0 0.0
        %1777 = vmatpush1.msra.mxu0 %v701
        %1778 = vmatprep.subr.mxu0 0.0
        %1779 = vmatpush1.msra.mxu0 %v700
        %1780 = vmatprep.subr.mxu0 0.0
        %1781 = vmatpush1.msra.mxu0 %v699
        %1782 = vmatprep.subr.mxu0 0.0
        %1783 = vmatpush1.msra.mxu0 %v698
        %1784 = vmatprep.subr.mxu0 0.0
        %1785 = vmatpush1.msra.mxu0 %v697
        %1786 = vmatprep.subr.mxu0 0.0
        %1787 = vmatpush1.msra.mxu0 %v696
        %1788 = vmatprep.subr.mxu0 0.0
        %1789 = vmatpush1.msra.mxu0 %v695
        %1790 = vmatprep.subr.mxu0 0.0
        %1791 = vmatpush1.msra.mxu0 %v694
        %1792 = vmatprep.subr.mxu0 0.0
        %1793 = vmatpush1.msra.mxu0 %v693
        %1794 = vmatprep.subr.mxu0 0.0
        %1795 = vmatpush1.msra.mxu0 %v692
        %1796 = vmatprep.subr.mxu0 0.0
        %1797 = vmatpush1.msra.mxu0 %v691
        %1798 = vmatprep.subr.mxu0 0.0
        %1799 = vmatpush1.msra.mxu0 %v690
        %1800 = vmatprep.subr.mxu0 0.0
        %1801 = vmatpush2.msra.mxu0 0.0
        %1802 = vmatprep.subr.mxu0 0.0
        %1803 = vmatpush2.msra.mxu0 0.0
        %1804 = vmatprep.subr.mxu0 0.0
        %1805 = vmatpush2.msra.mxu0 0.0
        %1806 = vmatprep.subr.mxu0 0.0
        %1807 = vmatpush2.msra.mxu0 0.0
        %1808 = vmatprep.subr.mxu0 0.0
        %1809 = vmatpush2.msra.mxu0 0.0
        %1810 = vmatprep.subr.mxu0 0.0
        %1811 = vmatpush2.msra.mxu0 0.0
        %1812 = vmatprep.subr.mxu0 0.0
        %1813 = vmatpush2.msra.mxu0 0.0
        %1814 = vmatprep.subr.mxu0 0.0
        %1815 = vmatpush2.msra.mxu0 0.0
        %1816 = vmatprep.subr.mxu0 0.0
        %1817 = vmatpush2.msra.mxu0 0.0
        %1818 = vmatprep.subr.mxu0 0.0
        %1819 = vmatpush2.msra.mxu0 0.0
        %1820 = vmatprep.subr.mxu0 0.0
        %1821 = vmatpush2.msra.mxu0 0.0
        %1822 = vmatprep.subr.mxu0 0.0
        %1823 = vmatpush2.msra.mxu0 0.0
        %1824 = vmatprep.subr.mxu0 0.0
        %1825 = vmatpush2.msra.mxu0 0.0
        %1826 = vmatprep.subr.mxu0 0.0
        %1827 = vmatpush2.msra.mxu0 0.0
        %1828 = vmatprep.subr.mxu0 0.0
        %1829 = vmatpush2.msra.mxu0 %v707
        %1830 = vmatprep.subr.mxu0 0.0
        %1831 = vmatpush2.msra.mxu0 %v706
        %1832 = vmatprep.mubr.f32.mxu0 %v1763
        %1833 = vmatmul.mubr.f32.gmra.mxu0 %v452
        %v1834 = vpop.f32.mrf.mxu0
        %v1835 = vadd.f32 0.0, %v1834
        %v1836 = vpop.f32.mrf.mxu0
        %1837 = vmatprep.mubr.f32.mxu0 %v1766
        %1838 = vmatmul.mubr.f32.gmra.mxu0 %v454
        %v1839 = vpop.f32.mrf.mxu0
        %v1840 = vadd.f32 0.0, %v1839
        %v1841 = vpop.f32.mrf.mxu0
        %1842 = vdwg.mxu0
        %v1844 = vsel %vm1032, %v457, 0
        %v1847 = vsel %vm1032, %v459, 0
        %1849 = vmatprep.subr.mxu0 0.0
        %1850 = vmatpush1.msra.mxu0 %v723
        %1851 = vmatprep.subr.mxu0 0.0
        %1852 = vmatpush1.msra.mxu0 %v722
        %1853 = vmatprep.subr.mxu0 0.0
        %1854 = vmatpush1.msra.mxu0 %v721
        %1855 = vmatprep.subr.mxu0 0.0
        %1856 = vmatpush1.msra.mxu0 %v720
        %1857 = vmatprep.subr.mxu0 0.0
        %1858 = vmatpush1.msra.mxu0 %v719
        %1859 = vmatprep.subr.mxu0 0.0
        %1860 = vmatpush1.msra.mxu0 %v718
        %1861 = vmatprep.subr.mxu0 0.0
        %1862 = vmatpush1.msra.mxu0 %v717
        %1863 = vmatprep.subr.mxu0 0.0
        %1864 = vmatpush1.msra.mxu0 %v716
        %1865 = vmatprep.subr.mxu0 0.0
        %1866 = vmatpush1.msra.mxu0 %v715
        %1867 = vmatprep.subr.mxu0 0.0
        %1868 = vmatpush1.msra.mxu0 %v714
        %1869 = vmatprep.subr.mxu0 0.0
        %1870 = vmatpush1.msra.mxu0 %v713
        %1871 = vmatprep.subr.mxu0 0.0
        %1872 = vmatpush1.msra.mxu0 %v712
        %1873 = vmatprep.subr.mxu0 0.0
        %1874 = vmatpush1.msra.mxu0 %v711
        %1875 = vmatprep.subr.mxu0 0.0
        %1876 = vmatpush1.msra.mxu0 %v710
        %1877 = vmatprep.subr.mxu0 0.0
        %1878 = vmatpush1.msra.mxu0 %v709
        %1879 = vmatprep.subr.mxu0 0.0
        %1880 = vmatpush1.msra.mxu0 %v708
        %1881 = vmatprep.subr.mxu0 0.0
        %1882 = vmatpush2.msra.mxu0 0.0
        %1883 = vmatprep.subr.mxu0 0.0
        %1884 = vmatpush2.msra.mxu0 0.0
        %1885 = vmatprep.subr.mxu0 0.0
        %1886 = vmatpush2.msra.mxu0 0.0
        %1887 = vmatprep.subr.mxu0 0.0
        %1888 = vmatpush2.msra.mxu0 0.0
        %1889 = vmatprep.subr.mxu0 0.0
        %1890 = vmatpush2.msra.mxu0 0.0
        %1891 = vmatprep.subr.mxu0 0.0
        %1892 = vmatpush2.msra.mxu0 0.0
        %1893 = vmatprep.subr.mxu0 0.0
        %1894 = vmatpush2.msra.mxu0 0.0
        %1895 = vmatprep.subr.mxu0 0.0
        %1896 = vmatpush2.msra.mxu0 0.0
        %1897 = vmatprep.subr.mxu0 0.0
        %1898 = vmatpush2.msra.mxu0 0.0
        %1899 = vmatprep.subr.mxu0 0.0
        %1900 = vmatpush2.msra.mxu0 0.0
        %1901 = vmatprep.subr.mxu0 0.0
        %1902 = vmatpush2.msra.mxu0 0.0
        %1903 = vmatprep.subr.mxu0 0.0
        %1904 = vmatpush2.msra.mxu0 0.0
        %1905 = vmatprep.subr.mxu0 0.0
        %1906 = vmatpush2.msra.mxu0 0.0
        %1907 = vmatprep.subr.mxu0 0.0
        %1908 = vmatpush2.msra.mxu0 0.0
        %1909 = vmatprep.subr.mxu0 0.0
        %1910 = vmatpush2.msra.mxu0 %v725
        %1911 = vmatprep.subr.mxu0 0.0
        %1912 = vmatpush2.msra.mxu0 %v724
        %1913 = vmatprep.mubr.f32.mxu0 %v1844
        %1914 = vmatmul.mubr.f32.gmra.mxu0 %v456
        %v1915 = vpop.f32.mrf.mxu0
        %v1916 = vadd.f32 0.0, %v1915
        %v1917 = vpop.f32.mrf.mxu0
        %1918 = vmatprep.mubr.f32.mxu0 %v1847
        %1919 = vmatmul.mubr.f32.gmra.mxu0 %v458
        %v1920 = vpop.f32.mrf.mxu0
        %v1921 = vadd.f32 0.0, %v1920
        %v1922 = vpop.f32.mrf.mxu0
        %1923 = vdwg.mxu0
        %v1925 = vsel %vm1032, %v461, 0
        %v1928 = vsel %vm1032, %v463, 0
        %1930 = vmatprep.subr.mxu0 0.0
        %1931 = vmatpush1.msra.mxu0 %v741
        %1932 = vmatprep.subr.mxu0 0.0
        %1933 = vmatpush1.msra.mxu0 %v740
        %1934 = vmatprep.subr.mxu0 0.0
        %1935 = vmatpush1.msra.mxu0 %v739
        %1936 = vmatprep.subr.mxu0 0.0
        %1937 = vmatpush1.msra.mxu0 %v738
        %1938 = vmatprep.subr.mxu0 0.0
        %1939 = vmatpush1.msra.mxu0 %v737
        %1940 = vmatprep.subr.mxu0 0.0
        %1941 = vmatpush1.msra.mxu0 %v736
        %1942 = vmatprep.subr.mxu0 0.0
        %1943 = vmatpush1.msra.mxu0 %v735
        %1944 = vmatprep.subr.mxu0 0.0
        %1945 = vmatpush1.msra.mxu0 %v734
        %1946 = vmatprep.subr.mxu0 0.0
        %1947 = vmatpush1.msra.mxu0 %v733
        %1948 = vmatprep.subr.mxu0 0.0
        %1949 = vmatpush1.msra.mxu0 %v732
        %1950 = vmatprep.subr.mxu0 0.0
        %1951 = vmatpush1.msra.mxu0 %v731
        %1952 = vmatprep.subr.mxu0 0.0
        %1953 = vmatpush1.msra.mxu0 %v730
        %1954 = vmatprep.subr.mxu0 0.0
        %1955 = vmatpush1.msra.mxu0 %v729
        %1956 = vmatprep.subr.mxu0 0.0
        %1957 = vmatpush1.msra.mxu0 %v728
        %1958 = vmatprep.subr.mxu0 0.0
        %1959 = vmatpush1.msra.mxu0 %v727
        %1960 = vmatprep.subr.mxu0 0.0
        %1961 = vmatpush1.msra.mxu0 %v726
        %1962 = vmatprep.subr.mxu0 0.0
        %1963 = vmatpush2.msra.mxu0 0.0
        %1964 = vmatprep.subr.mxu0 0.0
        %1965 = vmatpush2.msra.mxu0 0.0
        %1966 = vmatprep.subr.mxu0 0.0
        %1967 = vmatpush2.msra.mxu0 0.0
        %1968 = vmatprep.subr.mxu0 0.0
        %1969 = vmatpush2.msra.mxu0 0.0
        %1970 = vmatprep.subr.mxu0 0.0
        %1971 = vmatpush2.msra.mxu0 0.0
        %1972 = vmatprep.subr.mxu0 0.0
        %1973 = vmatpush2.msra.mxu0 0.0
        %1974 = vmatprep.subr.mxu0 0.0
        %1975 = vmatpush2.msra.mxu0 0.0
        %1976 = vmatprep.subr.mxu0 0.0
        %1977 = vmatpush2.msra.mxu0 0.0
        %1978 = vmatprep.subr.mxu0 0.0
        %1979 = vmatpush2.msra.mxu0 0.0
        %1980 = vmatprep.subr.mxu0 0.0
        %1981 = vmatpush2.msra.mxu0 0.0
        %1982 = vmatprep.subr.mxu0 0.0
        %1983 = vmatpush2.msra.mxu0 0.0
        %1984 = vmatprep.subr.mxu0 0.0
        %1985 = vmatpush2.msra.mxu0 0.0
        %1986 = vmatprep.subr.mxu0 0.0
        %1987 = vmatpush2.msra.mxu0 0.0
        %1988 = vmatprep.subr.mxu0 0.0
        %1989 = vmatpush2.msra.mxu0 0.0
        %1990 = vmatprep.subr.mxu0 0.0
        %1991 = vmatpush2.msra.mxu0 %v743
        %1992 = vmatprep.subr.mxu0 0.0
        %1993 = vmatpush2.msra.mxu0 %v742
        %1994 = vmatprep.mubr.f32.mxu0 %v1925
        %1995 = vmatmul.mubr.f32.gmra.mxu0 %v460
        %v1996 = vpop.f32.mrf.mxu0
        %v1997 = vadd.f32 0.0, %v1996
        %v1998 = vpop.f32.mrf.mxu0
        %1999 = vmatprep.mubr.f32.mxu0 %v1928
        %2000 = vmatmul.mubr.f32.gmra.mxu0 %v462
        %v2001 = vpop.f32.mrf.mxu0
        %v2002 = vadd.f32 0.0, %v2001
        %v2003 = vpop.f32.mrf.mxu0
        %2004 = vdwg.mxu0
        %v2006 = vsel %vm1032, %v465, 0
        %v2009 = vsel %vm1032, %v467, 0
        %2011 = vmatprep.subr.mxu0 0.0
        %2012 = vmatpush1.msra.mxu0 %v759
        %2013 = vmatprep.subr.mxu0 0.0
        %2014 = vmatpush1.msra.mxu0 %v758
        %2015 = vmatprep.subr.mxu0 0.0
        %2016 = vmatpush1.msra.mxu0 %v757
        %2017 = vmatprep.subr.mxu0 0.0
        %2018 = vmatpush1.msra.mxu0 %v756
        %2019 = vmatprep.subr.mxu0 0.0
        %2020 = vmatpush1.msra.mxu0 %v755
        %2021 = vmatprep.subr.mxu0 0.0
        %2022 = vmatpush1.msra.mxu0 %v754
        %2023 = vmatprep.subr.mxu0 0.0
        %2024 = vmatpush1.msra.mxu0 %v753
        %2025 = vmatprep.subr.mxu0 0.0
        %2026 = vmatpush1.msra.mxu0 %v752
        %2027 = vmatprep.subr.mxu0 0.0
        %2028 = vmatpush1.msra.mxu0 %v751
        %2029 = vmatprep.subr.mxu0 0.0
        %2030 = vmatpush1.msra.mxu0 %v750
        %2031 = vmatprep.subr.mxu0 0.0
        %2032 = vmatpush1.msra.mxu0 %v749
        %2033 = vmatprep.subr.mxu0 0.0
        %2034 = vmatpush1.msra.mxu0 %v748
        %2035 = vmatprep.subr.mxu0 0.0
        %2036 = vmatpush1.msra.mxu0 %v747
        %2037 = vmatprep.subr.mxu0 0.0
        %2038 = vmatpush1.msra.mxu0 %v746
        %2039 = vmatprep.subr.mxu0 0.0
        %2040 = vmatpush1.msra.mxu0 %v745
        %2041 = vmatprep.subr.mxu0 0.0
        %2042 = vmatpush1.msra.mxu0 %v744
        %2043 = vmatprep.subr.mxu0 0.0
        %2044 = vmatpush2.msra.mxu0 0.0
        %2045 = vmatprep.subr.mxu0 0.0
        %2046 = vmatpush2.msra.mxu0 0.0
        %2047 = vmatprep.subr.mxu0 0.0
        %2048 = vmatpush2.msra.mxu0 0.0
        %2049 = vmatprep.subr.mxu0 0.0
        %2050 = vmatpush2.msra.mxu0 0.0
        %2051 = vmatprep.subr.mxu0 0.0
        %2052 = vmatpush2.msra.mxu0 0.0
        %2053 = vmatprep.subr.mxu0 0.0
        %2054 = vmatpush2.msra.mxu0 0.0
        %2055 = vmatprep.subr.mxu0 0.0
        %2056 = vmatpush2.msra.mxu0 0.0
        %2057 = vmatprep.subr.mxu0 0.0
        %2058 = vmatpush2.msra.mxu0 0.0
        %2059 = vmatprep.subr.mxu0 0.0
        %2060 = vmatpush2.msra.mxu0 0.0
        %2061 = vmatprep.subr.mxu0 0.0
        %2062 = vmatpush2.msra.mxu0 0.0
        %2063 = vmatprep.subr.mxu0 0.0
        %2064 = vmatpush2.msra.mxu0 0.0
        %2065 = vmatprep.subr.mxu0 0.0
        %2066 = vmatpush2.msra.mxu0 0.0
        %2067 = vmatprep.subr.mxu0 0.0
        %2068 = vmatpush2.msra.mxu0 0.0
        %2069 = vmatprep.subr.mxu0 0.0
        %2070 = vmatpush2.msra.mxu0 0.0
        %2071 = vmatprep.subr.mxu0 0.0
        %2072 = vmatpush2.msra.mxu0 %v761
        %2073 = vmatprep.subr.mxu0 0.0
        %2074 = vmatpush2.msra.mxu0 %v760
        %2075 = vmatprep.mubr.f32.mxu0 %v2006
        %2076 = vmatmul.mubr.f32.gmra.mxu0 %v464
        %v2077 = vpop.f32.mrf.mxu0
        %v2078 = vadd.f32 0.0, %v2077
        %v2079 = vpop.f32.mrf.mxu0
        %2080 = vmatprep.mubr.f32.mxu0 %v2009
        %2081 = vmatmul.mubr.f32.gmra.mxu0 %v466
        %v2082 = vpop.f32.mrf.mxu0
        %v2083 = vadd.f32 0.0, %v2082
        %v2084 = vpop.f32.mrf.mxu0
        %2085 = vdwg.mxu0
        %v2087 = vsel %vm1032, %v469, 0
        %v2090 = vsel %vm1032, %v471, 0
        %2092 = vmatprep.subr.mxu0 0.0
        %2093 = vmatpush1.msra.mxu0 %v777
        %2094 = vmatprep.subr.mxu0 0.0
        %2095 = vmatpush1.msra.mxu0 %v776
        %2096 = vmatprep.subr.mxu0 0.0
        %2097 = vmatpush1.msra.mxu0 %v775
        %2098 = vmatprep.subr.mxu0 0.0
        %2099 = vmatpush1.msra.mxu0 %v774
        %2100 = vmatprep.subr.mxu0 0.0
        %2101 = vmatpush1.msra.mxu0 %v773
        %2102 = vmatprep.subr.mxu0 0.0
        %2103 = vmatpush1.msra.mxu0 %v772
        %2104 = vmatprep.subr.mxu0 0.0
        %2105 = vmatpush1.msra.mxu0 %v771
        %2106 = vmatprep.subr.mxu0 0.0
        %2107 = vmatpush1.msra.mxu0 %v770
        %2108 = vmatprep.subr.mxu0 0.0
        %2109 = vmatpush1.msra.mxu0 %v769
        %2110 = vmatprep.subr.mxu0 0.0
        %2111 = vmatpush1.msra.mxu0 %v768
        %2112 = vmatprep.subr.mxu0 0.0
        %2113 = vmatpush1.msra.mxu0 %v767
        %2114 = vmatprep.subr.mxu0 0.0
        %2115 = vmatpush1.msra.mxu0 %v766
        %2116 = vmatprep.subr.mxu0 0.0
        %2117 = vmatpush1.msra.mxu0 %v765
        %2118 = vmatprep.subr.mxu0 0.0
        %2119 = vmatpush1.msra.mxu0 %v764
        %2120 = vmatprep.subr.mxu0 0.0
        %2121 = vmatpush1.msra.mxu0 %v763
        %2122 = vmatprep.subr.mxu0 0.0
        %2123 = vmatpush1.msra.mxu0 %v762
        %2124 = vmatprep.subr.mxu0 0.0
        %2125 = vmatpush2.msra.mxu0 0.0
        %2126 = vmatprep.subr.mxu0 0.0
        %2127 = vmatpush2.msra.mxu0 0.0
        %2128 = vmatprep.subr.mxu0 0.0
        %2129 = vmatpush2.msra.mxu0 0.0
        %2130 = vmatprep.subr.mxu0 0.0
        %2131 = vmatpush2.msra.mxu0 0.0
        %2132 = vmatprep.subr.mxu0 0.0
        %2133 = vmatpush2.msra.mxu0 0.0
        %2134 = vmatprep.subr.mxu0 0.0
        %2135 = vmatpush2.msra.mxu0 0.0
        %2136 = vmatprep.subr.mxu0 0.0
        %2137 = vmatpush2.msra.mxu0 0.0
        %2138 = vmatprep.subr.mxu0 0.0
        %2139 = vmatpush2.msra.mxu0 0.0
        %2140 = vmatprep.subr.mxu0 0.0
        %2141 = vmatpush2.msra.mxu0 0.0
        %2142 = vmatprep.subr.mxu0 0.0
        %2143 = vmatpush2.msra.mxu0 0.0
        %2144 = vmatprep.subr.mxu0 0.0
        %2145 = vmatpush2.msra.mxu0 0.0
        %2146 = vmatprep.subr.mxu0 0.0
        %2147 = vmatpush2.msra.mxu0 0.0
        %2148 = vmatprep.subr.mxu0 0.0
        %2149 = vmatpush2.msra.mxu0 0.0
        %2150 = vmatprep.subr.mxu0 0.0
        %2151 = vmatpush2.msra.mxu0 0.0
        %2152 = vmatprep.subr.mxu0 0.0
        %2153 = vmatpush2.msra.mxu0 %v779
        %2154 = vmatprep.subr.mxu0 0.0
        %2155 = vmatpush2.msra.mxu0 %v778
        %2156 = vmatprep.mubr.f32.mxu0 %v2087
        %2157 = vmatmul.mubr.f32.gmra.mxu0 %v468
        %v2158 = vpop.f32.mrf.mxu0
        %v2159 = vadd.f32 0.0, %v2158
        %v2160 = vpop.f32.mrf.mxu0
        %2161 = vmatprep.mubr.f32.mxu0 %v2090
        %2162 = vmatmul.mubr.f32.gmra.mxu0 %v470
        %v2163 = vpop.f32.mrf.mxu0
        %v2164 = vadd.f32 0.0, %v2163
        %v2165 = vpop.f32.mrf.mxu0
        %2166 = vdwg.mxu0
        %v2168 = vsel %vm1032, %v473, 0
        %v2171 = vsel %vm1032, %v475, 0
        %2173 = vmatprep.subr.mxu0 0.0
        %2174 = vmatpush1.msra.mxu0 %v795
        %2175 = vmatprep.subr.mxu0 0.0
        %2176 = vmatpush1.msra.mxu0 %v794
        %2177 = vmatprep.subr.mxu0 0.0
        %2178 = vmatpush1.msra.mxu0 %v793
        %2179 = vmatprep.subr.mxu0 0.0
        %2180 = vmatpush1.msra.mxu0 %v792
        %2181 = vmatprep.subr.mxu0 0.0
        %2182 = vmatpush1.msra.mxu0 %v791
        %2183 = vmatprep.subr.mxu0 0.0
        %2184 = vmatpush1.msra.mxu0 %v790
        %2185 = vmatprep.subr.mxu0 0.0
        %2186 = vmatpush1.msra.mxu0 %v789
        %2187 = vmatprep.subr.mxu0 0.0
        %2188 = vmatpush1.msra.mxu0 %v788
        %2189 = vmatprep.subr.mxu0 0.0
        %2190 = vmatpush1.msra.mxu0 %v787
        %2191 = vmatprep.subr.mxu0 0.0
        %2192 = vmatpush1.msra.mxu0 %v786
        %2193 = vmatprep.subr.mxu0 0.0
        %2194 = vmatpush1.msra.mxu0 %v785
        %2195 = vmatprep.subr.mxu0 0.0
        %2196 = vmatpush1.msra.mxu0 %v784
        %2197 = vmatprep.subr.mxu0 0.0
        %2198 = vmatpush1.msra.mxu0 %v783
        %2199 = vmatprep.subr.mxu0 0.0
        %2200 = vmatpush1.msra.mxu0 %v782
        %2201 = vmatprep.subr.mxu0 0.0
        %2202 = vmatpush1.msra.mxu0 %v781
        %2203 = vmatprep.subr.mxu0 0.0
        %2204 = vmatpush1.msra.mxu0 %v780
        %2205 = vmatprep.subr.mxu0 0.0
        %2206 = vmatpush2.msra.mxu0 0.0
        %2207 = vmatprep.subr.mxu0 0.0
        %2208 = vmatpush2.msra.mxu0 0.0
        %2209 = vmatprep.subr.mxu0 0.0
        %2210 = vmatpush2.msra.mxu0 0.0
        %2211 = vmatprep.subr.mxu0 0.0
        %2212 = vmatpush2.msra.mxu0 0.0
        %2213 = vmatprep.subr.mxu0 0.0
        %2214 = vmatpush2.msra.mxu0 0.0
        %2215 = vmatprep.subr.mxu0 0.0
        %2216 = vmatpush2.msra.mxu0 0.0
        %2217 = vmatprep.subr.mxu0 0.0
        %2218 = vmatpush2.msra.mxu0 0.0
        %2219 = vmatprep.subr.mxu0 0.0
        %2220 = vmatpush2.msra.mxu0 0.0
        %2221 = vmatprep.subr.mxu0 0.0
        %2222 = vmatpush2.msra.mxu0 0.0
        %2223 = vmatprep.subr.mxu0 0.0
        %2224 = vmatpush2.msra.mxu0 0.0
        %2225 = vmatprep.subr.mxu0 0.0
        %2226 = vmatpush2.msra.mxu0 0.0
        %2227 = vmatprep.subr.mxu0 0.0
        %2228 = vmatpush2.msra.mxu0 0.0
        %2229 = vmatprep.subr.mxu0 0.0
        %2230 = vmatpush2.msra.mxu0 0.0
        %2231 = vmatprep.subr.mxu0 0.0
        %2232 = vmatpush2.msra.mxu0 0.0
        %2233 = vmatprep.subr.mxu0 0.0
        %2234 = vmatpush2.msra.mxu0 %v797
        %2235 = vmatprep.subr.mxu0 0.0
        %2236 = vmatpush2.msra.mxu0 %v796
        %2237 = vmatprep.mubr.f32.mxu0 %v2168
        %2238 = vmatmul.mubr.f32.gmra.mxu0 %v472
        %v2239 = vpop.f32.mrf.mxu0
        %v2240 = vadd.f32 0.0, %v2239
        %v2241 = vpop.f32.mrf.mxu0
        %2242 = vmatprep.mubr.f32.mxu0 %v2171
        %2243 = vmatmul.mubr.f32.gmra.mxu0 %v474
        %v2244 = vpop.f32.mrf.mxu0
        %v2245 = vadd.f32 0.0, %v2244
        %v2246 = vpop.f32.mrf.mxu0
        %2247 = vdwg.mxu0
        %v2249 = vsel %vm1032, %v477, 0
        %v2252 = vsel %vm1032, %v479, 0
        %2254 = vmatprep.subr.mxu0 0.0
        %2255 = vmatpush1.msra.mxu0 %v813
        %2256 = vmatprep.subr.mxu0 0.0
        %2257 = vmatpush1.msra.mxu0 %v812
        %2258 = vmatprep.subr.mxu0 0.0
        %2259 = vmatpush1.msra.mxu0 %v811
        %2260 = vmatprep.subr.mxu0 0.0
        %2261 = vmatpush1.msra.mxu0 %v810
        %2262 = vmatprep.subr.mxu0 0.0
        %2263 = vmatpush1.msra.mxu0 %v809
        %2264 = vmatprep.subr.mxu0 0.0
        %2265 = vmatpush1.msra.mxu0 %v808
        %2266 = vmatprep.subr.mxu0 0.0
        %2267 = vmatpush1.msra.mxu0 %v807
        %2268 = vmatprep.subr.mxu0 0.0
        %2269 = vmatpush1.msra.mxu0 %v806
        %2270 = vmatprep.subr.mxu0 0.0
        %2271 = vmatpush1.msra.mxu0 %v805
        %2272 = vmatprep.subr.mxu0 0.0
        %2273 = vmatpush1.msra.mxu0 %v804
        %2274 = vmatprep.subr.mxu0 0.0
        %2275 = vmatpush1.msra.mxu0 %v803
        %2276 = vmatprep.subr.mxu0 0.0
        %2277 = vmatpush1.msra.mxu0 %v802
        %2278 = vmatprep.subr.mxu0 0.0
        %2279 = vmatpush1.msra.mxu0 %v801
        %2280 = vmatprep.subr.mxu0 0.0
        %2281 = vmatpush1.msra.mxu0 %v800
        %2282 = vmatprep.subr.mxu0 0.0
        %2283 = vmatpush1.msra.mxu0 %v799
        %2284 = vmatprep.subr.mxu0 0.0
        %2285 = vmatpush1.msra.mxu0 %v798
        %2286 = vmatprep.subr.mxu0 0.0
        %2287 = vmatpush2.msra.mxu0 0.0
        %2288 = vmatprep.subr.mxu0 0.0
        %2289 = vmatpush2.msra.mxu0 0.0
        %2290 = vmatprep.subr.mxu0 0.0
        %2291 = vmatpush2.msra.mxu0 0.0
        %2292 = vmatprep.subr.mxu0 0.0
        %2293 = vmatpush2.msra.mxu0 0.0
        %2294 = vmatprep.subr.mxu0 0.0
        %2295 = vmatpush2.msra.mxu0 0.0
        %2296 = vmatprep.subr.mxu0 0.0
        %2297 = vmatpush2.msra.mxu0 0.0
        %2298 = vmatprep.subr.mxu0 0.0
        %2299 = vmatpush2.msra.mxu0 0.0
        %2300 = vmatprep.subr.mxu0 0.0
        %2301 = vmatpush2.msra.mxu0 0.0
        %2302 = vmatprep.subr.mxu0 0.0
        %2303 = vmatpush2.msra.mxu0 0.0
        %2304 = vmatprep.subr.mxu0 0.0
        %2305 = vmatpush2.msra.mxu0 0.0
        %2306 = vmatprep.subr.mxu0 0.0
        %2307 = vmatpush2.msra.mxu0 0.0
        %2308 = vmatprep.subr.mxu0 0.0
        %2309 = vmatpush2.msra.mxu0 0.0
        %2310 = vmatprep.subr.mxu0 0.0
        %2311 = vmatpush2.msra.mxu0 0.0
        %2312 = vmatprep.subr.mxu0 0.0
        %2313 = vmatpush2.msra.mxu0 0.0
        %2314 = vmatprep.subr.mxu0 0.0
        %2315 = vmatpush2.msra.mxu0 %v815
        %2316 = vmatprep.subr.mxu0 0.0
        %2317 = vmatpush2.msra.mxu0 %v814
        %2318 = vmatprep.mubr.f32.mxu0 %v2249
        %2319 = vmatmul.mubr.f32.gmra.mxu0 %v476
        %v2320 = vpop.f32.mrf.mxu0
        %v2321 = vadd.f32 0.0, %v2320
        %v2322 = vpop.f32.mrf.mxu0
        %2323 = vmatprep.mubr.f32.mxu0 %v2252
        %2324 = vmatmul.mubr.f32.gmra.mxu0 %v478
        %v2325 = vpop.f32.mrf.mxu0
        %v2326 = vadd.f32 0.0, %v2325
        %v2327 = vpop.f32.mrf.mxu0
        %2328 = vdwg.mxu0
        %v2330 = vsel %vm1032, %v481, 0
        %v2333 = vsel %vm1032, %v483, 0
        %2335 = vmatprep.subr.mxu0 0.0
        %2336 = vmatpush1.msra.mxu0 %v831
        %2337 = vmatprep.subr.mxu0 0.0
        %2338 = vmatpush1.msra.mxu0 %v830
        %2339 = vmatprep.subr.mxu0 0.0
        %2340 = vmatpush1.msra.mxu0 %v829
        %2341 = vmatprep.subr.mxu0 0.0
        %2342 = vmatpush1.msra.mxu0 %v828
        %2343 = vmatprep.subr.mxu0 0.0
        %2344 = vmatpush1.msra.mxu0 %v827
        %2345 = vmatprep.subr.mxu0 0.0
        %2346 = vmatpush1.msra.mxu0 %v826
        %2347 = vmatprep.subr.mxu0 0.0
        %2348 = vmatpush1.msra.mxu0 %v825
        %2349 = vmatprep.subr.mxu0 0.0
        %2350 = vmatpush1.msra.mxu0 %v824
        %2351 = vmatprep.subr.mxu0 0.0
        %2352 = vmatpush1.msra.mxu0 %v823
        %2353 = vmatprep.subr.mxu0 0.0
        %2354 = vmatpush1.msra.mxu0 %v822
        %2355 = vmatprep.subr.mxu0 0.0
        %2356 = vmatpush1.msra.mxu0 %v821
        %2357 = vmatprep.subr.mxu0 0.0
        %2358 = vmatpush1.msra.mxu0 %v820
        %2359 = vmatprep.subr.mxu0 0.0
        %2360 = vmatpush1.msra.mxu0 %v819
        %2361 = vmatprep.subr.mxu0 0.0
        %2362 = vmatpush1.msra.mxu0 %v818
        %2363 = vmatprep.subr.mxu0 0.0
        %2364 = vmatpush1.msra.mxu0 %v817
        %2365 = vmatprep.subr.mxu0 0.0
        %2366 = vmatpush1.msra.mxu0 %v816
        %2367 = vmatprep.subr.mxu0 0.0
        %2368 = vmatpush2.msra.mxu0 0.0
        %2369 = vmatprep.subr.mxu0 0.0
        %2370 = vmatpush2.msra.mxu0 0.0
        %2371 = vmatprep.subr.mxu0 0.0
        %2372 = vmatpush2.msra.mxu0 0.0
        %2373 = vmatprep.subr.mxu0 0.0
        %2374 = vmatpush2.msra.mxu0 0.0
        %2375 = vmatprep.subr.mxu0 0.0
        %2376 = vmatpush2.msra.mxu0 0.0
        %2377 = vmatprep.subr.mxu0 0.0
        %2378 = vmatpush2.msra.mxu0 0.0
        %2379 = vmatprep.subr.mxu0 0.0
        %2380 = vmatpush2.msra.mxu0 0.0
        %2381 = vmatprep.subr.mxu0 0.0
        %2382 = vmatpush2.msra.mxu0 0.0
        %2383 = vmatprep.subr.mxu0 0.0
        %2384 = vmatpush2.msra.mxu0 0.0
        %2385 = vmatprep.subr.mxu0 0.0
        %2386 = vmatpush2.msra.mxu0 0.0
        %2387 = vmatprep.subr.mxu0 0.0
        %2388 = vmatpush2.msra.mxu0 0.0
        %2389 = vmatprep.subr.mxu0 0.0
        %2390 = vmatpush2.msra.mxu0 0.0
        %2391 = vmatprep.subr.mxu0 0.0
        %2392 = vmatpush2.msra.mxu0 0.0
        %2393 = vmatprep.subr.mxu0 0.0
        %2394 = vmatpush2.msra.mxu0 0.0
        %2395 = vmatprep.subr.mxu0 0.0
        %2396 = vmatpush2.msra.mxu0 %v833
        %2397 = vmatprep.subr.mxu0 0.0
        %2398 = vmatpush2.msra.mxu0 %v832
        %2399 = vmatprep.mubr.f32.mxu0 %v2330
        %2400 = vmatmul.mubr.f32.gmra.mxu0 %v480
        %v2401 = vpop.f32.mrf.mxu0
        %v2402 = vadd.f32 0.0, %v2401
        %v2403 = vpop.f32.mrf.mxu0
        %2404 = vmatprep.mubr.f32.mxu0 %v2333
        %2405 = vmatmul.mubr.f32.gmra.mxu0 %v482
        %v2406 = vpop.f32.mrf.mxu0
        %v2407 = vadd.f32 0.0, %v2406
        %v2408 = vpop.f32.mrf.mxu0
        %2409 = vdwg.mxu0
        %v2411 = vsel %vm1032, %v485, 0
        %v2414 = vsel %vm1032, %v487, 0
        %2416 = vmatprep.subr.mxu0 0.0
        %2417 = vmatpush1.msra.mxu0 %v849
        %2418 = vmatprep.subr.mxu0 0.0
        %2419 = vmatpush1.msra.mxu0 %v848
        %2420 = vmatprep.subr.mxu0 0.0
        %2421 = vmatpush1.msra.mxu0 %v847
        %2422 = vmatprep.subr.mxu0 0.0
        %2423 = vmatpush1.msra.mxu0 %v846
        %2424 = vmatprep.subr.mxu0 0.0
        %2425 = vmatpush1.msra.mxu0 %v845
        %2426 = vmatprep.subr.mxu0 0.0
        %2427 = vmatpush1.msra.mxu0 %v844
        %2428 = vmatprep.subr.mxu0 0.0
        %2429 = vmatpush1.msra.mxu0 %v843
        %2430 = vmatprep.subr.mxu0 0.0
        %2431 = vmatpush1.msra.mxu0 %v842
        %2432 = vmatprep.subr.mxu0 0.0
        %2433 = vmatpush1.msra.mxu0 %v841
        %2434 = vmatprep.subr.mxu0 0.0
        %2435 = vmatpush1.msra.mxu0 %v840
        %2436 = vmatprep.subr.mxu0 0.0
        %2437 = vmatpush1.msra.mxu0 %v839
        %2438 = vmatprep.subr.mxu0 0.0
        %2439 = vmatpush1.msra.mxu0 %v838
        %2440 = vmatprep.subr.mxu0 0.0
        %2441 = vmatpush1.msra.mxu0 %v837
        %2442 = vmatprep.subr.mxu0 0.0
        %2443 = vmatpush1.msra.mxu0 %v836
        %2444 = vmatprep.subr.mxu0 0.0
        %2445 = vmatpush1.msra.mxu0 %v835
        %2446 = vmatprep.subr.mxu0 0.0
        %2447 = vmatpush1.msra.mxu0 %v834
        %2448 = vmatprep.subr.mxu0 0.0
        %2449 = vmatpush2.msra.mxu0 0.0
        %2450 = vmatprep.subr.mxu0 0.0
        %2451 = vmatpush2.msra.mxu0 0.0
        %2452 = vmatprep.subr.mxu0 0.0
        %2453 = vmatpush2.msra.mxu0 0.0
        %2454 = vmatprep.subr.mxu0 0.0
        %2455 = vmatpush2.msra.mxu0 0.0
        %2456 = vmatprep.subr.mxu0 0.0
        %2457 = vmatpush2.msra.mxu0 0.0
        %2458 = vmatprep.subr.mxu0 0.0
        %2459 = vmatpush2.msra.mxu0 0.0
        %2460 = vmatprep.subr.mxu0 0.0
        %2461 = vmatpush2.msra.mxu0 0.0
        %2462 = vmatprep.subr.mxu0 0.0
        %2463 = vmatpush2.msra.mxu0 0.0
        %2464 = vmatprep.subr.mxu0 0.0
        %2465 = vmatpush2.msra.mxu0 0.0
        %2466 = vmatprep.subr.mxu0 0.0
        %2467 = vmatpush2.msra.mxu0 0.0
        %2468 = vmatprep.subr.mxu0 0.0
        %2469 = vmatpush2.msra.mxu0 0.0
        %2470 = vmatprep.subr.mxu0 0.0
        %2471 = vmatpush2.msra.mxu0 0.0
        %2472 = vmatprep.subr.mxu0 0.0
        %2473 = vmatpush2.msra.mxu0 0.0
        %2474 = vmatprep.subr.mxu0 0.0
        %2475 = vmatpush2.msra.mxu0 0.0
        %2476 = vmatprep.subr.mxu0 0.0
        %2477 = vmatpush2.msra.mxu0 %v851
        %2478 = vmatprep.subr.mxu0 0.0
        %2479 = vmatpush2.msra.mxu0 %v850
        %2480 = vmatprep.mubr.f32.mxu0 %v2411
        %2481 = vmatmul.mubr.f32.gmra.mxu0 %v484
        %v2482 = vpop.f32.mrf.mxu0
        %v2483 = vadd.f32 0.0, %v2482
        %v2484 = vpop.f32.mrf.mxu0
        %2485 = vmatprep.mubr.f32.mxu0 %v2414
        %2486 = vmatmul.mubr.f32.gmra.mxu0 %v486
        %v2487 = vpop.f32.mrf.mxu0
        %v2488 = vadd.f32 0.0, %v2487
        %v2489 = vpop.f32.mrf.mxu0
        %2490 = vdwg.mxu0
        %v2492 = vsel %vm1032, %v489, 0
        %v2495 = vsel %vm1032, %v491, 0
        %2497 = vmatprep.subr.mxu0 0.0
        %2498 = vmatpush1.msra.mxu0 %v867
        %2499 = vmatprep.subr.mxu0 0.0
        %2500 = vmatpush1.msra.mxu0 %v866
        %2501 = vmatprep.subr.mxu0 0.0
        %2502 = vmatpush1.msra.mxu0 %v865
        %2503 = vmatprep.subr.mxu0 0.0
        %2504 = vmatpush1.msra.mxu0 %v864
        %2505 = vmatprep.subr.mxu0 0.0
        %2506 = vmatpush1.msra.mxu0 %v863
        %2507 = vmatprep.subr.mxu0 0.0
        %2508 = vmatpush1.msra.mxu0 %v862
        %2509 = vmatprep.subr.mxu0 0.0
        %2510 = vmatpush1.msra.mxu0 %v861
        %2511 = vmatprep.subr.mxu0 0.0
        %2512 = vmatpush1.msra.mxu0 %v860
        %2513 = vmatprep.subr.mxu0 0.0
        %2514 = vmatpush1.msra.mxu0 %v859
        %2515 = vmatprep.subr.mxu0 0.0
        %2516 = vmatpush1.msra.mxu0 %v858
        %2517 = vmatprep.subr.mxu0 0.0
        %2518 = vmatpush1.msra.mxu0 %v857
        %2519 = vmatprep.subr.mxu0 0.0
        %2520 = vmatpush1.msra.mxu0 %v856
        %2521 = vmatprep.subr.mxu0 0.0
        %2522 = vmatpush1.msra.mxu0 %v855
        %2523 = vmatprep.subr.mxu0 0.0
        %2524 = vmatpush1.msra.mxu0 %v854
        %2525 = vmatprep.subr.mxu0 0.0
        %2526 = vmatpush1.msra.mxu0 %v853
        %2527 = vmatprep.subr.mxu0 0.0
        %2528 = vmatpush1.msra.mxu0 %v852
        %2529 = vmatprep.subr.mxu0 0.0
        %2530 = vmatpush2.msra.mxu0 0.0
        %2531 = vmatprep.subr.mxu0 0.0
        %2532 = vmatpush2.msra.mxu0 0.0
        %2533 = vmatprep.subr.mxu0 0.0
        %2534 = vmatpush2.msra.mxu0 0.0
        %2535 = vmatprep.subr.mxu0 0.0
        %2536 = vmatpush2.msra.mxu0 0.0
        %2537 = vmatprep.subr.mxu0 0.0
        %2538 = vmatpush2.msra.mxu0 0.0
        %2539 = vmatprep.subr.mxu0 0.0
        %2540 = vmatpush2.msra.mxu0 0.0
        %2541 = vmatprep.subr.mxu0 0.0
        %2542 = vmatpush2.msra.mxu0 0.0
        %2543 = vmatprep.subr.mxu0 0.0
        %2544 = vmatpush2.msra.mxu0 0.0
        %2545 = vmatprep.subr.mxu0 0.0
        %2546 = vmatpush2.msra.mxu0 0.0
        %2547 = vmatprep.subr.mxu0 0.0
        %2548 = vmatpush2.msra.mxu0 0.0
        %2549 = vmatprep.subr.mxu0 0.0
        %2550 = vmatpush2.msra.mxu0 0.0
        %2551 = vmatprep.subr.mxu0 0.0
        %2552 = vmatpush2.msra.mxu0 0.0
        %2553 = vmatprep.subr.mxu0 0.0
        %2554 = vmatpush2.msra.mxu0 0.0
        %2555 = vmatprep.subr.mxu0 0.0
        %2556 = vmatpush2.msra.mxu0 0.0
        %2557 = vmatprep.subr.mxu0 0.0
        %2558 = vmatpush2.msra.mxu0 %v869
        %2559 = vmatprep.subr.mxu0 0.0
        %2560 = vmatpush2.msra.mxu0 %v868
        %2561 = vmatprep.mubr.f32.mxu0 %v2492
        %2562 = vmatmul.mubr.f32.gmra.mxu0 %v488
        %v2563 = vpop.f32.mrf.mxu0
        %v2564 = vadd.f32 0.0, %v2563
        %v2565 = vpop.f32.mrf.mxu0
        %2566 = vmatprep.mubr.f32.mxu0 %v2495
        %2567 = vmatmul.mubr.f32.gmra.mxu0 %v490
        %v2568 = vpop.f32.mrf.mxu0
        %v2569 = vadd.f32 0.0, %v2568
        %v2570 = vpop.f32.mrf.mxu0
        %2571 = vdwg.mxu0
        %v2573 = vsel %vm1032, %v493, 0
        %v2576 = vsel %vm1032, %v495, 0
        %2578 = vmatprep.subr.mxu0 0.0
        %2579 = vmatpush1.msra.mxu0 %v885
        %2580 = vmatprep.subr.mxu0 0.0
        %2581 = vmatpush1.msra.mxu0 %v884
        %2582 = vmatprep.subr.mxu0 0.0
        %2583 = vmatpush1.msra.mxu0 %v883
        %2584 = vmatprep.subr.mxu0 0.0
        %2585 = vmatpush1.msra.mxu0 %v882
        %2586 = vmatprep.subr.mxu0 0.0
        %2587 = vmatpush1.msra.mxu0 %v881
        %2588 = vmatprep.subr.mxu0 0.0
        %2589 = vmatpush1.msra.mxu0 %v880
        %2590 = vmatprep.subr.mxu0 0.0
        %2591 = vmatpush1.msra.mxu0 %v879
        %2592 = vmatprep.subr.mxu0 0.0
        %2593 = vmatpush1.msra.mxu0 %v878
        %2594 = vmatprep.subr.mxu0 0.0
        %2595 = vmatpush1.msra.mxu0 %v877
        %2596 = vmatprep.subr.mxu0 0.0
        %2597 = vmatpush1.msra.mxu0 %v876
        %2598 = vmatprep.subr.mxu0 0.0
        %2599 = vmatpush1.msra.mxu0 %v875
        %2600 = vmatprep.subr.mxu0 0.0
        %2601 = vmatpush1.msra.mxu0 %v874
        %2602 = vmatprep.subr.mxu0 0.0
        %2603 = vmatpush1.msra.mxu0 %v873
        %2604 = vmatprep.subr.mxu0 0.0
        %2605 = vmatpush1.msra.mxu0 %v872
        %2606 = vmatprep.subr.mxu0 0.0
        %2607 = vmatpush1.msra.mxu0 %v871
        %2608 = vmatprep.subr.mxu0 0.0
        %2609 = vmatpush1.msra.mxu0 %v870
        %2610 = vmatprep.subr.mxu0 0.0
        %2611 = vmatpush2.msra.mxu0 0.0
        %2612 = vmatprep.subr.mxu0 0.0
        %2613 = vmatpush2.msra.mxu0 0.0
        %2614 = vmatprep.subr.mxu0 0.0
        %2615 = vmatpush2.msra.mxu0 0.0
        %2616 = vmatprep.subr.mxu0 0.0
        %2617 = vmatpush2.msra.mxu0 0.0
        %2618 = vmatprep.subr.mxu0 0.0
        %2619 = vmatpush2.msra.mxu0 0.0
        %2620 = vmatprep.subr.mxu0 0.0
        %2621 = vmatpush2.msra.mxu0 0.0
        %2622 = vmatprep.subr.mxu0 0.0
        %2623 = vmatpush2.msra.mxu0 0.0
        %2624 = vmatprep.subr.mxu0 0.0
        %2625 = vmatpush2.msra.mxu0 0.0
        %2626 = vmatprep.subr.mxu0 0.0
        %2627 = vmatpush2.msra.mxu0 0.0
        %2628 = vmatprep.subr.mxu0 0.0
        %2629 = vmatpush2.msra.mxu0 0.0
        %2630 = vmatprep.subr.mxu0 0.0
        %2631 = vmatpush2.msra.mxu0 0.0
        %2632 = vmatprep.subr.mxu0 0.0
        %2633 = vmatpush2.msra.mxu0 0.0
        %2634 = vmatprep.subr.mxu0 0.0
        %2635 = vmatpush2.msra.mxu0 0.0
        %2636 = vmatprep.subr.mxu0 0.0
        %2637 = vmatpush2.msra.mxu0 0.0
        %2638 = vmatprep.subr.mxu0 0.0
        %2639 = vmatpush2.msra.mxu0 %v887
        %2640 = vmatprep.subr.mxu0 0.0
        %2641 = vmatpush2.msra.mxu0 %v886
        %2642 = vmatprep.mubr.f32.mxu0 %v2573
        %2643 = vmatmul.mubr.f32.gmra.mxu0 %v492
        %v2644 = vpop.f32.mrf.mxu0
        %v2645 = vadd.f32 0.0, %v2644
        %v2646 = vpop.f32.mrf.mxu0
        %2647 = vmatprep.mubr.f32.mxu0 %v2576
        %2648 = vmatmul.mubr.f32.gmra.mxu0 %v494
        %v2649 = vpop.f32.mrf.mxu0
        %v2650 = vadd.f32 0.0, %v2649
        %v2651 = vpop.f32.mrf.mxu0
        %2652 = vdwg.mxu0
        %v2654 = vsel %vm1032, %v497, 0
        %v2657 = vsel %vm1032, %v499, 0
        %2659 = vmatprep.subr.mxu0 0.0
        %2660 = vmatpush1.msra.mxu0 %v903
        %2661 = vmatprep.subr.mxu0 0.0
        %2662 = vmatpush1.msra.mxu0 %v902
        %2663 = vmatprep.subr.mxu0 0.0
        %2664 = vmatpush1.msra.mxu0 %v901
        %2665 = vmatprep.subr.mxu0 0.0
        %2666 = vmatpush1.msra.mxu0 %v900
        %2667 = vmatprep.subr.mxu0 0.0
        %2668 = vmatpush1.msra.mxu0 %v899
        %2669 = vmatprep.subr.mxu0 0.0
        %2670 = vmatpush1.msra.mxu0 %v898
        %2671 = vmatprep.subr.mxu0 0.0
        %2672 = vmatpush1.msra.mxu0 %v897
        %2673 = vmatprep.subr.mxu0 0.0
        %2674 = vmatpush1.msra.mxu0 %v896
        %2675 = vmatprep.subr.mxu0 0.0
        %2676 = vmatpush1.msra.mxu0 %v895
        %2677 = vmatprep.subr.mxu0 0.0
        %2678 = vmatpush1.msra.mxu0 %v894
        %2679 = vmatprep.subr.mxu0 0.0
        %2680 = vmatpush1.msra.mxu0 %v893
        %2681 = vmatprep.subr.mxu0 0.0
        %2682 = vmatpush1.msra.mxu0 %v892
        %2683 = vmatprep.subr.mxu0 0.0
        %2684 = vmatpush1.msra.mxu0 %v891
        %2685 = vmatprep.subr.mxu0 0.0
        %2686 = vmatpush1.msra.mxu0 %v890
        %2687 = vmatprep.subr.mxu0 0.0
        %2688 = vmatpush1.msra.mxu0 %v889
        %2689 = vmatprep.subr.mxu0 0.0
        %2690 = vmatpush1.msra.mxu0 %v888
        %2691 = vmatprep.subr.mxu0 0.0
        %2692 = vmatpush2.msra.mxu0 0.0
        %2693 = vmatprep.subr.mxu0 0.0
        %2694 = vmatpush2.msra.mxu0 0.0
        %2695 = vmatprep.subr.mxu0 0.0
        %2696 = vmatpush2.msra.mxu0 0.0
        %2697 = vmatprep.subr.mxu0 0.0
        %2698 = vmatpush2.msra.mxu0 0.0
        %2699 = vmatprep.subr.mxu0 0.0
        %2700 = vmatpush2.msra.mxu0 0.0
        %2701 = vmatprep.subr.mxu0 0.0
        %2702 = vmatpush2.msra.mxu0 0.0
        %2703 = vmatprep.subr.mxu0 0.0
        %2704 = vmatpush2.msra.mxu0 0.0
        %2705 = vmatprep.subr.mxu0 0.0
        %2706 = vmatpush2.msra.mxu0 0.0
        %2707 = vmatprep.subr.mxu0 0.0
        %2708 = vmatpush2.msra.mxu0 0.0
        %2709 = vmatprep.subr.mxu0 0.0
        %2710 = vmatpush2.msra.mxu0 0.0
        %2711 = vmatprep.subr.mxu0 0.0
        %2712 = vmatpush2.msra.mxu0 0.0
        %2713 = vmatprep.subr.mxu0 0.0
        %2714 = vmatpush2.msra.mxu0 0.0
        %2715 = vmatprep.subr.mxu0 0.0
        %2716 = vmatpush2.msra.mxu0 0.0
        %2717 = vmatprep.subr.mxu0 0.0
        %2718 = vmatpush2.msra.mxu0 0.0
        %2719 = vmatprep.subr.mxu0 0.0
        %2720 = vmatpush2.msra.mxu0 %v905
        %2721 = vmatprep.subr.mxu0 0.0
        %2722 = vmatpush2.msra.mxu0 %v904
        %2723 = vmatprep.mubr.f32.mxu0 %v2654
        %2724 = vmatmul.mubr.f32.gmra.mxu0 %v496
        %v2725 = vpop.f32.mrf.mxu0
        %v2726 = vadd.f32 0.0, %v2725
        %v2727 = vpop.f32.mrf.mxu0
        %2728 = vmatprep.mubr.f32.mxu0 %v2657
        %2729 = vmatmul.mubr.f32.gmra.mxu0 %v498
        %v2730 = vpop.f32.mrf.mxu0
        %v2731 = vadd.f32 0.0, %v2730
        %v2732 = vpop.f32.mrf.mxu0
        %2733 = vdwg.mxu0
        %v2735 = vsel %vm1032, %v501, 0
        %v2738 = vsel %vm1032, %v503, 0
        %2740 = vmatprep.subr.mxu0 0.0
        %2741 = vmatpush1.msra.mxu0 %v921
        %2742 = vmatprep.subr.mxu0 0.0
        %2743 = vmatpush1.msra.mxu0 %v920
        %2744 = vmatprep.subr.mxu0 0.0
        %2745 = vmatpush1.msra.mxu0 %v919
        %2746 = vmatprep.subr.mxu0 0.0
        %2747 = vmatpush1.msra.mxu0 %v918
        %2748 = vmatprep.subr.mxu0 0.0
        %2749 = vmatpush1.msra.mxu0 %v917
        %2750 = vmatprep.subr.mxu0 0.0
        %2751 = vmatpush1.msra.mxu0 %v916
        %2752 = vmatprep.subr.mxu0 0.0
        %2753 = vmatpush1.msra.mxu0 %v915
        %2754 = vmatprep.subr.mxu0 0.0
        %2755 = vmatpush1.msra.mxu0 %v914
        %2756 = vmatprep.subr.mxu0 0.0
        %2757 = vmatpush1.msra.mxu0 %v913
        %2758 = vmatprep.subr.mxu0 0.0
        %2759 = vmatpush1.msra.mxu0 %v912
        %2760 = vmatprep.subr.mxu0 0.0
        %2761 = vmatpush1.msra.mxu0 %v911
        %2762 = vmatprep.subr.mxu0 0.0
        %2763 = vmatpush1.msra.mxu0 %v910
        %2764 = vmatprep.subr.mxu0 0.0
        %2765 = vmatpush1.msra.mxu0 %v909
        %2766 = vmatprep.subr.mxu0 0.0
        %2767 = vmatpush1.msra.mxu0 %v908
        %2768 = vmatprep.subr.mxu0 0.0
        %2769 = vmatpush1.msra.mxu0 %v907
        %2770 = vmatprep.subr.mxu0 0.0
        %2771 = vmatpush1.msra.mxu0 %v906
        %2772 = vmatprep.subr.mxu0 0.0
        %2773 = vmatpush2.msra.mxu0 0.0
        %2774 = vmatprep.subr.mxu0 0.0
        %2775 = vmatpush2.msra.mxu0 0.0
        %2776 = vmatprep.subr.mxu0 0.0
        %2777 = vmatpush2.msra.mxu0 0.0
        %2778 = vmatprep.subr.mxu0 0.0
        %2779 = vmatpush2.msra.mxu0 0.0
        %2780 = vmatprep.subr.mxu0 0.0
        %2781 = vmatpush2.msra.mxu0 0.0
        %2782 = vmatprep.subr.mxu0 0.0
        %2783 = vmatpush2.msra.mxu0 0.0
        %2784 = vmatprep.subr.mxu0 0.0
        %2785 = vmatpush2.msra.mxu0 0.0
        %2786 = vmatprep.subr.mxu0 0.0
        %2787 = vmatpush2.msra.mxu0 0.0
        %2788 = vmatprep.subr.mxu0 0.0
        %2789 = vmatpush2.msra.mxu0 0.0
        %2790 = vmatprep.subr.mxu0 0.0
        %2791 = vmatpush2.msra.mxu0 0.0
        %2792 = vmatprep.subr.mxu0 0.0
        %2793 = vmatpush2.msra.mxu0 0.0
        %2794 = vmatprep.subr.mxu0 0.0
        %2795 = vmatpush2.msra.mxu0 0.0
        %2796 = vmatprep.subr.mxu0 0.0
        %2797 = vmatpush2.msra.mxu0 0.0
        %2798 = vmatprep.subr.mxu0 0.0
        %2799 = vmatpush2.msra.mxu0 0.0
        %2800 = vmatprep.subr.mxu0 0.0
        %2801 = vmatpush2.msra.mxu0 %v923
        %2802 = vmatprep.subr.mxu0 0.0
        %2803 = vmatpush2.msra.mxu0 %v922
        %2804 = vmatprep.mubr.f32.mxu0 %v2735
        %2805 = vmatmul.mubr.f32.gmra.mxu0 %v500
        %v2806 = vpop.f32.mrf.mxu0
        %v2807 = vadd.f32 0.0, %v2806
        %v2808 = vpop.f32.mrf.mxu0
        %2809 = vmatprep.mubr.f32.mxu0 %v2738
        %2810 = vmatmul.mubr.f32.gmra.mxu0 %v502
        %v2811 = vpop.f32.mrf.mxu0
        %v2812 = vadd.f32 0.0, %v2811
        %v2813 = vpop.f32.mrf.mxu0
        %2814 = vdwg.mxu0
        %v2816 = vsel %vm1032, %v505, 0
        %v2819 = vsel %vm1032, %v507, 0
        %2821 = vmatprep.subr.mxu0 0.0
        %2822 = vmatpush1.msra.mxu0 %v939
        %2823 = vmatprep.subr.mxu0 0.0
        %2824 = vmatpush1.msra.mxu0 %v938
        %2825 = vmatprep.subr.mxu0 0.0
        %2826 = vmatpush1.msra.mxu0 %v937
        %2827 = vmatprep.subr.mxu0 0.0
        %2828 = vmatpush1.msra.mxu0 %v936
        %2829 = vmatprep.subr.mxu0 0.0
        %2830 = vmatpush1.msra.mxu0 %v935
        %2831 = vmatprep.subr.mxu0 0.0
        %2832 = vmatpush1.msra.mxu0 %v934
        %2833 = vmatprep.subr.mxu0 0.0
        %2834 = vmatpush1.msra.mxu0 %v933
        %2835 = vmatprep.subr.mxu0 0.0
        %2836 = vmatpush1.msra.mxu0 %v932
        %2837 = vmatprep.subr.mxu0 0.0
        %2838 = vmatpush1.msra.mxu0 %v931
        %2839 = vmatprep.subr.mxu0 0.0
        %2840 = vmatpush1.msra.mxu0 %v930
        %2841 = vmatprep.subr.mxu0 0.0
        %2842 = vmatpush1.msra.mxu0 %v929
        %2843 = vmatprep.subr.mxu0 0.0
        %2844 = vmatpush1.msra.mxu0 %v928
        %2845 = vmatprep.subr.mxu0 0.0
        %2846 = vmatpush1.msra.mxu0 %v927
        %2847 = vmatprep.subr.mxu0 0.0
        %2848 = vmatpush1.msra.mxu0 %v926
        %2849 = vmatprep.subr.mxu0 0.0
        %2850 = vmatpush1.msra.mxu0 %v925
        %2851 = vmatprep.subr.mxu0 0.0
        %2852 = vmatpush1.msra.mxu0 %v924
        %2853 = vmatprep.subr.mxu0 0.0
        %2854 = vmatpush2.msra.mxu0 0.0
        %2855 = vmatprep.subr.mxu0 0.0
        %2856 = vmatpush2.msra.mxu0 0.0
        %2857 = vmatprep.subr.mxu0 0.0
        %2858 = vmatpush2.msra.mxu0 0.0
        %2859 = vmatprep.subr.mxu0 0.0
        %2860 = vmatpush2.msra.mxu0 0.0
        %2861 = vmatprep.subr.mxu0 0.0
        %2862 = vmatpush2.msra.mxu0 0.0
        %2863 = vmatprep.subr.mxu0 0.0
        %2864 = vmatpush2.msra.mxu0 0.0
        %2865 = vmatprep.subr.mxu0 0.0
        %2866 = vmatpush2.msra.mxu0 0.0
        %2867 = vmatprep.subr.mxu0 0.0
        %2868 = vmatpush2.msra.mxu0 0.0
        %2869 = vmatprep.subr.mxu0 0.0
        %2870 = vmatpush2.msra.mxu0 0.0
        %2871 = vmatprep.subr.mxu0 0.0
        %2872 = vmatpush2.msra.mxu0 0.0
        %2873 = vmatprep.subr.mxu0 0.0
        %2874 = vmatpush2.msra.mxu0 0.0
        %2875 = vmatprep.subr.mxu0 0.0
        %2876 = vmatpush2.msra.mxu0 0.0
        %2877 = vmatprep.subr.mxu0 0.0
        %2878 = vmatpush2.msra.mxu0 0.0
        %2879 = vmatprep.subr.mxu0 0.0
        %2880 = vmatpush2.msra.mxu0 0.0
        %2881 = vmatprep.subr.mxu0 0.0
        %2882 = vmatpush2.msra.mxu0 %v941
        %2883 = vmatprep.subr.mxu0 0.0
        %2884 = vmatpush2.msra.mxu0 %v940
        %2885 = vmatprep.mubr.f32.mxu0 %v2816
        %2886 = vmatmul.mubr.f32.gmra.mxu0 %v504
        %v2887 = vpop.f32.mrf.mxu0
        %v2888 = vadd.f32 0.0, %v2887
        %v2889 = vpop.f32.mrf.mxu0
        %2890 = vmatprep.mubr.f32.mxu0 %v2819
        %2891 = vmatmul.mubr.f32.gmra.mxu0 %v506
        %v2892 = vpop.f32.mrf.mxu0
        %v2893 = vadd.f32 0.0, %v2892
        %v2894 = vpop.f32.mrf.mxu0
        %2895 = vdwg.mxu0
        %v2897 = vsel %vm1032, %v509, 0
        %v2900 = vsel %vm1032, %v511, 0
        %2902 = vmatprep.subr.mxu0 0.0
        %2903 = vmatpush1.msra.mxu0 %v957
        %2904 = vmatprep.subr.mxu0 0.0
        %2905 = vmatpush1.msra.mxu0 %v956
        %2906 = vmatprep.subr.mxu0 0.0
        %2907 = vmatpush1.msra.mxu0 %v955
        %2908 = vmatprep.subr.mxu0 0.0
        %2909 = vmatpush1.msra.mxu0 %v954
        %2910 = vmatprep.subr.mxu0 0.0
        %2911 = vmatpush1.msra.mxu0 %v953
        %2912 = vmatprep.subr.mxu0 0.0
        %2913 = vmatpush1.msra.mxu0 %v952
        %2914 = vmatprep.subr.mxu0 0.0
        %2915 = vmatpush1.msra.mxu0 %v951
        %2916 = vmatprep.subr.mxu0 0.0
        %2917 = vmatpush1.msra.mxu0 %v950
        %2918 = vmatprep.subr.mxu0 0.0
        %2919 = vmatpush1.msra.mxu0 %v949
        %2920 = vmatprep.subr.mxu0 0.0
        %2921 = vmatpush1.msra.mxu0 %v948
        %2922 = vmatprep.subr.mxu0 0.0
        %2923 = vmatpush1.msra.mxu0 %v947
        %2924 = vmatprep.subr.mxu0 0.0
        %2925 = vmatpush1.msra.mxu0 %v946
        %2926 = vmatprep.subr.mxu0 0.0
        %2927 = vmatpush1.msra.mxu0 %v945
        %2928 = vmatprep.subr.mxu0 0.0
        %2929 = vmatpush1.msra.mxu0 %v944
        %2930 = vmatprep.subr.mxu0 0.0
        %2931 = vmatpush1.msra.mxu0 %v943
        %2932 = vmatprep.subr.mxu0 0.0
        %2933 = vmatpush1.msra.mxu0 %v942
        %2934 = vmatprep.subr.mxu0 0.0
        %2935 = vmatpush2.msra.mxu0 0.0
        %2936 = vmatprep.subr.mxu0 0.0
        %2937 = vmatpush2.msra.mxu0 0.0
        %2938 = vmatprep.subr.mxu0 0.0
        %2939 = vmatpush2.msra.mxu0 0.0
        %2940 = vmatprep.subr.mxu0 0.0
        %2941 = vmatpush2.msra.mxu0 0.0
        %2942 = vmatprep.subr.mxu0 0.0
        %2943 = vmatpush2.msra.mxu0 0.0
        %2944 = vmatprep.subr.mxu0 0.0
        %2945 = vmatpush2.msra.mxu0 0.0
        %2946 = vmatprep.subr.mxu0 0.0
        %2947 = vmatpush2.msra.mxu0 0.0
        %2948 = vmatprep.subr.mxu0 0.0
        %2949 = vmatpush2.msra.mxu0 0.0
        %2950 = vmatprep.subr.mxu0 0.0
        %2951 = vmatpush2.msra.mxu0 0.0
        %2952 = vmatprep.subr.mxu0 0.0
        %2953 = vmatpush2.msra.mxu0 0.0
        %2954 = vmatprep.subr.mxu0 0.0
        %2955 = vmatpush2.msra.mxu0 0.0
        %2956 = vmatprep.subr.mxu0 0.0
        %2957 = vmatpush2.msra.mxu0 0.0
        %2958 = vmatprep.subr.mxu0 0.0
        %2959 = vmatpush2.msra.mxu0 0.0
        %2960 = vmatprep.subr.mxu0 0.0
        %2961 = vmatpush2.msra.mxu0 0.0
        %2962 = vmatprep.subr.mxu0 0.0
        %2963 = vmatpush2.msra.mxu0 %v959
        %2964 = vmatprep.subr.mxu0 0.0
        %2965 = vmatpush2.msra.mxu0 %v958
        %2966 = vmatprep.mubr.f32.mxu0 %v2897
        %2967 = vmatmul.mubr.f32.gmra.mxu0 %v508
        %v2968 = vpop.f32.mrf.mxu0
        %v2969 = vadd.f32 0.0, %v2968
        %v2970 = vpop.f32.mrf.mxu0
        %2971 = vmatprep.mubr.f32.mxu0 %v2900
        %2972 = vmatmul.mubr.f32.gmra.mxu0 %v510
        %v2973 = vpop.f32.mrf.mxu0
        %v2974 = vadd.f32 0.0, %v2973
        %v2975 = vpop.f32.mrf.mxu0
        %2976 = vdwg.mxu0
        %v2978 = vsel %vm1032, %v513, 0
        %v2981 = vsel %vm1032, %v515, 0
        %2983 = vmatprep.subr.mxu0 0.0
        %2984 = vmatpush1.msra.mxu0 %v975
        %2985 = vmatprep.subr.mxu0 0.0
        %2986 = vmatpush1.msra.mxu0 %v974
        %2987 = vmatprep.subr.mxu0 0.0
        %2988 = vmatpush1.msra.mxu0 %v973
        %2989 = vmatprep.subr.mxu0 0.0
        %2990 = vmatpush1.msra.mxu0 %v972
        %2991 = vmatprep.subr.mxu0 0.0
        %2992 = vmatpush1.msra.mxu0 %v971
        %2993 = vmatprep.subr.mxu0 0.0
        %2994 = vmatpush1.msra.mxu0 %v970
        %2995 = vmatprep.subr.mxu0 0.0
        %2996 = vmatpush1.msra.mxu0 %v969
        %2997 = vmatprep.subr.mxu0 0.0
        %2998 = vmatpush1.msra.mxu0 %v968
        %2999 = vmatprep.subr.mxu0 0.0
        %3000 = vmatpush1.msra.mxu0 %v967
        %3001 = vmatprep.subr.mxu0 0.0
        %3002 = vmatpush1.msra.mxu0 %v966
        %3003 = vmatprep.subr.mxu0 0.0
        %3004 = vmatpush1.msra.mxu0 %v965
        %3005 = vmatprep.subr.mxu0 0.0
        %3006 = vmatpush1.msra.mxu0 %v964
        %3007 = vmatprep.subr.mxu0 0.0
        %3008 = vmatpush1.msra.mxu0 %v963
        %3009 = vmatprep.subr.mxu0 0.0
        %3010 = vmatpush1.msra.mxu0 %v962
        %3011 = vmatprep.subr.mxu0 0.0
        %3012 = vmatpush1.msra.mxu0 %v961
        %3013 = vmatprep.subr.mxu0 0.0
        %3014 = vmatpush1.msra.mxu0 %v960
        %3015 = vmatprep.subr.mxu0 0.0
        %3016 = vmatpush2.msra.mxu0 0.0
        %3017 = vmatprep.subr.mxu0 0.0
        %3018 = vmatpush2.msra.mxu0 0.0
        %3019 = vmatprep.subr.mxu0 0.0
        %3020 = vmatpush2.msra.mxu0 0.0
        %3021 = vmatprep.subr.mxu0 0.0
        %3022 = vmatpush2.msra.mxu0 0.0
        %3023 = vmatprep.subr.mxu0 0.0
        %3024 = vmatpush2.msra.mxu0 0.0
        %3025 = vmatprep.subr.mxu0 0.0
        %3026 = vmatpush2.msra.mxu0 0.0
        %3027 = vmatprep.subr.mxu0 0.0
        %3028 = vmatpush2.msra.mxu0 0.0
        %3029 = vmatprep.subr.mxu0 0.0
        %3030 = vmatpush2.msra.mxu0 0.0
        %3031 = vmatprep.subr.mxu0 0.0
        %3032 = vmatpush2.msra.mxu0 0.0
        %3033 = vmatprep.subr.mxu0 0.0
        %3034 = vmatpush2.msra.mxu0 0.0
        %3035 = vmatprep.subr.mxu0 0.0
        %3036 = vmatpush2.msra.mxu0 0.0
        %3037 = vmatprep.subr.mxu0 0.0
        %3038 = vmatpush2.msra.mxu0 0.0
        %3039 = vmatprep.subr.mxu0 0.0
        %3040 = vmatpush2.msra.mxu0 0.0
        %3041 = vmatprep.subr.mxu0 0.0
        %3042 = vmatpush2.msra.mxu0 0.0
        %3043 = vmatprep.subr.mxu0 0.0
        %3044 = vmatpush2.msra.mxu0 %v977
        %3045 = vmatprep.subr.mxu0 0.0
        %3046 = vmatpush2.msra.mxu0 %v976
        %3047 = vmatprep.mubr.f32.mxu0 %v2978
        %3048 = vmatmul.mubr.f32.gmra.mxu0 %v512
        %v3049 = vpop.f32.mrf.mxu0
        %v3050 = vadd.f32 0.0, %v3049
        %v3051 = vpop.f32.mrf.mxu0
        %3052 = vmatprep.mubr.f32.mxu0 %v2981
        %3053 = vmatmul.mubr.f32.gmra.mxu0 %v514
        %v3054 = vpop.f32.mrf.mxu0
        %v3055 = vadd.f32 0.0, %v3054
        %v3056 = vpop.f32.mrf.mxu0
        %3057 = vdwg.mxu0
        %v3059 = vsel %vm1032, %v517, 0
        %v3062 = vsel %vm1032, %v519, 0
        %3064 = vmatprep.subr.mxu0 0.0
        %3065 = vmatpush1.msra.mxu0 %v993
        %3066 = vmatprep.subr.mxu0 0.0
        %3067 = vmatpush1.msra.mxu0 %v992
        %3068 = vmatprep.subr.mxu0 0.0
        %3069 = vmatpush1.msra.mxu0 %v991
        %3070 = vmatprep.subr.mxu0 0.0
        %3071 = vmatpush1.msra.mxu0 %v990
        %3072 = vmatprep.subr.mxu0 0.0
        %3073 = vmatpush1.msra.mxu0 %v989
        %3074 = vmatprep.subr.mxu0 0.0
        %3075 = vmatpush1.msra.mxu0 %v988
        %3076 = vmatprep.subr.mxu0 0.0
        %3077 = vmatpush1.msra.mxu0 %v987
        %3078 = vmatprep.subr.mxu0 0.0
        %3079 = vmatpush1.msra.mxu0 %v986
        %3080 = vmatprep.subr.mxu0 0.0
        %3081 = vmatpush1.msra.mxu0 %v985
        %3082 = vmatprep.subr.mxu0 0.0
        %3083 = vmatpush1.msra.mxu0 %v984
        %3084 = vmatprep.subr.mxu0 0.0
        %3085 = vmatpush1.msra.mxu0 %v983
        %3086 = vmatprep.subr.mxu0 0.0
        %3087 = vmatpush1.msra.mxu0 %v982
        %3088 = vmatprep.subr.mxu0 0.0
        %3089 = vmatpush1.msra.mxu0 %v981
        %3090 = vmatprep.subr.mxu0 0.0
        %3091 = vmatpush1.msra.mxu0 %v980
        %3092 = vmatprep.subr.mxu0 0.0
        %3093 = vmatpush1.msra.mxu0 %v979
        %3094 = vmatprep.subr.mxu0 0.0
        %3095 = vmatpush1.msra.mxu0 %v978
        %3096 = vmatprep.subr.mxu0 0.0
        %3097 = vmatpush2.msra.mxu0 0.0
        %3098 = vmatprep.subr.mxu0 0.0
        %3099 = vmatpush2.msra.mxu0 0.0
        %3100 = vmatprep.subr.mxu0 0.0
        %3101 = vmatpush2.msra.mxu0 0.0
        %3102 = vmatprep.subr.mxu0 0.0
        %3103 = vmatpush2.msra.mxu0 0.0
        %3104 = vmatprep.subr.mxu0 0.0
        %3105 = vmatpush2.msra.mxu0 0.0
        %3106 = vmatprep.subr.mxu0 0.0
        %3107 = vmatpush2.msra.mxu0 0.0
        %3108 = vmatprep.subr.mxu0 0.0
        %3109 = vmatpush2.msra.mxu0 0.0
        %3110 = vmatprep.subr.mxu0 0.0
        %3111 = vmatpush2.msra.mxu0 0.0
        %3112 = vmatprep.subr.mxu0 0.0
        %3113 = vmatpush2.msra.mxu0 0.0
        %3114 = vmatprep.subr.mxu0 0.0
        %3115 = vmatpush2.msra.mxu0 0.0
        %3116 = vmatprep.subr.mxu0 0.0
        %3117 = vmatpush2.msra.mxu0 0.0
        %3118 = vmatprep.subr.mxu0 0.0
        %3119 = vmatpush2.msra.mxu0 0.0
        %3120 = vmatprep.subr.mxu0 0.0
        %3121 = vmatpush2.msra.mxu0 0.0
        %3122 = vmatprep.subr.mxu0 0.0
        %3123 = vmatpush2.msra.mxu0 0.0
        %3124 = vmatprep.subr.mxu0 0.0
        %3125 = vmatpush2.msra.mxu0 %v995
        %3126 = vmatprep.subr.mxu0 0.0
        %3127 = vmatpush2.msra.mxu0 %v994
        %3128 = vmatprep.mubr.f32.mxu0 %v3059
        %3129 = vmatmul.mubr.f32.gmra.mxu0 %v516
        %v3130 = vpop.f32.mrf.mxu0
        %v3131 = vadd.f32 0.0, %v3130
        %v3132 = vpop.f32.mrf.mxu0
        %3133 = vmatprep.mubr.f32.mxu0 %v3062
        %3134 = vmatmul.mubr.f32.gmra.mxu0 %v518
        %v3135 = vpop.f32.mrf.mxu0
        %v3136 = vadd.f32 0.0, %v3135
        %v3137 = vpop.f32.mrf.mxu0
        %3138 = vdwg.mxu0
        %v3140 = vsel %vm1032, %v521, 0
        %v3143 = vsel %vm1032, %v523, 0
        %3145 = vmatprep.subr.mxu0 0.0
        %3146 = vmatpush1.msra.mxu0 %v1011
        %3147 = vmatprep.subr.mxu0 0.0
        %3148 = vmatpush1.msra.mxu0 %v1010
        %3149 = vmatprep.subr.mxu0 0.0
        %3150 = vmatpush1.msra.mxu0 %v1009
        %3151 = vmatprep.subr.mxu0 0.0
        %3152 = vmatpush1.msra.mxu0 %v1008
        %3153 = vmatprep.subr.mxu0 0.0
        %3154 = vmatpush1.msra.mxu0 %v1007
        %3155 = vmatprep.subr.mxu0 0.0
        %3156 = vmatpush1.msra.mxu0 %v1006
        %3157 = vmatprep.subr.mxu0 0.0
        %3158 = vmatpush1.msra.mxu0 %v1005
        %3159 = vmatprep.subr.mxu0 0.0
        %3160 = vmatpush1.msra.mxu0 %v1004
        %3161 = vmatprep.subr.mxu0 0.0
        %3162 = vmatpush1.msra.mxu0 %v1003
        %3163 = vmatprep.subr.mxu0 0.0
        %3164 = vmatpush1.msra.mxu0 %v1002
        %3165 = vmatprep.subr.mxu0 0.0
        %3166 = vmatpush1.msra.mxu0 %v1001
        %3167 = vmatprep.subr.mxu0 0.0
        %3168 = vmatpush1.msra.mxu0 %v1000
        %3169 = vmatprep.subr.mxu0 0.0
        %3170 = vmatpush1.msra.mxu0 %v999
        %3171 = vmatprep.subr.mxu0 0.0
        %3172 = vmatpush1.msra.mxu0 %v998
        %3173 = vmatprep.subr.mxu0 0.0
        %3174 = vmatpush1.msra.mxu0 %v997
        %3175 = vmatprep.subr.mxu0 0.0
        %3176 = vmatpush1.msra.mxu0 %v996
        %3177 = vmatprep.subr.mxu0 0.0
        %3178 = vmatpush2.msra.mxu0 0.0
        %3179 = vmatprep.subr.mxu0 0.0
        %3180 = vmatpush2.msra.mxu0 0.0
        %3181 = vmatprep.subr.mxu0 0.0
        %3182 = vmatpush2.msra.mxu0 0.0
        %3183 = vmatprep.subr.mxu0 0.0
        %3184 = vmatpush2.msra.mxu0 0.0
        %3185 = vmatprep.subr.mxu0 0.0
        %3186 = vmatpush2.msra.mxu0 0.0
        %3187 = vmatprep.subr.mxu0 0.0
        %3188 = vmatpush2.msra.mxu0 0.0
        %3189 = vmatprep.subr.mxu0 0.0
        %3190 = vmatpush2.msra.mxu0 0.0
        %3191 = vmatprep.subr.mxu0 0.0
        %3192 = vmatpush2.msra.mxu0 0.0
        %3193 = vmatprep.subr.mxu0 0.0
        %3194 = vmatpush2.msra.mxu0 0.0
        %3195 = vmatprep.subr.mxu0 0.0
        %3196 = vmatpush2.msra.mxu0 0.0
        %3197 = vmatprep.subr.mxu0 0.0
        %3198 = vmatpush2.msra.mxu0 0.0
        %3199 = vmatprep.subr.mxu0 0.0
        %3200 = vmatpush2.msra.mxu0 0.0
        %3201 = vmatprep.subr.mxu0 0.0
        %3202 = vmatpush2.msra.mxu0 0.0
        %3203 = vmatprep.subr.mxu0 0.0
        %3204 = vmatpush2.msra.mxu0 0.0
        %3205 = vmatprep.subr.mxu0 0.0
        %3206 = vmatpush2.msra.mxu0 %v1013
        %3207 = vmatprep.subr.mxu0 0.0
        %3208 = vmatpush2.msra.mxu0 %v1012
        %3209 = vmatprep.mubr.f32.mxu0 %v3140
        %3210 = vmatmul.mubr.f32.gmra.mxu0 %v520
        %v3211 = vpop.f32.mrf.mxu0
        %v3212 = vadd.f32 0.0, %v3211
        %v3213 = vpop.f32.mrf.mxu0
        %3214 = vmatprep.mubr.f32.mxu0 %v3143
        %3215 = vmatmul.mubr.f32.gmra.mxu0 %v522
        %v3216 = vpop.f32.mrf.mxu0
        %v3217 = vadd.f32 0.0, %v3216
        %v3218 = vpop.f32.mrf.mxu0
        %3219 = vdwg.mxu0
        %v3221 = vsel %vm1032, %v525, 0
        %v3224 = vsel %vm1032, %v527, 0
        %3226 = vmatprep.subr.mxu0 0.0
        %3227 = vmatpush1.msra.mxu0 %v1029
        %3228 = vmatprep.subr.mxu0 0.0
        %3229 = vmatpush1.msra.mxu0 %v1028
        %3230 = vmatprep.subr.mxu0 0.0
        %3231 = vmatpush1.msra.mxu0 %v1027
        %3232 = vmatprep.subr.mxu0 0.0
        %3233 = vmatpush1.msra.mxu0 %v1026
        %3234 = vmatprep.subr.mxu0 0.0
        %3235 = vmatpush1.msra.mxu0 %v1025
        %3236 = vmatprep.subr.mxu0 0.0
        %3237 = vmatpush1.msra.mxu0 %v1024
        %3238 = vmatprep.subr.mxu0 0.0
        %3239 = vmatpush1.msra.mxu0 %v1023
        %3240 = vmatprep.subr.mxu0 0.0
        %3241 = vmatpush1.msra.mxu0 %v1022
        %3242 = vmatprep.subr.mxu0 0.0
        %3243 = vmatpush1.msra.mxu0 %v1021
        %3244 = vmatprep.subr.mxu0 0.0
        %3245 = vmatpush1.msra.mxu0 %v1020
        %3246 = vmatprep.subr.mxu0 0.0
        %3247 = vmatpush1.msra.mxu0 %v1019
        %3248 = vmatprep.subr.mxu0 0.0
        %3249 = vmatpush1.msra.mxu0 %v1018
        %3250 = vmatprep.subr.mxu0 0.0
        %3251 = vmatpush1.msra.mxu0 %v1017
        %3252 = vmatprep.subr.mxu0 0.0
        %3253 = vmatpush1.msra.mxu0 %v1016
        %3254 = vmatprep.subr.mxu0 0.0
        %3255 = vmatpush1.msra.mxu0 %v1015
        %3256 = vmatprep.subr.mxu0 0.0
        %3257 = vmatpush1.msra.mxu0 %v1014
        %3258 = vmatprep.subr.mxu0 0.0
        %3259 = vmatpush2.msra.mxu0 0.0
        %3260 = vmatprep.subr.mxu0 0.0
        %3261 = vmatpush2.msra.mxu0 0.0
        %3262 = vmatprep.subr.mxu0 0.0
        %3263 = vmatpush2.msra.mxu0 0.0
        %3264 = vmatprep.subr.mxu0 0.0
        %3265 = vmatpush2.msra.mxu0 0.0
        %3266 = vmatprep.subr.mxu0 0.0
        %3267 = vmatpush2.msra.mxu0 0.0
        %3268 = vmatprep.subr.mxu0 0.0
        %3269 = vmatpush2.msra.mxu0 0.0
        %3270 = vmatprep.subr.mxu0 0.0
        %3271 = vmatpush2.msra.mxu0 0.0
        %3272 = vmatprep.subr.mxu0 0.0
        %3273 = vmatpush2.msra.mxu0 0.0
        %3274 = vmatprep.subr.mxu0 0.0
        %3275 = vmatpush2.msra.mxu0 0.0
        %3276 = vmatprep.subr.mxu0 0.0
        %3277 = vmatpush2.msra.mxu0 0.0
        %3278 = vmatprep.subr.mxu0 0.0
        %3279 = vmatpush2.msra.mxu0 0.0
        %3280 = vmatprep.subr.mxu0 0.0
        %3281 = vmatpush2.msra.mxu0 0.0
        %3282 = vmatprep.subr.mxu0 0.0
        %3283 = vmatpush2.msra.mxu0 0.0
        %3284 = vmatprep.subr.mxu0 0.0
        %3285 = vmatpush2.msra.mxu0 0.0
        %3286 = vmatprep.subr.mxu0 0.0
        %3287 = vmatpush2.msra.mxu0 %v1031
        %3288 = vmatprep.subr.mxu0 0.0
        %3289 = vmatpush2.msra.mxu0 %v1030
        %3290 = vmatprep.mubr.f32.mxu0 %v3221
        %3291 = vmatmul.mubr.f32.gmra.mxu0 %v524
        %v3292 = vpop.f32.mrf.mxu0
        %v3293 = vadd.f32 0.0, %v3292
        %v3294 = vpop.f32.mrf.mxu0
        %3295 = vmatprep.mubr.f32.mxu0 %v3224
        %3296 = vmatmul.mubr.f32.gmra.mxu0 %v526
        %v3297 = vpop.f32.mrf.mxu0
        %v3298 = vadd.f32 0.0, %v3297
        %v3299 = vpop.f32.mrf.mxu0
        %3300 = vdwg.mxu0
        %v3301 = vadd.f32 %v1106, %v1187
        %v3302 = vadd.f32 %v3301, %v1268
        %v3303 = vadd.f32 %v3302, %v1349
        %v3304 = vadd.f32 %v3303, %v1430
        %v3305 = vadd.f32 %v3304, %v1511
        %v3306 = vadd.f32 %v3305, %v1592
        %v3307 = vadd.f32 %v3306, %v1673
        %v3308 = vadd.f32 %v3307, %v1754
        %v3309 = vadd.f32 %v3308, %v1835
        %v3310 = vadd.f32 %v3309, %v1916
        %v3311 = vadd.f32 %v3310, %v1997
        %v3312 = vadd.f32 %v3311, %v2078
        %v3313 = vadd.f32 %v3312, %v2159
        %v3314 = vadd.f32 %v3313, %v2240
        %v3315 = vadd.f32 %v3314, %v2321
        %v3316 = vadd.f32 %v3315, %v2402
        %v3317 = vadd.f32 %v3316, %v2483
        %v3318 = vadd.f32 %v3317, %v2564
        %v3319 = vadd.f32 %v3318, %v2645
        %v3320 = vadd.f32 %v3319, %v2726
        %v3321 = vadd.f32 %v3320, %v2807
        %v3322 = vadd.f32 %v3321, %v2888
        %v3323 = vadd.f32 %v3322, %v2969
        %v3324 = vadd.f32 %v3323, %v3050
        %v3325 = vadd.f32 %v3324, %v3131
        %v3326 = vadd.f32 %v3325, %v3212
        %v3327 = vadd.f32 %v3326, %v3293
        %v3328 = vadd.f32 %v1111, %v1192
        %v3329 = vadd.f32 %v3328, %v1273
        %v3330 = vadd.f32 %v3329, %v1354
        %v3331 = vadd.f32 %v3330, %v1435
        %v3332 = vadd.f32 %v3331, %v1516
        %v3333 = vadd.f32 %v3332, %v1597
        %v3334 = vadd.f32 %v3333, %v1678
        %v3335 = vadd.f32 %v3334, %v1759
        %v3336 = vadd.f32 %v3335, %v1840
        %v3337 = vadd.f32 %v3336, %v1921
        %v3338 = vadd.f32 %v3337, %v2002
        %v3339 = vadd.f32 %v3338, %v2083
        %v3340 = vadd.f32 %v3339, %v2164
        %v3341 = vadd.f32 %v3340, %v2245
        %v3342 = vadd.f32 %v3341, %v2326
        %v3343 = vadd.f32 %v3342, %v2407
        %v3344 = vadd.f32 %v3343, %v2488
        %v3345 = vadd.f32 %v3344, %v2569
        %v3346 = vadd.f32 %v3345, %v2650
        %v3347 = vadd.f32 %v3346, %v2731
        %v3348 = vadd.f32 %v3347, %v2812
        %v3349 = vadd.f32 %v3348, %v2893
        %v3350 = vadd.f32 %v3349, %v2974
        %v3351 = vadd.f32 %v3350, %v3055
        %v3352 = vadd.f32 %v3351, %v3136
        %v3353 = vadd.f32 %v3352, %v3217
        %v3354 = vadd.f32 %v3353, %v3298
        %v3355 = vld [vmem:[%s2] sm:$0x1]
        %v3357 = vlaneseq
        %v3358 = vshrl.u32 %v3357, 7
        %v3359 = vsub.s32 0, %v3358
        %v3360 = vrot.slane %v3355, %v3359
        %v3362 = vadd.f32 %v3327, %v3360
        %v3363 = vadd.f32 %v3354, %v3360
        %3364 = vmax.xlane.f32.xlu0 %v3362
        %v3365 = vpop.xlane.xlu0 %3364
        %3366 = vmax.xlane.f32.xlu0 %v3363
        %v3367 = vpop.xlane.xlu0 %3366
        %v3368 = vsub.f32 %v3362, %v3365
        %v3369 = vsub.f32 %v3363, %v3367
        %v3370 = vmul.f32 %v3368, 1.442695
        %v3371 = vpow.pop %v3370
        %v3372 = vmul.f32 %v3369, 1.442695
        %v3373 = vpow.pop %v3372
        %3374 = vadd.xlane.f32.xlu0 %v3371
        %v3375 = vpop.xlane.xlu0 %3374
        %3376 = vadd.xlane.f32.xlu0 %v3373
        %v3377 = vpop.xlane.xlu0 %3376
        %v3378 = vlog2.pop %v3375
        %v3379 = vmul.f32 %v3378, 0.6931472
        %v3380 = vlog2.pop %v3377
        %v3381 = vmul.f32 %v3380, 0.6931472
        %v3382 = vsub.f32 %v3368, %v3379
        %v3383 = vsub.f32 %v3369, %v3381
        %3384 = vst [vmem:[%s414] sm:$0xff] %v3382
        %3385 = vst [vmem:[%s414 + $0x8] sm:$0xff] %v3383
        %s3386 = smul.u32 2, %s14
        %p3387 = scmp.lt.s32.totalorder %s3386, 3
        %s3388 = scalar_select %p3387, %s3386, 3
        %s3389 = smul.addr %s3388, 8
        %s3390 = scalar_lea.vmem %s3, %s3389
        // Predicated region
        $region56: #{cnn_model_forward.3} parent=50 // pred_check
          %p3391 = pneg %p100
        $region57: #{cnn_model_forward.3} parent=50 // pred_check_branch
          %3393 = sbr.rel (%p3391) target = $region59
        $region58: #{cnn_model_forward.3} parent=50 // pred_region
          %s3394 = smul.u32 2, %s14
        $region59: #{cnn_model_forward.3} parent=50 // pred_fallthru
          _
      $region51: #{cnn_model_forward.3} parent=5 // pred_fallthru
        _
      %p3395 = scmp.le.s32.totalorder 2, %s9
      // Predicated region
      $region60: #{cnn_model_forward.3} parent=5 // pred_check
        %p3396 = pneg %p3395
      $region61: #{cnn_model_forward.3} parent=5 // pred_check_branch
        %3398 = sbr.rel (%p3396) target = $region63
      $region62: #{cnn_model_forward.3} parent=5 // pred_region
        %s3399 = ssub.s32 %s9, 2
        // Predicated region
        $region64: #{cnn_model_forward.3} parent=62 // pred_check
          %p3400 = pneg %p106
        $region65: #{cnn_model_forward.3} parent=62 // pred_check_branch
          %3402 = sbr.rel (%p3400) target = $region67
        $region66: #{cnn_model_forward.3} parent=62 // pred_region
          %s3403 = smul.u32 2, %s15
          %p3404 = scmp.lt.s32.totalorder %s3403, 3
          %s3405 = scalar_select %p3404, %s3403, 3
          %s3406 = smul.addr %s3405, 8
          %s3407 = scalar_lea.vmem %s3, %s3406
        $region67: #{cnn_model_forward.3} parent=62 // pred_fallthru
          _
      $region63: #{cnn_model_forward.3} parent=5 // pred_fallthru
        _
    $region6: #{cnn_model_forward.3} parent=1 // loop_footer
      %s13 = sadd.s32 1, %s9
    $region7: #{cnn_model_forward.3} parent=1 // loop_footer_branch
      %8 = sbr.rel target = $region3
    $region8: #{cnn_model_forward.3} parent=1 // loop_exit
      _

</llo_original>
